<compile_context>
chip_gen: v7x
topology: tpu7x:2x2x1
jax: 0.10.0
libtpu: 0.0.40
codegen_flags: <defaults>
</compile_context>

<pallas_src>
import functools
import math

import jax
import jax.numpy as jnp
from jax import lax
from jax.experimental import pallas as pl
from jax.experimental.pallas import tpu as pltpu

LANE = 128                     # channel padding unit (vreg lane width)
TM_MAX = 256                   # row tile for the im2col matmul path
VMEM_LIMIT = 16 * 1024 * 1024  # realistic per-kernel budget, valid on v5e/v6e/v7x


def _round_up(a, b):
    return (a + b - 1) // b * b


def _pad_axis(x, n, axis):
    if x.shape[axis] == n:
        return x
    widths = [(0, 0)] * x.ndim
    widths[axis] = (0, n - x.shape[axis])
    return jnp.pad(x, widths)


# --------------------------------------------------------------------------- kernels
def _conv3x3_flat_kernel(*refs, Wp, R, relu, res, proj):
    """3x3 stride-1 conv on a row-flattened padded image + folded-BN epilogue.

    x_ref : (Pf, Cin)      one batch element, spatially zero-padded, rows flattened
                           as p = h * (W+2) + w  (+2 slack rows at the end).
    w_ref : (9, Cin, Cout) taps ordered dy*3+dx.
    o_ref : (R, Cout)      R = H*(W+2); rows with (p mod (W+2)) >= W are garbage and
                           are stripped by the caller.
    Optional: residual r_ref (R, Cr) added after BN, optionally through a fused
    1x1-projection shortcut (wsc, ssc, bsc); final ReLU applied after the add.
    """
    if res and proj:
        x_ref, w_ref, s_ref, b_ref, r_ref, wsc_ref, ssc_ref, bsc_ref, o_ref = refs
    elif res:
        x_ref, w_ref, s_ref, b_ref, r_ref, o_ref = refs
    else:
        x_ref, w_ref, s_ref, b_ref, o_ref = refs

    cout = w_ref.shape[2]
    acc = jnp.zeros((R, cout), jnp.float32)
    for dy in range(3):                      # 9 in-kernel tap shifts, no HBM copies
        for dx in range(3):
            k = dy * Wp + dx
            acc = acc + jnp.dot(x_ref[k:k + R, :], w_ref[dy * 3 + dx],
                                preferred_element_type=jnp.float32)
    y = acc * s_ref[...] + b_ref[...]
    if res:
        if proj:
            sc = jnp.dot(r_ref[...], wsc_ref[...], preferred_element_type=jnp.float32)
            sc = sc * ssc_ref[...] + bsc_ref[...]
        else:
            sc = r_ref[...].astype(jnp.float32)
        y = y + sc
    if relu:
        y = jnp.maximum(y, 0.0)
    o_ref[...] = y.astype(o_ref.dtype)


def _matmul_bn_kernel(x_ref, w_ref, s_ref, b_ref, o_ref, *, relu):
    y = jnp.dot(x_ref[...], w_ref[...], preferred_element_type=jnp.float32)
    y = y * s_ref[...] + b_ref[...]
    if relu:
        y = jnp.maximum(y, 0.0)
    o_ref[...] = y.astype(o_ref.dtype)


# --------------------------------------------------------------------------- wrappers
def conv3x3_bn(x, w9, scale, bias, *, relu, residual=None, proj=None,
               out_dtype=jnp.bfloat16):
    """3x3 conv (stride 1, pad 1) + BN [+ residual / fused 1x1-proj shortcut] [+ ReLU].

    x: (N, H, W, Cp) NHWC channel-padded.  w9: (9, Cp, Coutp).
    residual: (N, H, W, Cr) added after BN (before ReLU); `proj=(wsc, ssc, bsc)`
    runs the residual through a fused 1x1 conv + BN inside the same kernel.
    """
    N, H, W, C = x.shape
    Wp = W + 2
    R = H * Wp
    coutp = w9.shape[2]

    xf = jnp.pad(x, ((0, 0), (1, 1), (1, 1), (0, 0))).reshape(N, (H + 2) * Wp, C)
    xf = jnp.pad(xf, ((0, 0), (0, 2), (0, 0)))     # slack rows for the max tap offset
    Pf = xf.shape[1]

    args = [xf, w9, scale.reshape(1, coutp), bias.reshape(1, coutp)]
    in_specs = [
        pl.BlockSpec((None, Pf, C), lambda n: (n, 0, 0)),
        pl.BlockSpec((9, C, coutp), lambda n: (0, 0, 0)),
        pl.BlockSpec((1, coutp), lambda n: (0, 0)),
        pl.BlockSpec((1, coutp), lambda n: (0, 0)),
    ]
    has_res = residual is not None
    has_proj = proj is not None
    if has_res:
        rC = residual.shape[3]
        rf = jnp.pad(residual, ((0, 0), (0, 0), (0, 2), (0, 0))).reshape(N, R, rC)
        args.append(rf)
        in_specs.append(pl.BlockSpec((None, R, rC), lambda n: (n, 0, 0)))
        if has_proj:
            wsc, ssc, bsc = proj
            args += [wsc, ssc.reshape(1, coutp), bsc.reshape(1, coutp)]
            in_specs += [
                pl.BlockSpec((rC, coutp), lambda n: (0, 0)),
                pl.BlockSpec((1, coutp), lambda n: (0, 0)),
                pl.BlockSpec((1, coutp), lambda n: (0, 0)),
            ]

    kernel = functools.partial(_conv3x3_flat_kernel, Wp=Wp, R=R, relu=relu,
                               res=has_res, proj=has_proj)
    out = pl.pallas_call(
        kernel,
        out_shape=jax.ShapeDtypeStruct((N, R, coutp), out_dtype),
        grid=(N,),
        in_specs=in_specs,
        out_specs=pl.BlockSpec((None, R, coutp), lambda n: (n, 0, 0)),
        compiler_params=pltpu.CompilerParams(
            dimension_semantics=("parallel",),   # batch shards across TCs on v7x
            vmem_limit_bytes=VMEM_LIMIT),
    )(*args)
    # drop the 2 garbage columns per flattened row; restore (N, H, W, Coutp)
    return out.reshape(N, H, Wp, coutp)[:, :, :W, :]


def conv3x3_bn_relu_strided(x, w_flat, scale, bias, stride, out_dtype=jnp.bfloat16):
    """3x3 conv (stride>1, pad 1) + BN + ReLU via strided im2col + one fused matmul.

    Only the strided output positions are gathered, so no wasted compute/HBM writeback.
    """
    N, H, W, C = x.shape
    Ho = (H - 1) // stride + 1
    Wo = (W - 1) // stride + 1
    xp = jnp.pad(x, ((0, 0), (1, 1), (1, 1), (0, 0)))
    cols = [xp[:, dy:dy + (Ho - 1) * stride + 1:stride,
               dx:dx + (Wo - 1) * stride + 1:stride, :]
            for dy in range(3) for dx in range(3)]
    patches = jnp.concatenate(cols, axis=-1).reshape(N * Ho * Wo, 9 * C)

    M, K = patches.shape
    coutp = w_flat.shape[1]
    tm = min(TM_MAX, _round_up(M, 8))          # no dead padded MXU rows at small M
    Mp = _round_up(M, tm)
    if Mp != M:
        patches = jnp.pad(patches, ((0, Mp - M), (0, 0)))

    out = pl.pallas_call(
        functools.partial(_matmul_bn_kernel, relu=True),
        out_shape=jax.ShapeDtypeStruct((Mp, coutp), out_dtype),
        grid=(Mp // tm,),
        in_specs=[
            pl.BlockSpec((tm, K), lambda i: (i, 0)),
            pl.BlockSpec((K, coutp), lambda i: (0, 0)),
            pl.BlockSpec((1, coutp), lambda i: (0, 0)),
            pl.BlockSpec((1, coutp), lambda i: (0, 0)),
        ],
        out_specs=pl.BlockSpec((tm, coutp), lambda i: (i, 0)),
        compiler_params=pltpu.CompilerParams(
            dimension_semantics=("parallel",),
            vmem_limit_bytes=VMEM_LIMIT),
    )(patches, w_flat, scale.reshape(1, coutp), bias.reshape(1, coutp))
    return out[:M].reshape(N, Ho, Wo, coutp)


# --------------------------------------------------------------------------- params
def _bn_fold(key, c):
    k1, k2, k3, k4 = jax.random.split(key, 4)
    gamma = 1.0 + 0.1 * jax.random.normal(k1, (c,), jnp.float32)
    beta = 0.05 * jax.random.normal(k2, (c,), jnp.float32)
    mean = 0.05 * jax.random.normal(k3, (c,), jnp.float32)
    var = jax.random.uniform(k4, (c,), jnp.float32, minval=0.8, maxval=1.2)
    scale = gamma / jnp.sqrt(var + 1e-5)        # eval-mode BatchNorm -> scale/bias
    bias = beta - mean * scale
    return scale, bias


def init_params(key, cin, cout, stride):
    cinp, coutp = _round_up(cin, LANE), _round_up(cout, LANE)
    ks = jax.random.split(key, 6)

    def conv3x3_w(k, ci, co):
        return jax.random.normal(k, (3, 3, ci, co), jnp.float32) * math.sqrt(2.0 / (9 * ci))

    def pack3x3(w, cip, cop):   # (3,3,ci,co) -> bf16 (9, cip, cop), zero-padded lanes
        w = _pad_axis(_pad_axis(w, cip, 2), cop, 3)
        return w.reshape(9, cip, cop).astype(jnp.bfloat16)

    def pack_bn(s, b, cop):     # padded channels get scale=0, bias=0 -> stay exactly 0
        return _pad_axis(s, cop, 0), _pad_axis(b, cop, 0)

    w1 = conv3x3_w(ks[0], cin, cout)
    s1, b1 = _bn_fold(ks[1], cout)
    w2 = conv3x3_w(ks[2], cout, cout)
    s2, b2 = _bn_fold(ks[3], cout)

    p = {'w1': pack3x3(w1, cinp, coutp), 'w2': pack3x3(w2, coutp, coutp)}
    p['s1'], p['b1'] = pack_bn(s1, b1, coutp)
    p['s2'], p['b2'] = pack_bn(s2, b2, coutp)
    if stride != 1 or cin != cout:
        wsc = jax.random.normal(ks[4], (cin, cout), jnp.float32) * math.sqrt(2.0 / cin)
        ssc, bsc = _bn_fold(ks[5], cout)
        p['wsc'] = _pad_axis(_pad_axis(wsc, cinp, 0), coutp, 1).astype(jnp.bfloat16)
        p['ssc'], p['bsc'] = pack_bn(ssc, bsc, coutp)
    return p


# --------------------------------------------------------------------------- forward
@functools.partial(jax.jit, static_argnames=("cin", "cout", "stride"))
def residual_block_forward(params, x_nchw, *, cin, cout, stride):
    """out = relu( BN2(conv2(relu(BN1(conv1_s(x))))) + shortcut(x) ); NCHW in/out."""
    cinp = _round_up(cin, LANE)
    coutp = _round_up(cout, LANE)
    x = jnp.transpose(x_nchw, (0, 2, 3, 1)).astype(jnp.bfloat16)     # NCHW -> NHWC
    x = _pad_axis(x, cinp, 3)                                        # lane-dense channels

    # conv1 + BN1 + ReLU
    if stride == 1:
        y = conv3x3_bn(x, params['w1'], params['s1'], params['b1'], relu=True)
    else:
        y = conv3x3_bn_relu_strided(x, params['w1'].reshape(9 * cinp, coutp),
                                    params['s1'], params['b1'], stride)

    # conv2 + BN2 + shortcut-add + final ReLU, all fused in one kernel
    if stride == 1 and cin == cout:
        res, proj = x, None                    # identity shortcut
    else:
        res = x[:, ::stride, ::stride, :]      # 1x1 stride-s conv input positions
        proj = (params['wsc'], params['ssc'], params['bsc'])
    out = conv3x3_bn(y, params['w2'], params['s2'], params['b2'], relu=True,
                     residual=res, proj=proj, out_dtype=jnp.float32)

    out = out[..., :cout]                                            # drop padded lanes
    return jnp.transpose(out, (0, 3, 1, 2))                          # NHWC -> NCHW


# --------------------------------------------------------------------------- reference
def _reference_forward(params, x_nchw, *, cin, cout, stride):
    """Pure-JAX reference mimicking the kernels' bf16 rounding points."""
    cinp, coutp = _round_up(cin, LANE), _round_up(cout, LANE)
    f32 = lambda a: a.astype(jnp.float32)
    x = f32(x_nchw.astype(jnp.bfloat16))
    bcast = lambda v: v[:cout][None, :, None, None]

    def conv(inp, w_hwio, s, pad):
        return lax.conv_general_dilated(
            inp, w_hwio, (s, s), ((pad, pad), (pad, pad)),
            dimension_numbers=('NCHW', 'HWIO', 'NCHW'),
            precision=lax.Precision.HIGHEST)

    w1 = f32(params['w1']).reshape(3, 3, cinp, coutp)[:, :, :cin, :cout]
    w2 = f32(params['w2']).reshape(3, 3, coutp, coutp)[:, :, :cout, :cout]

    y = conv(x, w1, stride, 1) * bcast(params['s1']) + bcast(params['b1'])
    y = f32(jnp.maximum(y, 0.0).astype(jnp.bfloat16))
    y = conv(y, w2, 1, 1) * bcast(params['s2']) + bcast(params['b2'])

    if stride != 1 or cin != cout:
        wsc = f32(params['wsc'])[:cin, :cout][None, None]
        sc = conv(x, wsc, stride, 0) * bcast(params['ssc']) + bcast(params['bsc'])
    else:
        sc = x
    return jnp.maximum(y + sc, 0.0)


if __name__ == "__main__":
    key = jax.random.PRNGKey(0)
    kx, k1, k2 = jax.random.split(key, 3)

    N, H, W = 2, 16, 16
    configs = [(32, 32, 1, k1),   # identity shortcut
               (16, 32, 2, k2)]   # 1x1 projection shortcut, stride 2
    for cin, cout, stride, pk in configs:
        params = init_params(pk, cin, cout, stride)
        x = jax.random.normal(kx, (N, cin, H, W), jnp.float32)
        out = residual_block_forward(params, x, cin=cin, cout=cout, stride=stride)
        out = jax.block_until_ready(out)
        Ho = (H - 1) // stride + 1
        assert out.shape == (N, cout, Ho, Ho), out.shape
        assert bool(jnp.all(jnp.isfinite(out)))
        ref = _reference_forward(params, x, cin=cin, cout=cout, stride=stride)
        err = float(jnp.max(jnp.abs(out - ref)))
        assert err < 5e-2, f"mismatch vs reference (cin={cin}, cout={cout}, s={stride}): {err}"
    print("KERNEL_OK")
</pallas_src>

<mosaic_0001>
module attributes {stable_mosaic.version = 11 : i64} {
  func.func @_conv3x3_flat_kernel(%arg0: i32, %arg1: memref<1x326x128xbf16, #tpu.memory_space<vmem>>, %arg2: memref<9x128x128xbf16, #tpu.memory_space<vmem>>, %arg3: memref<1x128xf32, #tpu.memory_space<vmem>>, %arg4: memref<1x128xf32, #tpu.memory_space<vmem>>, %arg5: memref<1x288x128xbf16, #tpu.memory_space<vmem>>) attributes {dimension_semantics = [#tpu.dimension_semantics<parallel>], iteration_bounds = array<i64: 2>, scalar_prefetch = 0 : i64, scratch_operands = 0 : i64, tpu.core_type = #tpu.core_type<tc>, window_params = [{transform_indices = @transform_0, window_bounds = array<i64: 1, 326, 128>}, {pipeline_mode = #tpu.pipeline_mode<synchronous>, transform_indices = @transform_1, window_bounds = array<i64: 9, 128, 128>}, {pipeline_mode = #tpu.pipeline_mode<synchronous>, transform_indices = @transform_2, window_bounds = array<i64: 1, 128>}, {pipeline_mode = #tpu.pipeline_mode<synchronous>, transform_indices = @transform_3, window_bounds = array<i64: 1, 128>}, {transform_indices = @transform_4, window_bounds = array<i64: 1, 288, 128>}]} {
    %cst = arith.constant 0.000000e+00 : f32
    %0 = vector.broadcast %cst : f32 to vector<288x128xf32>
    %c0 = arith.constant 0 : index
    %c0_0 = arith.constant 0 : index
    %c0_1 = arith.constant 0 : index
    %1 = vector.load %arg1[%c0, %c0_0, %c0_1] : memref<1x326x128xbf16, #tpu.memory_space<vmem>>, vector<1x288x128xbf16>
    %2 = vector.shape_cast %1 : vector<1x288x128xbf16> to vector<288x128xbf16>
    %c0_2 = arith.constant 0 : index
    %c0_3 = arith.constant 0 : index
    %c0_4 = arith.constant 0 : index
    %3 = vector.load %arg2[%c0_2, %c0_3, %c0_4] : memref<9x128x128xbf16, #tpu.memory_space<vmem>>, vector<1x128x128xbf16>
    %4 = vector.shape_cast %3 : vector<1x128x128xbf16> to vector<128x128xbf16>
    %cst_5 = arith.constant dense<0.000000e+00> : vector<288x128xf32>
    %5 = tpu.matmul %2, %4, %cst_5 {dimension_numbers = #tpu.dot_dimension_numbers<[1], [0], [0], [1], [0, 0, 1, 1], [], []>} : vector<288x128xbf16>, vector<128x128xbf16>, vector<288x128xf32> -> vector<288x128xf32>
    %6 = arith.addf %0, %5 : vector<288x128xf32>
    %c0_6 = arith.constant 0 : index
    %c1 = arith.constant 1 : index
    %c0_7 = arith.constant 0 : index
    %7 = vector.load %arg1[%c0_6, %c1, %c0_7] : memref<1x326x128xbf16, #tpu.memory_space<vmem>>, vector<1x288x128xbf16>
    %8 = vector.shape_cast %7 : vector<1x288x128xbf16> to vector<288x128xbf16>
    %c1_8 = arith.constant 1 : index
    %c0_9 = arith.constant 0 : index
    %c0_10 = arith.constant 0 : index
    %9 = vector.load %arg2[%c1_8, %c0_9, %c0_10] : memref<9x128x128xbf16, #tpu.memory_space<vmem>>, vector<1x128x128xbf16>
    %10 = vector.shape_cast %9 : vector<1x128x128xbf16> to vector<128x128xbf16>
    %cst_11 = arith.constant dense<0.000000e+00> : vector<288x128xf32>
    %11 = tpu.matmul %8, %10, %cst_11 {dimension_numbers = #tpu.dot_dimension_numbers<[1], [0], [0], [1], [0, 0, 1, 1], [], []>} : vector<288x128xbf16>, vector<128x128xbf16>, vector<288x128xf32> -> vector<288x128xf32>
    %12 = arith.addf %6, %11 : vector<288x128xf32>
    %c0_12 = arith.constant 0 : index
    %c2 = arith.constant 2 : index
    %c0_13 = arith.constant 0 : index
    %13 = vector.load %arg1[%c0_12, %c2, %c0_13] : memref<1x326x128xbf16, #tpu.memory_space<vmem>>, vector<1x288x128xbf16>
    %14 = vector.shape_cast %13 : vector<1x288x128xbf16> to vector<288x128xbf16>
    %c2_14 = arith.constant 2 : index
    %c0_15 = arith.constant 0 : index
    %c0_16 = arith.constant 0 : index
    %15 = vector.load %arg2[%c2_14, %c0_15, %c0_16] : memref<9x128x128xbf16, #tpu.memory_space<vmem>>, vector<1x128x128xbf16>
    %16 = vector.shape_cast %15 : vector<1x128x128xbf16> to vector<128x128xbf16>
    %cst_17 = arith.constant dense<0.000000e+00> : vector<288x128xf32>
    %17 = tpu.matmul %14, %16, %cst_17 {dimension_numbers = #tpu.dot_dimension_numbers<[1], [0], [0], [1], [0, 0, 1, 1], [], []>} : vector<288x128xbf16>, vector<128x128xbf16>, vector<288x128xf32> -> vector<288x128xf32>
    %18 = arith.addf %12, %17 : vector<288x128xf32>
    %c0_18 = arith.constant 0 : index
    %c18 = arith.constant 18 : index
    %c0_19 = arith.constant 0 : index
    %19 = vector.load %arg1[%c0_18, %c18, %c0_19] : memref<1x326x128xbf16, #tpu.memory_space<vmem>>, vector<1x288x128xbf16>
    %20 = vector.shape_cast %19 : vector<1x288x128xbf16> to vector<288x128xbf16>
    %c3 = arith.constant 3 : index
    %c0_20 = arith.constant 0 : index
    %c0_21 = arith.constant 0 : index
    %21 = vector.load %arg2[%c3, %c0_20, %c0_21] : memref<9x128x128xbf16, #tpu.memory_space<vmem>>, vector<1x128x128xbf16>
    %22 = vector.shape_cast %21 : vector<1x128x128xbf16> to vector<128x128xbf16>
    %cst_22 = arith.constant dense<0.000000e+00> : vector<288x128xf32>
    %23 = tpu.matmul %20, %22, %cst_22 {dimension_numbers = #tpu.dot_dimension_numbers<[1], [0], [0], [1], [0, 0, 1, 1], [], []>} : vector<288x128xbf16>, vector<128x128xbf16>, vector<288x128xf32> -> vector<288x128xf32>
    %24 = arith.addf %18, %23 : vector<288x128xf32>
    %c0_23 = arith.constant 0 : index
    %c19 = arith.constant 19 : index
    %c0_24 = arith.constant 0 : index
    %25 = vector.load %arg1[%c0_23, %c19, %c0_24] : memref<1x326x128xbf16, #tpu.memory_space<vmem>>, vector<1x288x128xbf16>
    %26 = vector.shape_cast %25 : vector<1x288x128xbf16> to vector<288x128xbf16>
    %c4 = arith.constant 4 : index
    %c0_25 = arith.constant 0 : index
    %c0_26 = arith.constant 0 : index
    %27 = vector.load %arg2[%c4, %c0_25, %c0_26] : memref<9x128x128xbf16, #tpu.memory_space<vmem>>, vector<1x128x128xbf16>
    %28 = vector.shape_cast %27 : vector<1x128x128xbf16> to vector<128x128xbf16>
    %cst_27 = arith.constant dense<0.000000e+00> : vector<288x128xf32>
    %29 = tpu.matmul %26, %28, %cst_27 {dimension_numbers = #tpu.dot_dimension_numbers<[1], [0], [0], [1], [0, 0, 1, 1], [], []>} : vector<288x128xbf16>, vector<128x128xbf16>, vector<288x128xf32> -> vector<288x128xf32>
    %30 = arith.addf %24, %29 : vector<288x128xf32>
    %c0_28 = arith.constant 0 : index
    %c20 = arith.constant 20 : index
    %c0_29 = arith.constant 0 : index
    %31 = vector.load %arg1[%c0_28, %c20, %c0_29] : memref<1x326x128xbf16, #tpu.memory_space<vmem>>, vector<1x288x128xbf16>
    %32 = vector.shape_cast %31 : vector<1x288x128xbf16> to vector<288x128xbf16>
    %c5 = arith.constant 5 : index
    %c0_30 = arith.constant 0 : index
    %c0_31 = arith.constant 0 : index
    %33 = vector.load %arg2[%c5, %c0_30, %c0_31] : memref<9x128x128xbf16, #tpu.memory_space<vmem>>, vector<1x128x128xbf16>
    %34 = vector.shape_cast %33 : vector<1x128x128xbf16> to vector<128x128xbf16>
    %cst_32 = arith.constant dense<0.000000e+00> : vector<288x128xf32>
    %35 = tpu.matmul %32, %34, %cst_32 {dimension_numbers = #tpu.dot_dimension_numbers<[1], [0], [0], [1], [0, 0, 1, 1], [], []>} : vector<288x128xbf16>, vector<128x128xbf16>, vector<288x128xf32> -> vector<288x128xf32>
    %36 = arith.addf %30, %35 : vector<288x128xf32>
    %c0_33 = arith.constant 0 : index
    %c36 = arith.constant 36 : index
    %c0_34 = arith.constant 0 : index
    %37 = vector.load %arg1[%c0_33, %c36, %c0_34] : memref<1x326x128xbf16, #tpu.memory_space<vmem>>, vector<1x288x128xbf16>
    %38 = vector.shape_cast %37 : vector<1x288x128xbf16> to vector<288x128xbf16>
    %c6 = arith.constant 6 : index
    %c0_35 = arith.constant 0 : index
    %c0_36 = arith.constant 0 : index
    %39 = vector.load %arg2[%c6, %c0_35, %c0_36] : memref<9x128x128xbf16, #tpu.memory_space<vmem>>, vector<1x128x128xbf16>
    %40 = vector.shape_cast %39 : vector<1x128x128xbf16> to vector<128x128xbf16>
    %cst_37 = arith.constant dense<0.000000e+00> : vector<288x128xf32>
    %41 = tpu.matmul %38, %40, %cst_37 {dimension_numbers = #tpu.dot_dimension_numbers<[1], [0], [0], [1], [0, 0, 1, 1], [], []>} : vector<288x128xbf16>, vector<128x128xbf16>, vector<288x128xf32> -> vector<288x128xf32>
    %42 = arith.addf %36, %41 : vector<288x128xf32>
    %c0_38 = arith.constant 0 : index
    %c37 = arith.constant 37 : index
    %c0_39 = arith.constant 0 : index
    %43 = vector.load %arg1[%c0_38, %c37, %c0_39] : memref<1x326x128xbf16, #tpu.memory_space<vmem>>, vector<1x288x128xbf16>
    %44 = vector.shape_cast %43 : vector<1x288x128xbf16> to vector<288x128xbf16>
    %c7 = arith.constant 7 : index
    %c0_40 = arith.constant 0 : index
    %c0_41 = arith.constant 0 : index
    %45 = vector.load %arg2[%c7, %c0_40, %c0_41] : memref<9x128x128xbf16, #tpu.memory_space<vmem>>, vector<1x128x128xbf16>
    %46 = vector.shape_cast %45 : vector<1x128x128xbf16> to vector<128x128xbf16>
    %cst_42 = arith.constant dense<0.000000e+00> : vector<288x128xf32>
    %47 = tpu.matmul %44, %46, %cst_42 {dimension_numbers = #tpu.dot_dimension_numbers<[1], [0], [0], [1], [0, 0, 1, 1], [], []>} : vector<288x128xbf16>, vector<128x128xbf16>, vector<288x128xf32> -> vector<288x128xf32>
    %48 = arith.addf %42, %47 : vector<288x128xf32>
    %c0_43 = arith.constant 0 : index
    %c38 = arith.constant 38 : index
    %c0_44 = arith.constant 0 : index
    %49 = vector.load %arg1[%c0_43, %c38, %c0_44] : memref<1x326x128xbf16, #tpu.memory_space<vmem>>, vector<1x288x128xbf16>
    %50 = vector.shape_cast %49 : vector<1x288x128xbf16> to vector<288x128xbf16>
    %c8 = arith.constant 8 : index
    %c0_45 = arith.constant 0 : index
    %c0_46 = arith.constant 0 : index
    %51 = vector.load %arg2[%c8, %c0_45, %c0_46] : memref<9x128x128xbf16, #tpu.memory_space<vmem>>, vector<1x128x128xbf16>
    %52 = vector.shape_cast %51 : vector<1x128x128xbf16> to vector<128x128xbf16>
    %cst_47 = arith.constant dense<0.000000e+00> : vector<288x128xf32>
    %53 = tpu.matmul %50, %52, %cst_47 {dimension_numbers = #tpu.dot_dimension_numbers<[1], [0], [0], [1], [0, 0, 1, 1], [], []>} : vector<288x128xbf16>, vector<128x128xbf16>, vector<288x128xf32> -> vector<288x128xf32>
    %54 = arith.addf %48, %53 : vector<288x128xf32>
    %c0_48 = arith.constant 0 : index
    %c0_49 = arith.constant 0 : index
    %55 = vector.load %arg3[%c0_48, %c0_49] : memref<1x128xf32, #tpu.memory_space<vmem>>, vector<1x128xf32>
    %56 = vector.broadcast %55 : vector<1x128xf32> to vector<288x128xf32>
    %57 = arith.mulf %54, %56 : vector<288x128xf32>
    %c0_50 = arith.constant 0 : index
    %c0_51 = arith.constant 0 : index
    %58 = vector.load %arg4[%c0_50, %c0_51] : memref<1x128xf32, #tpu.memory_space<vmem>>, vector<1x128xf32>
    %59 = vector.broadcast %58 : vector<1x128xf32> to vector<288x128xf32>
    %60 = arith.addf %57, %59 : vector<288x128xf32>
    %cst_52 = arith.constant 0.000000e+00 : f32
    %61 = vector.broadcast %cst_52 : f32 to vector<288x128xf32>
    %62 = arith.maximumf %60, %61 : vector<288x128xf32>
    %63 = arith.truncf %62 : vector<288x128xf32> to vector<288x128xbf16>
    %c0_53 = arith.constant 0 : index
    %c0_54 = arith.constant 0 : index
    %c0_55 = arith.constant 0 : index
    %64 = vector.load %arg5[%c0_53, %c0_54, %c0_55] : memref<1x288x128xbf16, #tpu.memory_space<vmem>>, vector<1x288x128xbf16>
    %65 = vector.shape_cast %64 : vector<1x288x128xbf16> to vector<288x128xbf16>
    %66 = vector.shape_cast %63 : vector<288x128xbf16> to vector<1x288x128xbf16>
    tpu.vector_store %arg5[%c0_53, %c0_54, %c0_55], %66 {strides = array<i32>} : memref<1x288x128xbf16, #tpu.memory_space<vmem>>, vector<1x288x128xbf16>,
    return
  }
  func.func @transform_0(%arg0: i32) -> (i32, i32, i32) {
    %c0_i32 = arith.constant 0 : i32
    %c0_i32_0 = arith.constant 0 : i32
    %c0_i32_1 = arith.constant 0 : i32
    return %arg0, %c0_i32, %c0_i32_0 : i32, i32, i32
  }
  func.func @transform_1(%arg0: i32) -> (i32, i32, i32) {
    %c0_i32 = arith.constant 0 : i32
    %c0_i32_0 = arith.constant 0 : i32
    %c0_i32_1 = arith.constant 0 : i32
    %c0_i32_2 = arith.constant 0 : i32
    return %c0_i32, %c0_i32_0, %c0_i32_1 : i32, i32, i32
  }
  func.func @transform_2(%arg0: i32) -> (i32, i32) {
    %c0_i32 = arith.constant 0 : i32
    %c0_i32_0 = arith.constant 0 : i32
    %c0_i32_1 = arith.constant 0 : i32
    return %c0_i32, %c0_i32_0 : i32, i32
  }
  func.func @transform_3(%arg0: i32) -> (i32, i32) {
    %c0_i32 = arith.constant 0 : i32
    %c0_i32_0 = arith.constant 0 : i32
    %c0_i32_1 = arith.constant 0 : i32
    return %c0_i32, %c0_i32_0 : i32, i32
  }
  func.func @transform_4(%arg0: i32) -> (i32, i32, i32) {
    %c0_i32 = arith.constant 0 : i32
    %c0_i32_0 = arith.constant 0 : i32
    %c0_i32_1 = arith.constant 0 : i32
    return %arg0, %c0_i32, %c0_i32_0 : i32, i32, i32
  }
}

module attributes {stable_mosaic.version = 11 : i64} {
  func.func @_conv3x3_flat_kernel(%arg0: i32, %arg1: memref<1x326x128xbf16, #tpu.memory_space<vmem>>, %arg2: memref<9x128x128xbf16, #tpu.memory_space<vmem>>, %arg3: memref<1x128xf32, #tpu.memory_space<vmem>>, %arg4: memref<1x128xf32, #tpu.memory_space<vmem>>, %arg5: memref<1x288x128xbf16, #tpu.memory_space<vmem>>, %arg6: memref<1x288x128xf32, #tpu.memory_space<vmem>>) attributes {dimension_semantics = [#tpu.dimension_semantics<parallel>], iteration_bounds = array<i64: 2>, scalar_prefetch = 0 : i64, scratch_operands = 0 : i64, tpu.core_type = #tpu.core_type<tc>, window_params = [{transform_indices = @transform_0, window_bounds = array<i64: 1, 326, 128>}, {pipeline_mode = #tpu.pipeline_mode<synchronous>, transform_indices = @transform_1, window_bounds = array<i64: 9, 128, 128>}, {pipeline_mode = #tpu.pipeline_mode<synchronous>, transform_indices = @transform_2, window_bounds = array<i64: 1, 128>}, {pipeline_mode = #tpu.pipeline_mode<synchronous>, transform_indices = @transform_3, window_bounds = array<i64: 1, 128>}, {transform_indices = @transform_4, window_bounds = array<i64: 1, 288, 128>}, {transform_indices = @transform_5, window_bounds = array<i64: 1, 288, 128>}]} {
    %cst = arith.constant 0.000000e+00 : f32
    %0 = vector.broadcast %cst : f32 to vector<288x128xf32>
    %c0 = arith.constant 0 : index
    %c0_0 = arith.constant 0 : index
    %c0_1 = arith.constant 0 : index
    %1 = vector.load %arg1[%c0, %c0_0, %c0_1] : memref<1x326x128xbf16, #tpu.memory_space<vmem>>, vector<1x288x128xbf16>
    %2 = vector.shape_cast %1 : vector<1x288x128xbf16> to vector<288x128xbf16>
    %c0_2 = arith.constant 0 : index
    %c0_3 = arith.constant 0 : index
    %c0_4 = arith.constant 0 : index
    %3 = vector.load %arg2[%c0_2, %c0_3, %c0_4] : memref<9x128x128xbf16, #tpu.memory_space<vmem>>, vector<1x128x128xbf16>
    %4 = vector.shape_cast %3 : vector<1x128x128xbf16> to vector<128x128xbf16>
    %cst_5 = arith.constant dense<0.000000e+00> : vector<288x128xf32>
    %5 = tpu.matmul %2, %4, %cst_5 {dimension_numbers = #tpu.dot_dimension_numbers<[1], [0], [0], [1], [0, 0, 1, 1], [], []>} : vector<288x128xbf16>, vector<128x128xbf16>, vector<288x128xf32> -> vector<288x128xf32>
    %6 = arith.addf %0, %5 : vector<288x128xf32>
    %c0_6 = arith.constant 0 : index
    %c1 = arith.constant 1 : index
    %c0_7 = arith.constant 0 : index
    %7 = vector.load %arg1[%c0_6, %c1, %c0_7] : memref<1x326x128xbf16, #tpu.memory_space<vmem>>, vector<1x288x128xbf16>
    %8 = vector.shape_cast %7 : vector<1x288x128xbf16> to vector<288x128xbf16>
    %c1_8 = arith.constant 1 : index
    %c0_9 = arith.constant 0 : index
    %c0_10 = arith.constant 0 : index
    %9 = vector.load %arg2[%c1_8, %c0_9, %c0_10] : memref<9x128x128xbf16, #tpu.memory_space<vmem>>, vector<1x128x128xbf16>
    %10 = vector.shape_cast %9 : vector<1x128x128xbf16> to vector<128x128xbf16>
    %cst_11 = arith.constant dense<0.000000e+00> : vector<288x128xf32>
    %11 = tpu.matmul %8, %10, %cst_11 {dimension_numbers = #tpu.dot_dimension_numbers<[1], [0], [0], [1], [0, 0, 1, 1], [], []>} : vector<288x128xbf16>, vector<128x128xbf16>, vector<288x128xf32> -> vector<288x128xf32>
    %12 = arith.addf %6, %11 : vector<288x128xf32>
    %c0_12 = arith.constant 0 : index
    %c2 = arith.constant 2 : index
    %c0_13 = arith.constant 0 : index
    %13 = vector.load %arg1[%c0_12, %c2, %c0_13] : memref<1x326x128xbf16, #tpu.memory_space<vmem>>, vector<1x288x128xbf16>
    %14 = vector.shape_cast %13 : vector<1x288x128xbf16> to vector<288x128xbf16>
    %c2_14 = arith.constant 2 : index
    %c0_15 = arith.constant 0 : index
    %c0_16 = arith.constant 0 : index
    %15 = vector.load %arg2[%c2_14, %c0_15, %c0_16] : memref<9x128x128xbf16, #tpu.memory_space<vmem>>, vector<1x128x128xbf16>
    %16 = vector.shape_cast %15 : vector<1x128x128xbf16> to vector<128x128xbf16>
    %cst_17 = arith.constant dense<0.000000e+00> : vector<288x128xf32>
    %17 = tpu.matmul %14, %16, %cst_17 {dimension_numbers = #tpu.dot_dimension_numbers<[1], [0], [0], [1], [0, 0, 1, 1], [], []>} : vector<288x128xbf16>, vector<128x128xbf16>, vector<288x128xf32> -> vector<288x128xf32>
    %18 = arith.addf %12, %17 : vector<288x128xf32>
    %c0_18 = arith.constant 0 : index
    %c18 = arith.constant 18 : index
    %c0_19 = arith.constant 0 : index
    %19 = vector.load %arg1[%c0_18, %c18, %c0_19] : memref<1x326x128xbf16, #tpu.memory_space<vmem>>, vector<1x288x128xbf16>
    %20 = vector.shape_cast %19 : vector<1x288x128xbf16> to vector<288x128xbf16>
    %c3 = arith.constant 3 : index
    %c0_20 = arith.constant 0 : index
    %c0_21 = arith.constant 0 : index
    %21 = vector.load %arg2[%c3, %c0_20, %c0_21] : memref<9x128x128xbf16, #tpu.memory_space<vmem>>, vector<1x128x128xbf16>
    %22 = vector.shape_cast %21 : vector<1x128x128xbf16> to vector<128x128xbf16>
    %cst_22 = arith.constant dense<0.000000e+00> : vector<288x128xf32>
    %23 = tpu.matmul %20, %22, %cst_22 {dimension_numbers = #tpu.dot_dimension_numbers<[1], [0], [0], [1], [0, 0, 1, 1], [], []>} : vector<288x128xbf16>, vector<128x128xbf16>, vector<288x128xf32> -> vector<288x128xf32>
    %24 = arith.addf %18, %23 : vector<288x128xf32>
    %c0_23 = arith.constant 0 : index
    %c19 = arith.constant 19 : index
    %c0_24 = arith.constant 0 : index
    %25 = vector.load %arg1[%c0_23, %c19, %c0_24] : memref<1x326x128xbf16, #tpu.memory_space<vmem>>, vector<1x288x128xbf16>
    %26 = vector.shape_cast %25 : vector<1x288x128xbf16> to vector<288x128xbf16>
    %c4 = arith.constant 4 : index
    %c0_25 = arith.constant 0 : index
    %c0_26 = arith.constant 0 : index
    %27 = vector.load %arg2[%c4, %c0_25, %c0_26] : memref<9x128x128xbf16, #tpu.memory_space<vmem>>, vector<1x128x128xbf16>
    %28 = vector.shape_cast %27 : vector<1x128x128xbf16> to vector<128x128xbf16>
    %cst_27 = arith.constant dense<0.000000e+00> : vector<288x128xf32>
    %29 = tpu.matmul %26, %28, %cst_27 {dimension_numbers = #tpu.dot_dimension_numbers<[1], [0], [0], [1], [0, 0, 1, 1], [], []>} : vector<288x128xbf16>, vector<128x128xbf16>, vector<288x128xf32> -> vector<288x128xf32>
    %30 = arith.addf %24, %29 : vector<288x128xf32>
    %c0_28 = arith.constant 0 : index
    %c20 = arith.constant 20 : index
    %c0_29 = arith.constant 0 : index
    %31 = vector.load %arg1[%c0_28, %c20, %c0_29] : memref<1x326x128xbf16, #tpu.memory_space<vmem>>, vector<1x288x128xbf16>
    %32 = vector.shape_cast %31 : vector<1x288x128xbf16> to vector<288x128xbf16>
    %c5 = arith.constant 5 : index
    %c0_30 = arith.constant 0 : index
    %c0_31 = arith.constant 0 : index
    %33 = vector.load %arg2[%c5, %c0_30, %c0_31] : memref<9x128x128xbf16, #tpu.memory_space<vmem>>, vector<1x128x128xbf16>
    %34 = vector.shape_cast %33 : vector<1x128x128xbf16> to vector<128x128xbf16>
    %cst_32 = arith.constant dense<0.000000e+00> : vector<288x128xf32>
    %35 = tpu.matmul %32, %34, %cst_32 {dimension_numbers = #tpu.dot_dimension_numbers<[1], [0], [0], [1], [0, 0, 1, 1], [], []>} : vector<288x128xbf16>, vector<128x128xbf16>, vector<288x128xf32> -> vector<288x128xf32>
    %36 = arith.addf %30, %35 : vector<288x128xf32>
    %c0_33 = arith.constant 0 : index
    %c36 = arith.constant 36 : index
    %c0_34 = arith.constant 0 : index
    %37 = vector.load %arg1[%c0_33, %c36, %c0_34] : memref<1x326x128xbf16, #tpu.memory_space<vmem>>, vector<1x288x128xbf16>
    %38 = vector.shape_cast %37 : vector<1x288x128xbf16> to vector<288x128xbf16>
    %c6 = arith.constant 6 : index
    %c0_35 = arith.constant 0 : index
    %c0_36 = arith.constant 0 : index
    %39 = vector.load %arg2[%c6, %c0_35, %c0_36] : memref<9x128x128xbf16, #tpu.memory_space<vmem>>, vector<1x128x128xbf16>
    %40 = vector.shape_cast %39 : vector<1x128x128xbf16> to vector<128x128xbf16>
    %cst_37 = arith.constant dense<0.000000e+00> : vector<288x128xf32>
    %41 = tpu.matmul %38, %40, %cst_37 {dimension_numbers = #tpu.dot_dimension_numbers<[1], [0], [0], [1], [0, 0, 1, 1], [], []>} : vector<288x128xbf16>, vector<128x128xbf16>, vector<288x128xf32> -> vector<288x128xf32>
    %42 = arith.addf %36, %41 : vector<288x128xf32>
    %c0_38 = arith.constant 0 : index
    %c37 = arith.constant 37 : index
    %c0_39 = arith.constant 0 : index
    %43 = vector.load %arg1[%c0_38, %c37, %c0_39] : memref<1x326x128xbf16, #tpu.memory_space<vmem>>, vector<1x288x128xbf16>
    %44 = vector.shape_cast %43 : vector<1x288x128xbf16> to vector<288x128xbf16>
    %c7 = arith.constant 7 : index
    %c0_40 = arith.constant 0 : index
    %c0_41 = arith.constant 0 : index
    %45 = vector.load %arg2[%c7, %c0_40, %c0_41] : memref<9x128x128xbf16, #tpu.memory_space<vmem>>, vector<1x128x128xbf16>
    %46 = vector.shape_cast %45 : vector<1x128x128xbf16> to vector<128x128xbf16>
    %cst_42 = arith.constant dense<0.000000e+00> : vector<288x128xf32>
    %47 = tpu.matmul %44, %46, %cst_42 {dimension_numbers = #tpu.dot_dimension_numbers<[1], [0], [0], [1], [0, 0, 1, 1], [], []>} : vector<288x128xbf16>, vector<128x128xbf16>, vector<288x128xf32> -> vector<288x128xf32>
    %48 = arith.addf %42, %47 : vector<288x128xf32>
    %c0_43 = arith.constant 0 : index
    %c38 = arith.constant 38 : index
    %c0_44 = arith.constant 0 : index
    %49 = vector.load %arg1[%c0_43, %c38, %c0_44] : memref<1x326x128xbf16, #tpu.memory_space<vmem>>, vector<1x288x128xbf16>
    %50 = vector.shape_cast %49 : vector<1x288x128xbf16> to vector<288x128xbf16>
    %c8 = arith.constant 8 : index
    %c0_45 = arith.constant 0 : index
    %c0_46 = arith.constant 0 : index
    %51 = vector.load %arg2[%c8, %c0_45, %c0_46] : memref<9x128x128xbf16, #tpu.memory_space<vmem>>, vector<1x128x128xbf16>
    %52 = vector.shape_cast %51 : vector<1x128x128xbf16> to vector<128x128xbf16>
    %cst_47 = arith.constant dense<0.000000e+00> : vector<288x128xf32>
    %53 = tpu.matmul %50, %52, %cst_47 {dimension_numbers = #tpu.dot_dimension_numbers<[1], [0], [0], [1], [0, 0, 1, 1], [], []>} : vector<288x128xbf16>, vector<128x128xbf16>, vector<288x128xf32> -> vector<288x128xf32>
    %54 = arith.addf %48, %53 : vector<288x128xf32>
    %c0_48 = arith.constant 0 : index
    %c0_49 = arith.constant 0 : index
    %55 = vector.load %arg3[%c0_48, %c0_49] : memref<1x128xf32, #tpu.memory_space<vmem>>, vector<1x128xf32>
    %56 = vector.broadcast %55 : vector<1x128xf32> to vector<288x128xf32>
    %57 = arith.mulf %54, %56 : vector<288x128xf32>
    %c0_50 = arith.constant 0 : index
    %c0_51 = arith.constant 0 : index
    %58 = vector.load %arg4[%c0_50, %c0_51] : memref<1x128xf32, #tpu.memory_space<vmem>>, vector<1x128xf32>
    %59 = vector.broadcast %58 : vector<1x128xf32> to vector<288x128xf32>
    %60 = arith.addf %57, %59 : vector<288x128xf32>
    %c0_52 = arith.constant 0 : index
    %c0_53 = arith.constant 0 : index
    %c0_54 = arith.constant 0 : index
    %61 = vector.load %arg5[%c0_52, %c0_53, %c0_54] : memref<1x288x128xbf16, #tpu.memory_space<vmem>>, vector<1x288x128xbf16>
    %62 = vector.shape_cast %61 : vector<1x288x128xbf16> to vector<288x128xbf16>
    %63 = arith.extf %62 : vector<288x128xbf16> to vector<288x128xf32>
    %64 = arith.addf %60, %63 : vector<288x128xf32>
    %cst_55 = arith.constant 0.000000e+00 : f32
    %65 = vector.broadcast %cst_55 : f32 to vector<288x128xf32>
    %66 = arith.maximumf %64, %65 : vector<288x128xf32>
    %c0_56 = arith.constant 0 : index
    %c0_57 = arith.constant 0 : index
    %c0_58 = arith.constant 0 : index
    %67 = vector.load %arg6[%c0_56, %c0_57, %c0_58] : memref<1x288x128xf32, #tpu.memory_space<vmem>>, vector<1x288x128xf32>
    %68 = vector.shape_cast %67 : vector<1x288x128xf32> to vector<288x128xf32>
    %69 = vector.shape_cast %66 : vector<288x128xf32> to vector<1x288x128xf32>
    tpu.vector_store %arg6[%c0_56, %c0_57, %c0_58], %69 {strides = array<i32>} : memref<1x288x128xf32, #tpu.memory_space<vmem>>, vector<1x288x128xf32>,
    return
  }
  func.func @transform_0(%arg0: i32) -> (i32, i32, i32) {
    %c0_i32 = arith.constant 0 : i32
    %c0_i32_0 = arith.constant 0 : i32
    %c0_i32_1 = arith.constant 0 : i32
    return %arg0, %c0_i32, %c0_i32_0 : i32, i32, i32
  }
  func.func @transform_1(%arg0: i32) -> (i32, i32, i32) {
    %c0_i32 = arith.constant 0 : i32
    %c0_i32_0 = arith.constant 0 : i32
    %c0_i32_1 = arith.constant 0 : i32
    %c0_i32_2 = arith.constant 0 : i32
    return %c0_i32, %c0_i32_0, %c0_i32_1 : i32, i32, i32
  }
  func.func @transform_2(%arg0: i32) -> (i32, i32) {
    %c0_i32 = arith.constant 0 : i32
    %c0_i32_0 = arith.constant 0 : i32
    %c0_i32_1 = arith.constant 0 : i32
    return %c0_i32, %c0_i32_0 : i32, i32
  }
  func.func @transform_3(%arg0: i32) -> (i32, i32) {
    %c0_i32 = arith.constant 0 : i32
    %c0_i32_0 = arith.constant 0 : i32
    %c0_i32_1 = arith.constant 0 : i32
    return %c0_i32, %c0_i32_0 : i32, i32
  }
  func.func @transform_4(%arg0: i32) -> (i32, i32, i32) {
    %c0_i32 = arith.constant 0 : i32
    %c0_i32_0 = arith.constant 0 : i32
    %c0_i32_1 = arith.constant 0 : i32
    return %arg0, %c0_i32, %c0_i32_0 : i32, i32, i32
  }
  func.func @transform_5(%arg0: i32) -> (i32, i32, i32) {
    %c0_i32 = arith.constant 0 : i32
    %c0_i32_0 = arith.constant 0 : i32
    %c0_i32_1 = arith.constant 0 : i32
    return %arg0, %c0_i32, %c0_i32_0 : i32, i32, i32
  }
}

</mosaic_0001>

<llo_original>
// kernel: residual_block_forward.3
$region0: #{residual_block_forward.3}
  #allocation0 [shape = 'u32[]', space=smem, size = 0x4, offset = 0x4, fixed_abs, tag = 'smem constant byte address 0x4 - core index']
  #allocation1 [shape = 'u32[144,128]{1,0:T(1,128)}', space=vmem, size = 0x12000, scoped, tag = 'internal scratch']
  %s0 = inlined_call_operand.vmem [shape: bf16[2,326,128], index: 0, kind: input, shape index: {}]
  %s1 = inlined_call_operand.vmem [shape: bf16[9,128,128], index: 1, kind: input, shape index: {}]
  %s2 = inlined_call_operand.vmem [shape: f32[1,128], index: 2, kind: input, shape index: {}]
  %s3 = inlined_call_operand.vmem [shape: f32[1,128], index: 3, kind: input, shape index: {}]
  %s4 = inlined_call_operand.vmem [shape: bf16[2,288,128], index: 4, kind: input, shape index: {}]
  %s5 = inlined_call_operand.vmem [shape: f32[2,288,128], index: 5, kind: output, shape index: {}]
  %s6 = sld [smem:[#allocation0]]
  $region53: #{residual_block_forward.3} parent=0
    _
  %s8 = ssub.s32 1, %s6
  %s9 = scalar_select 0, %s8, %s6
  loop: start=0, step=1, limit=4
  $region2: #{residual_block_forward.3} parent=0 // loop_pre_header
    _
  $region3: #{residual_block_forward.3} parent=0 // loop_header
    %s11 = sphi 0, %s15
    %p12 = scmp.ge.s32.totalorder %s11, 4
    %s21 = sphi 0, %s23
    %s24 = sphi 0, %s21
    %s25 = sphi 0, %s24
    %s41 = sphi 0, %s25
    %s45 = sphi 0, %s45
    %s47 = sphi 0, %s45
    %s48 = sphi 0, %s47
    %s62 = sphi 0, %s48
    %s66 = sphi 0, %s66
    %s68 = sphi 0, %s66
    %s69 = sphi 0, %s68
    %s83 = sphi 0, %s69
    %s87 = sphi 0, %s87
    %s89 = sphi 0, %s87
    %s90 = sphi 0, %s89
    %s104 = sphi 0, %s90
    %s110 = sphi 0, %s112
    %s113 = sphi 0, %s110
    %s114 = sphi 0, %s113
    %s130 = sphi 0, %s114
    %s136 = sphi 0, %s138
    %s139 = sphi 0, %s136
    %s140 = sphi 0, %s139
    %s156 = sphi 0, %s140
  $region4: #{residual_block_forward.3} parent=0 // loop_header_branch
    %14 = sbr.rel (%p12) target = $region8
  $region5: #{residual_block_forward.3} parent=0 // loop_body
    %s16 = ssub.s32 %s11, 1
    %s17 = ssub.s32 %s11, 2
    %s18 = sadd.s32 %s11, 1
    %s19 = ssub.s32 %s11, %s18
    %p20 = scmp.eq.s32.totalorder %s19, 0
    %s22 = sadd.s32 %s21, 1
    %s23 = scalar_select %p20, %s21, %s22
    %p26 = pneg %p20
    %p27 = scmp.eq.s32.totalorder %s11, 1
    %p28 = por %p26, %p27
    %p29 = scmp.ne.s32.totalorder %s21, %s24
    %p30 = scmp.eq.s32.totalorder %s11, 0
    %p31 = por %p29, %p30
    %p32 = scmp.ne.s32.totalorder %s21, %s24
    %p33 = scmp.eq.s32.totalorder %s16, 1
    %p34 = por %p32, %p33
    %p35 = scmp.ne.s32.totalorder %s24, %s25
    %p36 = scmp.eq.s32.totalorder %s16, 0
    %p37 = por %p35, %p36
    %p38 = scmp.ne.s32.totalorder %s24, %s25
    %p39 = scmp.eq.s32.totalorder %s17, 1
    %p40 = por %p38, %p39
    %p42 = scmp.ne.s32.totalorder %s25, %s41
    %p43 = scmp.eq.s32.totalorder %s17, 0
    %p44 = por %p42, %p43
    %s46 = sadd.s32 %s45, 1
    %p49 = scmp.eq.s32.totalorder %s11, 1
    %p50 = scmp.ne.s32.totalorder %s45, %s47
    %p51 = scmp.eq.s32.totalorder %s11, 0
    %p52 = por %p50, %p51
    %p53 = scmp.ne.s32.totalorder %s45, %s47
    %p54 = scmp.eq.s32.totalorder %s16, 1
    %p55 = por %p53, %p54
    %p56 = scmp.ne.s32.totalorder %s47, %s48
    %p57 = scmp.eq.s32.totalorder %s16, 0
    %p58 = por %p56, %p57
    %p59 = scmp.ne.s32.totalorder %s47, %s48
    %p60 = scmp.eq.s32.totalorder %s17, 1
    %p61 = por %p59, %p60
    %p63 = scmp.ne.s32.totalorder %s48, %s62
    %p64 = scmp.eq.s32.totalorder %s17, 0
    %p65 = por %p63, %p64
    %s67 = sadd.s32 %s66, 1
    %p70 = scmp.eq.s32.totalorder %s11, 1
    %p71 = scmp.ne.s32.totalorder %s66, %s68
    %p72 = scmp.eq.s32.totalorder %s11, 0
    %p73 = por %p71, %p72
    %p74 = scmp.ne.s32.totalorder %s66, %s68
    %p75 = scmp.eq.s32.totalorder %s16, 1
    %p76 = por %p74, %p75
    %p77 = scmp.ne.s32.totalorder %s68, %s69
    %p78 = scmp.eq.s32.totalorder %s16, 0
    %p79 = por %p77, %p78
    %p80 = scmp.ne.s32.totalorder %s68, %s69
    %p81 = scmp.eq.s32.totalorder %s17, 1
    %p82 = por %p80, %p81
    %p84 = scmp.ne.s32.totalorder %s69, %s83
    %p85 = scmp.eq.s32.totalorder %s17, 0
    %p86 = por %p84, %p85
    %s88 = sadd.s32 %s87, 1
    %p91 = scmp.eq.s32.totalorder %s11, 1
    %p92 = scmp.ne.s32.totalorder %s87, %s89
    %p93 = scmp.eq.s32.totalorder %s11, 0
    %p94 = por %p92, %p93
    %p95 = scmp.ne.s32.totalorder %s87, %s89
    %p96 = scmp.eq.s32.totalorder %s16, 1
    %p97 = por %p95, %p96
    %p98 = scmp.ne.s32.totalorder %s89, %s90
    %p99 = scmp.eq.s32.totalorder %s16, 0
    %p100 = por %p98, %p99
    %p101 = scmp.ne.s32.totalorder %s89, %s90
    %p102 = scmp.eq.s32.totalorder %s17, 1
    %p103 = por %p101, %p102
    %p105 = scmp.ne.s32.totalorder %s90, %s104
    %p106 = scmp.eq.s32.totalorder %s17, 0
    %p107 = por %p105, %p106
    %s108 = ssub.s32 %s11, %s18
    %p109 = scmp.eq.s32.totalorder %s108, 0
    %s111 = sadd.s32 %s110, 1
    %s112 = scalar_select %p109, %s110, %s111
    %p115 = pneg %p109
    %p116 = scmp.eq.s32.totalorder %s11, 1
    %p117 = por %p115, %p116
    %p118 = scmp.ne.s32.totalorder %s110, %s113
    %p119 = scmp.eq.s32.totalorder %s11, 0
    %p120 = por %p118, %p119
    %p121 = scmp.ne.s32.totalorder %s110, %s113
    %p122 = scmp.eq.s32.totalorder %s16, 1
    %p123 = por %p121, %p122
    %p124 = scmp.ne.s32.totalorder %s113, %s114
    %p125 = scmp.eq.s32.totalorder %s16, 0
    %p126 = por %p124, %p125
    %p127 = scmp.ne.s32.totalorder %s113, %s114
    %p128 = scmp.eq.s32.totalorder %s17, 1
    %p129 = por %p127, %p128
    %p131 = scmp.ne.s32.totalorder %s114, %s130
    %p132 = scmp.eq.s32.totalorder %s17, 0
    %p133 = por %p131, %p132
    %s134 = ssub.s32 %s11, %s18
    %p135 = scmp.eq.s32.totalorder %s134, 0
    %s137 = sadd.s32 %s136, 1
    %s138 = scalar_select %p135, %s136, %s137
    %p141 = pneg %p135
    %p142 = scmp.eq.s32.totalorder %s11, 1
    %p143 = por %p141, %p142
    %p144 = scmp.ne.s32.totalorder %s136, %s139
    %p145 = scmp.eq.s32.totalorder %s11, 0
    %p146 = por %p144, %p145
    %p147 = scmp.ne.s32.totalorder %s136, %s139
    %p148 = scmp.eq.s32.totalorder %s16, 1
    %p149 = por %p147, %p148
    %p150 = scmp.ne.s32.totalorder %s139, %s140
    %p151 = scmp.eq.s32.totalorder %s16, 0
    %p152 = por %p150, %p151
    %p153 = scmp.ne.s32.totalorder %s139, %s140
    %p154 = scmp.eq.s32.totalorder %s17, 1
    %p155 = por %p153, %p154
    %p157 = scmp.ne.s32.totalorder %s140, %s156
    %p158 = scmp.eq.s32.totalorder %s17, 0
    %p159 = por %p157, %p158
    %p160 = scmp.le.s32.totalorder 1, %s11
    %p161 = scmp.lt.s32.totalorder %s11, 3
    %p162 = pnand %p160, %p161
    %p163 = pneg %p162
    // Predicated region
    $region9: #{residual_block_forward.3} parent=5 // pred_check
      _
    $region10: #{residual_block_forward.3} parent=5 // pred_check_branch
      %165 = sbr.rel (%p162) target = $region12
    $region11: #{residual_block_forward.3} parent=5 // pred_region
      %s166 = ssub.s32 %s11, 1
      // Predicated region
      $region13: #{residual_block_forward.3} parent=11 // pred_check
        %p167 = pneg %p58
      $region14: #{residual_block_forward.3} parent=11 // pred_check_branch
        %169 = sbr.rel (%p167) target = $region16
      $region15: #{residual_block_forward.3} parent=11 // pred_region
        _
      $region16: #{residual_block_forward.3} parent=11 // pred_fallthru
        _
      // Predicated region
      $region17: #{residual_block_forward.3} parent=11 // pred_check
        %p170 = pneg %p79
      $region18: #{residual_block_forward.3} parent=11 // pred_check_branch
        %172 = sbr.rel (%p170) target = $region20
      $region19: #{residual_block_forward.3} parent=11 // pred_region
        _
      $region20: #{residual_block_forward.3} parent=11 // pred_fallthru
        _
      // Predicated region
      $region21: #{residual_block_forward.3} parent=11 // pred_check
        %p173 = pneg %p100
      $region22: #{residual_block_forward.3} parent=11 // pred_check_branch
        %175 = sbr.rel (%p173) target = $region24
      $region23: #{residual_block_forward.3} parent=11 // pred_region
        _
      $region24: #{residual_block_forward.3} parent=11 // pred_fallthru
        _
    $region12: #{residual_block_forward.3} parent=5 // pred_fallthru
      _
    %p176 = scmp.lt.s32.totalorder %s11, 2
    // Predicated region
    $region25: #{residual_block_forward.3} parent=5 // pred_check
      %p177 = pneg %p176
    $region26: #{residual_block_forward.3} parent=5 // pred_check_branch
      %179 = sbr.rel (%p177) target = $region28
    $region27: #{residual_block_forward.3} parent=5 // pred_region
      // Predicated region
      $region29: #{residual_block_forward.3} parent=27 // pred_check
        %p180 = pneg %p31
      $region30: #{residual_block_forward.3} parent=27 // pred_check_branch
        %182 = sbr.rel (%p180) target = $region32
      $region31: #{residual_block_forward.3} parent=27 // pred_region
        %p183 = scmp.lt.s32.totalorder %s11, 1
        %s184 = scalar_select %p183, %s11, 1
        %s185 = smul.addr %s184, 41
        %s186 = smul.addr %s185, 4
        %s187 = scalar_lea.vmem %s0, %s186
      $region32: #{residual_block_forward.3} parent=27 // pred_fallthru
        _
      // Predicated region
      $region33: #{residual_block_forward.3} parent=27 // pred_check
        %p188 = pneg %p120
      $region34: #{residual_block_forward.3} parent=27 // pred_check_branch
        %190 = sbr.rel (%p188) target = $region36
      $region35: #{residual_block_forward.3} parent=27 // pred_region
        %p191 = scmp.lt.s32.totalorder %s11, 1
        %s192 = scalar_select %p191, %s11, 1
        %s193 = smul.addr %s192, 36
        %s194 = smul.addr %s193, 4
        %s195 = scalar_lea.vmem %s4, %s194
      $region36: #{residual_block_forward.3} parent=27 // pred_fallthru
        _
    $region28: #{residual_block_forward.3} parent=5 // pred_fallthru
      _
    %p196 = scmp.le.s32.totalorder 1, %s11
    %p197 = scmp.lt.s32.totalorder %s11, 3
    %p198 = pnand %p196, %p197
    %p199 = pneg %p198
    // Predicated region
    $region37: #{residual_block_forward.3} parent=5 // pred_check
      _
    $region38: #{residual_block_forward.3} parent=5 // pred_check_branch
      %201 = sbr.rel (%p198) target = $region40
    $region39: #{residual_block_forward.3} parent=5 // pred_region
      %s202 = ssub.s32 %s11, 1
      %p203 = scmp.lt.s32.totalorder %s16, 1
      %s204 = scalar_select %p203, %s16, 1
      %s205 = smul.addr %s204, 41
      %s206 = smul.addr %s205, 4
      %s207 = scalar_lea.vmem %s0, %s206
      %p208 = pneg %p37
      %p209 = pneg %p34
      %p210 = pneg %p58
      %p211 = pneg %p55
      %p212 = pneg %p79
      %p213 = pneg %p76
      %p214 = pneg %p100
      %p215 = pneg %p97
      %p216 = scmp.lt.s32.totalorder %s16, 1
      %s217 = scalar_select %p216, %s16, 1
      %s218 = smul.addr %s217, 36
      %s219 = smul.addr %s218, 4
      %s220 = scalar_lea.vmem %s4, %s219
      %p221 = pneg %p126
      %p222 = pneg %p123
      %p223 = pneg %p152
      %p224 = pneg %p149
      %p225 = scmp.lt.s32.totalorder %s16, 1
      %s226 = scalar_select %p225, %s16, 1
      %s227 = smul.addr %s226, 36
      %s228 = smul.addr %s227, 8
      %s229 = scalar_lea.vmem %s5, %s228
      %p230 = scmp.lt.s32.totalorder %s16, 1
      %s231 = scalar_select %p230, %s16, 1
      %s232 = smul.addr %s231, 41
      %s233 = smul.addr %s232, 4
      %s234 = scalar_lea.vmem %s0, %s233
      %p235 = scmp.lt.s32.totalorder %s16, 1
      %s236 = scalar_select %p235, %s16, 1
      %s237 = smul.addr %s236, 36
      %s238 = smul.addr %s237, 4
      %s239 = scalar_lea.vmem %s4, %s238
      %p240 = scmp.lt.s32.totalorder %s16, 1
      %s241 = scalar_select %p240, %s16, 1
      %s242 = smul.addr %s241, 36
      %s243 = smul.addr %s242, 8
      %s244 = scalar_lea.vmem %s5, %s243
      %v246 = vld [vmem:[%s234] sm:$0xf]
      %v247 = vld [vmem:[%s234 + $0x4] sm:$0xf]
      %v248 = vld [vmem:[%s234 + $0x8] sm:$0xf]
      %v249 = vld [vmem:[%s234 + $0xc] sm:$0xf]
      %v250 = vld [vmem:[%s234 + $0x10] sm:$0xf]
      %v251 = vld [vmem:[%s234 + $0x14] sm:$0xf]
      %v252 = vld [vmem:[%s234 + $0x18] sm:$0xf]
      %v253 = vld [vmem:[%s234 + $0x1c] sm:$0xf]
      %v254 = vld [vmem:[%s234 + $0x20] sm:$0xf]
      %v255 = vld [vmem:[%s234 + $0x24] sm:$0xf]
      %v256 = vld [vmem:[%s234 + $0x28] sm:$0xf]
      %v257 = vld [vmem:[%s234 + $0x2c] sm:$0xf]
      %v258 = vld [vmem:[%s234 + $0x30] sm:$0xf]
      %v259 = vld [vmem:[%s234 + $0x34] sm:$0xf]
      %v260 = vld [vmem:[%s234 + $0x38] sm:$0xf]
      %v261 = vld [vmem:[%s234 + $0x3c] sm:$0xf]
      %v262 = vld [vmem:[%s234 + $0x40] sm:$0xf]
      %v263 = vld [vmem:[%s234 + $0x44] sm:$0xf]
      %v264 = vld [vmem:[%s234 + $0x48] sm:$0xf]
      %v265 = vld [vmem:[%s234 + $0x4c] sm:$0xf]
      %v266 = vld [vmem:[%s234 + $0x50] sm:$0xf]
      %v267 = vld [vmem:[%s234 + $0x54] sm:$0xf]
      %v268 = vld [vmem:[%s234 + $0x58] sm:$0xf]
      %v269 = vld [vmem:[%s234 + $0x5c] sm:$0xf]
      %v270 = vld [vmem:[%s234 + $0x60] sm:$0xf]
      %v271 = vld [vmem:[%s234 + $0x64] sm:$0xf]
      %v272 = vld [vmem:[%s234 + $0x68] sm:$0xf]
      %v273 = vld [vmem:[%s234 + $0x6c] sm:$0xf]
      %v274 = vld [vmem:[%s234 + $0x70] sm:$0xf]
      %v275 = vld [vmem:[%s234 + $0x74] sm:$0xf]
      %v276 = vld [vmem:[%s234 + $0x78] sm:$0xf]
      %v277 = vld [vmem:[%s234 + $0x7c] sm:$0xf]
      %v278 = vld [vmem:[%s234 + $0x80] sm:$0xf]
      %v279 = vld [vmem:[%s234 + $0x84] sm:$0xf]
      %v280 = vld [vmem:[%s234 + $0x88] sm:$0xf]
      %v281 = vld [vmem:[%s234 + $0x8c] sm:$0xf]
      %v282 = vld [vmem:[%s1] sm:$0xf]
      %v283 = vld [vmem:[%s1 + $0x4] sm:$0xf]
      %v284 = vld [vmem:[%s1 + $0x8] sm:$0xf]
      %v285 = vld [vmem:[%s1 + $0xc] sm:$0xf]
      %v286 = vld [vmem:[%s1 + $0x10] sm:$0xf]
      %v287 = vld [vmem:[%s1 + $0x14] sm:$0xf]
      %v288 = vld [vmem:[%s1 + $0x18] sm:$0xf]
      %v289 = vld [vmem:[%s1 + $0x1c] sm:$0xf]
      %v290 = vld [vmem:[%s1 + $0x20] sm:$0xf]
      %v291 = vld [vmem:[%s1 + $0x24] sm:$0xf]
      %v292 = vld [vmem:[%s1 + $0x28] sm:$0xf]
      %v293 = vld [vmem:[%s1 + $0x2c] sm:$0xf]
      %v294 = vld [vmem:[%s1 + $0x30] sm:$0xf]
      %v295 = vld [vmem:[%s1 + $0x34] sm:$0xf]
      %v296 = vld [vmem:[%s1 + $0x38] sm:$0xf]
      %v297 = vld [vmem:[%s1 + $0x3c] sm:$0xf]
      %v298 = vld [vmem:[%s234 + $0x90] sm:$0x1]
      %s299 = scalar_lea.vmem %s1, 64
      %v300 = vld [vmem:[%s299] sm:$0xf]
      %v301 = vld [vmem:[%s299 + $0x4] sm:$0xf]
      %v302 = vld [vmem:[%s299 + $0x8] sm:$0xf]
      %v303 = vld [vmem:[%s299 + $0xc] sm:$0xf]
      %v304 = vld [vmem:[%s299 + $0x10] sm:$0xf]
      %v305 = vld [vmem:[%s299 + $0x14] sm:$0xf]
      %v306 = vld [vmem:[%s299 + $0x18] sm:$0xf]
      %v307 = vld [vmem:[%s299 + $0x1c] sm:$0xf]
      %v308 = vld [vmem:[%s299 + $0x20] sm:$0xf]
      %v309 = vld [vmem:[%s299 + $0x24] sm:$0xf]
      %v310 = vld [vmem:[%s299 + $0x28] sm:$0xf]
      %v311 = vld [vmem:[%s299 + $0x2c] sm:$0xf]
      %v312 = vld [vmem:[%s299 + $0x30] sm:$0xf]
      %v313 = vld [vmem:[%s299 + $0x34] sm:$0xf]
      %v314 = vld [vmem:[%s299 + $0x38] sm:$0xf]
      %v315 = vld [vmem:[%s299 + $0x3c] sm:$0xf]
      %v353 = vunpack.c.l.b16 %v246
      %v354 = vunpack.c.l.b16 %v247
      %v355 = vunpack.c.l.b16 %v248
      %v356 = vunpack.c.l.b16 %v249
      %v357 = vunpack.c.l.b16 %v250
      %v358 = vunpack.c.l.b16 %v251
      %v359 = vunpack.c.l.b16 %v252
      %v360 = vunpack.c.l.b16 %v253
      %v361 = vunpack.c.l.b16 %v254
      %v362 = vunpack.c.l.b16 %v255
      %v363 = vunpack.c.l.b16 %v256
      %v364 = vunpack.c.l.b16 %v257
      %v365 = vunpack.c.l.b16 %v258
      %v366 = vunpack.c.l.b16 %v259
      %v367 = vunpack.c.l.b16 %v260
      %v368 = vunpack.c.l.b16 %v261
      %v369 = vunpack.c.l.b16 %v262
      %v370 = vunpack.c.l.b16 %v263
      %v371 = vunpack.c.l.b16 %v264
      %v372 = vunpack.c.l.b16 %v265
      %v373 = vunpack.c.l.b16 %v266
      %v374 = vunpack.c.l.b16 %v267
      %v375 = vunpack.c.l.b16 %v268
      %v376 = vunpack.c.l.b16 %v269
      %v377 = vunpack.c.l.b16 %v270
      %v378 = vunpack.c.l.b16 %v271
      %v379 = vunpack.c.l.b16 %v272
      %v380 = vunpack.c.l.b16 %v273
      %v381 = vunpack.c.l.b16 %v274
      %v382 = vunpack.c.l.b16 %v275
      %v383 = vunpack.c.l.b16 %v276
      %v384 = vunpack.c.l.b16 %v277
      %v385 = vunpack.c.l.b16 %v278
      %v386 = vunpack.c.l.b16 %v279
      %v387 = vunpack.c.l.b16 %v280
      %v388 = vunpack.c.l.b16 %v281
      %v389 = vunpack.c.l.b16 %v298
      %v390 = vpack.c.b16 %v354, %v353
      %v391 = vpack.c.b16 %v356, %v355
      %v392 = vpack.c.b16 %v358, %v357
      %v393 = vpack.c.b16 %v360, %v359
      %v394 = vpack.c.b16 %v362, %v361
      %v395 = vpack.c.b16 %v364, %v363
      %v396 = vpack.c.b16 %v366, %v365
      %v397 = vpack.c.b16 %v368, %v367
      %v398 = vpack.c.b16 %v370, %v369
      %v399 = vpack.c.b16 %v372, %v371
      %v400 = vpack.c.b16 %v374, %v373
      %v401 = vpack.c.b16 %v376, %v375
      %v402 = vpack.c.b16 %v378, %v377
      %v403 = vpack.c.b16 %v380, %v379
      %v404 = vpack.c.b16 %v382, %v381
      %v405 = vpack.c.b16 %v384, %v383
      %v406 = vpack.c.b16 %v386, %v385
      %v407 = vpack.c.b16 %v388, %v387
      %v408 = vpack.c.b16 %v389, %v389
      %vm409 = vsmask.f32 7424
      %v411 = vshrl.u32 %v390, 16
      %v413 = vshll.u32 %v390, 16
      %v415 = vrot.slane %v413, 1
      %v416 = vor.u32 %v411, %v415
      %v418 = vshll.u32 %v391, 16
      %v420 = vrot.slane %v418, 1
      %v421 = vsel %vm409, %v416, %v420
      %v422 = vshrl.u32 %v391, 16
      %v424 = vor.u32 %v422, %v420
      %v426 = vshll.u32 %v392, 16
      %v428 = vrot.slane %v426, 1
      %v429 = vsel %vm409, %v424, %v428
      %v430 = vshrl.u32 %v392, 16
      %v432 = vor.u32 %v430, %v428
      %v434 = vshll.u32 %v393, 16
      %v436 = vrot.slane %v434, 1
      %v437 = vsel %vm409, %v432, %v436
      %v438 = vshrl.u32 %v393, 16
      %v440 = vor.u32 %v438, %v436
      %v442 = vshll.u32 %v394, 16
      %v444 = vrot.slane %v442, 1
      %v445 = vsel %vm409, %v440, %v444
      %v446 = vshrl.u32 %v394, 16
      %v448 = vor.u32 %v446, %v444
      %v450 = vshll.u32 %v395, 16
      %v452 = vrot.slane %v450, 1
      %v453 = vsel %vm409, %v448, %v452
      %v454 = vshrl.u32 %v395, 16
      %v456 = vor.u32 %v454, %v452
      %v458 = vshll.u32 %v396, 16
      %v460 = vrot.slane %v458, 1
      %v461 = vsel %vm409, %v456, %v460
      %v462 = vshrl.u32 %v396, 16
      %v464 = vor.u32 %v462, %v460
      %v466 = vshll.u32 %v397, 16
      %v468 = vrot.slane %v466, 1
      %v469 = vsel %vm409, %v464, %v468
      %v470 = vshrl.u32 %v397, 16
      %v472 = vor.u32 %v470, %v468
      %v474 = vshll.u32 %v398, 16
      %v476 = vrot.slane %v474, 1
      %v477 = vsel %vm409, %v472, %v476
      %v478 = vshrl.u32 %v398, 16
      %v480 = vor.u32 %v478, %v476
      %v482 = vshll.u32 %v399, 16
      %v484 = vrot.slane %v482, 1
      %v485 = vsel %vm409, %v480, %v484
      %v486 = vshrl.u32 %v399, 16
      %v488 = vor.u32 %v486, %v484
      %v490 = vshll.u32 %v400, 16
      %v492 = vrot.slane %v490, 1
      %v493 = vsel %vm409, %v488, %v492
      %v494 = vshrl.u32 %v400, 16
      %v496 = vor.u32 %v494, %v492
      %v498 = vshll.u32 %v401, 16
      %v500 = vrot.slane %v498, 1
      %v501 = vsel %vm409, %v496, %v500
      %v502 = vshrl.u32 %v401, 16
      %v504 = vor.u32 %v502, %v500
      %v506 = vshll.u32 %v402, 16
      %v508 = vrot.slane %v506, 1
      %v509 = vsel %vm409, %v504, %v508
      %v510 = vshrl.u32 %v402, 16
      %v512 = vor.u32 %v510, %v508
      %v514 = vshll.u32 %v403, 16
      %v516 = vrot.slane %v514, 1
      %v517 = vsel %vm409, %v512, %v516
      %v518 = vshrl.u32 %v403, 16
      %v520 = vor.u32 %v518, %v516
      %v522 = vshll.u32 %v404, 16
      %v524 = vrot.slane %v522, 1
      %v525 = vsel %vm409, %v520, %v524
      %v526 = vshrl.u32 %v404, 16
      %v528 = vor.u32 %v526, %v524
      %v530 = vshll.u32 %v405, 16
      %v532 = vrot.slane %v530, 1
      %v533 = vsel %vm409, %v528, %v532
      %v534 = vshrl.u32 %v405, 16
      %v536 = vor.u32 %v534, %v532
      %v538 = vshll.u32 %v406, 16
      %v540 = vrot.slane %v538, 1
      %v541 = vsel %vm409, %v536, %v540
      %v542 = vshrl.u32 %v406, 16
      %v544 = vor.u32 %v542, %v540
      %v546 = vshll.u32 %v407, 16
      %v548 = vrot.slane %v546, 1
      %v549 = vsel %vm409, %v544, %v548
      %v550 = vshrl.u32 %v407, 16
      %v552 = vor.u32 %v550, %v548
      %v554 = vshll.u32 %v408, 16
      %v556 = vrot.slane %v554, 1
      %v557 = vsel %vm409, %v552, %v556
      %v592 = vunpack.c.l.b16 %v300
      %v593 = vunpack.c.l.b16 %v301
      %v594 = vunpack.c.l.b16 %v302
      %v595 = vunpack.c.l.b16 %v303
      %v596 = vunpack.c.l.b16 %v304
      %v597 = vunpack.c.l.b16 %v305
      %v598 = vunpack.c.l.b16 %v306
      %v599 = vunpack.c.l.b16 %v307
      %v600 = vunpack.c.l.b16 %v308
      %v601 = vunpack.c.l.b16 %v309
      %v602 = vunpack.c.l.b16 %v310
      %v603 = vunpack.c.l.b16 %v311
      %v604 = vunpack.c.l.b16 %v312
      %v605 = vunpack.c.l.b16 %v313
      %v606 = vunpack.c.l.b16 %v314
      %v607 = vunpack.c.l.b16 %v315
      %v608 = vpack.c.b16 %v593, %v592
      %v609 = vpack.c.b16 %v595, %v594
      %v610 = vpack.c.b16 %v597, %v596
      %v611 = vpack.c.b16 %v599, %v598
      %v612 = vpack.c.b16 %v601, %v600
      %v613 = vpack.c.b16 %v603, %v602
      %v614 = vpack.c.b16 %v605, %v604
      %v615 = vpack.c.b16 %v607, %v606
      %624 = vmatprep.subr.bf16.mxu0 0
      %625 = vmatpush1.bf16.msra.mxu0 %v608
      %626 = vmatprep.subr.bf16.mxu0 0
      %627 = vmatpush1.bf16.msra.mxu0 %v609
      %628 = vmatprep.subr.bf16.mxu0 0
      %629 = vmatpush1.bf16.msra.mxu0 %v610
      %630 = vmatprep.subr.bf16.mxu0 0
      %631 = vmatpush1.bf16.msra.mxu0 %v611
      %632 = vmatprep.subr.bf16.mxu0 0
      %633 = vmatpush1.bf16.msra.mxu0 %v612
      %634 = vmatprep.subr.bf16.mxu0 0
      %635 = vmatpush1.bf16.msra.mxu0 %v613
      %636 = vmatprep.subr.bf16.mxu0 0
      %637 = vmatpush1.bf16.msra.mxu0 %v614
      %638 = vmatprep.subr.bf16.mxu0 0
      %639 = vmatpush1.bf16.msra.mxu0 %v615
      %640 = vmatprep.subr.bf16.mxu0 0
      %641 = vmatpush1.bf16.msra.mxu0 0
      %642 = vmatprep.subr.bf16.mxu0 0
      %643 = vmatpush1.bf16.msra.mxu0 0
      %644 = vmatprep.subr.bf16.mxu0 0
      %645 = vmatpush1.bf16.msra.mxu0 0
      %646 = vmatprep.subr.bf16.mxu0 0
      %647 = vmatpush1.bf16.msra.mxu0 0
      %648 = vmatprep.subr.bf16.mxu0 0
      %649 = vmatpush1.bf16.msra.mxu0 0
      %650 = vmatprep.subr.bf16.mxu0 0
      %651 = vmatpush1.bf16.msra.mxu0 0
      %652 = vmatprep.subr.bf16.mxu0 0
      %653 = vmatpush1.bf16.msra.mxu0 0
      %654 = vmatprep.subr.bf16.mxu0 0
      %655 = vmatpush1.bf16.msra.mxu0 0
      %656 = vmatprep.mubr.bf16.mxu0 0
      %657 = vmatmul.mubr.bf16.gmra.mrb[0].mxu0 %v421
      %v658 = vpop.f32.mrb[0].mxu0
      %v659 = vadd.f32 0.0, %v658
      %v660 = vpop.f32.mrb[0].mxu0
      %v661 = vpop.f32.mrb[0].mxu0
      %v662 = vadd.f32 0.0, %v661
      %v663 = vpop.f32.mrb[0].mxu0
      %664 = vmatprep.mubr.bf16.mxu0 0
      %665 = vmatmul.mubr.bf16.gmra.mrb[0].mxu0 %v429
      %v666 = vpop.f32.mrb[0].mxu0
      %v667 = vadd.f32 0.0, %v666
      %v668 = vpop.f32.mrb[0].mxu0
      %v669 = vpop.f32.mrb[0].mxu0
      %v670 = vadd.f32 0.0, %v669
      %v671 = vpop.f32.mrb[0].mxu0
      %672 = vmatprep.mubr.bf16.mxu0 0
      %673 = vmatmul.mubr.bf16.gmra.mrb[0].mxu0 %v437
      %v674 = vpop.f32.mrb[0].mxu0
      %v675 = vadd.f32 0.0, %v674
      %v676 = vpop.f32.mrb[0].mxu0
      %v677 = vpop.f32.mrb[0].mxu0
      %v678 = vadd.f32 0.0, %v677
      %v679 = vpop.f32.mrb[0].mxu0
      %680 = vmatprep.mubr.bf16.mxu0 0
      %681 = vmatmul.mubr.bf16.gmra.mrb[0].mxu0 %v445
      %v682 = vpop.f32.mrb[0].mxu0
      %v683 = vadd.f32 0.0, %v682
      %v684 = vpop.f32.mrb[0].mxu0
      %v685 = vpop.f32.mrb[0].mxu0
      %v686 = vadd.f32 0.0, %v685
      %v687 = vpop.f32.mrb[0].mxu0
      %688 = vmatprep.mubr.bf16.mxu0 0
      %689 = vmatmul.mubr.bf16.gmra.mrb[0].mxu0 %v453
      %v690 = vpop.f32.mrb[0].mxu0
      %v691 = vadd.f32 0.0, %v690
      %v692 = vpop.f32.mrb[0].mxu0
      %v693 = vpop.f32.mrb[0].mxu0
      %v694 = vadd.f32 0.0, %v693
      %v695 = vpop.f32.mrb[0].mxu0
      %696 = vmatprep.mubr.bf16.mxu0 0
      %697 = vmatmul.mubr.bf16.gmra.mrb[0].mxu0 %v461
      %v698 = vpop.f32.mrb[0].mxu0
      %v699 = vadd.f32 0.0, %v698
      %v700 = vpop.f32.mrb[0].mxu0
      %v701 = vpop.f32.mrb[0].mxu0
      %v702 = vadd.f32 0.0, %v701
      %v703 = vpop.f32.mrb[0].mxu0
      %704 = vmatprep.mubr.bf16.mxu0 0
      %705 = vmatmul.mubr.bf16.gmra.mrb[0].mxu0 %v469
      %v706 = vpop.f32.mrb[0].mxu0
      %v707 = vadd.f32 0.0, %v706
      %v708 = vpop.f32.mrb[0].mxu0
      %v709 = vpop.f32.mrb[0].mxu0
      %v710 = vadd.f32 0.0, %v709
      %v711 = vpop.f32.mrb[0].mxu0
      %712 = vmatprep.mubr.bf16.mxu0 0
      %713 = vmatmul.mubr.bf16.gmra.mrb[0].mxu0 %v477
      %v714 = vpop.f32.mrb[0].mxu0
      %v715 = vadd.f32 0.0, %v714
      %v716 = vpop.f32.mrb[0].mxu0
      %v717 = vpop.f32.mrb[0].mxu0
      %v718 = vadd.f32 0.0, %v717
      %v719 = vpop.f32.mrb[0].mxu0
      %720 = vmatprep.mubr.bf16.mxu0 0
      %721 = vmatmul.mubr.bf16.gmra.mrb[0].mxu0 %v485
      %v722 = vpop.f32.mrb[0].mxu0
      %v723 = vadd.f32 0.0, %v722
      %v724 = vpop.f32.mrb[0].mxu0
      %v725 = vpop.f32.mrb[0].mxu0
      %v726 = vadd.f32 0.0, %v725
      %v727 = vpop.f32.mrb[0].mxu0
      %728 = vmatprep.mubr.bf16.mxu0 0
      %729 = vmatmul.mubr.bf16.gmra.mrb[0].mxu0 %v493
      %v730 = vpop.f32.mrb[0].mxu0
      %v731 = vadd.f32 0.0, %v730
      %v732 = vpop.f32.mrb[0].mxu0
      %v733 = vpop.f32.mrb[0].mxu0
      %v734 = vadd.f32 0.0, %v733
      %v735 = vpop.f32.mrb[0].mxu0
      %736 = vmatprep.mubr.bf16.mxu0 0
      %737 = vmatmul.mubr.bf16.gmra.mrb[0].mxu0 %v501
      %v738 = vpop.f32.mrb[0].mxu0
      %v739 = vadd.f32 0.0, %v738
      %v740 = vpop.f32.mrb[0].mxu0
      %v741 = vpop.f32.mrb[0].mxu0
      %v742 = vadd.f32 0.0, %v741
      %v743 = vpop.f32.mrb[0].mxu0
      %744 = vmatprep.mubr.bf16.mxu0 0
      %745 = vmatmul.mubr.bf16.gmra.mrb[0].mxu0 %v509
      %v746 = vpop.f32.mrb[0].mxu0
      %v747 = vadd.f32 0.0, %v746
      %v748 = vpop.f32.mrb[0].mxu0
      %v749 = vpop.f32.mrb[0].mxu0
      %v750 = vadd.f32 0.0, %v749
      %v751 = vpop.f32.mrb[0].mxu0
      %752 = vmatprep.mubr.bf16.mxu0 0
      %753 = vmatmul.mubr.bf16.gmra.mrb[0].mxu0 %v517
      %v754 = vpop.f32.mrb[0].mxu0
      %v755 = vadd.f32 0.0, %v754
      %v756 = vpop.f32.mrb[0].mxu0
      %v757 = vpop.f32.mrb[0].mxu0
      %v758 = vadd.f32 0.0, %v757
      %v759 = vpop.f32.mrb[0].mxu0
      %760 = vmatprep.mubr.bf16.mxu0 0
      %761 = vmatmul.mubr.bf16.gmra.mrb[0].mxu0 %v525
      %v762 = vpop.f32.mrb[0].mxu0
      %v763 = vadd.f32 0.0, %v762
      %v764 = vpop.f32.mrb[0].mxu0
      %v765 = vpop.f32.mrb[0].mxu0
      %v766 = vadd.f32 0.0, %v765
      %v767 = vpop.f32.mrb[0].mxu0
      %768 = vmatprep.mubr.bf16.mxu0 0
      %769 = vmatmul.mubr.bf16.gmra.mrb[0].mxu0 %v533
      %v770 = vpop.f32.mrb[0].mxu0
      %v771 = vadd.f32 0.0, %v770
      %v772 = vpop.f32.mrb[0].mxu0
      %v773 = vpop.f32.mrb[0].mxu0
      %v774 = vadd.f32 0.0, %v773
      %v775 = vpop.f32.mrb[0].mxu0
      %776 = vmatprep.mubr.bf16.mxu0 0
      %777 = vmatmul.mubr.bf16.gmra.mrb[0].mxu0 %v541
      %v778 = vpop.f32.mrb[0].mxu0
      %v779 = vadd.f32 0.0, %v778
      %v780 = vpop.f32.mrb[0].mxu0
      %v781 = vpop.f32.mrb[0].mxu0
      %v782 = vadd.f32 0.0, %v781
      %v783 = vpop.f32.mrb[0].mxu0
      %784 = vmatprep.mubr.bf16.mxu0 0
      %785 = vmatmul.mubr.bf16.gmra.mrb[0].mxu0 %v549
      %v786 = vpop.f32.mrb[0].mxu0
      %v787 = vadd.f32 0.0, %v786
      %v788 = vpop.f32.mrb[0].mxu0
      %v789 = vpop.f32.mrb[0].mxu0
      %v790 = vadd.f32 0.0, %v789
      %v791 = vpop.f32.mrb[0].mxu0
      %792 = vmatprep.mubr.bf16.mxu0 0
      %793 = vmatmul.mubr.bf16.gmra.mrb[0].mxu0 %v557
      %v794 = vpop.f32.mrb[0].mxu0
      %v795 = vadd.f32 0.0, %v794
      %v796 = vpop.f32.mrb[0].mxu0
      %v797 = vpop.f32.mrb[0].mxu0
      %v798 = vadd.f32 0.0, %v797
      %v799 = vpop.f32.mrb[0].mxu0
      %800 = vdwg.mxu0
      %v835 = vunpack.c.l.b16 %v282
      %v836 = vunpack.c.l.b16 %v283
      %v837 = vunpack.c.l.b16 %v284
      %v838 = vunpack.c.l.b16 %v285
      %v839 = vunpack.c.l.b16 %v286
      %v840 = vunpack.c.l.b16 %v287
      %v841 = vunpack.c.l.b16 %v288
      %v842 = vunpack.c.l.b16 %v289
      %v843 = vunpack.c.l.b16 %v290
      %v844 = vunpack.c.l.b16 %v291
      %v845 = vunpack.c.l.b16 %v292
      %v846 = vunpack.c.l.b16 %v293
      %v847 = vunpack.c.l.b16 %v294
      %v848 = vunpack.c.l.b16 %v295
      %v849 = vunpack.c.l.b16 %v296
      %v850 = vunpack.c.l.b16 %v297
      %v851 = vpack.c.b16 %v836, %v835
      %v852 = vpack.c.b16 %v838, %v837
      %v853 = vpack.c.b16 %v840, %v839
      %v854 = vpack.c.b16 %v842, %v841
      %v855 = vpack.c.b16 %v844, %v843
      %v856 = vpack.c.b16 %v846, %v845
      %v857 = vpack.c.b16 %v848, %v847
      %v858 = vpack.c.b16 %v850, %v849
      %867 = vmatprep.subr.bf16.mxu0 0
      %868 = vmatpush1.bf16.msra.mxu0 %v851
      %869 = vmatprep.subr.bf16.mxu0 0
      %870 = vmatpush1.bf16.msra.mxu0 %v852
      %871 = vmatprep.subr.bf16.mxu0 0
      %872 = vmatpush1.bf16.msra.mxu0 %v853
      %873 = vmatprep.subr.bf16.mxu0 0
      %874 = vmatpush1.bf16.msra.mxu0 %v854
      %875 = vmatprep.subr.bf16.mxu0 0
      %876 = vmatpush1.bf16.msra.mxu0 %v855
      %877 = vmatprep.subr.bf16.mxu0 0
      %878 = vmatpush1.bf16.msra.mxu0 %v856
      %879 = vmatprep.subr.bf16.mxu0 0
      %880 = vmatpush1.bf16.msra.mxu0 %v857
      %881 = vmatprep.subr.bf16.mxu0 0
      %882 = vmatpush1.bf16.msra.mxu0 %v858
      %883 = vmatprep.subr.bf16.mxu0 0
      %884 = vmatpush1.bf16.msra.mxu0 0
      %885 = vmatprep.subr.bf16.mxu0 0
      %886 = vmatpush1.bf16.msra.mxu0 0
      %887 = vmatprep.subr.bf16.mxu0 0
      %888 = vmatpush1.bf16.msra.mxu0 0
      %889 = vmatprep.subr.bf16.mxu0 0
      %890 = vmatpush1.bf16.msra.mxu0 0
      %891 = vmatprep.subr.bf16.mxu0 0
      %892 = vmatpush1.bf16.msra.mxu0 0
      %893 = vmatprep.subr.bf16.mxu0 0
      %894 = vmatpush1.bf16.msra.mxu0 0
      %895 = vmatprep.subr.bf16.mxu0 0
      %896 = vmatpush1.bf16.msra.mxu0 0
      %897 = vmatprep.subr.bf16.mxu0 0
      %898 = vmatpush1.bf16.msra.mxu0 0
      %899 = vmatprep.mubr.bf16.mxu0 0
      %900 = vmatmul.mubr.bf16.gmra.mrb[0].mxu0 %v390
      %v901 = vpop.f32.mrb[0].mxu0
      %v902 = vadd.f32 %v659, %v901
      %v903 = vpop.f32.mrb[0].mxu0
      %v904 = vpop.f32.mrb[0].mxu0
      %v905 = vadd.f32 %v662, %v904
      %v906 = vpop.f32.mrb[0].mxu0
      %907 = vmatprep.mubr.bf16.mxu0 0
      %908 = vmatmul.mubr.bf16.gmra.mrb[0].mxu0 %v391
      %v909 = vpop.f32.mrb[0].mxu0
      %v910 = vadd.f32 %v667, %v909
      %v911 = vpop.f32.mrb[0].mxu0
      %v912 = vpop.f32.mrb[0].mxu0
      %v913 = vadd.f32 %v670, %v912
      %v914 = vpop.f32.mrb[0].mxu0
      %915 = vmatprep.mubr.bf16.mxu0 0
      %916 = vmatmul.mubr.bf16.gmra.mrb[0].mxu0 %v392
      %v917 = vpop.f32.mrb[0].mxu0
      %v918 = vadd.f32 %v675, %v917
      %v919 = vpop.f32.mrb[0].mxu0
      %v920 = vpop.f32.mrb[0].mxu0
      %v921 = vadd.f32 %v678, %v920
      %v922 = vpop.f32.mrb[0].mxu0
      %923 = vmatprep.mubr.bf16.mxu0 0
      %924 = vmatmul.mubr.bf16.gmra.mrb[0].mxu0 %v393
      %v925 = vpop.f32.mrb[0].mxu0
      %v926 = vadd.f32 %v683, %v925
      %v927 = vpop.f32.mrb[0].mxu0
      %v928 = vpop.f32.mrb[0].mxu0
      %v929 = vadd.f32 %v686, %v928
      %v930 = vpop.f32.mrb[0].mxu0
      %931 = vmatprep.mubr.bf16.mxu0 0
      %932 = vmatmul.mubr.bf16.gmra.mrb[0].mxu0 %v394
      %v933 = vpop.f32.mrb[0].mxu0
      %v934 = vadd.f32 %v691, %v933
      %v935 = vpop.f32.mrb[0].mxu0
      %v936 = vpop.f32.mrb[0].mxu0
      %v937 = vadd.f32 %v694, %v936
      %v938 = vpop.f32.mrb[0].mxu0
      %939 = vmatprep.mubr.bf16.mxu0 0
      %940 = vmatmul.mubr.bf16.gmra.mrb[0].mxu0 %v395
      %v941 = vpop.f32.mrb[0].mxu0
      %v942 = vadd.f32 %v699, %v941
      %v943 = vpop.f32.mrb[0].mxu0
      %v944 = vpop.f32.mrb[0].mxu0
      %v945 = vadd.f32 %v702, %v944
      %v946 = vpop.f32.mrb[0].mxu0
      %947 = vmatprep.mubr.bf16.mxu0 0
      %948 = vmatmul.mubr.bf16.gmra.mrb[0].mxu0 %v396
      %v949 = vpop.f32.mrb[0].mxu0
      %v950 = vadd.f32 %v707, %v949
      %v951 = vpop.f32.mrb[0].mxu0
      %v952 = vpop.f32.mrb[0].mxu0
      %v953 = vadd.f32 %v710, %v952
      %v954 = vpop.f32.mrb[0].mxu0
      %955 = vmatprep.mubr.bf16.mxu0 0
      %956 = vmatmul.mubr.bf16.gmra.mrb[0].mxu0 %v397
      %v957 = vpop.f32.mrb[0].mxu0
      %v958 = vadd.f32 %v715, %v957
      %v959 = vpop.f32.mrb[0].mxu0
      %v960 = vpop.f32.mrb[0].mxu0
      %v961 = vadd.f32 %v718, %v960
      %v962 = vpop.f32.mrb[0].mxu0
      %963 = vmatprep.mubr.bf16.mxu0 0
      %964 = vmatmul.mubr.bf16.gmra.mrb[0].mxu0 %v398
      %v965 = vpop.f32.mrb[0].mxu0
      %v966 = vadd.f32 %v723, %v965
      %v967 = vpop.f32.mrb[0].mxu0
      %v968 = vpop.f32.mrb[0].mxu0
      %v969 = vadd.f32 %v726, %v968
      %v970 = vpop.f32.mrb[0].mxu0
      %971 = vmatprep.mubr.bf16.mxu0 0
      %972 = vmatmul.mubr.bf16.gmra.mrb[0].mxu0 %v399
      %v973 = vpop.f32.mrb[0].mxu0
      %v974 = vadd.f32 %v731, %v973
      %v975 = vpop.f32.mrb[0].mxu0
      %v976 = vpop.f32.mrb[0].mxu0
      %v977 = vadd.f32 %v734, %v976
      %v978 = vpop.f32.mrb[0].mxu0
      %979 = vmatprep.mubr.bf16.mxu0 0
      %980 = vmatmul.mubr.bf16.gmra.mrb[0].mxu0 %v400
      %v981 = vpop.f32.mrb[0].mxu0
      %v982 = vadd.f32 %v739, %v981
      %v983 = vpop.f32.mrb[0].mxu0
      %v984 = vpop.f32.mrb[0].mxu0
      %v985 = vadd.f32 %v742, %v984
      %v986 = vpop.f32.mrb[0].mxu0
      %987 = vmatprep.mubr.bf16.mxu0 0
      %988 = vmatmul.mubr.bf16.gmra.mrb[0].mxu0 %v401
      %v989 = vpop.f32.mrb[0].mxu0
      %v990 = vadd.f32 %v747, %v989
      %v991 = vpop.f32.mrb[0].mxu0
      %v992 = vpop.f32.mrb[0].mxu0
      %v993 = vadd.f32 %v750, %v992
      %v994 = vpop.f32.mrb[0].mxu0
      %995 = vmatprep.mubr.bf16.mxu0 0
      %996 = vmatmul.mubr.bf16.gmra.mrb[0].mxu0 %v402
      %v997 = vpop.f32.mrb[0].mxu0
      %v998 = vadd.f32 %v755, %v997
      %v999 = vpop.f32.mrb[0].mxu0
      %v1000 = vpop.f32.mrb[0].mxu0
      %v1001 = vadd.f32 %v758, %v1000
      %v1002 = vpop.f32.mrb[0].mxu0
      %1003 = vmatprep.mubr.bf16.mxu0 0
      %1004 = vmatmul.mubr.bf16.gmra.mrb[0].mxu0 %v403
      %v1005 = vpop.f32.mrb[0].mxu0
      %v1006 = vadd.f32 %v763, %v1005
      %v1007 = vpop.f32.mrb[0].mxu0
      %v1008 = vpop.f32.mrb[0].mxu0
      %v1009 = vadd.f32 %v766, %v1008
      %v1010 = vpop.f32.mrb[0].mxu0
      %1011 = vmatprep.mubr.bf16.mxu0 0
      %1012 = vmatmul.mubr.bf16.gmra.mrb[0].mxu0 %v404
      %v1013 = vpop.f32.mrb[0].mxu0
      %v1014 = vadd.f32 %v771, %v1013
      %v1015 = vpop.f32.mrb[0].mxu0
      %v1016 = vpop.f32.mrb[0].mxu0
      %v1017 = vadd.f32 %v774, %v1016
      %v1018 = vpop.f32.mrb[0].mxu0
      %1019 = vmatprep.mubr.bf16.mxu0 0
      %1020 = vmatmul.mubr.bf16.gmra.mrb[0].mxu0 %v405
      %v1021 = vpop.f32.mrb[0].mxu0
      %v1022 = vadd.f32 %v779, %v1021
      %v1023 = vpop.f32.mrb[0].mxu0
      %v1024 = vpop.f32.mrb[0].mxu0
      %v1025 = vadd.f32 %v782, %v1024
      %v1026 = vpop.f32.mrb[0].mxu0
      %1027 = vmatprep.mubr.bf16.mxu0 0
      %1028 = vmatmul.mubr.bf16.gmra.mrb[0].mxu0 %v406
      %v1029 = vpop.f32.mrb[0].mxu0
      %v1030 = vadd.f32 %v787, %v1029
      %v1031 = vpop.f32.mrb[0].mxu0
      %v1032 = vpop.f32.mrb[0].mxu0
      %v1033 = vadd.f32 %v790, %v1032
      %v1034 = vpop.f32.mrb[0].mxu0
      %1035 = vmatprep.mubr.bf16.mxu0 0
      %1036 = vmatmul.mubr.bf16.gmra.mrb[0].mxu0 %v407
      %v1037 = vpop.f32.mrb[0].mxu0
      %v1038 = vadd.f32 %v795, %v1037
      %v1039 = vpop.f32.mrb[0].mxu0
      %v1040 = vpop.f32.mrb[0].mxu0
      %v1041 = vadd.f32 %v798, %v1040
      %v1042 = vpop.f32.mrb[0].mxu0
      %1043 = vdwg.mxu0
      %v1044 = vld [vmem:[%s234] sm:$0xe]
      %s1045 = scalar_lea.vmem %s1, 128
      %v1046 = vld [vmem:[%s1045] sm:$0xf]
      %v1047 = vld [vmem:[%s1045 + $0x4] sm:$0xf]
      %v1048 = vld [vmem:[%s1045 + $0x8] sm:$0xf]
      %v1049 = vld [vmem:[%s1045 + $0xc] sm:$0xf]
      %v1050 = vld [vmem:[%s1045 + $0x10] sm:$0xf]
      %v1051 = vld [vmem:[%s1045 + $0x14] sm:$0xf]
      %v1052 = vld [vmem:[%s1045 + $0x18] sm:$0xf]
      %v1053 = vld [vmem:[%s1045 + $0x1c] sm:$0xf]
      %v1054 = vld [vmem:[%s1045 + $0x20] sm:$0xf]
      %v1055 = vld [vmem:[%s1045 + $0x24] sm:$0xf]
      %v1056 = vld [vmem:[%s1045 + $0x28] sm:$0xf]
      %v1057 = vld [vmem:[%s1045 + $0x2c] sm:$0xf]
      %v1058 = vld [vmem:[%s1045 + $0x30] sm:$0xf]
      %v1059 = vld [vmem:[%s1045 + $0x34] sm:$0xf]
      %v1060 = vld [vmem:[%s1045 + $0x38] sm:$0xf]
      %v1061 = vld [vmem:[%s1045 + $0x3c] sm:$0xf]
      %v1063 = vunpack.c.l.b16 %v1044
      %v1064 = vpack.c.b16 %v354, %v1063
      %vm1065 = vcmask 1046528
      %v1066 = vrot.slane %v1064, 1
      %v1067 = vrot.slane %v391, 1
      %v1068 = vsel %vm1065, %v1066, %v1067
      %v1069 = vrot.slane %v392, 1
      %v1070 = vsel %vm1065, %v1067, %v1069
      %v1071 = vrot.slane %v393, 1
      %v1072 = vsel %vm1065, %v1069, %v1071
      %v1073 = vrot.slane %v394, 1
      %v1074 = vsel %vm1065, %v1071, %v1073
      %v1075 = vrot.slane %v395, 1
      %v1076 = vsel %vm1065, %v1073, %v1075
      %v1077 = vrot.slane %v396, 1
      %v1078 = vsel %vm1065, %v1075, %v1077
      %v1079 = vrot.slane %v397, 1
      %v1080 = vsel %vm1065, %v1077, %v1079
      %v1081 = vrot.slane %v398, 1
      %v1082 = vsel %vm1065, %v1079, %v1081
      %v1083 = vrot.slane %v399, 1
      %v1084 = vsel %vm1065, %v1081, %v1083
      %v1085 = vrot.slane %v400, 1
      %v1086 = vsel %vm1065, %v1083, %v1085
      %v1087 = vrot.slane %v401, 1
      %v1088 = vsel %vm1065, %v1085, %v1087
      %v1089 = vrot.slane %v402, 1
      %v1090 = vsel %vm1065, %v1087, %v1089
      %v1091 = vrot.slane %v403, 1
      %v1092 = vsel %vm1065, %v1089, %v1091
      %v1093 = vrot.slane %v404, 1
      %v1094 = vsel %vm1065, %v1091, %v1093
      %v1095 = vrot.slane %v405, 1
      %v1096 = vsel %vm1065, %v1093, %v1095
      %v1097 = vrot.slane %v406, 1
      %v1098 = vsel %vm1065, %v1095, %v1097
      %v1099 = vrot.slane %v407, 1
      %v1100 = vsel %vm1065, %v1097, %v1099
      %v1101 = vrot.slane %v408, 1
      %v1102 = vsel %vm1065, %v1099, %v1101
      %v1137 = vunpack.c.l.b16 %v1046
      %v1138 = vunpack.c.l.b16 %v1047
      %v1139 = vunpack.c.l.b16 %v1048
      %v1140 = vunpack.c.l.b16 %v1049
      %v1141 = vunpack.c.l.b16 %v1050
      %v1142 = vunpack.c.l.b16 %v1051
      %v1143 = vunpack.c.l.b16 %v1052
      %v1144 = vunpack.c.l.b16 %v1053
      %v1145 = vunpack.c.l.b16 %v1054
      %v1146 = vunpack.c.l.b16 %v1055
      %v1147 = vunpack.c.l.b16 %v1056
      %v1148 = vunpack.c.l.b16 %v1057
      %v1149 = vunpack.c.l.b16 %v1058
      %v1150 = vunpack.c.l.b16 %v1059
      %v1151 = vunpack.c.l.b16 %v1060
      %v1152 = vunpack.c.l.b16 %v1061
      %v1153 = vpack.c.b16 %v1138, %v1137
      %v1154 = vpack.c.b16 %v1140, %v1139
      %v1155 = vpack.c.b16 %v1142, %v1141
      %v1156 = vpack.c.b16 %v1144, %v1143
      %v1157 = vpack.c.b16 %v1146, %v1145
      %v1158 = vpack.c.b16 %v1148, %v1147
      %v1159 = vpack.c.b16 %v1150, %v1149
      %v1160 = vpack.c.b16 %v1152, %v1151
      %1169 = vmatprep.subr.bf16.mxu0 0
      %1170 = vmatpush1.bf16.msra.mxu0 %v1153
      %1171 = vmatprep.subr.bf16.mxu0 0
      %1172 = vmatpush1.bf16.msra.mxu0 %v1154
      %1173 = vmatprep.subr.bf16.mxu0 0
      %1174 = vmatpush1.bf16.msra.mxu0 %v1155
      %1175 = vmatprep.subr.bf16.mxu0 0
      %1176 = vmatpush1.bf16.msra.mxu0 %v1156
      %1177 = vmatprep.subr.bf16.mxu0 0
      %1178 = vmatpush1.bf16.msra.mxu0 %v1157
      %1179 = vmatprep.subr.bf16.mxu0 0
      %1180 = vmatpush1.bf16.msra.mxu0 %v1158
      %1181 = vmatprep.subr.bf16.mxu0 0
      %1182 = vmatpush1.bf16.msra.mxu0 %v1159
      %1183 = vmatprep.subr.bf16.mxu0 0
      %1184 = vmatpush1.bf16.msra.mxu0 %v1160
      %1185 = vmatprep.subr.bf16.mxu0 0
      %1186 = vmatpush1.bf16.msra.mxu0 0
      %1187 = vmatprep.subr.bf16.mxu0 0
      %1188 = vmatpush1.bf16.msra.mxu0 0
      %1189 = vmatprep.subr.bf16.mxu0 0
      %1190 = vmatpush1.bf16.msra.mxu0 0
      %1191 = vmatprep.subr.bf16.mxu0 0
      %1192 = vmatpush1.bf16.msra.mxu0 0
      %1193 = vmatprep.subr.bf16.mxu0 0
      %1194 = vmatpush1.bf16.msra.mxu0 0
      %1195 = vmatprep.subr.bf16.mxu0 0
      %1196 = vmatpush1.bf16.msra.mxu0 0
      %1197 = vmatprep.subr.bf16.mxu0 0
      %1198 = vmatpush1.bf16.msra.mxu0 0
      %1199 = vmatprep.subr.bf16.mxu0 0
      %1200 = vmatpush1.bf16.msra.mxu0 0
      %1201 = vmatprep.mubr.bf16.mxu0 0
      %1202 = vmatmul.mubr.bf16.gmra.mrb[0].mxu0 %v1068
      %v1203 = vpop.f32.mrb[0].mxu0
      %v1204 = vadd.f32 0.0, %v1203
      %v1205 = vpop.f32.mrb[0].mxu0
      %v1206 = vpop.f32.mrb[0].mxu0
      %v1207 = vadd.f32 0.0, %v1206
      %v1208 = vpop.f32.mrb[0].mxu0
      %1209 = vmatprep.mubr.bf16.mxu0 0
      %1210 = vmatmul.mubr.bf16.gmra.mrb[0].mxu0 %v1070
      %v1211 = vpop.f32.mrb[0].mxu0
      %v1212 = vadd.f32 0.0, %v1211
      %v1213 = vpop.f32.mrb[0].mxu0
      %v1214 = vpop.f32.mrb[0].mxu0
      %v1215 = vadd.f32 0.0, %v1214
      %v1216 = vpop.f32.mrb[0].mxu0
      %1217 = vmatprep.mubr.bf16.mxu0 0
      %1218 = vmatmul.mubr.bf16.gmra.mrb[0].mxu0 %v1072
      %v1219 = vpop.f32.mrb[0].mxu0
      %v1220 = vadd.f32 0.0, %v1219
      %v1221 = vpop.f32.mrb[0].mxu0
      %v1222 = vpop.f32.mrb[0].mxu0
      %v1223 = vadd.f32 0.0, %v1222
      %v1224 = vpop.f32.mrb[0].mxu0
      %1225 = vmatprep.mubr.bf16.mxu0 0
      %1226 = vmatmul.mubr.bf16.gmra.mrb[0].mxu0 %v1074
      %v1227 = vpop.f32.mrb[0].mxu0
      %v1228 = vadd.f32 0.0, %v1227
      %v1229 = vpop.f32.mrb[0].mxu0
      %v1230 = vpop.f32.mrb[0].mxu0
      %v1231 = vadd.f32 0.0, %v1230
      %v1232 = vpop.f32.mrb[0].mxu0
      %1233 = vmatprep.mubr.bf16.mxu0 0
      %1234 = vmatmul.mubr.bf16.gmra.mrb[0].mxu0 %v1076
      %v1235 = vpop.f32.mrb[0].mxu0
      %v1236 = vadd.f32 0.0, %v1235
      %v1237 = vpop.f32.mrb[0].mxu0
      %v1238 = vpop.f32.mrb[0].mxu0
      %v1239 = vadd.f32 0.0, %v1238
      %v1240 = vpop.f32.mrb[0].mxu0
      %1241 = vmatprep.mubr.bf16.mxu0 0
      %1242 = vmatmul.mubr.bf16.gmra.mrb[0].mxu0 %v1078
      %v1243 = vpop.f32.mrb[0].mxu0
      %v1244 = vadd.f32 0.0, %v1243
      %v1245 = vpop.f32.mrb[0].mxu0
      %v1246 = vpop.f32.mrb[0].mxu0
      %v1247 = vadd.f32 0.0, %v1246
      %v1248 = vpop.f32.mrb[0].mxu0
      %1249 = vmatprep.mubr.bf16.mxu0 0
      %1250 = vmatmul.mubr.bf16.gmra.mrb[0].mxu0 %v1080
      %v1251 = vpop.f32.mrb[0].mxu0
      %v1252 = vadd.f32 0.0, %v1251
      %v1253 = vpop.f32.mrb[0].mxu0
      %v1254 = vpop.f32.mrb[0].mxu0
      %v1255 = vadd.f32 0.0, %v1254
      %v1256 = vpop.f32.mrb[0].mxu0
      %1257 = vmatprep.mubr.bf16.mxu0 0
      %1258 = vmatmul.mubr.bf16.gmra.mrb[0].mxu0 %v1082
      %v1259 = vpop.f32.mrb[0].mxu0
      %v1260 = vadd.f32 0.0, %v1259
      %v1261 = vpop.f32.mrb[0].mxu0
      %v1262 = vpop.f32.mrb[0].mxu0
      %v1263 = vadd.f32 0.0, %v1262
      %v1264 = vpop.f32.mrb[0].mxu0
      %1265 = vmatprep.mubr.bf16.mxu0 0
      %1266 = vmatmul.mubr.bf16.gmra.mrb[0].mxu0 %v1084
      %v1267 = vpop.f32.mrb[0].mxu0
      %v1268 = vadd.f32 0.0, %v1267
      %v1269 = vpop.f32.mrb[0].mxu0
      %v1270 = vpop.f32.mrb[0].mxu0
      %v1271 = vadd.f32 0.0, %v1270
      %v1272 = vpop.f32.mrb[0].mxu0
      %1273 = vmatprep.mubr.bf16.mxu0 0
      %1274 = vmatmul.mubr.bf16.gmra.mrb[0].mxu0 %v1086
      %v1275 = vpop.f32.mrb[0].mxu0
      %v1276 = vadd.f32 0.0, %v1275
      %v1277 = vpop.f32.mrb[0].mxu0
      %v1278 = vpop.f32.mrb[0].mxu0
      %v1279 = vadd.f32 0.0, %v1278
      %v1280 = vpop.f32.mrb[0].mxu0
      %1281 = vmatprep.mubr.bf16.mxu0 0
      %1282 = vmatmul.mubr.bf16.gmra.mrb[0].mxu0 %v1088
      %v1283 = vpop.f32.mrb[0].mxu0
      %v1284 = vadd.f32 0.0, %v1283
      %v1285 = vpop.f32.mrb[0].mxu0
      %v1286 = vpop.f32.mrb[0].mxu0
      %v1287 = vadd.f32 0.0, %v1286
      %v1288 = vpop.f32.mrb[0].mxu0
      %1289 = vmatprep.mubr.bf16.mxu0 0
      %1290 = vmatmul.mubr.bf16.gmra.mrb[0].mxu0 %v1090
      %v1291 = vpop.f32.mrb[0].mxu0
      %v1292 = vadd.f32 0.0, %v1291
      %v1293 = vpop.f32.mrb[0].mxu0
      %v1294 = vpop.f32.mrb[0].mxu0
      %v1295 = vadd.f32 0.0, %v1294
      %v1296 = vpop.f32.mrb[0].mxu0
      %1297 = vmatprep.mubr.bf16.mxu0 0
      %1298 = vmatmul.mubr.bf16.gmra.mrb[0].mxu0 %v1092
      %v1299 = vpop.f32.mrb[0].mxu0
      %v1300 = vadd.f32 0.0, %v1299
      %v1301 = vpop.f32.mrb[0].mxu0
      %v1302 = vpop.f32.mrb[0].mxu0
      %v1303 = vadd.f32 0.0, %v1302
      %v1304 = vpop.f32.mrb[0].mxu0
      %1305 = vmatprep.mubr.bf16.mxu0 0
      %1306 = vmatmul.mubr.bf16.gmra.mrb[0].mxu0 %v1094
      %v1307 = vpop.f32.mrb[0].mxu0
      %v1308 = vadd.f32 0.0, %v1307
      %v1309 = vpop.f32.mrb[0].mxu0
      %v1310 = vpop.f32.mrb[0].mxu0
      %v1311 = vadd.f32 0.0, %v1310
      %v1312 = vpop.f32.mrb[0].mxu0
      %1313 = vmatprep.mubr.bf16.mxu0 0
      %1314 = vmatmul.mubr.bf16.gmra.mrb[0].mxu0 %v1096
      %v1315 = vpop.f32.mrb[0].mxu0
      %v1316 = vadd.f32 0.0, %v1315
      %v1317 = vpop.f32.mrb[0].mxu0
      %v1318 = vpop.f32.mrb[0].mxu0
      %v1319 = vadd.f32 0.0, %v1318
      %v1320 = vpop.f32.mrb[0].mxu0
      %1321 = vmatprep.mubr.bf16.mxu0 0
      %1322 = vmatmul.mubr.bf16.gmra.mrb[0].mxu0 %v1098
      %v1323 = vpop.f32.mrb[0].mxu0
      %v1324 = vadd.f32 0.0, %v1323
      %v1325 = vpop.f32.mrb[0].mxu0
      %v1326 = vpop.f32.mrb[0].mxu0
      %v1327 = vadd.f32 0.0, %v1326
      %v1328 = vpop.f32.mrb[0].mxu0
      %1329 = vmatprep.mubr.bf16.mxu0 0
      %1330 = vmatmul.mubr.bf16.gmra.mrb[0].mxu0 %v1100
      %v1331 = vpop.f32.mrb[0].mxu0
      %v1332 = vadd.f32 0.0, %v1331
      %v1333 = vpop.f32.mrb[0].mxu0
      %v1334 = vpop.f32.mrb[0].mxu0
      %v1335 = vadd.f32 0.0, %v1334
      %v1336 = vpop.f32.mrb[0].mxu0
      %1337 = vmatprep.mubr.bf16.mxu0 0
      %1338 = vmatmul.mubr.bf16.gmra.mrb[0].mxu0 %v1102
      %v1339 = vpop.f32.mrb[0].mxu0
      %v1340 = vadd.f32 0.0, %v1339
      %v1341 = vpop.f32.mrb[0].mxu0
      %v1342 = vpop.f32.mrb[0].mxu0
      %v1343 = vadd.f32 0.0, %v1342
      %v1344 = vpop.f32.mrb[0].mxu0
      %1345 = vdwg.mxu0
      %v1346 = vadd.f32 %v902, %v1204
      %v1347 = vadd.f32 %v905, %v1207
      %v1348 = vadd.f32 %v910, %v1212
      %v1349 = vadd.f32 %v913, %v1215
      %v1350 = vadd.f32 %v918, %v1220
      %v1351 = vadd.f32 %v921, %v1223
      %v1352 = vadd.f32 %v926, %v1228
      %v1353 = vadd.f32 %v929, %v1231
      %v1354 = vadd.f32 %v934, %v1236
      %v1355 = vadd.f32 %v937, %v1239
      %v1356 = vadd.f32 %v942, %v1244
      %v1357 = vadd.f32 %v945, %v1247
      %v1358 = vadd.f32 %v950, %v1252
      %v1359 = vadd.f32 %v953, %v1255
      %v1360 = vadd.f32 %v958, %v1260
      %v1361 = vadd.f32 %v961, %v1263
      %v1362 = vadd.f32 %v966, %v1268
      %v1363 = vadd.f32 %v969, %v1271
      %v1364 = vadd.f32 %v974, %v1276
      %v1365 = vadd.f32 %v977, %v1279
      %v1366 = vadd.f32 %v982, %v1284
      %v1367 = vadd.f32 %v985, %v1287
      %v1368 = vadd.f32 %v990, %v1292
      %v1369 = vadd.f32 %v993, %v1295
      %v1370 = vadd.f32 %v998, %v1300
      %v1371 = vadd.f32 %v1001, %v1303
      %v1372 = vadd.f32 %v1006, %v1308
      %v1373 = vadd.f32 %v1009, %v1311
      %v1374 = vadd.f32 %v1014, %v1316
      %v1375 = vadd.f32 %v1017, %v1319
      %v1376 = vadd.f32 %v1022, %v1324
      %v1377 = vadd.f32 %v1025, %v1327
      %v1378 = vadd.f32 %v1030, %v1332
      %v1379 = vadd.f32 %v1033, %v1335
      %v1380 = vadd.f32 %v1038, %v1340
      %v1381 = vadd.f32 %v1041, %v1343
      %v1382 = vld [vmem:[%s234 + $0x8] sm:$0xe]
      %v1383 = vld [vmem:[%s234 + $0xc] sm:$0xf]
      %v1384 = vld [vmem:[%s234 + $0x10] sm:$0xf]
      %v1385 = vld [vmem:[%s234 + $0x14] sm:$0xf]
      %v1386 = vld [vmem:[%s234 + $0x18] sm:$0xf]
      %v1387 = vld [vmem:[%s234 + $0x1c] sm:$0xf]
      %v1388 = vld [vmem:[%s234 + $0x20] sm:$0xf]
      %v1389 = vld [vmem:[%s234 + $0x24] sm:$0xf]
      %v1390 = vld [vmem:[%s234 + $0x28] sm:$0xf]
      %v1391 = vld [vmem:[%s234 + $0x2c] sm:$0xf]
      %v1392 = vld [vmem:[%s234 + $0x30] sm:$0xf]
      %v1393 = vld [vmem:[%s234 + $0x34] sm:$0xf]
      %v1394 = vld [vmem:[%s234 + $0x38] sm:$0xf]
      %v1395 = vld [vmem:[%s234 + $0x3c] sm:$0xf]
      %v1396 = vld [vmem:[%s234 + $0x40] sm:$0xf]
      %v1397 = vld [vmem:[%s234 + $0x44] sm:$0xf]
      %v1398 = vld [vmem:[%s234 + $0x48] sm:$0xf]
      %v1399 = vld [vmem:[%s234 + $0x4c] sm:$0xf]
      %v1400 = vld [vmem:[%s234 + $0x50] sm:$0xf]
      %v1401 = vld [vmem:[%s234 + $0x54] sm:$0xf]
      %v1402 = vld [vmem:[%s234 + $0x58] sm:$0xf]
      %v1403 = vld [vmem:[%s234 + $0x5c] sm:$0xf]
      %v1404 = vld [vmem:[%s234 + $0x60] sm:$0xf]
      %v1405 = vld [vmem:[%s234 + $0x64] sm:$0xf]
      %v1406 = vld [vmem:[%s234 + $0x68] sm:$0xf]
      %v1407 = vld [vmem:[%s234 + $0x6c] sm:$0xf]
      %v1408 = vld [vmem:[%s234 + $0x70] sm:$0xf]
      %v1409 = vld [vmem:[%s234 + $0x74] sm:$0xf]
      %v1410 = vld [vmem:[%s234 + $0x78] sm:$0xf]
      %v1411 = vld [vmem:[%s234 + $0x7c] sm:$0xf]
      %v1412 = vld [vmem:[%s234 + $0x80] sm:$0xf]
      %v1413 = vld [vmem:[%s234 + $0x84] sm:$0xf]
      %v1414 = vld [vmem:[%s234 + $0x88] sm:$0xf]
      %v1415 = vld [vmem:[%s234 + $0x8c] sm:$0xf]
      %v1416 = vld [vmem:[%s234 + $0x90] sm:$0xf]
      %v1417 = vld [vmem:[%s234 + $0x94] sm:$0xf]
      %v1418 = vld [vmem:[%s234 + $0x98] sm:$0x1]
      %s1419 = scalar_lea.vmem %s1, 192
      %v1420 = vld [vmem:[%s1419] sm:$0xf]
      %v1421 = vld [vmem:[%s1419 + $0x4] sm:$0xf]
      %v1422 = vld [vmem:[%s1419 + $0x8] sm:$0xf]
      %v1423 = vld [vmem:[%s1419 + $0xc] sm:$0xf]
      %v1424 = vld [vmem:[%s1419 + $0x10] sm:$0xf]
      %v1425 = vld [vmem:[%s1419 + $0x14] sm:$0xf]
      %v1426 = vld [vmem:[%s1419 + $0x18] sm:$0xf]
      %v1427 = vld [vmem:[%s1419 + $0x1c] sm:$0xf]
      %v1428 = vld [vmem:[%s1419 + $0x20] sm:$0xf]
      %v1429 = vld [vmem:[%s1419 + $0x24] sm:$0xf]
      %v1430 = vld [vmem:[%s1419 + $0x28] sm:$0xf]
      %v1431 = vld [vmem:[%s1419 + $0x2c] sm:$0xf]
      %v1432 = vld [vmem:[%s1419 + $0x30] sm:$0xf]
      %v1433 = vld [vmem:[%s1419 + $0x34] sm:$0xf]
      %v1434 = vld [vmem:[%s1419 + $0x38] sm:$0xf]
      %v1435 = vld [vmem:[%s1419 + $0x3c] sm:$0xf]
      %v1473 = vunpack.c.l.b16 %v1382
      %v1474 = vunpack.c.l.b16 %v1383
      %v1475 = vunpack.c.l.b16 %v1384
      %v1476 = vunpack.c.l.b16 %v1385
      %v1477 = vunpack.c.l.b16 %v1386
      %v1478 = vunpack.c.l.b16 %v1387
      %v1479 = vunpack.c.l.b16 %v1388
      %v1480 = vunpack.c.l.b16 %v1389
      %v1481 = vunpack.c.l.b16 %v1390
      %v1482 = vunpack.c.l.b16 %v1391
      %v1483 = vunpack.c.l.b16 %v1392
      %v1484 = vunpack.c.l.b16 %v1393
      %v1485 = vunpack.c.l.b16 %v1394
      %v1486 = vunpack.c.l.b16 %v1395
      %v1487 = vunpack.c.l.b16 %v1396
      %v1488 = vunpack.c.l.b16 %v1397
      %v1489 = vunpack.c.l.b16 %v1398
      %v1490 = vunpack.c.l.b16 %v1399
      %v1491 = vunpack.c.l.b16 %v1400
      %v1492 = vunpack.c.l.b16 %v1401
      %v1493 = vunpack.c.l.b16 %v1402
      %v1494 = vunpack.c.l.b16 %v1403
      %v1495 = vunpack.c.l.b16 %v1404
      %v1496 = vunpack.c.l.b16 %v1405
      %v1497 = vunpack.c.l.b16 %v1406
      %v1498 = vunpack.c.l.b16 %v1407
      %v1499 = vunpack.c.l.b16 %v1408
      %v1500 = vunpack.c.l.b16 %v1409
      %v1501 = vunpack.c.l.b16 %v1410
      %v1502 = vunpack.c.l.b16 %v1411
      %v1503 = vunpack.c.l.b16 %v1412
      %v1504 = vunpack.c.l.b16 %v1413
      %v1505 = vunpack.c.l.b16 %v1414
      %v1506 = vunpack.c.l.b16 %v1415
      %v1507 = vunpack.c.l.b16 %v1416
      %v1508 = vunpack.c.l.b16 %v1417
      %v1509 = vunpack.c.l.b16 %v1418
      %v1510 = vpack.c.b16 %v1474, %v1473
      %v1511 = vpack.c.b16 %v1476, %v1475
      %v1512 = vpack.c.b16 %v1478, %v1477
      %v1513 = vpack.c.b16 %v1480, %v1479
      %v1514 = vpack.c.b16 %v1482, %v1481
      %v1515 = vpack.c.b16 %v1484, %v1483
      %v1516 = vpack.c.b16 %v1486, %v1485
      %v1517 = vpack.c.b16 %v1488, %v1487
      %v1518 = vpack.c.b16 %v1490, %v1489
      %v1519 = vpack.c.b16 %v1492, %v1491
      %v1520 = vpack.c.b16 %v1494, %v1493
      %v1521 = vpack.c.b16 %v1496, %v1495
      %v1522 = vpack.c.b16 %v1498, %v1497
      %v1523 = vpack.c.b16 %v1500, %v1499
      %v1524 = vpack.c.b16 %v1502, %v1501
      %v1525 = vpack.c.b16 %v1504, %v1503
      %v1526 = vpack.c.b16 %v1506, %v1505
      %v1527 = vpack.c.b16 %v1508, %v1507
      %v1528 = vpack.c.b16 %v1509, %v1509
      %v1529 = vrot.slane %v1510, 1
      %v1530 = vrot.slane %v1511, 1
      %v1531 = vsel %vm1065, %v1529, %v1530
      %v1532 = vrot.slane %v1512, 1
      %v1533 = vsel %vm1065, %v1530, %v1532
      %v1534 = vrot.slane %v1513, 1
      %v1535 = vsel %vm1065, %v1532, %v1534
      %v1536 = vrot.slane %v1514, 1
      %v1537 = vsel %vm1065, %v1534, %v1536
      %v1538 = vrot.slane %v1515, 1
      %v1539 = vsel %vm1065, %v1536, %v1538
      %v1540 = vrot.slane %v1516, 1
      %v1541 = vsel %vm1065, %v1538, %v1540
      %v1542 = vrot.slane %v1517, 1
      %v1543 = vsel %vm1065, %v1540, %v1542
      %v1544 = vrot.slane %v1518, 1
      %v1545 = vsel %vm1065, %v1542, %v1544
      %v1546 = vrot.slane %v1519, 1
      %v1547 = vsel %vm1065, %v1544, %v1546
      %v1548 = vrot.slane %v1520, 1
      %v1549 = vsel %vm1065, %v1546, %v1548
      %v1550 = vrot.slane %v1521, 1
      %v1551 = vsel %vm1065, %v1548, %v1550
      %v1552 = vrot.slane %v1522, 1
      %v1553 = vsel %vm1065, %v1550, %v1552
      %v1554 = vrot.slane %v1523, 1
      %v1555 = vsel %vm1065, %v1552, %v1554
      %v1556 = vrot.slane %v1524, 1
      %v1557 = vsel %vm1065, %v1554, %v1556
      %v1558 = vrot.slane %v1525, 1
      %v1559 = vsel %vm1065, %v1556, %v1558
      %v1560 = vrot.slane %v1526, 1
      %v1561 = vsel %vm1065, %v1558, %v1560
      %v1562 = vrot.slane %v1527, 1
      %v1563 = vsel %vm1065, %v1560, %v1562
      %v1564 = vrot.slane %v1528, 1
      %v1565 = vsel %vm1065, %v1562, %v1564
      %v1600 = vunpack.c.l.b16 %v1420
      %v1601 = vunpack.c.l.b16 %v1421
      %v1602 = vunpack.c.l.b16 %v1422
      %v1603 = vunpack.c.l.b16 %v1423
      %v1604 = vunpack.c.l.b16 %v1424
      %v1605 = vunpack.c.l.b16 %v1425
      %v1606 = vunpack.c.l.b16 %v1426
      %v1607 = vunpack.c.l.b16 %v1427
      %v1608 = vunpack.c.l.b16 %v1428
      %v1609 = vunpack.c.l.b16 %v1429
      %v1610 = vunpack.c.l.b16 %v1430
      %v1611 = vunpack.c.l.b16 %v1431
      %v1612 = vunpack.c.l.b16 %v1432
      %v1613 = vunpack.c.l.b16 %v1433
      %v1614 = vunpack.c.l.b16 %v1434
      %v1615 = vunpack.c.l.b16 %v1435
      %v1616 = vpack.c.b16 %v1601, %v1600
      %v1617 = vpack.c.b16 %v1603, %v1602
      %v1618 = vpack.c.b16 %v1605, %v1604
      %v1619 = vpack.c.b16 %v1607, %v1606
      %v1620 = vpack.c.b16 %v1609, %v1608
      %v1621 = vpack.c.b16 %v1611, %v1610
      %v1622 = vpack.c.b16 %v1613, %v1612
      %v1623 = vpack.c.b16 %v1615, %v1614
      %1632 = vmatprep.subr.bf16.mxu0 0
      %1633 = vmatpush1.bf16.msra.mxu0 %v1616
      %1634 = vmatprep.subr.bf16.mxu0 0
      %1635 = vmatpush1.bf16.msra.mxu0 %v1617
      %1636 = vmatprep.subr.bf16.mxu0 0
      %1637 = vmatpush1.bf16.msra.mxu0 %v1618
      %1638 = vmatprep.subr.bf16.mxu0 0
      %1639 = vmatpush1.bf16.msra.mxu0 %v1619
      %1640 = vmatprep.subr.bf16.mxu0 0
      %1641 = vmatpush1.bf16.msra.mxu0 %v1620
      %1642 = vmatprep.subr.bf16.mxu0 0
      %1643 = vmatpush1.bf16.msra.mxu0 %v1621
      %1644 = vmatprep.subr.bf16.mxu0 0
      %1645 = vmatpush1.bf16.msra.mxu0 %v1622
      %1646 = vmatprep.subr.bf16.mxu0 0
      %1647 = vmatpush1.bf16.msra.mxu0 %v1623
      %1648 = vmatprep.subr.bf16.mxu0 0
      %1649 = vmatpush1.bf16.msra.mxu0 0
      %1650 = vmatprep.subr.bf16.mxu0 0
      %1651 = vmatpush1.bf16.msra.mxu0 0
      %1652 = vmatprep.subr.bf16.mxu0 0
      %1653 = vmatpush1.bf16.msra.mxu0 0
      %1654 = vmatprep.subr.bf16.mxu0 0
      %1655 = vmatpush1.bf16.msra.mxu0 0
      %1656 = vmatprep.subr.bf16.mxu0 0
      %1657 = vmatpush1.bf16.msra.mxu0 0
      %1658 = vmatprep.subr.bf16.mxu0 0
      %1659 = vmatpush1.bf16.msra.mxu0 0
      %1660 = vmatprep.subr.bf16.mxu0 0
      %1661 = vmatpush1.bf16.msra.mxu0 0
      %1662 = vmatprep.subr.bf16.mxu0 0
      %1663 = vmatpush1.bf16.msra.mxu0 0
      %1664 = vmatprep.mubr.bf16.mxu0 0
      %1665 = vmatmul.mubr.bf16.gmra.mrb[0].mxu0 %v1531
      %v1666 = vpop.f32.mrb[0].mxu0
      %v1667 = vadd.f32 0.0, %v1666
      %v1668 = vpop.f32.mrb[0].mxu0
      %v1669 = vpop.f32.mrb[0].mxu0
      %v1670 = vadd.f32 0.0, %v1669
      %v1671 = vpop.f32.mrb[0].mxu0
      %1672 = vmatprep.mubr.bf16.mxu0 0
      %1673 = vmatmul.mubr.bf16.gmra.mrb[0].mxu0 %v1533
      %v1674 = vpop.f32.mrb[0].mxu0
      %v1675 = vadd.f32 0.0, %v1674
      %v1676 = vpop.f32.mrb[0].mxu0
      %v1677 = vpop.f32.mrb[0].mxu0
      %v1678 = vadd.f32 0.0, %v1677
      %v1679 = vpop.f32.mrb[0].mxu0
      %1680 = vmatprep.mubr.bf16.mxu0 0
      %1681 = vmatmul.mubr.bf16.gmra.mrb[0].mxu0 %v1535
      %v1682 = vpop.f32.mrb[0].mxu0
      %v1683 = vadd.f32 0.0, %v1682
      %v1684 = vpop.f32.mrb[0].mxu0
      %v1685 = vpop.f32.mrb[0].mxu0
      %v1686 = vadd.f32 0.0, %v1685
      %v1687 = vpop.f32.mrb[0].mxu0
      %1688 = vmatprep.mubr.bf16.mxu0 0
      %1689 = vmatmul.mubr.bf16.gmra.mrb[0].mxu0 %v1537
      %v1690 = vpop.f32.mrb[0].mxu0
      %v1691 = vadd.f32 0.0, %v1690
      %v1692 = vpop.f32.mrb[0].mxu0
      %v1693 = vpop.f32.mrb[0].mxu0
      %v1694 = vadd.f32 0.0, %v1693
      %v1695 = vpop.f32.mrb[0].mxu0
      %1696 = vmatprep.mubr.bf16.mxu0 0
      %1697 = vmatmul.mubr.bf16.gmra.mrb[0].mxu0 %v1539
      %v1698 = vpop.f32.mrb[0].mxu0
      %v1699 = vadd.f32 0.0, %v1698
      %v1700 = vpop.f32.mrb[0].mxu0
      %v1701 = vpop.f32.mrb[0].mxu0
      %v1702 = vadd.f32 0.0, %v1701
      %v1703 = vpop.f32.mrb[0].mxu0
      %1704 = vmatprep.mubr.bf16.mxu0 0
      %1705 = vmatmul.mubr.bf16.gmra.mrb[0].mxu0 %v1541
      %v1706 = vpop.f32.mrb[0].mxu0
      %v1707 = vadd.f32 0.0, %v1706
      %v1708 = vpop.f32.mrb[0].mxu0
      %v1709 = vpop.f32.mrb[0].mxu0
      %v1710 = vadd.f32 0.0, %v1709
      %v1711 = vpop.f32.mrb[0].mxu0
      %1712 = vmatprep.mubr.bf16.mxu0 0
      %1713 = vmatmul.mubr.bf16.gmra.mrb[0].mxu0 %v1543
      %v1714 = vpop.f32.mrb[0].mxu0
      %v1715 = vadd.f32 0.0, %v1714
      %v1716 = vpop.f32.mrb[0].mxu0
      %v1717 = vpop.f32.mrb[0].mxu0
      %v1718 = vadd.f32 0.0, %v1717
      %v1719 = vpop.f32.mrb[0].mxu0
      %1720 = vmatprep.mubr.bf16.mxu0 0
      %1721 = vmatmul.mubr.bf16.gmra.mrb[0].mxu0 %v1545
      %v1722 = vpop.f32.mrb[0].mxu0
      %v1723 = vadd.f32 0.0, %v1722
      %v1724 = vpop.f32.mrb[0].mxu0
      %v1725 = vpop.f32.mrb[0].mxu0
      %v1726 = vadd.f32 0.0, %v1725
      %v1727 = vpop.f32.mrb[0].mxu0
      %1728 = vmatprep.mubr.bf16.mxu0 0
      %1729 = vmatmul.mubr.bf16.gmra.mrb[0].mxu0 %v1547
      %v1730 = vpop.f32.mrb[0].mxu0
      %v1731 = vadd.f32 0.0, %v1730
      %v1732 = vpop.f32.mrb[0].mxu0
      %v1733 = vpop.f32.mrb[0].mxu0
      %v1734 = vadd.f32 0.0, %v1733
      %v1735 = vpop.f32.mrb[0].mxu0
      %1736 = vmatprep.mubr.bf16.mxu0 0
      %1737 = vmatmul.mubr.bf16.gmra.mrb[0].mxu0 %v1549
      %v1738 = vpop.f32.mrb[0].mxu0
      %v1739 = vadd.f32 0.0, %v1738
      %v1740 = vpop.f32.mrb[0].mxu0
      %v1741 = vpop.f32.mrb[0].mxu0
      %v1742 = vadd.f32 0.0, %v1741
      %v1743 = vpop.f32.mrb[0].mxu0
      %1744 = vmatprep.mubr.bf16.mxu0 0
      %1745 = vmatmul.mubr.bf16.gmra.mrb[0].mxu0 %v1551
      %v1746 = vpop.f32.mrb[0].mxu0
      %v1747 = vadd.f32 0.0, %v1746
      %v1748 = vpop.f32.mrb[0].mxu0
      %v1749 = vpop.f32.mrb[0].mxu0
      %v1750 = vadd.f32 0.0, %v1749
      %v1751 = vpop.f32.mrb[0].mxu0
      %1752 = vmatprep.mubr.bf16.mxu0 0
      %1753 = vmatmul.mubr.bf16.gmra.mrb[0].mxu0 %v1553
      %v1754 = vpop.f32.mrb[0].mxu0
      %v1755 = vadd.f32 0.0, %v1754
      %v1756 = vpop.f32.mrb[0].mxu0
      %v1757 = vpop.f32.mrb[0].mxu0
      %v1758 = vadd.f32 0.0, %v1757
      %v1759 = vpop.f32.mrb[0].mxu0
      %1760 = vmatprep.mubr.bf16.mxu0 0
      %1761 = vmatmul.mubr.bf16.gmra.mrb[0].mxu0 %v1555
      %v1762 = vpop.f32.mrb[0].mxu0
      %v1763 = vadd.f32 0.0, %v1762
      %v1764 = vpop.f32.mrb[0].mxu0
      %v1765 = vpop.f32.mrb[0].mxu0
      %v1766 = vadd.f32 0.0, %v1765
      %v1767 = vpop.f32.mrb[0].mxu0
      %1768 = vmatprep.mubr.bf16.mxu0 0
      %1769 = vmatmul.mubr.bf16.gmra.mrb[0].mxu0 %v1557
      %v1770 = vpop.f32.mrb[0].mxu0
      %v1771 = vadd.f32 0.0, %v1770
      %v1772 = vpop.f32.mrb[0].mxu0
      %v1773 = vpop.f32.mrb[0].mxu0
      %v1774 = vadd.f32 0.0, %v1773
      %v1775 = vpop.f32.mrb[0].mxu0
      %1776 = vmatprep.mubr.bf16.mxu0 0
      %1777 = vmatmul.mubr.bf16.gmra.mrb[0].mxu0 %v1559
      %v1778 = vpop.f32.mrb[0].mxu0
      %v1779 = vadd.f32 0.0, %v1778
      %v1780 = vpop.f32.mrb[0].mxu0
      %v1781 = vpop.f32.mrb[0].mxu0
      %v1782 = vadd.f32 0.0, %v1781
      %v1783 = vpop.f32.mrb[0].mxu0
      %1784 = vmatprep.mubr.bf16.mxu0 0
      %1785 = vmatmul.mubr.bf16.gmra.mrb[0].mxu0 %v1561
      %v1786 = vpop.f32.mrb[0].mxu0
      %v1787 = vadd.f32 0.0, %v1786
      %v1788 = vpop.f32.mrb[0].mxu0
      %v1789 = vpop.f32.mrb[0].mxu0
      %v1790 = vadd.f32 0.0, %v1789
      %v1791 = vpop.f32.mrb[0].mxu0
      %1792 = vmatprep.mubr.bf16.mxu0 0
      %1793 = vmatmul.mubr.bf16.gmra.mrb[0].mxu0 %v1563
      %v1794 = vpop.f32.mrb[0].mxu0
      %v1795 = vadd.f32 0.0, %v1794
      %v1796 = vpop.f32.mrb[0].mxu0
      %v1797 = vpop.f32.mrb[0].mxu0
      %v1798 = vadd.f32 0.0, %v1797
      %v1799 = vpop.f32.mrb[0].mxu0
      %1800 = vmatprep.mubr.bf16.mxu0 0
      %1801 = vmatmul.mubr.bf16.gmra.mrb[0].mxu0 %v1565
      %v1802 = vpop.f32.mrb[0].mxu0
      %v1803 = vadd.f32 0.0, %v1802
      %v1804 = vpop.f32.mrb[0].mxu0
      %v1805 = vpop.f32.mrb[0].mxu0
      %v1806 = vadd.f32 0.0, %v1805
      %v1807 = vpop.f32.mrb[0].mxu0
      %1808 = vdwg.mxu0
      %v1809 = vadd.f32 %v1346, %v1667
      %v1810 = vadd.f32 %v1347, %v1670
      %v1811 = vadd.f32 %v1348, %v1675
      %v1812 = vadd.f32 %v1349, %v1678
      %v1813 = vadd.f32 %v1350, %v1683
      %v1814 = vadd.f32 %v1351, %v1686
      %v1815 = vadd.f32 %v1352, %v1691
      %v1816 = vadd.f32 %v1353, %v1694
      %v1817 = vadd.f32 %v1354, %v1699
      %v1818 = vadd.f32 %v1355, %v1702
      %v1819 = vadd.f32 %v1356, %v1707
      %v1820 = vadd.f32 %v1357, %v1710
      %v1821 = vadd.f32 %v1358, %v1715
      %v1822 = vadd.f32 %v1359, %v1718
      %v1823 = vadd.f32 %v1360, %v1723
      %v1824 = vadd.f32 %v1361, %v1726
      %v1825 = vadd.f32 %v1362, %v1731
      %v1826 = vadd.f32 %v1363, %v1734
      %v1827 = vadd.f32 %v1364, %v1739
      %v1828 = vadd.f32 %v1365, %v1742
      %v1829 = vadd.f32 %v1366, %v1747
      %v1830 = vadd.f32 %v1367, %v1750
      %v1831 = vadd.f32 %v1368, %v1755
      %v1832 = vadd.f32 %v1369, %v1758
      %v1833 = vadd.f32 %v1370, %v1763
      %v1834 = vadd.f32 %v1371, %v1766
      %v1835 = vadd.f32 %v1372, %v1771
      %v1836 = vadd.f32 %v1373, %v1774
      %v1837 = vadd.f32 %v1374, %v1779
      %v1838 = vadd.f32 %v1375, %v1782
      %v1839 = vadd.f32 %v1376, %v1787
      %v1840 = vadd.f32 %v1377, %v1790
      %v1841 = vadd.f32 %v1378, %v1795
      %v1842 = vadd.f32 %v1379, %v1798
      %v1843 = vadd.f32 %v1380, %v1803
      %v1844 = vadd.f32 %v1381, %v1806
      %v1845 = vld [vmem:[%s234 + $0x98] sm:$0x3]
      %s1846 = scalar_lea.vmem %s1, 256
      %v1847 = vld [vmem:[%s1846] sm:$0xf]
      %v1848 = vld [vmem:[%s1846 + $0x4] sm:$0xf]
      %v1849 = vld [vmem:[%s1846 + $0x8] sm:$0xf]
      %v1850 = vld [vmem:[%s1846 + $0xc] sm:$0xf]
      %v1851 = vld [vmem:[%s1846 + $0x10] sm:$0xf]
      %v1852 = vld [vmem:[%s1846 + $0x14] sm:$0xf]
      %v1853 = vld [vmem:[%s1846 + $0x18] sm:$0xf]
      %v1854 = vld [vmem:[%s1846 + $0x1c] sm:$0xf]
      %v1855 = vld [vmem:[%s1846 + $0x20] sm:$0xf]
      %v1856 = vld [vmem:[%s1846 + $0x24] sm:$0xf]
      %v1857 = vld [vmem:[%s1846 + $0x28] sm:$0xf]
      %v1858 = vld [vmem:[%s1846 + $0x2c] sm:$0xf]
      %v1859 = vld [vmem:[%s1846 + $0x30] sm:$0xf]
      %v1860 = vld [vmem:[%s1846 + $0x34] sm:$0xf]
      %v1861 = vld [vmem:[%s1846 + $0x38] sm:$0xf]
      %v1862 = vld [vmem:[%s1846 + $0x3c] sm:$0xf]
      %v1864 = vunpack.c.l.b16 %v1845
      %v1865 = vpack.c.b16 %v1864, %v1864
      %vm1866 = vsmask.f32 6400
      %v1868 = vshrl.u32 %v1510, 16
      %v1870 = vrot.slane %v1868, 1
      %v1871 = vshll.u32 %v1510, 16
      %v1873 = vrot.slane %v1871, 2
      %v1874 = vor.u32 %v1870, %v1873
      %v1876 = vshrl.u32 %v1511, 16
      %v1878 = vrot.slane %v1876, 1
      %v1879 = vshll.u32 %v1511, 16
      %v1881 = vrot.slane %v1879, 2
      %v1882 = vor.u32 %v1878, %v1881
      %v1883 = vsel %vm1866, %v1874, %v1882
      %v1885 = vshrl.u32 %v1512, 16
      %v1887 = vrot.slane %v1885, 1
      %v1888 = vshll.u32 %v1512, 16
      %v1890 = vrot.slane %v1888, 2
      %v1891 = vor.u32 %v1887, %v1890
      %v1892 = vsel %vm1866, %v1882, %v1891
      %v1894 = vshrl.u32 %v1513, 16
      %v1896 = vrot.slane %v1894, 1
      %v1897 = vshll.u32 %v1513, 16
      %v1899 = vrot.slane %v1897, 2
      %v1900 = vor.u32 %v1896, %v1899
      %v1901 = vsel %vm1866, %v1891, %v1900
      %v1903 = vshrl.u32 %v1514, 16
      %v1905 = vrot.slane %v1903, 1
      %v1906 = vshll.u32 %v1514, 16
      %v1908 = vrot.slane %v1906, 2
      %v1909 = vor.u32 %v1905, %v1908
      %v1910 = vsel %vm1866, %v1900, %v1909
      %v1912 = vshrl.u32 %v1515, 16
      %v1914 = vrot.slane %v1912, 1
      %v1915 = vshll.u32 %v1515, 16
      %v1917 = vrot.slane %v1915, 2
      %v1918 = vor.u32 %v1914, %v1917
      %v1919 = vsel %vm1866, %v1909, %v1918
      %v1921 = vshrl.u32 %v1516, 16
      %v1923 = vrot.slane %v1921, 1
      %v1924 = vshll.u32 %v1516, 16
      %v1926 = vrot.slane %v1924, 2
      %v1927 = vor.u32 %v1923, %v1926
      %v1928 = vsel %vm1866, %v1918, %v1927
      %v1930 = vshrl.u32 %v1517, 16
      %v1932 = vrot.slane %v1930, 1
      %v1933 = vshll.u32 %v1517, 16
      %v1935 = vrot.slane %v1933, 2
      %v1936 = vor.u32 %v1932, %v1935
      %v1937 = vsel %vm1866, %v1927, %v1936
      %v1939 = vshrl.u32 %v1518, 16
      %v1941 = vrot.slane %v1939, 1
      %v1942 = vshll.u32 %v1518, 16
      %v1944 = vrot.slane %v1942, 2
      %v1945 = vor.u32 %v1941, %v1944
      %v1946 = vsel %vm1866, %v1936, %v1945
      %v1948 = vshrl.u32 %v1519, 16
      %v1950 = vrot.slane %v1948, 1
      %v1951 = vshll.u32 %v1519, 16
      %v1953 = vrot.slane %v1951, 2
      %v1954 = vor.u32 %v1950, %v1953
      %v1955 = vsel %vm1866, %v1945, %v1954
      %v1957 = vshrl.u32 %v1520, 16
      %v1959 = vrot.slane %v1957, 1
      %v1960 = vshll.u32 %v1520, 16
      %v1962 = vrot.slane %v1960, 2
      %v1963 = vor.u32 %v1959, %v1962
      %v1964 = vsel %vm1866, %v1954, %v1963
      %v1966 = vshrl.u32 %v1521, 16
      %v1968 = vrot.slane %v1966, 1
      %v1969 = vshll.u32 %v1521, 16
      %v1971 = vrot.slane %v1969, 2
      %v1972 = vor.u32 %v1968, %v1971
      %v1973 = vsel %vm1866, %v1963, %v1972
      %v1975 = vshrl.u32 %v1522, 16
      %v1977 = vrot.slane %v1975, 1
      %v1978 = vshll.u32 %v1522, 16
      %v1980 = vrot.slane %v1978, 2
      %v1981 = vor.u32 %v1977, %v1980
      %v1982 = vsel %vm1866, %v1972, %v1981
      %v1984 = vshrl.u32 %v1523, 16
      %v1986 = vrot.slane %v1984, 1
      %v1987 = vshll.u32 %v1523, 16
      %v1989 = vrot.slane %v1987, 2
      %v1990 = vor.u32 %v1986, %v1989
      %v1991 = vsel %vm1866, %v1981, %v1990
      %v1993 = vshrl.u32 %v1524, 16
      %v1995 = vrot.slane %v1993, 1
      %v1996 = vshll.u32 %v1524, 16
      %v1998 = vrot.slane %v1996, 2
      %v1999 = vor.u32 %v1995, %v1998
      %v2000 = vsel %vm1866, %v1990, %v1999
      %v2002 = vshrl.u32 %v1525, 16
      %v2004 = vrot.slane %v2002, 1
      %v2005 = vshll.u32 %v1525, 16
      %v2007 = vrot.slane %v2005, 2
      %v2008 = vor.u32 %v2004, %v2007
      %v2009 = vsel %vm1866, %v1999, %v2008
      %v2011 = vshrl.u32 %v1526, 16
      %v2013 = vrot.slane %v2011, 1
      %v2014 = vshll.u32 %v1526, 16
      %v2016 = vrot.slane %v2014, 2
      %v2017 = vor.u32 %v2013, %v2016
      %v2018 = vsel %vm1866, %v2008, %v2017
      %v2020 = vshrl.u32 %v1527, 16
      %v2022 = vrot.slane %v2020, 1
      %v2023 = vshll.u32 %v1527, 16
      %v2025 = vrot.slane %v2023, 2
      %v2026 = vor.u32 %v2022, %v2025
      %v2027 = vsel %vm1866, %v2017, %v2026
      %v2029 = vshrl.u32 %v1865, 16
      %v2031 = vrot.slane %v2029, 1
      %v2032 = vshll.u32 %v1865, 16
      %v2034 = vrot.slane %v2032, 2
      %v2035 = vor.u32 %v2031, %v2034
      %v2036 = vsel %vm1866, %v2026, %v2035
      %v2071 = vunpack.c.l.b16 %v1847
      %v2072 = vunpack.c.l.b16 %v1848
      %v2073 = vunpack.c.l.b16 %v1849
      %v2074 = vunpack.c.l.b16 %v1850
      %v2075 = vunpack.c.l.b16 %v1851
      %v2076 = vunpack.c.l.b16 %v1852
      %v2077 = vunpack.c.l.b16 %v1853
      %v2078 = vunpack.c.l.b16 %v1854
      %v2079 = vunpack.c.l.b16 %v1855
      %v2080 = vunpack.c.l.b16 %v1856
      %v2081 = vunpack.c.l.b16 %v1857
      %v2082 = vunpack.c.l.b16 %v1858
      %v2083 = vunpack.c.l.b16 %v1859
      %v2084 = vunpack.c.l.b16 %v1860
      %v2085 = vunpack.c.l.b16 %v1861
      %v2086 = vunpack.c.l.b16 %v1862
      %v2087 = vpack.c.b16 %v2072, %v2071
      %v2088 = vpack.c.b16 %v2074, %v2073
      %v2089 = vpack.c.b16 %v2076, %v2075
      %v2090 = vpack.c.b16 %v2078, %v2077
      %v2091 = vpack.c.b16 %v2080, %v2079
      %v2092 = vpack.c.b16 %v2082, %v2081
      %v2093 = vpack.c.b16 %v2084, %v2083
      %v2094 = vpack.c.b16 %v2086, %v2085
      %2103 = vmatprep.subr.bf16.mxu0 0
      %2104 = vmatpush1.bf16.msra.mxu0 %v2087
      %2105 = vmatprep.subr.bf16.mxu0 0
      %2106 = vmatpush1.bf16.msra.mxu0 %v2088
      %2107 = vmatprep.subr.bf16.mxu0 0
      %2108 = vmatpush1.bf16.msra.mxu0 %v2089
      %2109 = vmatprep.subr.bf16.mxu0 0
      %2110 = vmatpush1.bf16.msra.mxu0 %v2090
      %2111 = vmatprep.subr.bf16.mxu0 0
      %2112 = vmatpush1.bf16.msra.mxu0 %v2091
      %2113 = vmatprep.subr.bf16.mxu0 0
      %2114 = vmatpush1.bf16.msra.mxu0 %v2092
      %2115 = vmatprep.subr.bf16.mxu0 0
      %2116 = vmatpush1.bf16.msra.mxu0 %v2093
      %2117 = vmatprep.subr.bf16.mxu0 0
      %2118 = vmatpush1.bf16.msra.mxu0 %v2094
      %2119 = vmatprep.subr.bf16.mxu0 0
      %2120 = vmatpush1.bf16.msra.mxu0 0
      %2121 = vmatprep.subr.bf16.mxu0 0
      %2122 = vmatpush1.bf16.msra.mxu0 0
      %2123 = vmatprep.subr.bf16.mxu0 0
      %2124 = vmatpush1.bf16.msra.mxu0 0
      %2125 = vmatprep.subr.bf16.mxu0 0
      %2126 = vmatpush1.bf16.msra.mxu0 0
      %2127 = vmatprep.subr.bf16.mxu0 0
      %2128 = vmatpush1.bf16.msra.mxu0 0
      %2129 = vmatprep.subr.bf16.mxu0 0
      %2130 = vmatpush1.bf16.msra.mxu0 0
      %2131 = vmatprep.subr.bf16.mxu0 0
      %2132 = vmatpush1.bf16.msra.mxu0 0
      %2133 = vmatprep.subr.bf16.mxu0 0
      %2134 = vmatpush1.bf16.msra.mxu0 0
      %2135 = vmatprep.mubr.bf16.mxu0 0
      %2136 = vmatmul.mubr.bf16.gmra.mrb[0].mxu0 %v1883
      %v2137 = vpop.f32.mrb[0].mxu0
      %v2138 = vadd.f32 0.0, %v2137
      %v2139 = vpop.f32.mrb[0].mxu0
      %v2140 = vpop.f32.mrb[0].mxu0
      %v2141 = vadd.f32 0.0, %v2140
      %v2142 = vpop.f32.mrb[0].mxu0
      %2143 = vmatprep.mubr.bf16.mxu0 0
      %2144 = vmatmul.mubr.bf16.gmra.mrb[0].mxu0 %v1892
      %v2145 = vpop.f32.mrb[0].mxu0
      %v2146 = vadd.f32 0.0, %v2145
      %v2147 = vpop.f32.mrb[0].mxu0
      %v2148 = vpop.f32.mrb[0].mxu0
      %v2149 = vadd.f32 0.0, %v2148
      %v2150 = vpop.f32.mrb[0].mxu0
      %2151 = vmatprep.mubr.bf16.mxu0 0
      %2152 = vmatmul.mubr.bf16.gmra.mrb[0].mxu0 %v1901
      %v2153 = vpop.f32.mrb[0].mxu0
      %v2154 = vadd.f32 0.0, %v2153
      %v2155 = vpop.f32.mrb[0].mxu0
      %v2156 = vpop.f32.mrb[0].mxu0
      %v2157 = vadd.f32 0.0, %v2156
      %v2158 = vpop.f32.mrb[0].mxu0
      %2159 = vmatprep.mubr.bf16.mxu0 0
      %2160 = vmatmul.mubr.bf16.gmra.mrb[0].mxu0 %v1910
      %v2161 = vpop.f32.mrb[0].mxu0
      %v2162 = vadd.f32 0.0, %v2161
      %v2163 = vpop.f32.mrb[0].mxu0
      %v2164 = vpop.f32.mrb[0].mxu0
      %v2165 = vadd.f32 0.0, %v2164
      %v2166 = vpop.f32.mrb[0].mxu0
      %2167 = vmatprep.mubr.bf16.mxu0 0
      %2168 = vmatmul.mubr.bf16.gmra.mrb[0].mxu0 %v1919
      %v2169 = vpop.f32.mrb[0].mxu0
      %v2170 = vadd.f32 0.0, %v2169
      %v2171 = vpop.f32.mrb[0].mxu0
      %v2172 = vpop.f32.mrb[0].mxu0
      %v2173 = vadd.f32 0.0, %v2172
      %v2174 = vpop.f32.mrb[0].mxu0
      %2175 = vmatprep.mubr.bf16.mxu0 0
      %2176 = vmatmul.mubr.bf16.gmra.mrb[0].mxu0 %v1928
      %v2177 = vpop.f32.mrb[0].mxu0
      %v2178 = vadd.f32 0.0, %v2177
      %v2179 = vpop.f32.mrb[0].mxu0
      %v2180 = vpop.f32.mrb[0].mxu0
      %v2181 = vadd.f32 0.0, %v2180
      %v2182 = vpop.f32.mrb[0].mxu0
      %2183 = vmatprep.mubr.bf16.mxu0 0
      %2184 = vmatmul.mubr.bf16.gmra.mrb[0].mxu0 %v1937
      %v2185 = vpop.f32.mrb[0].mxu0
      %v2186 = vadd.f32 0.0, %v2185
      %v2187 = vpop.f32.mrb[0].mxu0
      %v2188 = vpop.f32.mrb[0].mxu0
      %v2189 = vadd.f32 0.0, %v2188
      %v2190 = vpop.f32.mrb[0].mxu0
      %2191 = vmatprep.mubr.bf16.mxu0 0
      %2192 = vmatmul.mubr.bf16.gmra.mrb[0].mxu0 %v1946
      %v2193 = vpop.f32.mrb[0].mxu0
      %v2194 = vadd.f32 0.0, %v2193
      %v2195 = vpop.f32.mrb[0].mxu0
      %v2196 = vpop.f32.mrb[0].mxu0
      %v2197 = vadd.f32 0.0, %v2196
      %v2198 = vpop.f32.mrb[0].mxu0
      %2199 = vmatprep.mubr.bf16.mxu0 0
      %2200 = vmatmul.mubr.bf16.gmra.mrb[0].mxu0 %v1955
      %v2201 = vpop.f32.mrb[0].mxu0
      %v2202 = vadd.f32 0.0, %v2201
      %v2203 = vpop.f32.mrb[0].mxu0
      %v2204 = vpop.f32.mrb[0].mxu0
      %v2205 = vadd.f32 0.0, %v2204
      %v2206 = vpop.f32.mrb[0].mxu0
      %2207 = vmatprep.mubr.bf16.mxu0 0
      %2208 = vmatmul.mubr.bf16.gmra.mrb[0].mxu0 %v1964
      %v2209 = vpop.f32.mrb[0].mxu0
      %v2210 = vadd.f32 0.0, %v2209
      %v2211 = vpop.f32.mrb[0].mxu0
      %v2212 = vpop.f32.mrb[0].mxu0
      %v2213 = vadd.f32 0.0, %v2212
      %v2214 = vpop.f32.mrb[0].mxu0
      %2215 = vmatprep.mubr.bf16.mxu0 0
      %2216 = vmatmul.mubr.bf16.gmra.mrb[0].mxu0 %v1973
      %v2217 = vpop.f32.mrb[0].mxu0
      %v2218 = vadd.f32 0.0, %v2217
      %v2219 = vpop.f32.mrb[0].mxu0
      %v2220 = vpop.f32.mrb[0].mxu0
      %v2221 = vadd.f32 0.0, %v2220
      %v2222 = vpop.f32.mrb[0].mxu0
      %2223 = vmatprep.mubr.bf16.mxu0 0
      %2224 = vmatmul.mubr.bf16.gmra.mrb[0].mxu0 %v1982
      %v2225 = vpop.f32.mrb[0].mxu0
      %v2226 = vadd.f32 0.0, %v2225
      %v2227 = vpop.f32.mrb[0].mxu0
      %v2228 = vpop.f32.mrb[0].mxu0
      %v2229 = vadd.f32 0.0, %v2228
      %v2230 = vpop.f32.mrb[0].mxu0
      %2231 = vmatprep.mubr.bf16.mxu0 0
      %2232 = vmatmul.mubr.bf16.gmra.mrb[0].mxu0 %v1991
      %v2233 = vpop.f32.mrb[0].mxu0
      %v2234 = vadd.f32 0.0, %v2233
      %v2235 = vpop.f32.mrb[0].mxu0
      %v2236 = vpop.f32.mrb[0].mxu0
      %v2237 = vadd.f32 0.0, %v2236
      %v2238 = vpop.f32.mrb[0].mxu0
      %2239 = vmatprep.mubr.bf16.mxu0 0
      %2240 = vmatmul.mubr.bf16.gmra.mrb[0].mxu0 %v2000
      %v2241 = vpop.f32.mrb[0].mxu0
      %v2242 = vadd.f32 0.0, %v2241
      %v2243 = vpop.f32.mrb[0].mxu0
      %v2244 = vpop.f32.mrb[0].mxu0
      %v2245 = vadd.f32 0.0, %v2244
      %v2246 = vpop.f32.mrb[0].mxu0
      %2247 = vmatprep.mubr.bf16.mxu0 0
      %2248 = vmatmul.mubr.bf16.gmra.mrb[0].mxu0 %v2009
      %v2249 = vpop.f32.mrb[0].mxu0
      %v2250 = vadd.f32 0.0, %v2249
      %v2251 = vpop.f32.mrb[0].mxu0
      %v2252 = vpop.f32.mrb[0].mxu0
      %v2253 = vadd.f32 0.0, %v2252
      %v2254 = vpop.f32.mrb[0].mxu0
      %2255 = vmatprep.mubr.bf16.mxu0 0
      %2256 = vmatmul.mubr.bf16.gmra.mrb[0].mxu0 %v2018
      %v2257 = vpop.f32.mrb[0].mxu0
      %v2258 = vadd.f32 0.0, %v2257
      %v2259 = vpop.f32.mrb[0].mxu0
      %v2260 = vpop.f32.mrb[0].mxu0
      %v2261 = vadd.f32 0.0, %v2260
      %v2262 = vpop.f32.mrb[0].mxu0
      %2263 = vmatprep.mubr.bf16.mxu0 0
      %2264 = vmatmul.mubr.bf16.gmra.mrb[0].mxu0 %v2027
      %v2265 = vpop.f32.mrb[0].mxu0
      %v2266 = vadd.f32 0.0, %v2265
      %v2267 = vpop.f32.mrb[0].mxu0
      %v2268 = vpop.f32.mrb[0].mxu0
      %v2269 = vadd.f32 0.0, %v2268
      %v2270 = vpop.f32.mrb[0].mxu0
      %2271 = vmatprep.mubr.bf16.mxu0 0
      %2272 = vmatmul.mubr.bf16.gmra.mrb[0].mxu0 %v2036
      %v2273 = vpop.f32.mrb[0].mxu0
      %v2274 = vadd.f32 0.0, %v2273
      %v2275 = vpop.f32.mrb[0].mxu0
      %v2276 = vpop.f32.mrb[0].mxu0
      %v2277 = vadd.f32 0.0, %v2276
      %v2278 = vpop.f32.mrb[0].mxu0
      %2279 = vdwg.mxu0
      %v2280 = vadd.f32 %v1809, %v2138
      %v2281 = vadd.f32 %v1810, %v2141
      %v2282 = vadd.f32 %v1811, %v2146
      %v2283 = vadd.f32 %v1812, %v2149
      %v2284 = vadd.f32 %v1813, %v2154
      %v2285 = vadd.f32 %v1814, %v2157
      %v2286 = vadd.f32 %v1815, %v2162
      %v2287 = vadd.f32 %v1816, %v2165
      %v2288 = vadd.f32 %v1817, %v2170
      %v2289 = vadd.f32 %v1818, %v2173
      %v2290 = vadd.f32 %v1819, %v2178
      %v2291 = vadd.f32 %v1820, %v2181
      %v2292 = vadd.f32 %v1821, %v2186
      %v2293 = vadd.f32 %v1822, %v2189
      %v2294 = vadd.f32 %v1823, %v2194
      %v2295 = vadd.f32 %v1824, %v2197
      %v2296 = vadd.f32 %v1825, %v2202
      %v2297 = vadd.f32 %v1826, %v2205
      %v2298 = vadd.f32 %v1827, %v2210
      %v2299 = vadd.f32 %v1828, %v2213
      %v2300 = vadd.f32 %v1829, %v2218
      %v2301 = vadd.f32 %v1830, %v2221
      %v2302 = vadd.f32 %v1831, %v2226
      %v2303 = vadd.f32 %v1832, %v2229
      %v2304 = vadd.f32 %v1833, %v2234
      %v2305 = vadd.f32 %v1834, %v2237
      %v2306 = vadd.f32 %v1835, %v2242
      %v2307 = vadd.f32 %v1836, %v2245
      %v2308 = vadd.f32 %v1837, %v2250
      %v2309 = vadd.f32 %v1838, %v2253
      %v2310 = vadd.f32 %v1839, %v2258
      %v2311 = vadd.f32 %v1840, %v2261
      %v2312 = vadd.f32 %v1841, %v2266
      %v2313 = vadd.f32 %v1842, %v2269
      %v2314 = vadd.f32 %v1843, %v2274
      %v2315 = vadd.f32 %v1844, %v2277
      %v2316 = vld [vmem:[%s234 + $0x8] sm:$0xc]
      %s2317 = scalar_lea.vmem %s1, 320
      %v2318 = vld [vmem:[%s2317] sm:$0xf]
      %v2319 = vld [vmem:[%s2317 + $0x4] sm:$0xf]
      %v2320 = vld [vmem:[%s2317 + $0x8] sm:$0xf]
      %v2321 = vld [vmem:[%s2317 + $0xc] sm:$0xf]
      %v2322 = vld [vmem:[%s2317 + $0x10] sm:$0xf]
      %v2323 = vld [vmem:[%s2317 + $0x14] sm:$0xf]
      %v2324 = vld [vmem:[%s2317 + $0x18] sm:$0xf]
      %v2325 = vld [vmem:[%s2317 + $0x1c] sm:$0xf]
      %v2326 = vld [vmem:[%s2317 + $0x20] sm:$0xf]
      %v2327 = vld [vmem:[%s2317 + $0x24] sm:$0xf]
      %v2328 = vld [vmem:[%s2317 + $0x28] sm:$0xf]
      %v2329 = vld [vmem:[%s2317 + $0x2c] sm:$0xf]
      %v2330 = vld [vmem:[%s2317 + $0x30] sm:$0xf]
      %v2331 = vld [vmem:[%s2317 + $0x34] sm:$0xf]
      %v2332 = vld [vmem:[%s2317 + $0x38] sm:$0xf]
      %v2333 = vld [vmem:[%s2317 + $0x3c] sm:$0xf]
      %v2335 = vunpack.c.l.b16 %v2316
      %v2336 = vpack.c.b16 %v1474, %v2335
      %vm2337 = vcmask 1045504
      %v2338 = vrot.slane %v2336, 2
      %v2339 = vrot.slane %v1511, 2
      %v2340 = vsel %vm2337, %v2338, %v2339
      %v2341 = vrot.slane %v1512, 2
      %v2342 = vsel %vm2337, %v2339, %v2341
      %v2343 = vrot.slane %v1513, 2
      %v2344 = vsel %vm2337, %v2341, %v2343
      %v2345 = vrot.slane %v1514, 2
      %v2346 = vsel %vm2337, %v2343, %v2345
      %v2347 = vrot.slane %v1515, 2
      %v2348 = vsel %vm2337, %v2345, %v2347
      %v2349 = vrot.slane %v1516, 2
      %v2350 = vsel %vm2337, %v2347, %v2349
      %v2351 = vrot.slane %v1517, 2
      %v2352 = vsel %vm2337, %v2349, %v2351
      %v2353 = vrot.slane %v1518, 2
      %v2354 = vsel %vm2337, %v2351, %v2353
      %v2355 = vrot.slane %v1519, 2
      %v2356 = vsel %vm2337, %v2353, %v2355
      %v2357 = vrot.slane %v1520, 2
      %v2358 = vsel %vm2337, %v2355, %v2357
      %v2359 = vrot.slane %v1521, 2
      %v2360 = vsel %vm2337, %v2357, %v2359
      %v2361 = vrot.slane %v1522, 2
      %v2362 = vsel %vm2337, %v2359, %v2361
      %v2363 = vrot.slane %v1523, 2
      %v2364 = vsel %vm2337, %v2361, %v2363
      %v2365 = vrot.slane %v1524, 2
      %v2366 = vsel %vm2337, %v2363, %v2365
      %v2367 = vrot.slane %v1525, 2
      %v2368 = vsel %vm2337, %v2365, %v2367
      %v2369 = vrot.slane %v1526, 2
      %v2370 = vsel %vm2337, %v2367, %v2369
      %v2371 = vrot.slane %v1527, 2
      %v2372 = vsel %vm2337, %v2369, %v2371
      %v2373 = vrot.slane %v1865, 2
      %v2374 = vsel %vm2337, %v2371, %v2373
      %v2409 = vunpack.c.l.b16 %v2318
      %v2410 = vunpack.c.l.b16 %v2319
      %v2411 = vunpack.c.l.b16 %v2320
      %v2412 = vunpack.c.l.b16 %v2321
      %v2413 = vunpack.c.l.b16 %v2322
      %v2414 = vunpack.c.l.b16 %v2323
      %v2415 = vunpack.c.l.b16 %v2324
      %v2416 = vunpack.c.l.b16 %v2325
      %v2417 = vunpack.c.l.b16 %v2326
      %v2418 = vunpack.c.l.b16 %v2327
      %v2419 = vunpack.c.l.b16 %v2328
      %v2420 = vunpack.c.l.b16 %v2329
      %v2421 = vunpack.c.l.b16 %v2330
      %v2422 = vunpack.c.l.b16 %v2331
      %v2423 = vunpack.c.l.b16 %v2332
      %v2424 = vunpack.c.l.b16 %v2333
      %v2425 = vpack.c.b16 %v2410, %v2409
      %v2426 = vpack.c.b16 %v2412, %v2411
      %v2427 = vpack.c.b16 %v2414, %v2413
      %v2428 = vpack.c.b16 %v2416, %v2415
      %v2429 = vpack.c.b16 %v2418, %v2417
      %v2430 = vpack.c.b16 %v2420, %v2419
      %v2431 = vpack.c.b16 %v2422, %v2421
      %v2432 = vpack.c.b16 %v2424, %v2423
      %2441 = vmatprep.subr.bf16.mxu0 0
      %2442 = vmatpush1.bf16.msra.mxu0 %v2425
      %2443 = vmatprep.subr.bf16.mxu0 0
      %2444 = vmatpush1.bf16.msra.mxu0 %v2426
      %2445 = vmatprep.subr.bf16.mxu0 0
      %2446 = vmatpush1.bf16.msra.mxu0 %v2427
      %2447 = vmatprep.subr.bf16.mxu0 0
      %2448 = vmatpush1.bf16.msra.mxu0 %v2428
      %2449 = vmatprep.subr.bf16.mxu0 0
      %2450 = vmatpush1.bf16.msra.mxu0 %v2429
      %2451 = vmatprep.subr.bf16.mxu0 0
      %2452 = vmatpush1.bf16.msra.mxu0 %v2430
      %2453 = vmatprep.subr.bf16.mxu0 0
      %2454 = vmatpush1.bf16.msra.mxu0 %v2431
      %2455 = vmatprep.subr.bf16.mxu0 0
      %2456 = vmatpush1.bf16.msra.mxu0 %v2432
      %2457 = vmatprep.subr.bf16.mxu0 0
      %2458 = vmatpush1.bf16.msra.mxu0 0
      %2459 = vmatprep.subr.bf16.mxu0 0
      %2460 = vmatpush1.bf16.msra.mxu0 0
      %2461 = vmatprep.subr.bf16.mxu0 0
      %2462 = vmatpush1.bf16.msra.mxu0 0
      %2463 = vmatprep.subr.bf16.mxu0 0
      %2464 = vmatpush1.bf16.msra.mxu0 0
      %2465 = vmatprep.subr.bf16.mxu0 0
      %2466 = vmatpush1.bf16.msra.mxu0 0
      %2467 = vmatprep.subr.bf16.mxu0 0
      %2468 = vmatpush1.bf16.msra.mxu0 0
      %2469 = vmatprep.subr.bf16.mxu0 0
      %2470 = vmatpush1.bf16.msra.mxu0 0
      %2471 = vmatprep.subr.bf16.mxu0 0
      %2472 = vmatpush1.bf16.msra.mxu0 0
      %2473 = vmatprep.mubr.bf16.mxu0 0
      %2474 = vmatmul.mubr.bf16.gmra.mrb[0].mxu0 %v2340
      %v2475 = vpop.f32.mrb[0].mxu0
      %v2476 = vadd.f32 0.0, %v2475
      %v2477 = vpop.f32.mrb[0].mxu0
      %v2478 = vpop.f32.mrb[0].mxu0
      %v2479 = vadd.f32 0.0, %v2478
      %v2480 = vpop.f32.mrb[0].mxu0
      %2481 = vmatprep.mubr.bf16.mxu0 0
      %2482 = vmatmul.mubr.bf16.gmra.mrb[0].mxu0 %v2342
      %v2483 = vpop.f32.mrb[0].mxu0
      %v2484 = vadd.f32 0.0, %v2483
      %v2485 = vpop.f32.mrb[0].mxu0
      %v2486 = vpop.f32.mrb[0].mxu0
      %v2487 = vadd.f32 0.0, %v2486
      %v2488 = vpop.f32.mrb[0].mxu0
      %2489 = vmatprep.mubr.bf16.mxu0 0
      %2490 = vmatmul.mubr.bf16.gmra.mrb[0].mxu0 %v2344
      %v2491 = vpop.f32.mrb[0].mxu0
      %v2492 = vadd.f32 0.0, %v2491
      %v2493 = vpop.f32.mrb[0].mxu0
      %v2494 = vpop.f32.mrb[0].mxu0
      %v2495 = vadd.f32 0.0, %v2494
      %v2496 = vpop.f32.mrb[0].mxu0
      %2497 = vmatprep.mubr.bf16.mxu0 0
      %2498 = vmatmul.mubr.bf16.gmra.mrb[0].mxu0 %v2346
      %v2499 = vpop.f32.mrb[0].mxu0
      %v2500 = vadd.f32 0.0, %v2499
      %v2501 = vpop.f32.mrb[0].mxu0
      %v2502 = vpop.f32.mrb[0].mxu0
      %v2503 = vadd.f32 0.0, %v2502
      %v2504 = vpop.f32.mrb[0].mxu0
      %2505 = vmatprep.mubr.bf16.mxu0 0
      %2506 = vmatmul.mubr.bf16.gmra.mrb[0].mxu0 %v2348
      %v2507 = vpop.f32.mrb[0].mxu0
      %v2508 = vadd.f32 0.0, %v2507
      %v2509 = vpop.f32.mrb[0].mxu0
      %v2510 = vpop.f32.mrb[0].mxu0
      %v2511 = vadd.f32 0.0, %v2510
      %v2512 = vpop.f32.mrb[0].mxu0
      %2513 = vmatprep.mubr.bf16.mxu0 0
      %2514 = vmatmul.mubr.bf16.gmra.mrb[0].mxu0 %v2350
      %v2515 = vpop.f32.mrb[0].mxu0
      %v2516 = vadd.f32 0.0, %v2515
      %v2517 = vpop.f32.mrb[0].mxu0
      %v2518 = vpop.f32.mrb[0].mxu0
      %v2519 = vadd.f32 0.0, %v2518
      %v2520 = vpop.f32.mrb[0].mxu0
      %2521 = vmatprep.mubr.bf16.mxu0 0
      %2522 = vmatmul.mubr.bf16.gmra.mrb[0].mxu0 %v2352
      %v2523 = vpop.f32.mrb[0].mxu0
      %v2524 = vadd.f32 0.0, %v2523
      %v2525 = vpop.f32.mrb[0].mxu0
      %v2526 = vpop.f32.mrb[0].mxu0
      %v2527 = vadd.f32 0.0, %v2526
      %v2528 = vpop.f32.mrb[0].mxu0
      %2529 = vmatprep.mubr.bf16.mxu0 0
      %2530 = vmatmul.mubr.bf16.gmra.mrb[0].mxu0 %v2354
      %v2531 = vpop.f32.mrb[0].mxu0
      %v2532 = vadd.f32 0.0, %v2531
      %v2533 = vpop.f32.mrb[0].mxu0
      %v2534 = vpop.f32.mrb[0].mxu0
      %v2535 = vadd.f32 0.0, %v2534
      %v2536 = vpop.f32.mrb[0].mxu0
      %2537 = vmatprep.mubr.bf16.mxu0 0
      %2538 = vmatmul.mubr.bf16.gmra.mrb[0].mxu0 %v2356
      %v2539 = vpop.f32.mrb[0].mxu0
      %v2540 = vadd.f32 0.0, %v2539
      %v2541 = vpop.f32.mrb[0].mxu0
      %v2542 = vpop.f32.mrb[0].mxu0
      %v2543 = vadd.f32 0.0, %v2542
      %v2544 = vpop.f32.mrb[0].mxu0
      %2545 = vmatprep.mubr.bf16.mxu0 0
      %2546 = vmatmul.mubr.bf16.gmra.mrb[0].mxu0 %v2358
      %v2547 = vpop.f32.mrb[0].mxu0
      %v2548 = vadd.f32 0.0, %v2547
      %v2549 = vpop.f32.mrb[0].mxu0
      %v2550 = vpop.f32.mrb[0].mxu0
      %v2551 = vadd.f32 0.0, %v2550
      %v2552 = vpop.f32.mrb[0].mxu0
      %2553 = vmatprep.mubr.bf16.mxu0 0
      %2554 = vmatmul.mubr.bf16.gmra.mrb[0].mxu0 %v2360
      %v2555 = vpop.f32.mrb[0].mxu0
      %v2556 = vadd.f32 0.0, %v2555
      %v2557 = vpop.f32.mrb[0].mxu0
      %v2558 = vpop.f32.mrb[0].mxu0
      %v2559 = vadd.f32 0.0, %v2558
      %v2560 = vpop.f32.mrb[0].mxu0
      %2561 = vmatprep.mubr.bf16.mxu0 0
      %2562 = vmatmul.mubr.bf16.gmra.mrb[0].mxu0 %v2362
      %v2563 = vpop.f32.mrb[0].mxu0
      %v2564 = vadd.f32 0.0, %v2563
      %v2565 = vpop.f32.mrb[0].mxu0
      %v2566 = vpop.f32.mrb[0].mxu0
      %v2567 = vadd.f32 0.0, %v2566
      %v2568 = vpop.f32.mrb[0].mxu0
      %2569 = vmatprep.mubr.bf16.mxu0 0
      %2570 = vmatmul.mubr.bf16.gmra.mrb[0].mxu0 %v2364
      %v2571 = vpop.f32.mrb[0].mxu0
      %v2572 = vadd.f32 0.0, %v2571
      %v2573 = vpop.f32.mrb[0].mxu0
      %v2574 = vpop.f32.mrb[0].mxu0
      %v2575 = vadd.f32 0.0, %v2574
      %v2576 = vpop.f32.mrb[0].mxu0
      %2577 = vmatprep.mubr.bf16.mxu0 0
      %2578 = vmatmul.mubr.bf16.gmra.mrb[0].mxu0 %v2366
      %v2579 = vpop.f32.mrb[0].mxu0
      %v2580 = vadd.f32 0.0, %v2579
      %v2581 = vpop.f32.mrb[0].mxu0
      %v2582 = vpop.f32.mrb[0].mxu0
      %v2583 = vadd.f32 0.0, %v2582
      %v2584 = vpop.f32.mrb[0].mxu0
      %2585 = vmatprep.mubr.bf16.mxu0 0
      %2586 = vmatmul.mubr.bf16.gmra.mrb[0].mxu0 %v2368
      %v2587 = vpop.f32.mrb[0].mxu0
      %v2588 = vadd.f32 0.0, %v2587
      %v2589 = vpop.f32.mrb[0].mxu0
      %v2590 = vpop.f32.mrb[0].mxu0
      %v2591 = vadd.f32 0.0, %v2590
      %v2592 = vpop.f32.mrb[0].mxu0
      %2593 = vmatprep.mubr.bf16.mxu0 0
      %2594 = vmatmul.mubr.bf16.gmra.mrb[0].mxu0 %v2370
      %v2595 = vpop.f32.mrb[0].mxu0
      %v2596 = vadd.f32 0.0, %v2595
      %v2597 = vpop.f32.mrb[0].mxu0
      %v2598 = vpop.f32.mrb[0].mxu0
      %v2599 = vadd.f32 0.0, %v2598
      %v2600 = vpop.f32.mrb[0].mxu0
      %2601 = vmatprep.mubr.bf16.mxu0 0
      %2602 = vmatmul.mubr.bf16.gmra.mrb[0].mxu0 %v2372
      %v2603 = vpop.f32.mrb[0].mxu0
      %v2604 = vadd.f32 0.0, %v2603
      %v2605 = vpop.f32.mrb[0].mxu0
      %v2606 = vpop.f32.mrb[0].mxu0
      %v2607 = vadd.f32 0.0, %v2606
      %v2608 = vpop.f32.mrb[0].mxu0
      %2609 = vmatprep.mubr.bf16.mxu0 0
      %2610 = vmatmul.mubr.bf16.gmra.mrb[0].mxu0 %v2374
      %v2611 = vpop.f32.mrb[0].mxu0
      %v2612 = vadd.f32 0.0, %v2611
      %v2613 = vpop.f32.mrb[0].mxu0
      %v2614 = vpop.f32.mrb[0].mxu0
      %v2615 = vadd.f32 0.0, %v2614
      %v2616 = vpop.f32.mrb[0].mxu0
      %2617 = vdwg.mxu0
      %v2618 = vadd.f32 %v2280, %v2476
      %v2619 = vadd.f32 %v2281, %v2479
      %v2620 = vadd.f32 %v2282, %v2484
      %v2621 = vadd.f32 %v2283, %v2487
      %v2622 = vadd.f32 %v2284, %v2492
      %v2623 = vadd.f32 %v2285, %v2495
      %v2624 = vadd.f32 %v2286, %v2500
      %v2625 = vadd.f32 %v2287, %v2503
      %v2626 = vadd.f32 %v2288, %v2508
      %v2627 = vadd.f32 %v2289, %v2511
      %v2628 = vadd.f32 %v2290, %v2516
      %v2629 = vadd.f32 %v2291, %v2519
      %v2630 = vadd.f32 %v2292, %v2524
      %v2631 = vadd.f32 %v2293, %v2527
      %v2632 = vadd.f32 %v2294, %v2532
      %v2633 = vadd.f32 %v2295, %v2535
      %v2634 = vadd.f32 %v2296, %v2540
      %v2635 = vadd.f32 %v2297, %v2543
      %v2636 = vadd.f32 %v2298, %v2548
      %v2637 = vadd.f32 %v2299, %v2551
      %v2638 = vadd.f32 %v2300, %v2556
      %v2639 = vadd.f32 %v2301, %v2559
      %v2640 = vadd.f32 %v2302, %v2564
      %v2641 = vadd.f32 %v2303, %v2567
      %v2642 = vadd.f32 %v2304, %v2572
      %v2643 = vadd.f32 %v2305, %v2575
      %v2644 = vadd.f32 %v2306, %v2580
      %v2645 = vadd.f32 %v2307, %v2583
      %v2646 = vadd.f32 %v2308, %v2588
      %v2647 = vadd.f32 %v2309, %v2591
      %v2648 = vadd.f32 %v2310, %v2596
      %v2649 = vadd.f32 %v2311, %v2599
      %v2650 = vadd.f32 %v2312, %v2604
      %v2651 = vadd.f32 %v2313, %v2607
      %v2652 = vadd.f32 %v2314, %v2612
      %v2653 = vadd.f32 %v2315, %v2615
      %v2654 = vld [vmem:[%s234 + $0x10] sm:$0xc]
      %v2655 = vld [vmem:[%s234 + $0x14] sm:$0xf]
      %v2656 = vld [vmem:[%s234 + $0x18] sm:$0xf]
      %v2657 = vld [vmem:[%s234 + $0x1c] sm:$0xf]
      %v2658 = vld [vmem:[%s234 + $0x20] sm:$0xf]
      %v2659 = vld [vmem:[%s234 + $0x24] sm:$0xf]
      %v2660 = vld [vmem:[%s234 + $0x28] sm:$0xf]
      %v2661 = vld [vmem:[%s234 + $0x2c] sm:$0xf]
      %v2662 = vld [vmem:[%s234 + $0x30] sm:$0xf]
      %v2663 = vld [vmem:[%s234 + $0x34] sm:$0xf]
      %v2664 = vld [vmem:[%s234 + $0x38] sm:$0xf]
      %v2665 = vld [vmem:[%s234 + $0x3c] sm:$0xf]
      %v2666 = vld [vmem:[%s234 + $0x40] sm:$0xf]
      %v2667 = vld [vmem:[%s234 + $0x44] sm:$0xf]
      %v2668 = vld [vmem:[%s234 + $0x48] sm:$0xf]
      %v2669 = vld [vmem:[%s234 + $0x4c] sm:$0xf]
      %v2670 = vld [vmem:[%s234 + $0x50] sm:$0xf]
      %v2671 = vld [vmem:[%s234 + $0x54] sm:$0xf]
      %v2672 = vld [vmem:[%s234 + $0x58] sm:$0xf]
      %v2673 = vld [vmem:[%s234 + $0x5c] sm:$0xf]
      %v2674 = vld [vmem:[%s234 + $0x60] sm:$0xf]
      %v2675 = vld [vmem:[%s234 + $0x64] sm:$0xf]
      %v2676 = vld [vmem:[%s234 + $0x68] sm:$0xf]
      %v2677 = vld [vmem:[%s234 + $0x6c] sm:$0xf]
      %v2678 = vld [vmem:[%s234 + $0x70] sm:$0xf]
      %v2679 = vld [vmem:[%s234 + $0x74] sm:$0xf]
      %v2680 = vld [vmem:[%s234 + $0x78] sm:$0xf]
      %v2681 = vld [vmem:[%s234 + $0x7c] sm:$0xf]
      %v2682 = vld [vmem:[%s234 + $0x80] sm:$0xf]
      %v2683 = vld [vmem:[%s234 + $0x84] sm:$0xf]
      %v2684 = vld [vmem:[%s234 + $0x88] sm:$0xf]
      %v2685 = vld [vmem:[%s234 + $0x8c] sm:$0xf]
      %v2686 = vld [vmem:[%s234 + $0x90] sm:$0xf]
      %v2687 = vld [vmem:[%s234 + $0x94] sm:$0xf]
      %v2688 = vld [vmem:[%s234 + $0x98] sm:$0xf]
      %v2689 = vld [vmem:[%s234 + $0x9c] sm:$0xf]
      %v2690 = vld [vmem:[%s234 + $0xa0] sm:$0x3]
      %s2691 = scalar_lea.vmem %s1, 384
      %v2692 = vld [vmem:[%s2691] sm:$0xf]
      %v2693 = vld [vmem:[%s2691 + $0x4] sm:$0xf]
      %v2694 = vld [vmem:[%s2691 + $0x8] sm:$0xf]
      %v2695 = vld [vmem:[%s2691 + $0xc] sm:$0xf]
      %v2696 = vld [vmem:[%s2691 + $0x10] sm:$0xf]
      %v2697 = vld [vmem:[%s2691 + $0x14] sm:$0xf]
      %v2698 = vld [vmem:[%s2691 + $0x18] sm:$0xf]
      %v2699 = vld [vmem:[%s2691 + $0x1c] sm:$0xf]
      %v2700 = vld [vmem:[%s2691 + $0x20] sm:$0xf]
      %v2701 = vld [vmem:[%s2691 + $0x24] sm:$0xf]
      %v2702 = vld [vmem:[%s2691 + $0x28] sm:$0xf]
      %v2703 = vld [vmem:[%s2691 + $0x2c] sm:$0xf]
      %v2704 = vld [vmem:[%s2691 + $0x30] sm:$0xf]
      %v2705 = vld [vmem:[%s2691 + $0x34] sm:$0xf]
      %v2706 = vld [vmem:[%s2691 + $0x38] sm:$0xf]
      %v2707 = vld [vmem:[%s2691 + $0x3c] sm:$0xf]
      %v2745 = vunpack.c.l.b16 %v2654
      %v2746 = vunpack.c.l.b16 %v2655
      %v2747 = vunpack.c.l.b16 %v2656
      %v2748 = vunpack.c.l.b16 %v2657
      %v2749 = vunpack.c.l.b16 %v2658
      %v2750 = vunpack.c.l.b16 %v2659
      %v2751 = vunpack.c.l.b16 %v2660
      %v2752 = vunpack.c.l.b16 %v2661
      %v2753 = vunpack.c.l.b16 %v2662
      %v2754 = vunpack.c.l.b16 %v2663
      %v2755 = vunpack.c.l.b16 %v2664
      %v2756 = vunpack.c.l.b16 %v2665
      %v2757 = vunpack.c.l.b16 %v2666
      %v2758 = vunpack.c.l.b16 %v2667
      %v2759 = vunpack.c.l.b16 %v2668
      %v2760 = vunpack.c.l.b16 %v2669
      %v2761 = vunpack.c.l.b16 %v2670
      %v2762 = vunpack.c.l.b16 %v2671
      %v2763 = vunpack.c.l.b16 %v2672
      %v2764 = vunpack.c.l.b16 %v2673
      %v2765 = vunpack.c.l.b16 %v2674
      %v2766 = vunpack.c.l.b16 %v2675
      %v2767 = vunpack.c.l.b16 %v2676
      %v2768 = vunpack.c.l.b16 %v2677
      %v2769 = vunpack.c.l.b16 %v2678
      %v2770 = vunpack.c.l.b16 %v2679
      %v2771 = vunpack.c.l.b16 %v2680
      %v2772 = vunpack.c.l.b16 %v2681
      %v2773 = vunpack.c.l.b16 %v2682
      %v2774 = vunpack.c.l.b16 %v2683
      %v2775 = vunpack.c.l.b16 %v2684
      %v2776 = vunpack.c.l.b16 %v2685
      %v2777 = vunpack.c.l.b16 %v2686
      %v2778 = vunpack.c.l.b16 %v2687
      %v2779 = vunpack.c.l.b16 %v2688
      %v2780 = vunpack.c.l.b16 %v2689
      %v2781 = vunpack.c.l.b16 %v2690
      %v2782 = vpack.c.b16 %v2746, %v2745
      %v2783 = vpack.c.b16 %v2748, %v2747
      %v2784 = vpack.c.b16 %v2750, %v2749
      %v2785 = vpack.c.b16 %v2752, %v2751
      %v2786 = vpack.c.b16 %v2754, %v2753
      %v2787 = vpack.c.b16 %v2756, %v2755
      %v2788 = vpack.c.b16 %v2758, %v2757
      %v2789 = vpack.c.b16 %v2760, %v2759
      %v2790 = vpack.c.b16 %v2762, %v2761
      %v2791 = vpack.c.b16 %v2764, %v2763
      %v2792 = vpack.c.b16 %v2766, %v2765
      %v2793 = vpack.c.b16 %v2768, %v2767
      %v2794 = vpack.c.b16 %v2770, %v2769
      %v2795 = vpack.c.b16 %v2772, %v2771
      %v2796 = vpack.c.b16 %v2774, %v2773
      %v2797 = vpack.c.b16 %v2776, %v2775
      %v2798 = vpack.c.b16 %v2778, %v2777
      %v2799 = vpack.c.b16 %v2780, %v2779
      %v2800 = vpack.c.b16 %v2781, %v2781
      %v2801 = vrot.slane %v2782, 2
      %v2802 = vrot.slane %v2783, 2
      %v2803 = vsel %vm2337, %v2801, %v2802
      %v2804 = vrot.slane %v2784, 2
      %v2805 = vsel %vm2337, %v2802, %v2804
      %v2806 = vrot.slane %v2785, 2
      %v2807 = vsel %vm2337, %v2804, %v2806
      %v2808 = vrot.slane %v2786, 2
      %v2809 = vsel %vm2337, %v2806, %v2808
      %v2810 = vrot.slane %v2787, 2
      %v2811 = vsel %vm2337, %v2808, %v2810
      %v2812 = vrot.slane %v2788, 2
      %v2813 = vsel %vm2337, %v2810, %v2812
      %v2814 = vrot.slane %v2789, 2
      %v2815 = vsel %vm2337, %v2812, %v2814
      %v2816 = vrot.slane %v2790, 2
      %v2817 = vsel %vm2337, %v2814, %v2816
      %v2818 = vrot.slane %v2791, 2
      %v2819 = vsel %vm2337, %v2816, %v2818
      %v2820 = vrot.slane %v2792, 2
      %v2821 = vsel %vm2337, %v2818, %v2820
      %v2822 = vrot.slane %v2793, 2
      %v2823 = vsel %vm2337, %v2820, %v2822
      %v2824 = vrot.slane %v2794, 2
      %v2825 = vsel %vm2337, %v2822, %v2824
      %v2826 = vrot.slane %v2795, 2
      %v2827 = vsel %vm2337, %v2824, %v2826
      %v2828 = vrot.slane %v2796, 2
      %v2829 = vsel %vm2337, %v2826, %v2828
      %v2830 = vrot.slane %v2797, 2
      %v2831 = vsel %vm2337, %v2828, %v2830
      %v2832 = vrot.slane %v2798, 2
      %v2833 = vsel %vm2337, %v2830, %v2832
      %v2834 = vrot.slane %v2799, 2
      %v2835 = vsel %vm2337, %v2832, %v2834
      %v2836 = vrot.slane %v2800, 2
      %v2837 = vsel %vm2337, %v2834, %v2836
      %v2872 = vunpack.c.l.b16 %v2692
      %v2873 = vunpack.c.l.b16 %v2693
      %v2874 = vunpack.c.l.b16 %v2694
      %v2875 = vunpack.c.l.b16 %v2695
      %v2876 = vunpack.c.l.b16 %v2696
      %v2877 = vunpack.c.l.b16 %v2697
      %v2878 = vunpack.c.l.b16 %v2698
      %v2879 = vunpack.c.l.b16 %v2699
      %v2880 = vunpack.c.l.b16 %v2700
      %v2881 = vunpack.c.l.b16 %v2701
      %v2882 = vunpack.c.l.b16 %v2702
      %v2883 = vunpack.c.l.b16 %v2703
      %v2884 = vunpack.c.l.b16 %v2704
      %v2885 = vunpack.c.l.b16 %v2705
      %v2886 = vunpack.c.l.b16 %v2706
      %v2887 = vunpack.c.l.b16 %v2707
      %v2888 = vpack.c.b16 %v2873, %v2872
      %v2889 = vpack.c.b16 %v2875, %v2874
      %v2890 = vpack.c.b16 %v2877, %v2876
      %v2891 = vpack.c.b16 %v2879, %v2878
      %v2892 = vpack.c.b16 %v2881, %v2880
      %v2893 = vpack.c.b16 %v2883, %v2882
      %v2894 = vpack.c.b16 %v2885, %v2884
      %v2895 = vpack.c.b16 %v2887, %v2886
      %2904 = vmatprep.subr.bf16.mxu0 0
      %2905 = vmatpush1.bf16.msra.mxu0 %v2888
      %2906 = vmatprep.subr.bf16.mxu0 0
      %2907 = vmatpush1.bf16.msra.mxu0 %v2889
      %2908 = vmatprep.subr.bf16.mxu0 0
      %2909 = vmatpush1.bf16.msra.mxu0 %v2890
      %2910 = vmatprep.subr.bf16.mxu0 0
      %2911 = vmatpush1.bf16.msra.mxu0 %v2891
      %2912 = vmatprep.subr.bf16.mxu0 0
      %2913 = vmatpush1.bf16.msra.mxu0 %v2892
      %2914 = vmatprep.subr.bf16.mxu0 0
      %2915 = vmatpush1.bf16.msra.mxu0 %v2893
      %2916 = vmatprep.subr.bf16.mxu0 0
      %2917 = vmatpush1.bf16.msra.mxu0 %v2894
      %2918 = vmatprep.subr.bf16.mxu0 0
      %2919 = vmatpush1.bf16.msra.mxu0 %v2895
      %2920 = vmatprep.subr.bf16.mxu0 0
      %2921 = vmatpush1.bf16.msra.mxu0 0
      %2922 = vmatprep.subr.bf16.mxu0 0
      %2923 = vmatpush1.bf16.msra.mxu0 0
      %2924 = vmatprep.subr.bf16.mxu0 0
      %2925 = vmatpush1.bf16.msra.mxu0 0
      %2926 = vmatprep.subr.bf16.mxu0 0
      %2927 = vmatpush1.bf16.msra.mxu0 0
      %2928 = vmatprep.subr.bf16.mxu0 0
      %2929 = vmatpush1.bf16.msra.mxu0 0
      %2930 = vmatprep.subr.bf16.mxu0 0
      %2931 = vmatpush1.bf16.msra.mxu0 0
      %2932 = vmatprep.subr.bf16.mxu0 0
      %2933 = vmatpush1.bf16.msra.mxu0 0
      %2934 = vmatprep.subr.bf16.mxu0 0
      %2935 = vmatpush1.bf16.msra.mxu0 0
      %2936 = vmatprep.mubr.bf16.mxu0 0
      %2937 = vmatmul.mubr.bf16.gmra.mrb[0].mxu0 %v2803
      %v2938 = vpop.f32.mrb[0].mxu0
      %v2939 = vadd.f32 0.0, %v2938
      %v2940 = vpop.f32.mrb[0].mxu0
      %v2941 = vpop.f32.mrb[0].mxu0
      %v2942 = vadd.f32 0.0, %v2941
      %v2943 = vpop.f32.mrb[0].mxu0
      %2944 = vmatprep.mubr.bf16.mxu0 0
      %2945 = vmatmul.mubr.bf16.gmra.mrb[0].mxu0 %v2805
      %v2946 = vpop.f32.mrb[0].mxu0
      %v2947 = vadd.f32 0.0, %v2946
      %v2948 = vpop.f32.mrb[0].mxu0
      %v2949 = vpop.f32.mrb[0].mxu0
      %v2950 = vadd.f32 0.0, %v2949
      %v2951 = vpop.f32.mrb[0].mxu0
      %2952 = vmatprep.mubr.bf16.mxu0 0
      %2953 = vmatmul.mubr.bf16.gmra.mrb[0].mxu0 %v2807
      %v2954 = vpop.f32.mrb[0].mxu0
      %v2955 = vadd.f32 0.0, %v2954
      %v2956 = vpop.f32.mrb[0].mxu0
      %v2957 = vpop.f32.mrb[0].mxu0
      %v2958 = vadd.f32 0.0, %v2957
      %v2959 = vpop.f32.mrb[0].mxu0
      %2960 = vmatprep.mubr.bf16.mxu0 0
      %2961 = vmatmul.mubr.bf16.gmra.mrb[0].mxu0 %v2809
      %v2962 = vpop.f32.mrb[0].mxu0
      %v2963 = vadd.f32 0.0, %v2962
      %v2964 = vpop.f32.mrb[0].mxu0
      %v2965 = vpop.f32.mrb[0].mxu0
      %v2966 = vadd.f32 0.0, %v2965
      %v2967 = vpop.f32.mrb[0].mxu0
      %2968 = vmatprep.mubr.bf16.mxu0 0
      %2969 = vmatmul.mubr.bf16.gmra.mrb[0].mxu0 %v2811
      %v2970 = vpop.f32.mrb[0].mxu0
      %v2971 = vadd.f32 0.0, %v2970
      %v2972 = vpop.f32.mrb[0].mxu0
      %v2973 = vpop.f32.mrb[0].mxu0
      %v2974 = vadd.f32 0.0, %v2973
      %v2975 = vpop.f32.mrb[0].mxu0
      %2976 = vmatprep.mubr.bf16.mxu0 0
      %2977 = vmatmul.mubr.bf16.gmra.mrb[0].mxu0 %v2813
      %v2978 = vpop.f32.mrb[0].mxu0
      %v2979 = vadd.f32 0.0, %v2978
      %v2980 = vpop.f32.mrb[0].mxu0
      %v2981 = vpop.f32.mrb[0].mxu0
      %v2982 = vadd.f32 0.0, %v2981
      %v2983 = vpop.f32.mrb[0].mxu0
      %2984 = vmatprep.mubr.bf16.mxu0 0
      %2985 = vmatmul.mubr.bf16.gmra.mrb[0].mxu0 %v2815
      %v2986 = vpop.f32.mrb[0].mxu0
      %v2987 = vadd.f32 0.0, %v2986
      %v2988 = vpop.f32.mrb[0].mxu0
      %v2989 = vpop.f32.mrb[0].mxu0
      %v2990 = vadd.f32 0.0, %v2989
      %v2991 = vpop.f32.mrb[0].mxu0
      %2992 = vmatprep.mubr.bf16.mxu0 0
      %2993 = vmatmul.mubr.bf16.gmra.mrb[0].mxu0 %v2817
      %v2994 = vpop.f32.mrb[0].mxu0
      %v2995 = vadd.f32 0.0, %v2994
      %v2996 = vpop.f32.mrb[0].mxu0
      %v2997 = vpop.f32.mrb[0].mxu0
      %v2998 = vadd.f32 0.0, %v2997
      %v2999 = vpop.f32.mrb[0].mxu0
      %3000 = vmatprep.mubr.bf16.mxu0 0
      %3001 = vmatmul.mubr.bf16.gmra.mrb[0].mxu0 %v2819
      %v3002 = vpop.f32.mrb[0].mxu0
      %v3003 = vadd.f32 0.0, %v3002
      %v3004 = vpop.f32.mrb[0].mxu0
      %v3005 = vpop.f32.mrb[0].mxu0
      %v3006 = vadd.f32 0.0, %v3005
      %v3007 = vpop.f32.mrb[0].mxu0
      %3008 = vmatprep.mubr.bf16.mxu0 0
      %3009 = vmatmul.mubr.bf16.gmra.mrb[0].mxu0 %v2821
      %v3010 = vpop.f32.mrb[0].mxu0
      %v3011 = vadd.f32 0.0, %v3010
      %v3012 = vpop.f32.mrb[0].mxu0
      %v3013 = vpop.f32.mrb[0].mxu0
      %v3014 = vadd.f32 0.0, %v3013
      %v3015 = vpop.f32.mrb[0].mxu0
      %3016 = vmatprep.mubr.bf16.mxu0 0
      %3017 = vmatmul.mubr.bf16.gmra.mrb[0].mxu0 %v2823
      %v3018 = vpop.f32.mrb[0].mxu0
      %v3019 = vadd.f32 0.0, %v3018
      %v3020 = vpop.f32.mrb[0].mxu0
      %v3021 = vpop.f32.mrb[0].mxu0
      %v3022 = vadd.f32 0.0, %v3021
      %v3023 = vpop.f32.mrb[0].mxu0
      %3024 = vmatprep.mubr.bf16.mxu0 0
      %3025 = vmatmul.mubr.bf16.gmra.mrb[0].mxu0 %v2825
      %v3026 = vpop.f32.mrb[0].mxu0
      %v3027 = vadd.f32 0.0, %v3026
      %v3028 = vpop.f32.mrb[0].mxu0
      %v3029 = vpop.f32.mrb[0].mxu0
      %v3030 = vadd.f32 0.0, %v3029
      %v3031 = vpop.f32.mrb[0].mxu0
      %3032 = vmatprep.mubr.bf16.mxu0 0
      %3033 = vmatmul.mubr.bf16.gmra.mrb[0].mxu0 %v2827
      %v3034 = vpop.f32.mrb[0].mxu0
      %v3035 = vadd.f32 0.0, %v3034
      %v3036 = vpop.f32.mrb[0].mxu0
      %v3037 = vpop.f32.mrb[0].mxu0
      %v3038 = vadd.f32 0.0, %v3037
      %v3039 = vpop.f32.mrb[0].mxu0
      %3040 = vmatprep.mubr.bf16.mxu0 0
      %3041 = vmatmul.mubr.bf16.gmra.mrb[0].mxu0 %v2829
      %v3042 = vpop.f32.mrb[0].mxu0
      %v3043 = vadd.f32 0.0, %v3042
      %v3044 = vpop.f32.mrb[0].mxu0
      %v3045 = vpop.f32.mrb[0].mxu0
      %v3046 = vadd.f32 0.0, %v3045
      %v3047 = vpop.f32.mrb[0].mxu0
      %3048 = vmatprep.mubr.bf16.mxu0 0
      %3049 = vmatmul.mubr.bf16.gmra.mrb[0].mxu0 %v2831
      %v3050 = vpop.f32.mrb[0].mxu0
      %v3051 = vadd.f32 0.0, %v3050
      %v3052 = vpop.f32.mrb[0].mxu0
      %v3053 = vpop.f32.mrb[0].mxu0
      %v3054 = vadd.f32 0.0, %v3053
      %v3055 = vpop.f32.mrb[0].mxu0
      %3056 = vmatprep.mubr.bf16.mxu0 0
      %3057 = vmatmul.mubr.bf16.gmra.mrb[0].mxu0 %v2833
      %v3058 = vpop.f32.mrb[0].mxu0
      %v3059 = vadd.f32 0.0, %v3058
      %v3060 = vpop.f32.mrb[0].mxu0
      %v3061 = vpop.f32.mrb[0].mxu0
      %v3062 = vadd.f32 0.0, %v3061
      %v3063 = vpop.f32.mrb[0].mxu0
      %3064 = vmatprep.mubr.bf16.mxu0 0
      %3065 = vmatmul.mubr.bf16.gmra.mrb[0].mxu0 %v2835
      %v3066 = vpop.f32.mrb[0].mxu0
      %v3067 = vadd.f32 0.0, %v3066
      %v3068 = vpop.f32.mrb[0].mxu0
      %v3069 = vpop.f32.mrb[0].mxu0
      %v3070 = vadd.f32 0.0, %v3069
      %v3071 = vpop.f32.mrb[0].mxu0
      %3072 = vmatprep.mubr.bf16.mxu0 0
      %3073 = vmatmul.mubr.bf16.gmra.mrb[0].mxu0 %v2837
      %v3074 = vpop.f32.mrb[0].mxu0
      %v3075 = vadd.f32 0.0, %v3074
      %v3076 = vpop.f32.mrb[0].mxu0
      %v3077 = vpop.f32.mrb[0].mxu0
      %v3078 = vadd.f32 0.0, %v3077
      %v3079 = vpop.f32.mrb[0].mxu0
      %3080 = vdwg.mxu0
      %v3081 = vadd.f32 %v2618, %v2939
      %v3082 = vadd.f32 %v2619, %v2942
      %v3083 = vadd.f32 %v2620, %v2947
      %v3084 = vadd.f32 %v2621, %v2950
      %v3085 = vadd.f32 %v2622, %v2955
      %v3086 = vadd.f32 %v2623, %v2958
      %v3087 = vadd.f32 %v2624, %v2963
      %v3088 = vadd.f32 %v2625, %v2966
      %v3089 = vadd.f32 %v2626, %v2971
      %v3090 = vadd.f32 %v2627, %v2974
      %v3091 = vadd.f32 %v2628, %v2979
      %v3092 = vadd.f32 %v2629, %v2982
      %v3093 = vadd.f32 %v2630, %v2987
      %v3094 = vadd.f32 %v2631, %v2990
      %v3095 = vadd.f32 %v2632, %v2995
      %v3096 = vadd.f32 %v2633, %v2998
      %v3097 = vadd.f32 %v2634, %v3003
      %v3098 = vadd.f32 %v2635, %v3006
      %v3099 = vadd.f32 %v2636, %v3011
      %v3100 = vadd.f32 %v2637, %v3014
      %v3101 = vadd.f32 %v2638, %v3019
      %v3102 = vadd.f32 %v2639, %v3022
      %v3103 = vadd.f32 %v2640, %v3027
      %v3104 = vadd.f32 %v2641, %v3030
      %v3105 = vadd.f32 %v2642, %v3035
      %v3106 = vadd.f32 %v2643, %v3038
      %v3107 = vadd.f32 %v2644, %v3043
      %v3108 = vadd.f32 %v2645, %v3046
      %v3109 = vadd.f32 %v2646, %v3051
      %v3110 = vadd.f32 %v2647, %v3054
      %v3111 = vadd.f32 %v2648, %v3059
      %v3112 = vadd.f32 %v2649, %v3062
      %v3113 = vadd.f32 %v2650, %v3067
      %v3114 = vadd.f32 %v2651, %v3070
      %v3115 = vadd.f32 %v2652, %v3075
      %v3116 = vadd.f32 %v2653, %v3078
      %v3117 = vld [vmem:[%s234 + $0xa0] sm:$0x7]
      %s3118 = scalar_lea.vmem %s1, 448
      %v3119 = vld [vmem:[%s3118] sm:$0xf]
      %v3120 = vld [vmem:[%s3118 + $0x4] sm:$0xf]
      %v3121 = vld [vmem:[%s3118 + $0x8] sm:$0xf]
      %v3122 = vld [vmem:[%s3118 + $0xc] sm:$0xf]
      %v3123 = vld [vmem:[%s3118 + $0x10] sm:$0xf]
      %v3124 = vld [vmem:[%s3118 + $0x14] sm:$0xf]
      %v3125 = vld [vmem:[%s3118 + $0x18] sm:$0xf]
      %v3126 = vld [vmem:[%s3118 + $0x1c] sm:$0xf]
      %v3127 = vld [vmem:[%s3118 + $0x20] sm:$0xf]
      %v3128 = vld [vmem:[%s3118 + $0x24] sm:$0xf]
      %v3129 = vld [vmem:[%s3118 + $0x28] sm:$0xf]
      %v3130 = vld [vmem:[%s3118 + $0x2c] sm:$0xf]
      %v3131 = vld [vmem:[%s3118 + $0x30] sm:$0xf]
      %v3132 = vld [vmem:[%s3118 + $0x34] sm:$0xf]
      %v3133 = vld [vmem:[%s3118 + $0x38] sm:$0xf]
      %v3134 = vld [vmem:[%s3118 + $0x3c] sm:$0xf]
      %v3136 = vunpack.c.l.b16 %v3117
      %v3137 = vpack.c.b16 %v3136, %v3136
      %vm3138 = vsmask.f32 5376
      %v3140 = vshrl.u32 %v2782, 16
      %v3142 = vrot.slane %v3140, 2
      %v3143 = vshll.u32 %v2782, 16
      %v3145 = vrot.slane %v3143, 3
      %v3146 = vor.u32 %v3142, %v3145
      %v3148 = vshrl.u32 %v2783, 16
      %v3150 = vrot.slane %v3148, 2
      %v3151 = vshll.u32 %v2783, 16
      %v3153 = vrot.slane %v3151, 3
      %v3154 = vor.u32 %v3150, %v3153
      %v3155 = vsel %vm3138, %v3146, %v3154
      %v3157 = vshrl.u32 %v2784, 16
      %v3159 = vrot.slane %v3157, 2
      %v3160 = vshll.u32 %v2784, 16
      %v3162 = vrot.slane %v3160, 3
      %v3163 = vor.u32 %v3159, %v3162
      %v3164 = vsel %vm3138, %v3154, %v3163
      %v3166 = vshrl.u32 %v2785, 16
      %v3168 = vrot.slane %v3166, 2
      %v3169 = vshll.u32 %v2785, 16
      %v3171 = vrot.slane %v3169, 3
      %v3172 = vor.u32 %v3168, %v3171
      %v3173 = vsel %vm3138, %v3163, %v3172
      %v3175 = vshrl.u32 %v2786, 16
      %v3177 = vrot.slane %v3175, 2
      %v3178 = vshll.u32 %v2786, 16
      %v3180 = vrot.slane %v3178, 3
      %v3181 = vor.u32 %v3177, %v3180
      %v3182 = vsel %vm3138, %v3172, %v3181
      %v3184 = vshrl.u32 %v2787, 16
      %v3186 = vrot.slane %v3184, 2
      %v3187 = vshll.u32 %v2787, 16
      %v3189 = vrot.slane %v3187, 3
      %v3190 = vor.u32 %v3186, %v3189
      %v3191 = vsel %vm3138, %v3181, %v3190
      %v3193 = vshrl.u32 %v2788, 16
      %v3195 = vrot.slane %v3193, 2
      %v3196 = vshll.u32 %v2788, 16
      %v3198 = vrot.slane %v3196, 3
      %v3199 = vor.u32 %v3195, %v3198
      %v3200 = vsel %vm3138, %v3190, %v3199
      %v3202 = vshrl.u32 %v2789, 16
      %v3204 = vrot.slane %v3202, 2
      %v3205 = vshll.u32 %v2789, 16
      %v3207 = vrot.slane %v3205, 3
      %v3208 = vor.u32 %v3204, %v3207
      %v3209 = vsel %vm3138, %v3199, %v3208
      %v3211 = vshrl.u32 %v2790, 16
      %v3213 = vrot.slane %v3211, 2
      %v3214 = vshll.u32 %v2790, 16
      %v3216 = vrot.slane %v3214, 3
      %v3217 = vor.u32 %v3213, %v3216
      %v3218 = vsel %vm3138, %v3208, %v3217
      %v3220 = vshrl.u32 %v2791, 16
      %v3222 = vrot.slane %v3220, 2
      %v3223 = vshll.u32 %v2791, 16
      %v3225 = vrot.slane %v3223, 3
      %v3226 = vor.u32 %v3222, %v3225
      %v3227 = vsel %vm3138, %v3217, %v3226
      %v3229 = vshrl.u32 %v2792, 16
      %v3231 = vrot.slane %v3229, 2
      %v3232 = vshll.u32 %v2792, 16
      %v3234 = vrot.slane %v3232, 3
      %v3235 = vor.u32 %v3231, %v3234
      %v3236 = vsel %vm3138, %v3226, %v3235
      %v3238 = vshrl.u32 %v2793, 16
      %v3240 = vrot.slane %v3238, 2
      %v3241 = vshll.u32 %v2793, 16
      %v3243 = vrot.slane %v3241, 3
      %v3244 = vor.u32 %v3240, %v3243
      %v3245 = vsel %vm3138, %v3235, %v3244
      %v3247 = vshrl.u32 %v2794, 16
      %v3249 = vrot.slane %v3247, 2
      %v3250 = vshll.u32 %v2794, 16
      %v3252 = vrot.slane %v3250, 3
      %v3253 = vor.u32 %v3249, %v3252
      %v3254 = vsel %vm3138, %v3244, %v3253
      %v3256 = vshrl.u32 %v2795, 16
      %v3258 = vrot.slane %v3256, 2
      %v3259 = vshll.u32 %v2795, 16
      %v3261 = vrot.slane %v3259, 3
      %v3262 = vor.u32 %v3258, %v3261
      %v3263 = vsel %vm3138, %v3253, %v3262
      %v3265 = vshrl.u32 %v2796, 16
      %v3267 = vrot.slane %v3265, 2
      %v3268 = vshll.u32 %v2796, 16
      %v3270 = vrot.slane %v3268, 3
      %v3271 = vor.u32 %v3267, %v3270
      %v3272 = vsel %vm3138, %v3262, %v3271
      %v3274 = vshrl.u32 %v2797, 16
      %v3276 = vrot.slane %v3274, 2
      %v3277 = vshll.u32 %v2797, 16
      %v3279 = vrot.slane %v3277, 3
      %v3280 = vor.u32 %v3276, %v3279
      %v3281 = vsel %vm3138, %v3271, %v3280
      %v3283 = vshrl.u32 %v2798, 16
      %v3285 = vrot.slane %v3283, 2
      %v3286 = vshll.u32 %v2798, 16
      %v3288 = vrot.slane %v3286, 3
      %v3289 = vor.u32 %v3285, %v3288
      %v3290 = vsel %vm3138, %v3280, %v3289
      %v3292 = vshrl.u32 %v2799, 16
      %v3294 = vrot.slane %v3292, 2
      %v3295 = vshll.u32 %v2799, 16
      %v3297 = vrot.slane %v3295, 3
      %v3298 = vor.u32 %v3294, %v3297
      %v3299 = vsel %vm3138, %v3289, %v3298
      %v3301 = vshrl.u32 %v3137, 16
      %v3303 = vrot.slane %v3301, 2
      %v3304 = vshll.u32 %v3137, 16
      %v3306 = vrot.slane %v3304, 3
      %v3307 = vor.u32 %v3303, %v3306
      %v3308 = vsel %vm3138, %v3298, %v3307
      %v3343 = vunpack.c.l.b16 %v3119
      %v3344 = vunpack.c.l.b16 %v3120
      %v3345 = vunpack.c.l.b16 %v3121
      %v3346 = vunpack.c.l.b16 %v3122
      %v3347 = vunpack.c.l.b16 %v3123
      %v3348 = vunpack.c.l.b16 %v3124
      %v3349 = vunpack.c.l.b16 %v3125
      %v3350 = vunpack.c.l.b16 %v3126
      %v3351 = vunpack.c.l.b16 %v3127
      %v3352 = vunpack.c.l.b16 %v3128
      %v3353 = vunpack.c.l.b16 %v3129
      %v3354 = vunpack.c.l.b16 %v3130
      %v3355 = vunpack.c.l.b16 %v3131
      %v3356 = vunpack.c.l.b16 %v3132
      %v3357 = vunpack.c.l.b16 %v3133
      %v3358 = vunpack.c.l.b16 %v3134
      %v3359 = vpack.c.b16 %v3344, %v3343
      %v3360 = vpack.c.b16 %v3346, %v3345
      %v3361 = vpack.c.b16 %v3348, %v3347
      %v3362 = vpack.c.b16 %v3350, %v3349
      %v3363 = vpack.c.b16 %v3352, %v3351
      %v3364 = vpack.c.b16 %v3354, %v3353
      %v3365 = vpack.c.b16 %v3356, %v3355
      %v3366 = vpack.c.b16 %v3358, %v3357
      %3375 = vmatprep.subr.bf16.mxu0 0
      %3376 = vmatpush1.bf16.msra.mxu0 %v3359
      %3377 = vmatprep.subr.bf16.mxu0 0
      %3378 = vmatpush1.bf16.msra.mxu0 %v3360
      %3379 = vmatprep.subr.bf16.mxu0 0
      %3380 = vmatpush1.bf16.msra.mxu0 %v3361
      %3381 = vmatprep.subr.bf16.mxu0 0
      %3382 = vmatpush1.bf16.msra.mxu0 %v3362
      %3383 = vmatprep.subr.bf16.mxu0 0
      %3384 = vmatpush1.bf16.msra.mxu0 %v3363
      %3385 = vmatprep.subr.bf16.mxu0 0
      %3386 = vmatpush1.bf16.msra.mxu0 %v3364
      %3387 = vmatprep.subr.bf16.mxu0 0
      %3388 = vmatpush1.bf16.msra.mxu0 %v3365
      %3389 = vmatprep.subr.bf16.mxu0 0
      %3390 = vmatpush1.bf16.msra.mxu0 %v3366
      %3391 = vmatprep.subr.bf16.mxu0 0
      %3392 = vmatpush1.bf16.msra.mxu0 0
      %3393 = vmatprep.subr.bf16.mxu0 0
      %3394 = vmatpush1.bf16.msra.mxu0 0
      %3395 = vmatprep.subr.bf16.mxu0 0
      %3396 = vmatpush1.bf16.msra.mxu0 0
      %3397 = vmatprep.subr.bf16.mxu0 0
      %3398 = vmatpush1.bf16.msra.mxu0 0
      %3399 = vmatprep.subr.bf16.mxu0 0
      %3400 = vmatpush1.bf16.msra.mxu0 0
      %3401 = vmatprep.subr.bf16.mxu0 0
      %3402 = vmatpush1.bf16.msra.mxu0 0
      %3403 = vmatprep.subr.bf16.mxu0 0
      %3404 = vmatpush1.bf16.msra.mxu0 0
      %3405 = vmatprep.subr.bf16.mxu0 0
      %3406 = vmatpush1.bf16.msra.mxu0 0
      %3407 = vmatprep.mubr.bf16.mxu0 0
      %3408 = vmatmul.mubr.bf16.gmra.mrb[0].mxu0 %v3155
      %v3409 = vpop.f32.mrb[0].mxu0
      %v3410 = vadd.f32 0.0, %v3409
      %v3411 = vpop.f32.mrb[0].mxu0
      %v3412 = vpop.f32.mrb[0].mxu0
      %v3413 = vadd.f32 0.0, %v3412
      %v3414 = vpop.f32.mrb[0].mxu0
      %3415 = vmatprep.mubr.bf16.mxu0 0
      %3416 = vmatmul.mubr.bf16.gmra.mrb[0].mxu0 %v3164
      %v3417 = vpop.f32.mrb[0].mxu0
      %v3418 = vadd.f32 0.0, %v3417
      %v3419 = vpop.f32.mrb[0].mxu0
      %v3420 = vpop.f32.mrb[0].mxu0
      %v3421 = vadd.f32 0.0, %v3420
      %v3422 = vpop.f32.mrb[0].mxu0
      %3423 = vmatprep.mubr.bf16.mxu0 0
      %3424 = vmatmul.mubr.bf16.gmra.mrb[0].mxu0 %v3173
      %v3425 = vpop.f32.mrb[0].mxu0
      %v3426 = vadd.f32 0.0, %v3425
      %v3427 = vpop.f32.mrb[0].mxu0
      %v3428 = vpop.f32.mrb[0].mxu0
      %v3429 = vadd.f32 0.0, %v3428
      %v3430 = vpop.f32.mrb[0].mxu0
      %3431 = vmatprep.mubr.bf16.mxu0 0
      %3432 = vmatmul.mubr.bf16.gmra.mrb[0].mxu0 %v3182
      %v3433 = vpop.f32.mrb[0].mxu0
      %v3434 = vadd.f32 0.0, %v3433
      %v3435 = vpop.f32.mrb[0].mxu0
      %v3436 = vpop.f32.mrb[0].mxu0
      %v3437 = vadd.f32 0.0, %v3436
      %v3438 = vpop.f32.mrb[0].mxu0
      %3439 = vmatprep.mubr.bf16.mxu0 0
      %3440 = vmatmul.mubr.bf16.gmra.mrb[0].mxu0 %v3191
      %v3441 = vpop.f32.mrb[0].mxu0
      %v3442 = vadd.f32 0.0, %v3441
      %v3443 = vpop.f32.mrb[0].mxu0
      %v3444 = vpop.f32.mrb[0].mxu0
      %v3445 = vadd.f32 0.0, %v3444
      %v3446 = vpop.f32.mrb[0].mxu0
      %3447 = vmatprep.mubr.bf16.mxu0 0
      %3448 = vmatmul.mubr.bf16.gmra.mrb[0].mxu0 %v3200
      %v3449 = vpop.f32.mrb[0].mxu0
      %v3450 = vadd.f32 0.0, %v3449
      %v3451 = vpop.f32.mrb[0].mxu0
      %v3452 = vpop.f32.mrb[0].mxu0
      %v3453 = vadd.f32 0.0, %v3452
      %v3454 = vpop.f32.mrb[0].mxu0
      %3455 = vmatprep.mubr.bf16.mxu0 0
      %3456 = vmatmul.mubr.bf16.gmra.mrb[0].mxu0 %v3209
      %v3457 = vpop.f32.mrb[0].mxu0
      %v3458 = vadd.f32 0.0, %v3457
      %v3459 = vpop.f32.mrb[0].mxu0
      %v3460 = vpop.f32.mrb[0].mxu0
      %v3461 = vadd.f32 0.0, %v3460
      %v3462 = vpop.f32.mrb[0].mxu0
      %3463 = vmatprep.mubr.bf16.mxu0 0
      %3464 = vmatmul.mubr.bf16.gmra.mrb[0].mxu0 %v3218
      %v3465 = vpop.f32.mrb[0].mxu0
      %v3466 = vadd.f32 0.0, %v3465
      %v3467 = vpop.f32.mrb[0].mxu0
      %v3468 = vpop.f32.mrb[0].mxu0
      %v3469 = vadd.f32 0.0, %v3468
      %v3470 = vpop.f32.mrb[0].mxu0
      %3471 = vmatprep.mubr.bf16.mxu0 0
      %3472 = vmatmul.mubr.bf16.gmra.mrb[0].mxu0 %v3227
      %v3473 = vpop.f32.mrb[0].mxu0
      %v3474 = vadd.f32 0.0, %v3473
      %v3475 = vpop.f32.mrb[0].mxu0
      %v3476 = vpop.f32.mrb[0].mxu0
      %v3477 = vadd.f32 0.0, %v3476
      %v3478 = vpop.f32.mrb[0].mxu0
      %3479 = vmatprep.mubr.bf16.mxu0 0
      %3480 = vmatmul.mubr.bf16.gmra.mrb[0].mxu0 %v3236
      %v3481 = vpop.f32.mrb[0].mxu0
      %v3482 = vadd.f32 0.0, %v3481
      %v3483 = vpop.f32.mrb[0].mxu0
      %v3484 = vpop.f32.mrb[0].mxu0
      %v3485 = vadd.f32 0.0, %v3484
      %v3486 = vpop.f32.mrb[0].mxu0
      %3487 = vmatprep.mubr.bf16.mxu0 0
      %3488 = vmatmul.mubr.bf16.gmra.mrb[0].mxu0 %v3245
      %v3489 = vpop.f32.mrb[0].mxu0
      %v3490 = vadd.f32 0.0, %v3489
      %v3491 = vpop.f32.mrb[0].mxu0
      %v3492 = vpop.f32.mrb[0].mxu0
      %v3493 = vadd.f32 0.0, %v3492
      %v3494 = vpop.f32.mrb[0].mxu0
      %3495 = vmatprep.mubr.bf16.mxu0 0
      %3496 = vmatmul.mubr.bf16.gmra.mrb[0].mxu0 %v3254
      %v3497 = vpop.f32.mrb[0].mxu0
      %v3498 = vadd.f32 0.0, %v3497
      %v3499 = vpop.f32.mrb[0].mxu0
      %v3500 = vpop.f32.mrb[0].mxu0
      %v3501 = vadd.f32 0.0, %v3500
      %v3502 = vpop.f32.mrb[0].mxu0
      %3503 = vmatprep.mubr.bf16.mxu0 0
      %3504 = vmatmul.mubr.bf16.gmra.mrb[0].mxu0 %v3263
      %v3505 = vpop.f32.mrb[0].mxu0
      %v3506 = vadd.f32 0.0, %v3505
      %v3507 = vpop.f32.mrb[0].mxu0
      %v3508 = vpop.f32.mrb[0].mxu0
      %v3509 = vadd.f32 0.0, %v3508
      %v3510 = vpop.f32.mrb[0].mxu0
      %3511 = vmatprep.mubr.bf16.mxu0 0
      %3512 = vmatmul.mubr.bf16.gmra.mrb[0].mxu0 %v3272
      %v3513 = vpop.f32.mrb[0].mxu0
      %v3514 = vadd.f32 0.0, %v3513
      %v3515 = vpop.f32.mrb[0].mxu0
      %v3516 = vpop.f32.mrb[0].mxu0
      %v3517 = vadd.f32 0.0, %v3516
      %v3518 = vpop.f32.mrb[0].mxu0
      %3519 = vmatprep.mubr.bf16.mxu0 0
      %3520 = vmatmul.mubr.bf16.gmra.mrb[0].mxu0 %v3281
      %v3521 = vpop.f32.mrb[0].mxu0
      %v3522 = vadd.f32 0.0, %v3521
      %v3523 = vpop.f32.mrb[0].mxu0
      %v3524 = vpop.f32.mrb[0].mxu0
      %v3525 = vadd.f32 0.0, %v3524
      %v3526 = vpop.f32.mrb[0].mxu0
      %3527 = vmatprep.mubr.bf16.mxu0 0
      %3528 = vmatmul.mubr.bf16.gmra.mrb[0].mxu0 %v3290
      %v3529 = vpop.f32.mrb[0].mxu0
      %v3530 = vadd.f32 0.0, %v3529
      %v3531 = vpop.f32.mrb[0].mxu0
      %v3532 = vpop.f32.mrb[0].mxu0
      %v3533 = vadd.f32 0.0, %v3532
      %v3534 = vpop.f32.mrb[0].mxu0
      %3535 = vmatprep.mubr.bf16.mxu0 0
      %3536 = vmatmul.mubr.bf16.gmra.mrb[0].mxu0 %v3299
      %v3537 = vpop.f32.mrb[0].mxu0
      %v3538 = vadd.f32 0.0, %v3537
      %v3539 = vpop.f32.mrb[0].mxu0
      %v3540 = vpop.f32.mrb[0].mxu0
      %v3541 = vadd.f32 0.0, %v3540
      %v3542 = vpop.f32.mrb[0].mxu0
      %3543 = vmatprep.mubr.bf16.mxu0 0
      %3544 = vmatmul.mubr.bf16.gmra.mrb[0].mxu0 %v3308
      %v3545 = vpop.f32.mrb[0].mxu0
      %v3546 = vadd.f32 0.0, %v3545
      %v3547 = vpop.f32.mrb[0].mxu0
      %v3548 = vpop.f32.mrb[0].mxu0
      %v3549 = vadd.f32 0.0, %v3548
      %v3550 = vpop.f32.mrb[0].mxu0
      %3551 = vdwg.mxu0
      %v3552 = vadd.f32 %v3081, %v3410
      %v3553 = vadd.f32 %v3082, %v3413
      %v3554 = vadd.f32 %v3083, %v3418
      %v3555 = vadd.f32 %v3084, %v3421
      %v3556 = vadd.f32 %v3085, %v3426
      %v3557 = vadd.f32 %v3086, %v3429
      %v3558 = vadd.f32 %v3087, %v3434
      %v3559 = vadd.f32 %v3088, %v3437
      %v3560 = vadd.f32 %v3089, %v3442
      %v3561 = vadd.f32 %v3090, %v3445
      %v3562 = vadd.f32 %v3091, %v3450
      %v3563 = vadd.f32 %v3092, %v3453
      %v3564 = vadd.f32 %v3093, %v3458
      %v3565 = vadd.f32 %v3094, %v3461
      %v3566 = vadd.f32 %v3095, %v3466
      %v3567 = vadd.f32 %v3096, %v3469
      %v3568 = vadd.f32 %v3097, %v3474
      %v3569 = vadd.f32 %v3098, %v3477
      %v3570 = vadd.f32 %v3099, %v3482
      %v3571 = vadd.f32 %v3100, %v3485
      %v3572 = vadd.f32 %v3101, %v3490
      %v3573 = vadd.f32 %v3102, %v3493
      %v3574 = vadd.f32 %v3103, %v3498
      %v3575 = vadd.f32 %v3104, %v3501
      %v3576 = vadd.f32 %v3105, %v3506
      %v3577 = vadd.f32 %v3106, %v3509
      %v3578 = vadd.f32 %v3107, %v3514
      %v3579 = vadd.f32 %v3108, %v3517
      %v3580 = vadd.f32 %v3109, %v3522
      %v3581 = vadd.f32 %v3110, %v3525
      %v3582 = vadd.f32 %v3111, %v3530
      %v3583 = vadd.f32 %v3112, %v3533
      %v3584 = vadd.f32 %v3113, %v3538
      %v3585 = vadd.f32 %v3114, %v3541
      %v3586 = vadd.f32 %v3115, %v3546
      %v3587 = vadd.f32 %v3116, %v3549
      %v3588 = vld [vmem:[%s234 + $0x10] sm:$0x8]
      %s3589 = scalar_lea.vmem %s1, 512
      %v3590 = vld [vmem:[%s3589] sm:$0xf]
      %v3591 = vld [vmem:[%s3589 + $0x4] sm:$0xf]
      %v3592 = vld [vmem:[%s3589 + $0x8] sm:$0xf]
      %v3593 = vld [vmem:[%s3589 + $0xc] sm:$0xf]
      %v3594 = vld [vmem:[%s3589 + $0x10] sm:$0xf]
      %v3595 = vld [vmem:[%s3589 + $0x14] sm:$0xf]
      %v3596 = vld [vmem:[%s3589 + $0x18] sm:$0xf]
      %v3597 = vld [vmem:[%s3589 + $0x1c] sm:$0xf]
      %v3598 = vld [vmem:[%s3589 + $0x20] sm:$0xf]
      %v3599 = vld [vmem:[%s3589 + $0x24] sm:$0xf]
      %v3600 = vld [vmem:[%s3589 + $0x28] sm:$0xf]
      %v3601 = vld [vmem:[%s3589 + $0x2c] sm:$0xf]
      %v3602 = vld [vmem:[%s3589 + $0x30] sm:$0xf]
      %v3603 = vld [vmem:[%s3589 + $0x34] sm:$0xf]
      %v3604 = vld [vmem:[%s3589 + $0x38] sm:$0xf]
      %v3605 = vld [vmem:[%s3589 + $0x3c] sm:$0xf]
      %v3607 = vunpack.c.l.b16 %v3588
      %v3608 = vpack.c.b16 %v2746, %v3607
      %vm3609 = vcmask 1044480
      %v3610 = vrot.slane %v3608, 3
      %v3611 = vrot.slane %v2783, 3
      %v3612 = vsel %vm3609, %v3610, %v3611
      %v3613 = vrot.slane %v2784, 3
      %v3614 = vsel %vm3609, %v3611, %v3613
      %v3615 = vrot.slane %v2785, 3
      %v3616 = vsel %vm3609, %v3613, %v3615
      %v3617 = vrot.slane %v2786, 3
      %v3618 = vsel %vm3609, %v3615, %v3617
      %v3619 = vrot.slane %v2787, 3
      %v3620 = vsel %vm3609, %v3617, %v3619
      %v3621 = vrot.slane %v2788, 3
      %v3622 = vsel %vm3609, %v3619, %v3621
      %v3623 = vrot.slane %v2789, 3
      %v3624 = vsel %vm3609, %v3621, %v3623
      %v3625 = vrot.slane %v2790, 3
      %v3626 = vsel %vm3609, %v3623, %v3625
      %v3627 = vrot.slane %v2791, 3
      %v3628 = vsel %vm3609, %v3625, %v3627
      %v3629 = vrot.slane %v2792, 3
      %v3630 = vsel %vm3609, %v3627, %v3629
      %v3631 = vrot.slane %v2793, 3
      %v3632 = vsel %vm3609, %v3629, %v3631
      %v3633 = vrot.slane %v2794, 3
      %v3634 = vsel %vm3609, %v3631, %v3633
      %v3635 = vrot.slane %v2795, 3
      %v3636 = vsel %vm3609, %v3633, %v3635
      %v3637 = vrot.slane %v2796, 3
      %v3638 = vsel %vm3609, %v3635, %v3637
      %v3639 = vrot.slane %v2797, 3
      %v3640 = vsel %vm3609, %v3637, %v3639
      %v3641 = vrot.slane %v2798, 3
      %v3642 = vsel %vm3609, %v3639, %v3641
      %v3643 = vrot.slane %v2799, 3
      %v3644 = vsel %vm3609, %v3641, %v3643
      %v3645 = vrot.slane %v3137, 3
      %v3646 = vsel %vm3609, %v3643, %v3645
      %v3681 = vunpack.c.l.b16 %v3590
      %v3682 = vunpack.c.l.b16 %v3591
      %v3683 = vunpack.c.l.b16 %v3592
      %v3684 = vunpack.c.l.b16 %v3593
      %v3685 = vunpack.c.l.b16 %v3594
      %v3686 = vunpack.c.l.b16 %v3595
      %v3687 = vunpack.c.l.b16 %v3596
      %v3688 = vunpack.c.l.b16 %v3597
      %v3689 = vunpack.c.l.b16 %v3598
      %v3690 = vunpack.c.l.b16 %v3599
      %v3691 = vunpack.c.l.b16 %v3600
      %v3692 = vunpack.c.l.b16 %v3601
      %v3693 = vunpack.c.l.b16 %v3602
      %v3694 = vunpack.c.l.b16 %v3603
      %v3695 = vunpack.c.l.b16 %v3604
      %v3696 = vunpack.c.l.b16 %v3605
      %v3697 = vpack.c.b16 %v3682, %v3681
      %v3698 = vpack.c.b16 %v3684, %v3683
      %v3699 = vpack.c.b16 %v3686, %v3685
      %v3700 = vpack.c.b16 %v3688, %v3687
      %v3701 = vpack.c.b16 %v3690, %v3689
      %v3702 = vpack.c.b16 %v3692, %v3691
      %v3703 = vpack.c.b16 %v3694, %v3693
      %v3704 = vpack.c.b16 %v3696, %v3695
      %3713 = vmatprep.subr.bf16.mxu0 0
      %3714 = vmatpush1.bf16.msra.mxu0 %v3697
      %3715 = vmatprep.subr.bf16.mxu0 0
      %3716 = vmatpush1.bf16.msra.mxu0 %v3698
      %3717 = vmatprep.subr.bf16.mxu0 0
      %3718 = vmatpush1.bf16.msra.mxu0 %v3699
      %3719 = vmatprep.subr.bf16.mxu0 0
      %3720 = vmatpush1.bf16.msra.mxu0 %v3700
      %3721 = vmatprep.subr.bf16.mxu0 0
      %3722 = vmatpush1.bf16.msra.mxu0 %v3701
      %3723 = vmatprep.subr.bf16.mxu0 0
      %3724 = vmatpush1.bf16.msra.mxu0 %v3702
      %3725 = vmatprep.subr.bf16.mxu0 0
      %3726 = vmatpush1.bf16.msra.mxu0 %v3703
      %3727 = vmatprep.subr.bf16.mxu0 0
      %3728 = vmatpush1.bf16.msra.mxu0 %v3704
      %3729 = vmatprep.subr.bf16.mxu0 0
      %3730 = vmatpush1.bf16.msra.mxu0 0
      %3731 = vmatprep.subr.bf16.mxu0 0
      %3732 = vmatpush1.bf16.msra.mxu0 0
      %3733 = vmatprep.subr.bf16.mxu0 0
      %3734 = vmatpush1.bf16.msra.mxu0 0
      %3735 = vmatprep.subr.bf16.mxu0 0
      %3736 = vmatpush1.bf16.msra.mxu0 0
      %3737 = vmatprep.subr.bf16.mxu0 0
      %3738 = vmatpush1.bf16.msra.mxu0 0
      %3739 = vmatprep.subr.bf16.mxu0 0
      %3740 = vmatpush1.bf16.msra.mxu0 0
      %3741 = vmatprep.subr.bf16.mxu0 0
      %3742 = vmatpush1.bf16.msra.mxu0 0
      %3743 = vmatprep.subr.bf16.mxu0 0
      %3744 = vmatpush1.bf16.msra.mxu0 0
      %3745 = vmatprep.mubr.bf16.mxu0 0
      %3746 = vmatmul.mubr.bf16.gmra.mrb[0].mxu0 %v3612
      %v3747 = vpop.f32.mrb[0].mxu0
      %v3748 = vadd.f32 0.0, %v3747
      %v3749 = vpop.f32.mrb[0].mxu0
      %v3750 = vpop.f32.mrb[0].mxu0
      %v3751 = vadd.f32 0.0, %v3750
      %v3752 = vpop.f32.mrb[0].mxu0
      %3753 = vmatprep.mubr.bf16.mxu0 0
      %3754 = vmatmul.mubr.bf16.gmra.mrb[0].mxu0 %v3614
      %v3755 = vpop.f32.mrb[0].mxu0
      %v3756 = vadd.f32 0.0, %v3755
      %v3757 = vpop.f32.mrb[0].mxu0
      %v3758 = vpop.f32.mrb[0].mxu0
      %v3759 = vadd.f32 0.0, %v3758
      %v3760 = vpop.f32.mrb[0].mxu0
      %3761 = vmatprep.mubr.bf16.mxu0 0
      %3762 = vmatmul.mubr.bf16.gmra.mrb[0].mxu0 %v3616
      %v3763 = vpop.f32.mrb[0].mxu0
      %v3764 = vadd.f32 0.0, %v3763
      %v3765 = vpop.f32.mrb[0].mxu0
      %v3766 = vpop.f32.mrb[0].mxu0
      %v3767 = vadd.f32 0.0, %v3766
      %v3768 = vpop.f32.mrb[0].mxu0
      %3769 = vmatprep.mubr.bf16.mxu0 0
      %3770 = vmatmul.mubr.bf16.gmra.mrb[0].mxu0 %v3618
      %v3771 = vpop.f32.mrb[0].mxu0
      %v3772 = vadd.f32 0.0, %v3771
      %v3773 = vpop.f32.mrb[0].mxu0
      %v3774 = vpop.f32.mrb[0].mxu0
      %v3775 = vadd.f32 0.0, %v3774
      %v3776 = vpop.f32.mrb[0].mxu0
      %3777 = vmatprep.mubr.bf16.mxu0 0
      %3778 = vmatmul.mubr.bf16.gmra.mrb[0].mxu0 %v3620
      %v3779 = vpop.f32.mrb[0].mxu0
      %v3780 = vadd.f32 0.0, %v3779
      %v3781 = vpop.f32.mrb[0].mxu0
      %v3782 = vpop.f32.mrb[0].mxu0
      %v3783 = vadd.f32 0.0, %v3782
      %v3784 = vpop.f32.mrb[0].mxu0
      %3785 = vmatprep.mubr.bf16.mxu0 0
      %3786 = vmatmul.mubr.bf16.gmra.mrb[0].mxu0 %v3622
      %v3787 = vpop.f32.mrb[0].mxu0
      %v3788 = vadd.f32 0.0, %v3787
      %v3789 = vpop.f32.mrb[0].mxu0
      %v3790 = vpop.f32.mrb[0].mxu0
      %v3791 = vadd.f32 0.0, %v3790
      %v3792 = vpop.f32.mrb[0].mxu0
      %3793 = vmatprep.mubr.bf16.mxu0 0
      %3794 = vmatmul.mubr.bf16.gmra.mrb[0].mxu0 %v3624
      %v3795 = vpop.f32.mrb[0].mxu0
      %v3796 = vadd.f32 0.0, %v3795
      %v3797 = vpop.f32.mrb[0].mxu0
      %v3798 = vpop.f32.mrb[0].mxu0
      %v3799 = vadd.f32 0.0, %v3798
      %v3800 = vpop.f32.mrb[0].mxu0
      %3801 = vmatprep.mubr.bf16.mxu0 0
      %3802 = vmatmul.mubr.bf16.gmra.mrb[0].mxu0 %v3626
      %v3803 = vpop.f32.mrb[0].mxu0
      %v3804 = vadd.f32 0.0, %v3803
      %v3805 = vpop.f32.mrb[0].mxu0
      %v3806 = vpop.f32.mrb[0].mxu0
      %v3807 = vadd.f32 0.0, %v3806
      %v3808 = vpop.f32.mrb[0].mxu0
      %3809 = vmatprep.mubr.bf16.mxu0 0
      %3810 = vmatmul.mubr.bf16.gmra.mrb[0].mxu0 %v3628
      %v3811 = vpop.f32.mrb[0].mxu0
      %v3812 = vadd.f32 0.0, %v3811
      %v3813 = vpop.f32.mrb[0].mxu0
      %v3814 = vpop.f32.mrb[0].mxu0
      %v3815 = vadd.f32 0.0, %v3814
      %v3816 = vpop.f32.mrb[0].mxu0
      %3817 = vmatprep.mubr.bf16.mxu0 0
      %3818 = vmatmul.mubr.bf16.gmra.mrb[0].mxu0 %v3630
      %v3819 = vpop.f32.mrb[0].mxu0
      %v3820 = vadd.f32 0.0, %v3819
      %v3821 = vpop.f32.mrb[0].mxu0
      %v3822 = vpop.f32.mrb[0].mxu0
      %v3823 = vadd.f32 0.0, %v3822
      %v3824 = vpop.f32.mrb[0].mxu0
      %3825 = vmatprep.mubr.bf16.mxu0 0
      %3826 = vmatmul.mubr.bf16.gmra.mrb[0].mxu0 %v3632
      %v3827 = vpop.f32.mrb[0].mxu0
      %v3828 = vadd.f32 0.0, %v3827
      %v3829 = vpop.f32.mrb[0].mxu0
      %v3830 = vpop.f32.mrb[0].mxu0
      %v3831 = vadd.f32 0.0, %v3830
      %v3832 = vpop.f32.mrb[0].mxu0
      %3833 = vmatprep.mubr.bf16.mxu0 0
      %3834 = vmatmul.mubr.bf16.gmra.mrb[0].mxu0 %v3634
      %v3835 = vpop.f32.mrb[0].mxu0
      %v3836 = vadd.f32 0.0, %v3835
      %v3837 = vpop.f32.mrb[0].mxu0
      %v3838 = vpop.f32.mrb[0].mxu0
      %v3839 = vadd.f32 0.0, %v3838
      %v3840 = vpop.f32.mrb[0].mxu0
      %3841 = vmatprep.mubr.bf16.mxu0 0
      %3842 = vmatmul.mubr.bf16.gmra.mrb[0].mxu0 %v3636
      %v3843 = vpop.f32.mrb[0].mxu0
      %v3844 = vadd.f32 0.0, %v3843
      %v3845 = vpop.f32.mrb[0].mxu0
      %v3846 = vpop.f32.mrb[0].mxu0
      %v3847 = vadd.f32 0.0, %v3846
      %v3848 = vpop.f32.mrb[0].mxu0
      %3849 = vmatprep.mubr.bf16.mxu0 0
      %3850 = vmatmul.mubr.bf16.gmra.mrb[0].mxu0 %v3638
      %v3851 = vpop.f32.mrb[0].mxu0
      %v3852 = vadd.f32 0.0, %v3851
      %v3853 = vpop.f32.mrb[0].mxu0
      %v3854 = vpop.f32.mrb[0].mxu0
      %v3855 = vadd.f32 0.0, %v3854
      %v3856 = vpop.f32.mrb[0].mxu0
      %3857 = vmatprep.mubr.bf16.mxu0 0
      %3858 = vmatmul.mubr.bf16.gmra.mrb[0].mxu0 %v3640
      %v3859 = vpop.f32.mrb[0].mxu0
      %v3860 = vadd.f32 0.0, %v3859
      %v3861 = vpop.f32.mrb[0].mxu0
      %v3862 = vpop.f32.mrb[0].mxu0
      %v3863 = vadd.f32 0.0, %v3862
      %v3864 = vpop.f32.mrb[0].mxu0
      %3865 = vmatprep.mubr.bf16.mxu0 0
      %3866 = vmatmul.mubr.bf16.gmra.mrb[0].mxu0 %v3642
      %v3867 = vpop.f32.mrb[0].mxu0
      %v3868 = vadd.f32 0.0, %v3867
      %v3869 = vpop.f32.mrb[0].mxu0
      %v3870 = vpop.f32.mrb[0].mxu0
      %v3871 = vadd.f32 0.0, %v3870
      %v3872 = vpop.f32.mrb[0].mxu0
      %3873 = vmatprep.mubr.bf16.mxu0 0
      %3874 = vmatmul.mubr.bf16.gmra.mrb[0].mxu0 %v3644
      %v3875 = vpop.f32.mrb[0].mxu0
      %v3876 = vadd.f32 0.0, %v3875
      %v3877 = vpop.f32.mrb[0].mxu0
      %v3878 = vpop.f32.mrb[0].mxu0
      %v3879 = vadd.f32 0.0, %v3878
      %v3880 = vpop.f32.mrb[0].mxu0
      %3881 = vmatprep.mubr.bf16.mxu0 0
      %3882 = vmatmul.mubr.bf16.gmra.mrb[0].mxu0 %v3646
      %v3883 = vpop.f32.mrb[0].mxu0
      %v3884 = vadd.f32 0.0, %v3883
      %v3885 = vpop.f32.mrb[0].mxu0
      %v3886 = vpop.f32.mrb[0].mxu0
      %v3887 = vadd.f32 0.0, %v3886
      %v3888 = vpop.f32.mrb[0].mxu0
      %3889 = vdwg.mxu0
      %v3890 = vadd.f32 %v3552, %v3748
      %v3891 = vadd.f32 %v3553, %v3751
      %v3892 = vadd.f32 %v3554, %v3756
      %v3893 = vadd.f32 %v3555, %v3759
      %v3894 = vadd.f32 %v3556, %v3764
      %v3895 = vadd.f32 %v3557, %v3767
      %v3896 = vadd.f32 %v3558, %v3772
      %v3897 = vadd.f32 %v3559, %v3775
      %v3898 = vadd.f32 %v3560, %v3780
      %v3899 = vadd.f32 %v3561, %v3783
      %v3900 = vadd.f32 %v3562, %v3788
      %v3901 = vadd.f32 %v3563, %v3791
      %v3902 = vadd.f32 %v3564, %v3796
      %v3903 = vadd.f32 %v3565, %v3799
      %v3904 = vadd.f32 %v3566, %v3804
      %v3905 = vadd.f32 %v3567, %v3807
      %v3906 = vadd.f32 %v3568, %v3812
      %v3907 = vadd.f32 %v3569, %v3815
      %v3908 = vadd.f32 %v3570, %v3820
      %v3909 = vadd.f32 %v3571, %v3823
      %v3910 = vadd.f32 %v3572, %v3828
      %v3911 = vadd.f32 %v3573, %v3831
      %v3912 = vadd.f32 %v3574, %v3836
      %v3913 = vadd.f32 %v3575, %v3839
      %v3914 = vadd.f32 %v3576, %v3844
      %v3915 = vadd.f32 %v3577, %v3847
      %v3916 = vadd.f32 %v3578, %v3852
      %v3917 = vadd.f32 %v3579, %v3855
      %v3918 = vadd.f32 %v3580, %v3860
      %v3919 = vadd.f32 %v3581, %v3863
      %v3920 = vadd.f32 %v3582, %v3868
      %v3921 = vadd.f32 %v3583, %v3871
      %v3922 = vadd.f32 %v3584, %v3876
      %v3923 = vadd.f32 %v3585, %v3879
      %v3924 = vadd.f32 %v3586, %v3884
      %v3925 = vadd.f32 %v3587, %v3887
      %v3926 = vld [vmem:[%s2] sm:$0x1]
      %v3928 = vlaneseq
      %v3929 = vshrl.u32 %v3928, 7
      %v3930 = vsub.s32 0, %v3929
      %v3931 = vrot.slane %v3926, %v3930
      %v3933 = vmul.f32 %v3890, %v3931
      %v3934 = vmul.f32 %v3891, %v3931
      %v3935 = vmul.f32 %v3892, %v3931
      %v3936 = vmul.f32 %v3893, %v3931
      %v3937 = vmul.f32 %v3894, %v3931
      %v3938 = vmul.f32 %v3895, %v3931
      %v3939 = vmul.f32 %v3896, %v3931
      %v3940 = vmul.f32 %v3897, %v3931
      %v3941 = vmul.f32 %v3898, %v3931
      %v3942 = vmul.f32 %v3899, %v3931
      %v3943 = vmul.f32 %v3900, %v3931
      %v3944 = vmul.f32 %v3901, %v3931
      %v3945 = vmul.f32 %v3902, %v3931
      %v3946 = vmul.f32 %v3903, %v3931
      %v3947 = vmul.f32 %v3904, %v3931
      %v3948 = vmul.f32 %v3905, %v3931
      %v3949 = vmul.f32 %v3906, %v3931
      %v3950 = vmul.f32 %v3907, %v3931
      %v3951 = vmul.f32 %v3908, %v3931
      %v3952 = vmul.f32 %v3909, %v3931
      %v3953 = vmul.f32 %v3910, %v3931
      %v3954 = vmul.f32 %v3911, %v3931
      %v3955 = vmul.f32 %v3912, %v3931
      %v3956 = vmul.f32 %v3913, %v3931
      %v3957 = vmul.f32 %v3914, %v3931
      %v3958 = vmul.f32 %v3915, %v3931
      %v3959 = vmul.f32 %v3916, %v3931
      %v3960 = vmul.f32 %v3917, %v3931
      %v3961 = vmul.f32 %v3918, %v3931
      %v3962 = vmul.f32 %v3919, %v3931
      %v3963 = vmul.f32 %v3920, %v3931
      %v3964 = vmul.f32 %v3921, %v3931
      %v3965 = vmul.f32 %v3922, %v3931
      %v3966 = vmul.f32 %v3923, %v3931
      %v3967 = vmul.f32 %v3924, %v3931
      %v3968 = vmul.f32 %v3925, %v3931
      %v3969 = vld [vmem:[%s3] sm:$0x1]
      %v3971 = vlaneseq
      %v3972 = vshrl.u32 %v3971, 7
      %v3973 = vsub.s32 0, %v3972
      %v3974 = vrot.slane %v3969, %v3973
      %v3976 = vadd.f32 %v3933, %v3974
      %v3977 = vadd.f32 %v3934, %v3974
      %v3978 = vadd.f32 %v3935, %v3974
      %v3979 = vadd.f32 %v3936, %v3974
      %v3980 = vadd.f32 %v3937, %v3974
      %v3981 = vadd.f32 %v3938, %v3974
      %v3982 = vadd.f32 %v3939, %v3974
      %v3983 = vadd.f32 %v3940, %v3974
      %v3984 = vadd.f32 %v3941, %v3974
      %v3985 = vadd.f32 %v3942, %v3974
      %v3986 = vadd.f32 %v3943, %v3974
      %v3987 = vadd.f32 %v3944, %v3974
      %v3988 = vadd.f32 %v3945, %v3974
      %v3989 = vadd.f32 %v3946, %v3974
      %v3990 = vadd.f32 %v3947, %v3974
      %v3991 = vadd.f32 %v3948, %v3974
      %v3992 = vadd.f32 %v3949, %v3974
      %v3993 = vadd.f32 %v3950, %v3974
      %v3994 = vadd.f32 %v3951, %v3974
      %v3995 = vadd.f32 %v3952, %v3974
      %v3996 = vadd.f32 %v3953, %v3974
      %v3997 = vadd.f32 %v3954, %v3974
      %v3998 = vadd.f32 %v3955, %v3974
      %v3999 = vadd.f32 %v3956, %v3974
      %v4000 = vadd.f32 %v3957, %v3974
      %v4001 = vadd.f32 %v3958, %v3974
      %v4002 = vadd.f32 %v3959, %v3974
      %v4003 = vadd.f32 %v3960, %v3974
      %v4004 = vadd.f32 %v3961, %v3974
      %v4005 = vadd.f32 %v3962, %v3974
      %v4006 = vadd.f32 %v3963, %v3974
      %v4007 = vadd.f32 %v3964, %v3974
      %v4008 = vadd.f32 %v3965, %v3974
      %v4009 = vadd.f32 %v3966, %v3974
      %v4010 = vadd.f32 %v3967, %v3974
      %v4011 = vadd.f32 %v3968, %v3974
      %v4012 = vld [vmem:[%s239] sm:$0xf]
      %v4013 = vld [vmem:[%s239 + $0x4] sm:$0xf]
      %v4014 = vld [vmem:[%s239 + $0x8] sm:$0xf]
      %v4015 = vld [vmem:[%s239 + $0xc] sm:$0xf]
      %v4016 = vld [vmem:[%s239 + $0x10] sm:$0xf]
      %v4017 = vld [vmem:[%s239 + $0x14] sm:$0xf]
      %v4018 = vld [vmem:[%s239 + $0x18] sm:$0xf]
      %v4019 = vld [vmem:[%s239 + $0x1c] sm:$0xf]
      %v4020 = vld [vmem:[%s239 + $0x20] sm:$0xf]
      %v4021 = vld [vmem:[%s239 + $0x24] sm:$0xf]
      %v4022 = vld [vmem:[%s239 + $0x28] sm:$0xf]
      %v4023 = vld [vmem:[%s239 + $0x2c] sm:$0xf]
      %v4024 = vld [vmem:[%s239 + $0x30] sm:$0xf]
      %v4025 = vld [vmem:[%s239 + $0x34] sm:$0xf]
      %v4026 = vld [vmem:[%s239 + $0x38] sm:$0xf]
      %v4027 = vld [vmem:[%s239 + $0x3c] sm:$0xf]
      %v4028 = vld [vmem:[%s239 + $0x40] sm:$0xf]
      %v4029 = vld [vmem:[%s239 + $0x44] sm:$0xf]
      %v4030 = vld [vmem:[%s239 + $0x48] sm:$0xf]
      %v4031 = vld [vmem:[%s239 + $0x4c] sm:$0xf]
      %v4032 = vld [vmem:[%s239 + $0x50] sm:$0xf]
      %v4033 = vld [vmem:[%s239 + $0x54] sm:$0xf]
      %v4034 = vld [vmem:[%s239 + $0x58] sm:$0xf]
      %v4035 = vld [vmem:[%s239 + $0x5c] sm:$0xf]
      %v4036 = vld [vmem:[%s239 + $0x60] sm:$0xf]
      %v4037 = vld [vmem:[%s239 + $0x64] sm:$0xf]
      %v4038 = vld [vmem:[%s239 + $0x68] sm:$0xf]
      %v4039 = vld [vmem:[%s239 + $0x6c] sm:$0xf]
      %v4040 = vld [vmem:[%s239 + $0x70] sm:$0xf]
      %v4041 = vld [vmem:[%s239 + $0x74] sm:$0xf]
      %v4042 = vld [vmem:[%s239 + $0x78] sm:$0xf]
      %v4043 = vld [vmem:[%s239 + $0x7c] sm:$0xf]
      %v4044 = vld [vmem:[%s239 + $0x80] sm:$0xf]
      %v4045 = vld [vmem:[%s239 + $0x84] sm:$0xf]
      %v4046 = vld [vmem:[%s239 + $0x88] sm:$0xf]
      %v4047 = vld [vmem:[%s239 + $0x8c] sm:$0xf]
      %v4048 = vunpack.c.l.bf16 %v4012
      %v4049 = vunpack.c.l.bf16 %v4013
      %v4050 = vunpack.c.l.bf16 %v4014
      %v4051 = vunpack.c.l.bf16 %v4015
      %v4052 = vunpack.c.l.bf16 %v4016
      %v4053 = vunpack.c.l.bf16 %v4017
      %v4054 = vunpack.c.l.bf16 %v4018
      %v4055 = vunpack.c.l.bf16 %v4019
      %v4056 = vunpack.c.l.bf16 %v4020
      %v4057 = vunpack.c.l.bf16 %v4021
      %v4058 = vunpack.c.l.bf16 %v4022
      %v4059 = vunpack.c.l.bf16 %v4023
      %v4060 = vunpack.c.l.bf16 %v4024
      %v4061 = vunpack.c.l.bf16 %v4025
      %v4062 = vunpack.c.l.bf16 %v4026
      %v4063 = vunpack.c.l.bf16 %v4027
      %v4064 = vunpack.c.l.bf16 %v4028
      %v4065 = vunpack.c.l.bf16 %v4029
      %v4066 = vunpack.c.l.bf16 %v4030
      %v4067 = vunpack.c.l.bf16 %v4031
      %v4068 = vunpack.c.l.bf16 %v4032
      %v4069 = vunpack.c.l.bf16 %v4033
      %v4070 = vunpack.c.l.bf16 %v4034
      %v4071 = vunpack.c.l.bf16 %v4035
      %v4072 = vunpack.c.l.bf16 %v4036
      %v4073 = vunpack.c.l.bf16 %v4037
      %v4074 = vunpack.c.l.bf16 %v4038
      %v4075 = vunpack.c.l.bf16 %v4039
      %v4076 = vunpack.c.l.bf16 %v4040
      %v4077 = vunpack.c.l.bf16 %v4041
      %v4078 = vunpack.c.l.bf16 %v4042
      %v4079 = vunpack.c.l.bf16 %v4043
      %v4080 = vunpack.c.l.bf16 %v4044
      %v4081 = vunpack.c.l.bf16 %v4045
      %v4082 = vunpack.c.l.bf16 %v4046
      %v4083 = vunpack.c.l.bf16 %v4047
      %v4084 = vadd.f32 %v3976, %v4048
      %v4085 = vadd.f32 %v3977, %v4049
      %v4086 = vadd.f32 %v3978, %v4050
      %v4087 = vadd.f32 %v3979, %v4051
      %v4088 = vadd.f32 %v3980, %v4052
      %v4089 = vadd.f32 %v3981, %v4053
      %v4090 = vadd.f32 %v3982, %v4054
      %v4091 = vadd.f32 %v3983, %v4055
      %v4092 = vadd.f32 %v3984, %v4056
      %v4093 = vadd.f32 %v3985, %v4057
      %v4094 = vadd.f32 %v3986, %v4058
      %v4095 = vadd.f32 %v3987, %v4059
      %v4096 = vadd.f32 %v3988, %v4060
      %v4097 = vadd.f32 %v3989, %v4061
      %v4098 = vadd.f32 %v3990, %v4062
      %v4099 = vadd.f32 %v3991, %v4063
      %v4100 = vadd.f32 %v3992, %v4064
      %v4101 = vadd.f32 %v3993, %v4065
      %v4102 = vadd.f32 %v3994, %v4066
      %v4103 = vadd.f32 %v3995, %v4067
      %v4104 = vadd.f32 %v3996, %v4068
      %v4105 = vadd.f32 %v3997, %v4069
      %v4106 = vadd.f32 %v3998, %v4070
      %v4107 = vadd.f32 %v3999, %v4071
      %v4108 = vadd.f32 %v4000, %v4072
      %v4109 = vadd.f32 %v4001, %v4073
      %v4110 = vadd.f32 %v4002, %v4074
      %v4111 = vadd.f32 %v4003, %v4075
      %v4112 = vadd.f32 %v4004, %v4076
      %v4113 = vadd.f32 %v4005, %v4077
      %v4114 = vadd.f32 %v4006, %v4078
      %v4115 = vadd.f32 %v4007, %v4079
      %v4116 = vadd.f32 %v4008, %v4080
      %v4117 = vadd.f32 %v4009, %v4081
      %v4118 = vadd.f32 %v4010, %v4082
      %v4119 = vadd.f32 %v4011, %v4083
      %v4120 = vmax.f32 %v4084, 0.0
      %v4121 = vmax.f32 %v4085, 0.0
      %v4122 = vmax.f32 %v4086, 0.0
      %v4123 = vmax.f32 %v4087, 0.0
      %v4124 = vmax.f32 %v4088, 0.0
      %v4125 = vmax.f32 %v4089, 0.0
      %v4126 = vmax.f32 %v4090, 0.0
      %v4127 = vmax.f32 %v4091, 0.0
      %v4128 = vmax.f32 %v4092, 0.0
      %v4129 = vmax.f32 %v4093, 0.0
      %v4130 = vmax.f32 %v4094, 0.0
      %v4131 = vmax.f32 %v4095, 0.0
      %v4132 = vmax.f32 %v4096, 0.0
      %v4133 = vmax.f32 %v4097, 0.0
      %v4134 = vmax.f32 %v4098, 0.0
      %v4135 = vmax.f32 %v4099, 0.0
      %v4136 = vmax.f32 %v4100, 0.0
      %v4137 = vmax.f32 %v4101, 0.0
      %v4138 = vmax.f32 %v4102, 0.0
      %v4139 = vmax.f32 %v4103, 0.0
      %v4140 = vmax.f32 %v4104, 0.0
      %v4141 = vmax.f32 %v4105, 0.0
      %v4142 = vmax.f32 %v4106, 0.0
      %v4143 = vmax.f32 %v4107, 0.0
      %v4144 = vmax.f32 %v4108, 0.0
      %v4145 = vmax.f32 %v4109, 0.0
      %v4146 = vmax.f32 %v4110, 0.0
      %v4147 = vmax.f32 %v4111, 0.0
      %v4148 = vmax.f32 %v4112, 0.0
      %v4149 = vmax.f32 %v4113, 0.0
      %v4150 = vmax.f32 %v4114, 0.0
      %v4151 = vmax.f32 %v4115, 0.0
      %v4152 = vmax.f32 %v4116, 0.0
      %v4153 = vmax.f32 %v4117, 0.0
      %v4154 = vmax.f32 %v4118, 0.0
      %v4155 = vmax.f32 %v4119, 0.0
      %4156 = vst [vmem:[%s244] sm:$0xff] %v4120
      %4157 = vst [vmem:[%s244 + $0x8] sm:$0xff] %v4121
      %4158 = vst [vmem:[%s244 + $0x10] sm:$0xff] %v4122
      %4159 = vst [vmem:[%s244 + $0x18] sm:$0xff] %v4123
      %4160 = vst [vmem:[%s244 + $0x20] sm:$0xff] %v4124
      %4161 = vst [vmem:[%s244 + $0x28] sm:$0xff] %v4125
      %4162 = vst [vmem:[%s244 + $0x30] sm:$0xff] %v4126
      %4163 = vst [vmem:[%s244 + $0x38] sm:$0xff] %v4127
      %4164 = vst [vmem:[%s244 + $0x40] sm:$0xff] %v4128
      %4165 = vst [vmem:[%s244 + $0x48] sm:$0xff] %v4129
      %4166 = vst [vmem:[%s244 + $0x50] sm:$0xff] %v4130
      %4167 = vst [vmem:[%s244 + $0x58] sm:$0xff] %v4131
      %4168 = vst [vmem:[%s244 + $0x60] sm:$0xff] %v4132
      %4169 = vst [vmem:[%s244 + $0x68] sm:$0xff] %v4133
      %4170 = vst [vmem:[%s244 + $0x70] sm:$0xff] %v4134
      %4171 = vst [vmem:[%s244 + $0x78] sm:$0xff] %v4135
      %4172 = vst [vmem:[%s244 + $0x80] sm:$0xff] %v4136
      %4173 = vst [vmem:[%s244 + $0x88] sm:$0xff] %v4137
      %4174 = vst [vmem:[%s244 + $0x90] sm:$0xff] %v4138
      %4175 = vst [vmem:[%s244 + $0x98] sm:$0xff] %v4139
      %4176 = vst [vmem:[%s244 + $0xa0] sm:$0xff] %v4140
      %4177 = vst [vmem:[%s244 + $0xa8] sm:$0xff] %v4141
      %4178 = vst [vmem:[%s244 + $0xb0] sm:$0xff] %v4142
      %4179 = vst [vmem:[%s244 + $0xb8] sm:$0xff] %v4143
      %4180 = vst [vmem:[%s244 + $0xc0] sm:$0xff] %v4144
      %4181 = vst [vmem:[%s244 + $0xc8] sm:$0xff] %v4145
      %4182 = vst [vmem:[%s244 + $0xd0] sm:$0xff] %v4146
      %4183 = vst [vmem:[%s244 + $0xd8] sm:$0xff] %v4147
      %4184 = vst [vmem:[%s244 + $0xe0] sm:$0xff] %v4148
      %4185 = vst [vmem:[%s244 + $0xe8] sm:$0xff] %v4149
      %4186 = vst [vmem:[%s244 + $0xf0] sm:$0xff] %v4150
      %4187 = vst [vmem:[%s244 + $0xf8] sm:$0xff] %v4151
      %4188 = vst [vmem:[%s244 + $0x100] sm:$0xff] %v4152
      %4189 = vst [vmem:[%s244 + $0x108] sm:$0xff] %v4153
      %4190 = vst [vmem:[%s244 + $0x110] sm:$0xff] %v4154
      %4191 = vst [vmem:[%s244 + $0x118] sm:$0xff] %v4155
      %p4192 = scmp.lt.s32.totalorder %s16, 1
      %s4193 = scalar_select %p4192, %s16, 1
      %s4194 = smul.addr %s4193, 36
      %s4195 = smul.addr %s4194, 8
      %s4196 = scalar_lea.vmem %s5, %s4195
      // Predicated region
      $region41: #{residual_block_forward.3} parent=39 // pred_check
        %p4197 = pneg %p149
      $region42: #{residual_block_forward.3} parent=39 // pred_check_branch
        %4199 = sbr.rel (%p4197) target = $region44
      $region43: #{residual_block_forward.3} parent=39 // pred_region
        _
      $region44: #{residual_block_forward.3} parent=39 // pred_fallthru
        _
    $region40: #{residual_block_forward.3} parent=5 // pred_fallthru
      _
    %p4200 = scmp.le.s32.totalorder 2, %s11
    // Predicated region
    $region45: #{residual_block_forward.3} parent=5 // pred_check
      %p4201 = pneg %p4200
    $region46: #{residual_block_forward.3} parent=5 // pred_check_branch
      %4203 = sbr.rel (%p4201) target = $region48
    $region47: #{residual_block_forward.3} parent=5 // pred_region
      %s4204 = ssub.s32 %s11, 2
      // Predicated region
      $region49: #{residual_block_forward.3} parent=47 // pred_check
        %p4205 = pneg %p155
      $region50: #{residual_block_forward.3} parent=47 // pred_check_branch
        %4207 = sbr.rel (%p4205) target = $region52
      $region51: #{residual_block_forward.3} parent=47 // pred_region
        %p4208 = scmp.lt.s32.totalorder %s17, 1
        %s4209 = scalar_select %p4208, %s17, 1
        %s4210 = smul.addr %s4209, 36
        %s4211 = smul.addr %s4210, 8
        %s4212 = scalar_lea.vmem %s5, %s4211
      $region52: #{residual_block_forward.3} parent=47 // pred_fallthru
        _
    $region48: #{residual_block_forward.3} parent=5 // pred_fallthru
      _
  $region6: #{residual_block_forward.3} parent=0 // loop_footer
    %s15 = sadd.s32 1, %s11
  $region7: #{residual_block_forward.3} parent=0 // loop_footer_branch
    %10 = sbr.rel target = $region3
  $region8: #{residual_block_forward.3} parent=0 // loop_exit
    _

// kernel: residual_block_forward.2
$region0: #{residual_block_forward.2}
  #allocation0 [shape = 'u32[]', space=smem, size = 0x4, offset = 0x4, fixed_abs, tag = 'smem constant byte address 0x4 - core index']
  #allocation1 [shape = 'u32[144,128]{1,0:T(1,128)}', space=vmem, size = 0x12000, scoped, tag = 'internal scratch']
  %s0 = inlined_call_operand.vmem [shape: bf16[2,326,128], index: 0, kind: input, shape index: {}]
  %s1 = inlined_call_operand.vmem [shape: bf16[9,128,128], index: 1, kind: input, shape index: {}]
  %s2 = inlined_call_operand.vmem [shape: f32[1,128], index: 2, kind: input, shape index: {}]
  %s3 = inlined_call_operand.vmem [shape: f32[1,128], index: 3, kind: input, shape index: {}]
  %s4 = inlined_call_operand.vmem [shape: bf16[2,288,128], index: 4, kind: output, shape index: {}]
  %s5 = sld [smem:[#allocation0]]
  $region49: #{residual_block_forward.2} parent=0
    _
  %s7 = ssub.s32 1, %s5
  %s8 = scalar_select 0, %s7, %s5
  loop: start=0, step=1, limit=4
  $region2: #{residual_block_forward.2} parent=0 // loop_pre_header
    _
  $region3: #{residual_block_forward.2} parent=0 // loop_header
    %s10 = sphi 0, %s14
    %p11 = scmp.ge.s32.totalorder %s10, 4
    %s20 = sphi 0, %s22
    %s23 = sphi 0, %s20
    %s24 = sphi 0, %s23
    %s40 = sphi 0, %s24
    %s44 = sphi 0, %s44
    %s46 = sphi 0, %s44
    %s47 = sphi 0, %s46
    %s61 = sphi 0, %s47
    %s65 = sphi 0, %s65
    %s67 = sphi 0, %s65
    %s68 = sphi 0, %s67
    %s82 = sphi 0, %s68
    %s86 = sphi 0, %s86
    %s88 = sphi 0, %s86
    %s89 = sphi 0, %s88
    %s103 = sphi 0, %s89
    %s109 = sphi 0, %s111
    %s112 = sphi 0, %s109
    %s113 = sphi 0, %s112
    %s129 = sphi 0, %s113
  $region4: #{residual_block_forward.2} parent=0 // loop_header_branch
    %13 = sbr.rel (%p11) target = $region8
  $region5: #{residual_block_forward.2} parent=0 // loop_body
    %s15 = ssub.s32 %s10, 1
    %s16 = ssub.s32 %s10, 2
    %s17 = sadd.s32 %s10, 1
    %s18 = ssub.s32 %s10, %s17
    %p19 = scmp.eq.s32.totalorder %s18, 0
    %s21 = sadd.s32 %s20, 1
    %s22 = scalar_select %p19, %s20, %s21
    %p25 = pneg %p19
    %p26 = scmp.eq.s32.totalorder %s10, 1
    %p27 = por %p25, %p26
    %p28 = scmp.ne.s32.totalorder %s20, %s23
    %p29 = scmp.eq.s32.totalorder %s10, 0
    %p30 = por %p28, %p29
    %p31 = scmp.ne.s32.totalorder %s20, %s23
    %p32 = scmp.eq.s32.totalorder %s15, 1
    %p33 = por %p31, %p32
    %p34 = scmp.ne.s32.totalorder %s23, %s24
    %p35 = scmp.eq.s32.totalorder %s15, 0
    %p36 = por %p34, %p35
    %p37 = scmp.ne.s32.totalorder %s23, %s24
    %p38 = scmp.eq.s32.totalorder %s16, 1
    %p39 = por %p37, %p38
    %p41 = scmp.ne.s32.totalorder %s24, %s40
    %p42 = scmp.eq.s32.totalorder %s16, 0
    %p43 = por %p41, %p42
    %s45 = sadd.s32 %s44, 1
    %p48 = scmp.eq.s32.totalorder %s10, 1
    %p49 = scmp.ne.s32.totalorder %s44, %s46
    %p50 = scmp.eq.s32.totalorder %s10, 0
    %p51 = por %p49, %p50
    %p52 = scmp.ne.s32.totalorder %s44, %s46
    %p53 = scmp.eq.s32.totalorder %s15, 1
    %p54 = por %p52, %p53
    %p55 = scmp.ne.s32.totalorder %s46, %s47
    %p56 = scmp.eq.s32.totalorder %s15, 0
    %p57 = por %p55, %p56
    %p58 = scmp.ne.s32.totalorder %s46, %s47
    %p59 = scmp.eq.s32.totalorder %s16, 1
    %p60 = por %p58, %p59
    %p62 = scmp.ne.s32.totalorder %s47, %s61
    %p63 = scmp.eq.s32.totalorder %s16, 0
    %p64 = por %p62, %p63
    %s66 = sadd.s32 %s65, 1
    %p69 = scmp.eq.s32.totalorder %s10, 1
    %p70 = scmp.ne.s32.totalorder %s65, %s67
    %p71 = scmp.eq.s32.totalorder %s10, 0
    %p72 = por %p70, %p71
    %p73 = scmp.ne.s32.totalorder %s65, %s67
    %p74 = scmp.eq.s32.totalorder %s15, 1
    %p75 = por %p73, %p74
    %p76 = scmp.ne.s32.totalorder %s67, %s68
    %p77 = scmp.eq.s32.totalorder %s15, 0
    %p78 = por %p76, %p77
    %p79 = scmp.ne.s32.totalorder %s67, %s68
    %p80 = scmp.eq.s32.totalorder %s16, 1
    %p81 = por %p79, %p80
    %p83 = scmp.ne.s32.totalorder %s68, %s82
    %p84 = scmp.eq.s32.totalorder %s16, 0
    %p85 = por %p83, %p84
    %s87 = sadd.s32 %s86, 1
    %p90 = scmp.eq.s32.totalorder %s10, 1
    %p91 = scmp.ne.s32.totalorder %s86, %s88
    %p92 = scmp.eq.s32.totalorder %s10, 0
    %p93 = por %p91, %p92
    %p94 = scmp.ne.s32.totalorder %s86, %s88
    %p95 = scmp.eq.s32.totalorder %s15, 1
    %p96 = por %p94, %p95
    %p97 = scmp.ne.s32.totalorder %s88, %s89
    %p98 = scmp.eq.s32.totalorder %s15, 0
    %p99 = por %p97, %p98
    %p100 = scmp.ne.s32.totalorder %s88, %s89
    %p101 = scmp.eq.s32.totalorder %s16, 1
    %p102 = por %p100, %p101
    %p104 = scmp.ne.s32.totalorder %s89, %s103
    %p105 = scmp.eq.s32.totalorder %s16, 0
    %p106 = por %p104, %p105
    %s107 = ssub.s32 %s10, %s17
    %p108 = scmp.eq.s32.totalorder %s107, 0
    %s110 = sadd.s32 %s109, 1
    %s111 = scalar_select %p108, %s109, %s110
    %p114 = pneg %p108
    %p115 = scmp.eq.s32.totalorder %s10, 1
    %p116 = por %p114, %p115
    %p117 = scmp.ne.s32.totalorder %s109, %s112
    %p118 = scmp.eq.s32.totalorder %s10, 0
    %p119 = por %p117, %p118
    %p120 = scmp.ne.s32.totalorder %s109, %s112
    %p121 = scmp.eq.s32.totalorder %s15, 1
    %p122 = por %p120, %p121
    %p123 = scmp.ne.s32.totalorder %s112, %s113
    %p124 = scmp.eq.s32.totalorder %s15, 0
    %p125 = por %p123, %p124
    %p126 = scmp.ne.s32.totalorder %s112, %s113
    %p127 = scmp.eq.s32.totalorder %s16, 1
    %p128 = por %p126, %p127
    %p130 = scmp.ne.s32.totalorder %s113, %s129
    %p131 = scmp.eq.s32.totalorder %s16, 0
    %p132 = por %p130, %p131
    %p133 = scmp.le.s32.totalorder 1, %s10
    %p134 = scmp.lt.s32.totalorder %s10, 3
    %p135 = pnand %p133, %p134
    %p136 = pneg %p135
    // Predicated region
    $region9: #{residual_block_forward.2} parent=5 // pred_check
      _
    $region10: #{residual_block_forward.2} parent=5 // pred_check_branch
      %138 = sbr.rel (%p135) target = $region12
    $region11: #{residual_block_forward.2} parent=5 // pred_region
      %s139 = ssub.s32 %s10, 1
      // Predicated region
      $region13: #{residual_block_forward.2} parent=11 // pred_check
        %p140 = pneg %p57
      $region14: #{residual_block_forward.2} parent=11 // pred_check_branch
        %142 = sbr.rel (%p140) target = $region16
      $region15: #{residual_block_forward.2} parent=11 // pred_region
        _
      $region16: #{residual_block_forward.2} parent=11 // pred_fallthru
        _
      // Predicated region
      $region17: #{residual_block_forward.2} parent=11 // pred_check
        %p143 = pneg %p78
      $region18: #{residual_block_forward.2} parent=11 // pred_check_branch
        %145 = sbr.rel (%p143) target = $region20
      $region19: #{residual_block_forward.2} parent=11 // pred_region
        _
      $region20: #{residual_block_forward.2} parent=11 // pred_fallthru
        _
      // Predicated region
      $region21: #{residual_block_forward.2} parent=11 // pred_check
        %p146 = pneg %p99
      $region22: #{residual_block_forward.2} parent=11 // pred_check_branch
        %148 = sbr.rel (%p146) target = $region24
      $region23: #{residual_block_forward.2} parent=11 // pred_region
        _
      $region24: #{residual_block_forward.2} parent=11 // pred_fallthru
        _
    $region12: #{residual_block_forward.2} parent=5 // pred_fallthru
      _
    %p149 = scmp.lt.s32.totalorder %s10, 2
    // Predicated region
    $region25: #{residual_block_forward.2} parent=5 // pred_check
      %p150 = pneg %p149
    $region26: #{residual_block_forward.2} parent=5 // pred_check_branch
      %152 = sbr.rel (%p150) target = $region28
    $region27: #{residual_block_forward.2} parent=5 // pred_region
      // Predicated region
      $region29: #{residual_block_forward.2} parent=27 // pred_check
        %p153 = pneg %p30
      $region30: #{residual_block_forward.2} parent=27 // pred_check_branch
        %155 = sbr.rel (%p153) target = $region32
      $region31: #{residual_block_forward.2} parent=27 // pred_region
        %p156 = scmp.lt.s32.totalorder %s10, 1
        %s157 = scalar_select %p156, %s10, 1
        %s158 = smul.addr %s157, 41
        %s159 = smul.addr %s158, 4
        %s160 = scalar_lea.vmem %s0, %s159
      $region32: #{residual_block_forward.2} parent=27 // pred_fallthru
        _
    $region28: #{residual_block_forward.2} parent=5 // pred_fallthru
      _
    %p161 = scmp.le.s32.totalorder 1, %s10
    %p162 = scmp.lt.s32.totalorder %s10, 3
    %p163 = pnand %p161, %p162
    %p164 = pneg %p163
    // Predicated region
    $region33: #{residual_block_forward.2} parent=5 // pred_check
      _
    $region34: #{residual_block_forward.2} parent=5 // pred_check_branch
      %166 = sbr.rel (%p163) target = $region36
    $region35: #{residual_block_forward.2} parent=5 // pred_region
      %s167 = ssub.s32 %s10, 1
      %p168 = scmp.lt.s32.totalorder %s15, 1
      %s169 = scalar_select %p168, %s15, 1
      %s170 = smul.addr %s169, 41
      %s171 = smul.addr %s170, 4
      %s172 = scalar_lea.vmem %s0, %s171
      %p173 = pneg %p36
      %p174 = pneg %p33
      %p175 = pneg %p57
      %p176 = pneg %p54
      %p177 = pneg %p78
      %p178 = pneg %p75
      %p179 = pneg %p99
      %p180 = pneg %p96
      %p181 = pneg %p125
      %p182 = pneg %p122
      %p183 = scmp.lt.s32.totalorder %s15, 1
      %s184 = scalar_select %p183, %s15, 1
      %s185 = smul.addr %s184, 36
      %s186 = smul.addr %s185, 4
      %s187 = scalar_lea.vmem %s4, %s186
      %p188 = scmp.lt.s32.totalorder %s15, 1
      %s189 = scalar_select %p188, %s15, 1
      %s190 = smul.addr %s189, 41
      %s191 = smul.addr %s190, 4
      %s192 = scalar_lea.vmem %s0, %s191
      %p193 = scmp.lt.s32.totalorder %s15, 1
      %s194 = scalar_select %p193, %s15, 1
      %s195 = smul.addr %s194, 36
      %s196 = smul.addr %s195, 4
      %s197 = scalar_lea.vmem %s4, %s196
      %v199 = vld [vmem:[%s192] sm:$0xf]
      %v200 = vld [vmem:[%s192 + $0x4] sm:$0xf]
      %v201 = vld [vmem:[%s192 + $0x8] sm:$0xf]
      %v202 = vld [vmem:[%s192 + $0xc] sm:$0xf]
      %v203 = vld [vmem:[%s192 + $0x10] sm:$0xf]
      %v204 = vld [vmem:[%s192 + $0x14] sm:$0xf]
      %v205 = vld [vmem:[%s192 + $0x18] sm:$0xf]
      %v206 = vld [vmem:[%s192 + $0x1c] sm:$0xf]
      %v207 = vld [vmem:[%s192 + $0x20] sm:$0xf]
      %v208 = vld [vmem:[%s192 + $0x24] sm:$0xf]
      %v209 = vld [vmem:[%s192 + $0x28] sm:$0xf]
      %v210 = vld [vmem:[%s192 + $0x2c] sm:$0xf]
      %v211 = vld [vmem:[%s192 + $0x30] sm:$0xf]
      %v212 = vld [vmem:[%s192 + $0x34] sm:$0xf]
      %v213 = vld [vmem:[%s192 + $0x38] sm:$0xf]
      %v214 = vld [vmem:[%s192 + $0x3c] sm:$0xf]
      %v215 = vld [vmem:[%s192 + $0x40] sm:$0xf]
      %v216 = vld [vmem:[%s192 + $0x44] sm:$0xf]
      %v217 = vld [vmem:[%s192 + $0x48] sm:$0xf]
      %v218 = vld [vmem:[%s192 + $0x4c] sm:$0xf]
      %v219 = vld [vmem:[%s192 + $0x50] sm:$0xf]
      %v220 = vld [vmem:[%s192 + $0x54] sm:$0xf]
      %v221 = vld [vmem:[%s192 + $0x58] sm:$0xf]
      %v222 = vld [vmem:[%s192 + $0x5c] sm:$0xf]
      %v223 = vld [vmem:[%s192 + $0x60] sm:$0xf]
      %v224 = vld [vmem:[%s192 + $0x64] sm:$0xf]
      %v225 = vld [vmem:[%s192 + $0x68] sm:$0xf]
      %v226 = vld [vmem:[%s192 + $0x6c] sm:$0xf]
      %v227 = vld [vmem:[%s192 + $0x70] sm:$0xf]
      %v228 = vld [vmem:[%s192 + $0x74] sm:$0xf]
      %v229 = vld [vmem:[%s192 + $0x78] sm:$0xf]
      %v230 = vld [vmem:[%s192 + $0x7c] sm:$0xf]
      %v231 = vld [vmem:[%s192 + $0x80] sm:$0xf]
      %v232 = vld [vmem:[%s192 + $0x84] sm:$0xf]
      %v233 = vld [vmem:[%s192 + $0x88] sm:$0xf]
      %v234 = vld [vmem:[%s192 + $0x8c] sm:$0xf]
      %v235 = vld [vmem:[%s1] sm:$0xf]
      %v236 = vld [vmem:[%s1 + $0x4] sm:$0xf]
      %v237 = vld [vmem:[%s1 + $0x8] sm:$0xf]
      %v238 = vld [vmem:[%s1 + $0xc] sm:$0xf]
      %v239 = vld [vmem:[%s1 + $0x10] sm:$0xf]
      %v240 = vld [vmem:[%s1 + $0x14] sm:$0xf]
      %v241 = vld [vmem:[%s1 + $0x18] sm:$0xf]
      %v242 = vld [vmem:[%s1 + $0x1c] sm:$0xf]
      %v243 = vld [vmem:[%s1 + $0x20] sm:$0xf]
      %v244 = vld [vmem:[%s1 + $0x24] sm:$0xf]
      %v245 = vld [vmem:[%s1 + $0x28] sm:$0xf]
      %v246 = vld [vmem:[%s1 + $0x2c] sm:$0xf]
      %v247 = vld [vmem:[%s1 + $0x30] sm:$0xf]
      %v248 = vld [vmem:[%s1 + $0x34] sm:$0xf]
      %v249 = vld [vmem:[%s1 + $0x38] sm:$0xf]
      %v250 = vld [vmem:[%s1 + $0x3c] sm:$0xf]
      %v251 = vld [vmem:[%s192 + $0x90] sm:$0x1]
      %s252 = scalar_lea.vmem %s1, 64
      %v253 = vld [vmem:[%s252] sm:$0xf]
      %v254 = vld [vmem:[%s252 + $0x4] sm:$0xf]
      %v255 = vld [vmem:[%s252 + $0x8] sm:$0xf]
      %v256 = vld [vmem:[%s252 + $0xc] sm:$0xf]
      %v257 = vld [vmem:[%s252 + $0x10] sm:$0xf]
      %v258 = vld [vmem:[%s252 + $0x14] sm:$0xf]
      %v259 = vld [vmem:[%s252 + $0x18] sm:$0xf]
      %v260 = vld [vmem:[%s252 + $0x1c] sm:$0xf]
      %v261 = vld [vmem:[%s252 + $0x20] sm:$0xf]
      %v262 = vld [vmem:[%s252 + $0x24] sm:$0xf]
      %v263 = vld [vmem:[%s252 + $0x28] sm:$0xf]
      %v264 = vld [vmem:[%s252 + $0x2c] sm:$0xf]
      %v265 = vld [vmem:[%s252 + $0x30] sm:$0xf]
      %v266 = vld [vmem:[%s252 + $0x34] sm:$0xf]
      %v267 = vld [vmem:[%s252 + $0x38] sm:$0xf]
      %v268 = vld [vmem:[%s252 + $0x3c] sm:$0xf]
      %v306 = vunpack.c.l.b16 %v199
      %v307 = vunpack.c.l.b16 %v200
      %v308 = vunpack.c.l.b16 %v201
      %v309 = vunpack.c.l.b16 %v202
      %v310 = vunpack.c.l.b16 %v203
      %v311 = vunpack.c.l.b16 %v204
      %v312 = vunpack.c.l.b16 %v205
      %v313 = vunpack.c.l.b16 %v206
      %v314 = vunpack.c.l.b16 %v207
      %v315 = vunpack.c.l.b16 %v208
      %v316 = vunpack.c.l.b16 %v209
      %v317 = vunpack.c.l.b16 %v210
      %v318 = vunpack.c.l.b16 %v211
      %v319 = vunpack.c.l.b16 %v212
      %v320 = vunpack.c.l.b16 %v213
      %v321 = vunpack.c.l.b16 %v214
      %v322 = vunpack.c.l.b16 %v215
      %v323 = vunpack.c.l.b16 %v216
      %v324 = vunpack.c.l.b16 %v217
      %v325 = vunpack.c.l.b16 %v218
      %v326 = vunpack.c.l.b16 %v219
      %v327 = vunpack.c.l.b16 %v220
      %v328 = vunpack.c.l.b16 %v221
      %v329 = vunpack.c.l.b16 %v222
      %v330 = vunpack.c.l.b16 %v223
      %v331 = vunpack.c.l.b16 %v224
      %v332 = vunpack.c.l.b16 %v225
      %v333 = vunpack.c.l.b16 %v226
      %v334 = vunpack.c.l.b16 %v227
      %v335 = vunpack.c.l.b16 %v228
      %v336 = vunpack.c.l.b16 %v229
      %v337 = vunpack.c.l.b16 %v230
      %v338 = vunpack.c.l.b16 %v231
      %v339 = vunpack.c.l.b16 %v232
      %v340 = vunpack.c.l.b16 %v233
      %v341 = vunpack.c.l.b16 %v234
      %v342 = vunpack.c.l.b16 %v251
      %v343 = vpack.c.b16 %v307, %v306
      %v344 = vpack.c.b16 %v309, %v308
      %v345 = vpack.c.b16 %v311, %v310
      %v346 = vpack.c.b16 %v313, %v312
      %v347 = vpack.c.b16 %v315, %v314
      %v348 = vpack.c.b16 %v317, %v316
      %v349 = vpack.c.b16 %v319, %v318
      %v350 = vpack.c.b16 %v321, %v320
      %v351 = vpack.c.b16 %v323, %v322
      %v352 = vpack.c.b16 %v325, %v324
      %v353 = vpack.c.b16 %v327, %v326
      %v354 = vpack.c.b16 %v329, %v328
      %v355 = vpack.c.b16 %v331, %v330
      %v356 = vpack.c.b16 %v333, %v332
      %v357 = vpack.c.b16 %v335, %v334
      %v358 = vpack.c.b16 %v337, %v336
      %v359 = vpack.c.b16 %v339, %v338
      %v360 = vpack.c.b16 %v341, %v340
      %v361 = vpack.c.b16 %v342, %v342
      %vm362 = vsmask.f32 7424
      %v364 = vshrl.u32 %v343, 16
      %v366 = vshll.u32 %v343, 16
      %v368 = vrot.slane %v366, 1
      %v369 = vor.u32 %v364, %v368
      %v371 = vshll.u32 %v344, 16
      %v373 = vrot.slane %v371, 1
      %v374 = vsel %vm362, %v369, %v373
      %v375 = vshrl.u32 %v344, 16
      %v377 = vor.u32 %v375, %v373
      %v379 = vshll.u32 %v345, 16
      %v381 = vrot.slane %v379, 1
      %v382 = vsel %vm362, %v377, %v381
      %v383 = vshrl.u32 %v345, 16
      %v385 = vor.u32 %v383, %v381
      %v387 = vshll.u32 %v346, 16
      %v389 = vrot.slane %v387, 1
      %v390 = vsel %vm362, %v385, %v389
      %v391 = vshrl.u32 %v346, 16
      %v393 = vor.u32 %v391, %v389
      %v395 = vshll.u32 %v347, 16
      %v397 = vrot.slane %v395, 1
      %v398 = vsel %vm362, %v393, %v397
      %v399 = vshrl.u32 %v347, 16
      %v401 = vor.u32 %v399, %v397
      %v403 = vshll.u32 %v348, 16
      %v405 = vrot.slane %v403, 1
      %v406 = vsel %vm362, %v401, %v405
      %v407 = vshrl.u32 %v348, 16
      %v409 = vor.u32 %v407, %v405
      %v411 = vshll.u32 %v349, 16
      %v413 = vrot.slane %v411, 1
      %v414 = vsel %vm362, %v409, %v413
      %v415 = vshrl.u32 %v349, 16
      %v417 = vor.u32 %v415, %v413
      %v419 = vshll.u32 %v350, 16
      %v421 = vrot.slane %v419, 1
      %v422 = vsel %vm362, %v417, %v421
      %v423 = vshrl.u32 %v350, 16
      %v425 = vor.u32 %v423, %v421
      %v427 = vshll.u32 %v351, 16
      %v429 = vrot.slane %v427, 1
      %v430 = vsel %vm362, %v425, %v429
      %v431 = vshrl.u32 %v351, 16
      %v433 = vor.u32 %v431, %v429
      %v435 = vshll.u32 %v352, 16
      %v437 = vrot.slane %v435, 1
      %v438 = vsel %vm362, %v433, %v437
      %v439 = vshrl.u32 %v352, 16
      %v441 = vor.u32 %v439, %v437
      %v443 = vshll.u32 %v353, 16
      %v445 = vrot.slane %v443, 1
      %v446 = vsel %vm362, %v441, %v445
      %v447 = vshrl.u32 %v353, 16
      %v449 = vor.u32 %v447, %v445
      %v451 = vshll.u32 %v354, 16
      %v453 = vrot.slane %v451, 1
      %v454 = vsel %vm362, %v449, %v453
      %v455 = vshrl.u32 %v354, 16
      %v457 = vor.u32 %v455, %v453
      %v459 = vshll.u32 %v355, 16
      %v461 = vrot.slane %v459, 1
      %v462 = vsel %vm362, %v457, %v461
      %v463 = vshrl.u32 %v355, 16
      %v465 = vor.u32 %v463, %v461
      %v467 = vshll.u32 %v356, 16
      %v469 = vrot.slane %v467, 1
      %v470 = vsel %vm362, %v465, %v469
      %v471 = vshrl.u32 %v356, 16
      %v473 = vor.u32 %v471, %v469
      %v475 = vshll.u32 %v357, 16
      %v477 = vrot.slane %v475, 1
      %v478 = vsel %vm362, %v473, %v477
      %v479 = vshrl.u32 %v357, 16
      %v481 = vor.u32 %v479, %v477
      %v483 = vshll.u32 %v358, 16
      %v485 = vrot.slane %v483, 1
      %v486 = vsel %vm362, %v481, %v485
      %v487 = vshrl.u32 %v358, 16
      %v489 = vor.u32 %v487, %v485
      %v491 = vshll.u32 %v359, 16
      %v493 = vrot.slane %v491, 1
      %v494 = vsel %vm362, %v489, %v493
      %v495 = vshrl.u32 %v359, 16
      %v497 = vor.u32 %v495, %v493
      %v499 = vshll.u32 %v360, 16
      %v501 = vrot.slane %v499, 1
      %v502 = vsel %vm362, %v497, %v501
      %v503 = vshrl.u32 %v360, 16
      %v505 = vor.u32 %v503, %v501
      %v507 = vshll.u32 %v361, 16
      %v509 = vrot.slane %v507, 1
      %v510 = vsel %vm362, %v505, %v509
      %v545 = vunpack.c.l.b16 %v253
      %v546 = vunpack.c.l.b16 %v254
      %v547 = vunpack.c.l.b16 %v255
      %v548 = vunpack.c.l.b16 %v256
      %v549 = vunpack.c.l.b16 %v257
      %v550 = vunpack.c.l.b16 %v258
      %v551 = vunpack.c.l.b16 %v259
      %v552 = vunpack.c.l.b16 %v260
      %v553 = vunpack.c.l.b16 %v261
      %v554 = vunpack.c.l.b16 %v262
      %v555 = vunpack.c.l.b16 %v263
      %v556 = vunpack.c.l.b16 %v264
      %v557 = vunpack.c.l.b16 %v265
      %v558 = vunpack.c.l.b16 %v266
      %v559 = vunpack.c.l.b16 %v267
      %v560 = vunpack.c.l.b16 %v268
      %v561 = vpack.c.b16 %v546, %v545
      %v562 = vpack.c.b16 %v548, %v547
      %v563 = vpack.c.b16 %v550, %v549
      %v564 = vpack.c.b16 %v552, %v551
      %v565 = vpack.c.b16 %v554, %v553
      %v566 = vpack.c.b16 %v556, %v555
      %v567 = vpack.c.b16 %v558, %v557
      %v568 = vpack.c.b16 %v560, %v559
      %577 = vmatprep.subr.bf16.mxu0 0
      %578 = vmatpush1.bf16.msra.mxu0 %v561
      %579 = vmatprep.subr.bf16.mxu0 0
      %580 = vmatpush1.bf16.msra.mxu0 %v562
      %581 = vmatprep.subr.bf16.mxu0 0
      %582 = vmatpush1.bf16.msra.mxu0 %v563
      %583 = vmatprep.subr.bf16.mxu0 0
      %584 = vmatpush1.bf16.msra.mxu0 %v564
      %585 = vmatprep.subr.bf16.mxu0 0
      %586 = vmatpush1.bf16.msra.mxu0 %v565
      %587 = vmatprep.subr.bf16.mxu0 0
      %588 = vmatpush1.bf16.msra.mxu0 %v566
      %589 = vmatprep.subr.bf16.mxu0 0
      %590 = vmatpush1.bf16.msra.mxu0 %v567
      %591 = vmatprep.subr.bf16.mxu0 0
      %592 = vmatpush1.bf16.msra.mxu0 %v568
      %593 = vmatprep.subr.bf16.mxu0 0
      %594 = vmatpush1.bf16.msra.mxu0 0
      %595 = vmatprep.subr.bf16.mxu0 0
      %596 = vmatpush1.bf16.msra.mxu0 0
      %597 = vmatprep.subr.bf16.mxu0 0
      %598 = vmatpush1.bf16.msra.mxu0 0
      %599 = vmatprep.subr.bf16.mxu0 0
      %600 = vmatpush1.bf16.msra.mxu0 0
      %601 = vmatprep.subr.bf16.mxu0 0
      %602 = vmatpush1.bf16.msra.mxu0 0
      %603 = vmatprep.subr.bf16.mxu0 0
      %604 = vmatpush1.bf16.msra.mxu0 0
      %605 = vmatprep.subr.bf16.mxu0 0
      %606 = vmatpush1.bf16.msra.mxu0 0
      %607 = vmatprep.subr.bf16.mxu0 0
      %608 = vmatpush1.bf16.msra.mxu0 0
      %609 = vmatprep.mubr.bf16.mxu0 0
      %610 = vmatmul.mubr.bf16.gmra.mrb[0].mxu0 %v374
      %v611 = vpop.f32.mrb[0].mxu0
      %v612 = vadd.f32 0.0, %v611
      %v613 = vpop.f32.mrb[0].mxu0
      %v614 = vpop.f32.mrb[0].mxu0
      %v615 = vadd.f32 0.0, %v614
      %v616 = vpop.f32.mrb[0].mxu0
      %617 = vmatprep.mubr.bf16.mxu0 0
      %618 = vmatmul.mubr.bf16.gmra.mrb[0].mxu0 %v382
      %v619 = vpop.f32.mrb[0].mxu0
      %v620 = vadd.f32 0.0, %v619
      %v621 = vpop.f32.mrb[0].mxu0
      %v622 = vpop.f32.mrb[0].mxu0
      %v623 = vadd.f32 0.0, %v622
      %v624 = vpop.f32.mrb[0].mxu0
      %625 = vmatprep.mubr.bf16.mxu0 0
      %626 = vmatmul.mubr.bf16.gmra.mrb[0].mxu0 %v390
      %v627 = vpop.f32.mrb[0].mxu0
      %v628 = vadd.f32 0.0, %v627
      %v629 = vpop.f32.mrb[0].mxu0
      %v630 = vpop.f32.mrb[0].mxu0
      %v631 = vadd.f32 0.0, %v630
      %v632 = vpop.f32.mrb[0].mxu0
      %633 = vmatprep.mubr.bf16.mxu0 0
      %634 = vmatmul.mubr.bf16.gmra.mrb[0].mxu0 %v398
      %v635 = vpop.f32.mrb[0].mxu0
      %v636 = vadd.f32 0.0, %v635
      %v637 = vpop.f32.mrb[0].mxu0
      %v638 = vpop.f32.mrb[0].mxu0
      %v639 = vadd.f32 0.0, %v638
      %v640 = vpop.f32.mrb[0].mxu0
      %641 = vmatprep.mubr.bf16.mxu0 0
      %642 = vmatmul.mubr.bf16.gmra.mrb[0].mxu0 %v406
      %v643 = vpop.f32.mrb[0].mxu0
      %v644 = vadd.f32 0.0, %v643
      %v645 = vpop.f32.mrb[0].mxu0
      %v646 = vpop.f32.mrb[0].mxu0
      %v647 = vadd.f32 0.0, %v646
      %v648 = vpop.f32.mrb[0].mxu0
      %649 = vmatprep.mubr.bf16.mxu0 0
      %650 = vmatmul.mubr.bf16.gmra.mrb[0].mxu0 %v414
      %v651 = vpop.f32.mrb[0].mxu0
      %v652 = vadd.f32 0.0, %v651
      %v653 = vpop.f32.mrb[0].mxu0
      %v654 = vpop.f32.mrb[0].mxu0
      %v655 = vadd.f32 0.0, %v654
      %v656 = vpop.f32.mrb[0].mxu0
      %657 = vmatprep.mubr.bf16.mxu0 0
      %658 = vmatmul.mubr.bf16.gmra.mrb[0].mxu0 %v422
      %v659 = vpop.f32.mrb[0].mxu0
      %v660 = vadd.f32 0.0, %v659
      %v661 = vpop.f32.mrb[0].mxu0
      %v662 = vpop.f32.mrb[0].mxu0
      %v663 = vadd.f32 0.0, %v662
      %v664 = vpop.f32.mrb[0].mxu0
      %665 = vmatprep.mubr.bf16.mxu0 0
      %666 = vmatmul.mubr.bf16.gmra.mrb[0].mxu0 %v430
      %v667 = vpop.f32.mrb[0].mxu0
      %v668 = vadd.f32 0.0, %v667
      %v669 = vpop.f32.mrb[0].mxu0
      %v670 = vpop.f32.mrb[0].mxu0
      %v671 = vadd.f32 0.0, %v670
      %v672 = vpop.f32.mrb[0].mxu0
      %673 = vmatprep.mubr.bf16.mxu0 0
      %674 = vmatmul.mubr.bf16.gmra.mrb[0].mxu0 %v438
      %v675 = vpop.f32.mrb[0].mxu0
      %v676 = vadd.f32 0.0, %v675
      %v677 = vpop.f32.mrb[0].mxu0
      %v678 = vpop.f32.mrb[0].mxu0
      %v679 = vadd.f32 0.0, %v678
      %v680 = vpop.f32.mrb[0].mxu0
      %681 = vmatprep.mubr.bf16.mxu0 0
      %682 = vmatmul.mubr.bf16.gmra.mrb[0].mxu0 %v446
      %v683 = vpop.f32.mrb[0].mxu0
      %v684 = vadd.f32 0.0, %v683
      %v685 = vpop.f32.mrb[0].mxu0
      %v686 = vpop.f32.mrb[0].mxu0
      %v687 = vadd.f32 0.0, %v686
      %v688 = vpop.f32.mrb[0].mxu0
      %689 = vmatprep.mubr.bf16.mxu0 0
      %690 = vmatmul.mubr.bf16.gmra.mrb[0].mxu0 %v454
      %v691 = vpop.f32.mrb[0].mxu0
      %v692 = vadd.f32 0.0, %v691
      %v693 = vpop.f32.mrb[0].mxu0
      %v694 = vpop.f32.mrb[0].mxu0
      %v695 = vadd.f32 0.0, %v694
      %v696 = vpop.f32.mrb[0].mxu0
      %697 = vmatprep.mubr.bf16.mxu0 0
      %698 = vmatmul.mubr.bf16.gmra.mrb[0].mxu0 %v462
      %v699 = vpop.f32.mrb[0].mxu0
      %v700 = vadd.f32 0.0, %v699
      %v701 = vpop.f32.mrb[0].mxu0
      %v702 = vpop.f32.mrb[0].mxu0
      %v703 = vadd.f32 0.0, %v702
      %v704 = vpop.f32.mrb[0].mxu0
      %705 = vmatprep.mubr.bf16.mxu0 0
      %706 = vmatmul.mubr.bf16.gmra.mrb[0].mxu0 %v470
      %v707 = vpop.f32.mrb[0].mxu0
      %v708 = vadd.f32 0.0, %v707
      %v709 = vpop.f32.mrb[0].mxu0
      %v710 = vpop.f32.mrb[0].mxu0
      %v711 = vadd.f32 0.0, %v710
      %v712 = vpop.f32.mrb[0].mxu0
      %713 = vmatprep.mubr.bf16.mxu0 0
      %714 = vmatmul.mubr.bf16.gmra.mrb[0].mxu0 %v478
      %v715 = vpop.f32.mrb[0].mxu0
      %v716 = vadd.f32 0.0, %v715
      %v717 = vpop.f32.mrb[0].mxu0
      %v718 = vpop.f32.mrb[0].mxu0
      %v719 = vadd.f32 0.0, %v718
      %v720 = vpop.f32.mrb[0].mxu0
      %721 = vmatprep.mubr.bf16.mxu0 0
      %722 = vmatmul.mubr.bf16.gmra.mrb[0].mxu0 %v486
      %v723 = vpop.f32.mrb[0].mxu0
      %v724 = vadd.f32 0.0, %v723
      %v725 = vpop.f32.mrb[0].mxu0
      %v726 = vpop.f32.mrb[0].mxu0
      %v727 = vadd.f32 0.0, %v726
      %v728 = vpop.f32.mrb[0].mxu0
      %729 = vmatprep.mubr.bf16.mxu0 0
      %730 = vmatmul.mubr.bf16.gmra.mrb[0].mxu0 %v494
      %v731 = vpop.f32.mrb[0].mxu0
      %v732 = vadd.f32 0.0, %v731
      %v733 = vpop.f32.mrb[0].mxu0
      %v734 = vpop.f32.mrb[0].mxu0
      %v735 = vadd.f32 0.0, %v734
      %v736 = vpop.f32.mrb[0].mxu0
      %737 = vmatprep.mubr.bf16.mxu0 0
      %738 = vmatmul.mubr.bf16.gmra.mrb[0].mxu0 %v502
      %v739 = vpop.f32.mrb[0].mxu0
      %v740 = vadd.f32 0.0, %v739
      %v741 = vpop.f32.mrb[0].mxu0
      %v742 = vpop.f32.mrb[0].mxu0
      %v743 = vadd.f32 0.0, %v742
      %v744 = vpop.f32.mrb[0].mxu0
      %745 = vmatprep.mubr.bf16.mxu0 0
      %746 = vmatmul.mubr.bf16.gmra.mrb[0].mxu0 %v510
      %v747 = vpop.f32.mrb[0].mxu0
      %v748 = vadd.f32 0.0, %v747
      %v749 = vpop.f32.mrb[0].mxu0
      %v750 = vpop.f32.mrb[0].mxu0
      %v751 = vadd.f32 0.0, %v750
      %v752 = vpop.f32.mrb[0].mxu0
      %753 = vdwg.mxu0
      %v788 = vunpack.c.l.b16 %v235
      %v789 = vunpack.c.l.b16 %v236
      %v790 = vunpack.c.l.b16 %v237
      %v791 = vunpack.c.l.b16 %v238
      %v792 = vunpack.c.l.b16 %v239
      %v793 = vunpack.c.l.b16 %v240
      %v794 = vunpack.c.l.b16 %v241
      %v795 = vunpack.c.l.b16 %v242
      %v796 = vunpack.c.l.b16 %v243
      %v797 = vunpack.c.l.b16 %v244
      %v798 = vunpack.c.l.b16 %v245
      %v799 = vunpack.c.l.b16 %v246
      %v800 = vunpack.c.l.b16 %v247
      %v801 = vunpack.c.l.b16 %v248
      %v802 = vunpack.c.l.b16 %v249
      %v803 = vunpack.c.l.b16 %v250
      %v804 = vpack.c.b16 %v789, %v788
      %v805 = vpack.c.b16 %v791, %v790
      %v806 = vpack.c.b16 %v793, %v792
      %v807 = vpack.c.b16 %v795, %v794
      %v808 = vpack.c.b16 %v797, %v796
      %v809 = vpack.c.b16 %v799, %v798
      %v810 = vpack.c.b16 %v801, %v800
      %v811 = vpack.c.b16 %v803, %v802
      %820 = vmatprep.subr.bf16.mxu0 0
      %821 = vmatpush1.bf16.msra.mxu0 %v804
      %822 = vmatprep.subr.bf16.mxu0 0
      %823 = vmatpush1.bf16.msra.mxu0 %v805
      %824 = vmatprep.subr.bf16.mxu0 0
      %825 = vmatpush1.bf16.msra.mxu0 %v806
      %826 = vmatprep.subr.bf16.mxu0 0
      %827 = vmatpush1.bf16.msra.mxu0 %v807
      %828 = vmatprep.subr.bf16.mxu0 0
      %829 = vmatpush1.bf16.msra.mxu0 %v808
      %830 = vmatprep.subr.bf16.mxu0 0
      %831 = vmatpush1.bf16.msra.mxu0 %v809
      %832 = vmatprep.subr.bf16.mxu0 0
      %833 = vmatpush1.bf16.msra.mxu0 %v810
      %834 = vmatprep.subr.bf16.mxu0 0
      %835 = vmatpush1.bf16.msra.mxu0 %v811
      %836 = vmatprep.subr.bf16.mxu0 0
      %837 = vmatpush1.bf16.msra.mxu0 0
      %838 = vmatprep.subr.bf16.mxu0 0
      %839 = vmatpush1.bf16.msra.mxu0 0
      %840 = vmatprep.subr.bf16.mxu0 0
      %841 = vmatpush1.bf16.msra.mxu0 0
      %842 = vmatprep.subr.bf16.mxu0 0
      %843 = vmatpush1.bf16.msra.mxu0 0
      %844 = vmatprep.subr.bf16.mxu0 0
      %845 = vmatpush1.bf16.msra.mxu0 0
      %846 = vmatprep.subr.bf16.mxu0 0
      %847 = vmatpush1.bf16.msra.mxu0 0
      %848 = vmatprep.subr.bf16.mxu0 0
      %849 = vmatpush1.bf16.msra.mxu0 0
      %850 = vmatprep.subr.bf16.mxu0 0
      %851 = vmatpush1.bf16.msra.mxu0 0
      %852 = vmatprep.mubr.bf16.mxu0 0
      %853 = vmatmul.mubr.bf16.gmra.mrb[0].mxu0 %v343
      %v854 = vpop.f32.mrb[0].mxu0
      %v855 = vadd.f32 %v612, %v854
      %v856 = vpop.f32.mrb[0].mxu0
      %v857 = vpop.f32.mrb[0].mxu0
      %v858 = vadd.f32 %v615, %v857
      %v859 = vpop.f32.mrb[0].mxu0
      %860 = vmatprep.mubr.bf16.mxu0 0
      %861 = vmatmul.mubr.bf16.gmra.mrb[0].mxu0 %v344
      %v862 = vpop.f32.mrb[0].mxu0
      %v863 = vadd.f32 %v620, %v862
      %v864 = vpop.f32.mrb[0].mxu0
      %v865 = vpop.f32.mrb[0].mxu0
      %v866 = vadd.f32 %v623, %v865
      %v867 = vpop.f32.mrb[0].mxu0
      %868 = vmatprep.mubr.bf16.mxu0 0
      %869 = vmatmul.mubr.bf16.gmra.mrb[0].mxu0 %v345
      %v870 = vpop.f32.mrb[0].mxu0
      %v871 = vadd.f32 %v628, %v870
      %v872 = vpop.f32.mrb[0].mxu0
      %v873 = vpop.f32.mrb[0].mxu0
      %v874 = vadd.f32 %v631, %v873
      %v875 = vpop.f32.mrb[0].mxu0
      %876 = vmatprep.mubr.bf16.mxu0 0
      %877 = vmatmul.mubr.bf16.gmra.mrb[0].mxu0 %v346
      %v878 = vpop.f32.mrb[0].mxu0
      %v879 = vadd.f32 %v636, %v878
      %v880 = vpop.f32.mrb[0].mxu0
      %v881 = vpop.f32.mrb[0].mxu0
      %v882 = vadd.f32 %v639, %v881
      %v883 = vpop.f32.mrb[0].mxu0
      %884 = vmatprep.mubr.bf16.mxu0 0
      %885 = vmatmul.mubr.bf16.gmra.mrb[0].mxu0 %v347
      %v886 = vpop.f32.mrb[0].mxu0
      %v887 = vadd.f32 %v644, %v886
      %v888 = vpop.f32.mrb[0].mxu0
      %v889 = vpop.f32.mrb[0].mxu0
      %v890 = vadd.f32 %v647, %v889
      %v891 = vpop.f32.mrb[0].mxu0
      %892 = vmatprep.mubr.bf16.mxu0 0
      %893 = vmatmul.mubr.bf16.gmra.mrb[0].mxu0 %v348
      %v894 = vpop.f32.mrb[0].mxu0
      %v895 = vadd.f32 %v652, %v894
      %v896 = vpop.f32.mrb[0].mxu0
      %v897 = vpop.f32.mrb[0].mxu0
      %v898 = vadd.f32 %v655, %v897
      %v899 = vpop.f32.mrb[0].mxu0
      %900 = vmatprep.mubr.bf16.mxu0 0
      %901 = vmatmul.mubr.bf16.gmra.mrb[0].mxu0 %v349
      %v902 = vpop.f32.mrb[0].mxu0
      %v903 = vadd.f32 %v660, %v902
      %v904 = vpop.f32.mrb[0].mxu0
      %v905 = vpop.f32.mrb[0].mxu0
      %v906 = vadd.f32 %v663, %v905
      %v907 = vpop.f32.mrb[0].mxu0
      %908 = vmatprep.mubr.bf16.mxu0 0
      %909 = vmatmul.mubr.bf16.gmra.mrb[0].mxu0 %v350
      %v910 = vpop.f32.mrb[0].mxu0
      %v911 = vadd.f32 %v668, %v910
      %v912 = vpop.f32.mrb[0].mxu0
      %v913 = vpop.f32.mrb[0].mxu0
      %v914 = vadd.f32 %v671, %v913
      %v915 = vpop.f32.mrb[0].mxu0
      %916 = vmatprep.mubr.bf16.mxu0 0
      %917 = vmatmul.mubr.bf16.gmra.mrb[0].mxu0 %v351
      %v918 = vpop.f32.mrb[0].mxu0
      %v919 = vadd.f32 %v676, %v918
      %v920 = vpop.f32.mrb[0].mxu0
      %v921 = vpop.f32.mrb[0].mxu0
      %v922 = vadd.f32 %v679, %v921
      %v923 = vpop.f32.mrb[0].mxu0
      %924 = vmatprep.mubr.bf16.mxu0 0
      %925 = vmatmul.mubr.bf16.gmra.mrb[0].mxu0 %v352
      %v926 = vpop.f32.mrb[0].mxu0
      %v927 = vadd.f32 %v684, %v926
      %v928 = vpop.f32.mrb[0].mxu0
      %v929 = vpop.f32.mrb[0].mxu0
      %v930 = vadd.f32 %v687, %v929
      %v931 = vpop.f32.mrb[0].mxu0
      %932 = vmatprep.mubr.bf16.mxu0 0
      %933 = vmatmul.mubr.bf16.gmra.mrb[0].mxu0 %v353
      %v934 = vpop.f32.mrb[0].mxu0
      %v935 = vadd.f32 %v692, %v934
      %v936 = vpop.f32.mrb[0].mxu0
      %v937 = vpop.f32.mrb[0].mxu0
      %v938 = vadd.f32 %v695, %v937
      %v939 = vpop.f32.mrb[0].mxu0
      %940 = vmatprep.mubr.bf16.mxu0 0
      %941 = vmatmul.mubr.bf16.gmra.mrb[0].mxu0 %v354
      %v942 = vpop.f32.mrb[0].mxu0
      %v943 = vadd.f32 %v700, %v942
      %v944 = vpop.f32.mrb[0].mxu0
      %v945 = vpop.f32.mrb[0].mxu0
      %v946 = vadd.f32 %v703, %v945
      %v947 = vpop.f32.mrb[0].mxu0
      %948 = vmatprep.mubr.bf16.mxu0 0
      %949 = vmatmul.mubr.bf16.gmra.mrb[0].mxu0 %v355
      %v950 = vpop.f32.mrb[0].mxu0
      %v951 = vadd.f32 %v708, %v950
      %v952 = vpop.f32.mrb[0].mxu0
      %v953 = vpop.f32.mrb[0].mxu0
      %v954 = vadd.f32 %v711, %v953
      %v955 = vpop.f32.mrb[0].mxu0
      %956 = vmatprep.mubr.bf16.mxu0 0
      %957 = vmatmul.mubr.bf16.gmra.mrb[0].mxu0 %v356
      %v958 = vpop.f32.mrb[0].mxu0
      %v959 = vadd.f32 %v716, %v958
      %v960 = vpop.f32.mrb[0].mxu0
      %v961 = vpop.f32.mrb[0].mxu0
      %v962 = vadd.f32 %v719, %v961
      %v963 = vpop.f32.mrb[0].mxu0
      %964 = vmatprep.mubr.bf16.mxu0 0
      %965 = vmatmul.mubr.bf16.gmra.mrb[0].mxu0 %v357
      %v966 = vpop.f32.mrb[0].mxu0
      %v967 = vadd.f32 %v724, %v966
      %v968 = vpop.f32.mrb[0].mxu0
      %v969 = vpop.f32.mrb[0].mxu0
      %v970 = vadd.f32 %v727, %v969
      %v971 = vpop.f32.mrb[0].mxu0
      %972 = vmatprep.mubr.bf16.mxu0 0
      %973 = vmatmul.mubr.bf16.gmra.mrb[0].mxu0 %v358
      %v974 = vpop.f32.mrb[0].mxu0
      %v975 = vadd.f32 %v732, %v974
      %v976 = vpop.f32.mrb[0].mxu0
      %v977 = vpop.f32.mrb[0].mxu0
      %v978 = vadd.f32 %v735, %v977
      %v979 = vpop.f32.mrb[0].mxu0
      %980 = vmatprep.mubr.bf16.mxu0 0
      %981 = vmatmul.mubr.bf16.gmra.mrb[0].mxu0 %v359
      %v982 = vpop.f32.mrb[0].mxu0
      %v983 = vadd.f32 %v740, %v982
      %v984 = vpop.f32.mrb[0].mxu0
      %v985 = vpop.f32.mrb[0].mxu0
      %v986 = vadd.f32 %v743, %v985
      %v987 = vpop.f32.mrb[0].mxu0
      %988 = vmatprep.mubr.bf16.mxu0 0
      %989 = vmatmul.mubr.bf16.gmra.mrb[0].mxu0 %v360
      %v990 = vpop.f32.mrb[0].mxu0
      %v991 = vadd.f32 %v748, %v990
      %v992 = vpop.f32.mrb[0].mxu0
      %v993 = vpop.f32.mrb[0].mxu0
      %v994 = vadd.f32 %v751, %v993
      %v995 = vpop.f32.mrb[0].mxu0
      %996 = vdwg.mxu0
      %v997 = vld [vmem:[%s192] sm:$0xe]
      %s998 = scalar_lea.vmem %s1, 128
      %v999 = vld [vmem:[%s998] sm:$0xf]
      %v1000 = vld [vmem:[%s998 + $0x4] sm:$0xf]
      %v1001 = vld [vmem:[%s998 + $0x8] sm:$0xf]
      %v1002 = vld [vmem:[%s998 + $0xc] sm:$0xf]
      %v1003 = vld [vmem:[%s998 + $0x10] sm:$0xf]
      %v1004 = vld [vmem:[%s998 + $0x14] sm:$0xf]
      %v1005 = vld [vmem:[%s998 + $0x18] sm:$0xf]
      %v1006 = vld [vmem:[%s998 + $0x1c] sm:$0xf]
      %v1007 = vld [vmem:[%s998 + $0x20] sm:$0xf]
      %v1008 = vld [vmem:[%s998 + $0x24] sm:$0xf]
      %v1009 = vld [vmem:[%s998 + $0x28] sm:$0xf]
      %v1010 = vld [vmem:[%s998 + $0x2c] sm:$0xf]
      %v1011 = vld [vmem:[%s998 + $0x30] sm:$0xf]
      %v1012 = vld [vmem:[%s998 + $0x34] sm:$0xf]
      %v1013 = vld [vmem:[%s998 + $0x38] sm:$0xf]
      %v1014 = vld [vmem:[%s998 + $0x3c] sm:$0xf]
      %v1016 = vunpack.c.l.b16 %v997
      %v1017 = vpack.c.b16 %v307, %v1016
      %vm1018 = vcmask 1046528
      %v1019 = vrot.slane %v1017, 1
      %v1020 = vrot.slane %v344, 1
      %v1021 = vsel %vm1018, %v1019, %v1020
      %v1022 = vrot.slane %v345, 1
      %v1023 = vsel %vm1018, %v1020, %v1022
      %v1024 = vrot.slane %v346, 1
      %v1025 = vsel %vm1018, %v1022, %v1024
      %v1026 = vrot.slane %v347, 1
      %v1027 = vsel %vm1018, %v1024, %v1026
      %v1028 = vrot.slane %v348, 1
      %v1029 = vsel %vm1018, %v1026, %v1028
      %v1030 = vrot.slane %v349, 1
      %v1031 = vsel %vm1018, %v1028, %v1030
      %v1032 = vrot.slane %v350, 1
      %v1033 = vsel %vm1018, %v1030, %v1032
      %v1034 = vrot.slane %v351, 1
      %v1035 = vsel %vm1018, %v1032, %v1034
      %v1036 = vrot.slane %v352, 1
      %v1037 = vsel %vm1018, %v1034, %v1036
      %v1038 = vrot.slane %v353, 1
      %v1039 = vsel %vm1018, %v1036, %v1038
      %v1040 = vrot.slane %v354, 1
      %v1041 = vsel %vm1018, %v1038, %v1040
      %v1042 = vrot.slane %v355, 1
      %v1043 = vsel %vm1018, %v1040, %v1042
      %v1044 = vrot.slane %v356, 1
      %v1045 = vsel %vm1018, %v1042, %v1044
      %v1046 = vrot.slane %v357, 1
      %v1047 = vsel %vm1018, %v1044, %v1046
      %v1048 = vrot.slane %v358, 1
      %v1049 = vsel %vm1018, %v1046, %v1048
      %v1050 = vrot.slane %v359, 1
      %v1051 = vsel %vm1018, %v1048, %v1050
      %v1052 = vrot.slane %v360, 1
      %v1053 = vsel %vm1018, %v1050, %v1052
      %v1054 = vrot.slane %v361, 1
      %v1055 = vsel %vm1018, %v1052, %v1054
      %v1090 = vunpack.c.l.b16 %v999
      %v1091 = vunpack.c.l.b16 %v1000
      %v1092 = vunpack.c.l.b16 %v1001
      %v1093 = vunpack.c.l.b16 %v1002
      %v1094 = vunpack.c.l.b16 %v1003
      %v1095 = vunpack.c.l.b16 %v1004
      %v1096 = vunpack.c.l.b16 %v1005
      %v1097 = vunpack.c.l.b16 %v1006
      %v1098 = vunpack.c.l.b16 %v1007
      %v1099 = vunpack.c.l.b16 %v1008
      %v1100 = vunpack.c.l.b16 %v1009
      %v1101 = vunpack.c.l.b16 %v1010
      %v1102 = vunpack.c.l.b16 %v1011
      %v1103 = vunpack.c.l.b16 %v1012
      %v1104 = vunpack.c.l.b16 %v1013
      %v1105 = vunpack.c.l.b16 %v1014
      %v1106 = vpack.c.b16 %v1091, %v1090
      %v1107 = vpack.c.b16 %v1093, %v1092
      %v1108 = vpack.c.b16 %v1095, %v1094
      %v1109 = vpack.c.b16 %v1097, %v1096
      %v1110 = vpack.c.b16 %v1099, %v1098
      %v1111 = vpack.c.b16 %v1101, %v1100
      %v1112 = vpack.c.b16 %v1103, %v1102
      %v1113 = vpack.c.b16 %v1105, %v1104
      %1122 = vmatprep.subr.bf16.mxu0 0
      %1123 = vmatpush1.bf16.msra.mxu0 %v1106
      %1124 = vmatprep.subr.bf16.mxu0 0
      %1125 = vmatpush1.bf16.msra.mxu0 %v1107
      %1126 = vmatprep.subr.bf16.mxu0 0
      %1127 = vmatpush1.bf16.msra.mxu0 %v1108
      %1128 = vmatprep.subr.bf16.mxu0 0
      %1129 = vmatpush1.bf16.msra.mxu0 %v1109
      %1130 = vmatprep.subr.bf16.mxu0 0
      %1131 = vmatpush1.bf16.msra.mxu0 %v1110
      %1132 = vmatprep.subr.bf16.mxu0 0
      %1133 = vmatpush1.bf16.msra.mxu0 %v1111
      %1134 = vmatprep.subr.bf16.mxu0 0
      %1135 = vmatpush1.bf16.msra.mxu0 %v1112
      %1136 = vmatprep.subr.bf16.mxu0 0
      %1137 = vmatpush1.bf16.msra.mxu0 %v1113
      %1138 = vmatprep.subr.bf16.mxu0 0
      %1139 = vmatpush1.bf16.msra.mxu0 0
      %1140 = vmatprep.subr.bf16.mxu0 0
      %1141 = vmatpush1.bf16.msra.mxu0 0
      %1142 = vmatprep.subr.bf16.mxu0 0
      %1143 = vmatpush1.bf16.msra.mxu0 0
      %1144 = vmatprep.subr.bf16.mxu0 0
      %1145 = vmatpush1.bf16.msra.mxu0 0
      %1146 = vmatprep.subr.bf16.mxu0 0
      %1147 = vmatpush1.bf16.msra.mxu0 0
      %1148 = vmatprep.subr.bf16.mxu0 0
      %1149 = vmatpush1.bf16.msra.mxu0 0
      %1150 = vmatprep.subr.bf16.mxu0 0
      %1151 = vmatpush1.bf16.msra.mxu0 0
      %1152 = vmatprep.subr.bf16.mxu0 0
      %1153 = vmatpush1.bf16.msra.mxu0 0
      %1154 = vmatprep.mubr.bf16.mxu0 0
      %1155 = vmatmul.mubr.bf16.gmra.mrb[0].mxu0 %v1021
      %v1156 = vpop.f32.mrb[0].mxu0
      %v1157 = vadd.f32 0.0, %v1156
      %v1158 = vpop.f32.mrb[0].mxu0
      %v1159 = vpop.f32.mrb[0].mxu0
      %v1160 = vadd.f32 0.0, %v1159
      %v1161 = vpop.f32.mrb[0].mxu0
      %1162 = vmatprep.mubr.bf16.mxu0 0
      %1163 = vmatmul.mubr.bf16.gmra.mrb[0].mxu0 %v1023
      %v1164 = vpop.f32.mrb[0].mxu0
      %v1165 = vadd.f32 0.0, %v1164
      %v1166 = vpop.f32.mrb[0].mxu0
      %v1167 = vpop.f32.mrb[0].mxu0
      %v1168 = vadd.f32 0.0, %v1167
      %v1169 = vpop.f32.mrb[0].mxu0
      %1170 = vmatprep.mubr.bf16.mxu0 0
      %1171 = vmatmul.mubr.bf16.gmra.mrb[0].mxu0 %v1025
      %v1172 = vpop.f32.mrb[0].mxu0
      %v1173 = vadd.f32 0.0, %v1172
      %v1174 = vpop.f32.mrb[0].mxu0
      %v1175 = vpop.f32.mrb[0].mxu0
      %v1176 = vadd.f32 0.0, %v1175
      %v1177 = vpop.f32.mrb[0].mxu0
      %1178 = vmatprep.mubr.bf16.mxu0 0
      %1179 = vmatmul.mubr.bf16.gmra.mrb[0].mxu0 %v1027
      %v1180 = vpop.f32.mrb[0].mxu0
      %v1181 = vadd.f32 0.0, %v1180
      %v1182 = vpop.f32.mrb[0].mxu0
      %v1183 = vpop.f32.mrb[0].mxu0
      %v1184 = vadd.f32 0.0, %v1183
      %v1185 = vpop.f32.mrb[0].mxu0
      %1186 = vmatprep.mubr.bf16.mxu0 0
      %1187 = vmatmul.mubr.bf16.gmra.mrb[0].mxu0 %v1029
      %v1188 = vpop.f32.mrb[0].mxu0
      %v1189 = vadd.f32 0.0, %v1188
      %v1190 = vpop.f32.mrb[0].mxu0
      %v1191 = vpop.f32.mrb[0].mxu0
      %v1192 = vadd.f32 0.0, %v1191
      %v1193 = vpop.f32.mrb[0].mxu0
      %1194 = vmatprep.mubr.bf16.mxu0 0
      %1195 = vmatmul.mubr.bf16.gmra.mrb[0].mxu0 %v1031
      %v1196 = vpop.f32.mrb[0].mxu0
      %v1197 = vadd.f32 0.0, %v1196
      %v1198 = vpop.f32.mrb[0].mxu0
      %v1199 = vpop.f32.mrb[0].mxu0
      %v1200 = vadd.f32 0.0, %v1199
      %v1201 = vpop.f32.mrb[0].mxu0
      %1202 = vmatprep.mubr.bf16.mxu0 0
      %1203 = vmatmul.mubr.bf16.gmra.mrb[0].mxu0 %v1033
      %v1204 = vpop.f32.mrb[0].mxu0
      %v1205 = vadd.f32 0.0, %v1204
      %v1206 = vpop.f32.mrb[0].mxu0
      %v1207 = vpop.f32.mrb[0].mxu0
      %v1208 = vadd.f32 0.0, %v1207
      %v1209 = vpop.f32.mrb[0].mxu0
      %1210 = vmatprep.mubr.bf16.mxu0 0
      %1211 = vmatmul.mubr.bf16.gmra.mrb[0].mxu0 %v1035
      %v1212 = vpop.f32.mrb[0].mxu0
      %v1213 = vadd.f32 0.0, %v1212
      %v1214 = vpop.f32.mrb[0].mxu0
      %v1215 = vpop.f32.mrb[0].mxu0
      %v1216 = vadd.f32 0.0, %v1215
      %v1217 = vpop.f32.mrb[0].mxu0
      %1218 = vmatprep.mubr.bf16.mxu0 0
      %1219 = vmatmul.mubr.bf16.gmra.mrb[0].mxu0 %v1037
      %v1220 = vpop.f32.mrb[0].mxu0
      %v1221 = vadd.f32 0.0, %v1220
      %v1222 = vpop.f32.mrb[0].mxu0
      %v1223 = vpop.f32.mrb[0].mxu0
      %v1224 = vadd.f32 0.0, %v1223
      %v1225 = vpop.f32.mrb[0].mxu0
      %1226 = vmatprep.mubr.bf16.mxu0 0
      %1227 = vmatmul.mubr.bf16.gmra.mrb[0].mxu0 %v1039
      %v1228 = vpop.f32.mrb[0].mxu0
      %v1229 = vadd.f32 0.0, %v1228
      %v1230 = vpop.f32.mrb[0].mxu0
      %v1231 = vpop.f32.mrb[0].mxu0
      %v1232 = vadd.f32 0.0, %v1231
      %v1233 = vpop.f32.mrb[0].mxu0
      %1234 = vmatprep.mubr.bf16.mxu0 0
      %1235 = vmatmul.mubr.bf16.gmra.mrb[0].mxu0 %v1041
      %v1236 = vpop.f32.mrb[0].mxu0
      %v1237 = vadd.f32 0.0, %v1236
      %v1238 = vpop.f32.mrb[0].mxu0
      %v1239 = vpop.f32.mrb[0].mxu0
      %v1240 = vadd.f32 0.0, %v1239
      %v1241 = vpop.f32.mrb[0].mxu0
      %1242 = vmatprep.mubr.bf16.mxu0 0
      %1243 = vmatmul.mubr.bf16.gmra.mrb[0].mxu0 %v1043
      %v1244 = vpop.f32.mrb[0].mxu0
      %v1245 = vadd.f32 0.0, %v1244
      %v1246 = vpop.f32.mrb[0].mxu0
      %v1247 = vpop.f32.mrb[0].mxu0
      %v1248 = vadd.f32 0.0, %v1247
      %v1249 = vpop.f32.mrb[0].mxu0
      %1250 = vmatprep.mubr.bf16.mxu0 0
      %1251 = vmatmul.mubr.bf16.gmra.mrb[0].mxu0 %v1045
      %v1252 = vpop.f32.mrb[0].mxu0
      %v1253 = vadd.f32 0.0, %v1252
      %v1254 = vpop.f32.mrb[0].mxu0
      %v1255 = vpop.f32.mrb[0].mxu0
      %v1256 = vadd.f32 0.0, %v1255
      %v1257 = vpop.f32.mrb[0].mxu0
      %1258 = vmatprep.mubr.bf16.mxu0 0
      %1259 = vmatmul.mubr.bf16.gmra.mrb[0].mxu0 %v1047
      %v1260 = vpop.f32.mrb[0].mxu0
      %v1261 = vadd.f32 0.0, %v1260
      %v1262 = vpop.f32.mrb[0].mxu0
      %v1263 = vpop.f32.mrb[0].mxu0
      %v1264 = vadd.f32 0.0, %v1263
      %v1265 = vpop.f32.mrb[0].mxu0
      %1266 = vmatprep.mubr.bf16.mxu0 0
      %1267 = vmatmul.mubr.bf16.gmra.mrb[0].mxu0 %v1049
      %v1268 = vpop.f32.mrb[0].mxu0
      %v1269 = vadd.f32 0.0, %v1268
      %v1270 = vpop.f32.mrb[0].mxu0
      %v1271 = vpop.f32.mrb[0].mxu0
      %v1272 = vadd.f32 0.0, %v1271
      %v1273 = vpop.f32.mrb[0].mxu0
      %1274 = vmatprep.mubr.bf16.mxu0 0
      %1275 = vmatmul.mubr.bf16.gmra.mrb[0].mxu0 %v1051
      %v1276 = vpop.f32.mrb[0].mxu0
      %v1277 = vadd.f32 0.0, %v1276
      %v1278 = vpop.f32.mrb[0].mxu0
      %v1279 = vpop.f32.mrb[0].mxu0
      %v1280 = vadd.f32 0.0, %v1279
      %v1281 = vpop.f32.mrb[0].mxu0
      %1282 = vmatprep.mubr.bf16.mxu0 0
      %1283 = vmatmul.mubr.bf16.gmra.mrb[0].mxu0 %v1053
      %v1284 = vpop.f32.mrb[0].mxu0
      %v1285 = vadd.f32 0.0, %v1284
      %v1286 = vpop.f32.mrb[0].mxu0
      %v1287 = vpop.f32.mrb[0].mxu0
      %v1288 = vadd.f32 0.0, %v1287
      %v1289 = vpop.f32.mrb[0].mxu0
      %1290 = vmatprep.mubr.bf16.mxu0 0
      %1291 = vmatmul.mubr.bf16.gmra.mrb[0].mxu0 %v1055
      %v1292 = vpop.f32.mrb[0].mxu0
      %v1293 = vadd.f32 0.0, %v1292
      %v1294 = vpop.f32.mrb[0].mxu0
      %v1295 = vpop.f32.mrb[0].mxu0
      %v1296 = vadd.f32 0.0, %v1295
      %v1297 = vpop.f32.mrb[0].mxu0
      %1298 = vdwg.mxu0
      %v1299 = vadd.f32 %v855, %v1157
      %v1300 = vadd.f32 %v858, %v1160
      %v1301 = vadd.f32 %v863, %v1165
      %v1302 = vadd.f32 %v866, %v1168
      %v1303 = vadd.f32 %v871, %v1173
      %v1304 = vadd.f32 %v874, %v1176
      %v1305 = vadd.f32 %v879, %v1181
      %v1306 = vadd.f32 %v882, %v1184
      %v1307 = vadd.f32 %v887, %v1189
      %v1308 = vadd.f32 %v890, %v1192
      %v1309 = vadd.f32 %v895, %v1197
      %v1310 = vadd.f32 %v898, %v1200
      %v1311 = vadd.f32 %v903, %v1205
      %v1312 = vadd.f32 %v906, %v1208
      %v1313 = vadd.f32 %v911, %v1213
      %v1314 = vadd.f32 %v914, %v1216
      %v1315 = vadd.f32 %v919, %v1221
      %v1316 = vadd.f32 %v922, %v1224
      %v1317 = vadd.f32 %v927, %v1229
      %v1318 = vadd.f32 %v930, %v1232
      %v1319 = vadd.f32 %v935, %v1237
      %v1320 = vadd.f32 %v938, %v1240
      %v1321 = vadd.f32 %v943, %v1245
      %v1322 = vadd.f32 %v946, %v1248
      %v1323 = vadd.f32 %v951, %v1253
      %v1324 = vadd.f32 %v954, %v1256
      %v1325 = vadd.f32 %v959, %v1261
      %v1326 = vadd.f32 %v962, %v1264
      %v1327 = vadd.f32 %v967, %v1269
      %v1328 = vadd.f32 %v970, %v1272
      %v1329 = vadd.f32 %v975, %v1277
      %v1330 = vadd.f32 %v978, %v1280
      %v1331 = vadd.f32 %v983, %v1285
      %v1332 = vadd.f32 %v986, %v1288
      %v1333 = vadd.f32 %v991, %v1293
      %v1334 = vadd.f32 %v994, %v1296
      %v1335 = vld [vmem:[%s192 + $0x8] sm:$0xe]
      %v1336 = vld [vmem:[%s192 + $0xc] sm:$0xf]
      %v1337 = vld [vmem:[%s192 + $0x10] sm:$0xf]
      %v1338 = vld [vmem:[%s192 + $0x14] sm:$0xf]
      %v1339 = vld [vmem:[%s192 + $0x18] sm:$0xf]
      %v1340 = vld [vmem:[%s192 + $0x1c] sm:$0xf]
      %v1341 = vld [vmem:[%s192 + $0x20] sm:$0xf]
      %v1342 = vld [vmem:[%s192 + $0x24] sm:$0xf]
      %v1343 = vld [vmem:[%s192 + $0x28] sm:$0xf]
      %v1344 = vld [vmem:[%s192 + $0x2c] sm:$0xf]
      %v1345 = vld [vmem:[%s192 + $0x30] sm:$0xf]
      %v1346 = vld [vmem:[%s192 + $0x34] sm:$0xf]
      %v1347 = vld [vmem:[%s192 + $0x38] sm:$0xf]
      %v1348 = vld [vmem:[%s192 + $0x3c] sm:$0xf]
      %v1349 = vld [vmem:[%s192 + $0x40] sm:$0xf]
      %v1350 = vld [vmem:[%s192 + $0x44] sm:$0xf]
      %v1351 = vld [vmem:[%s192 + $0x48] sm:$0xf]
      %v1352 = vld [vmem:[%s192 + $0x4c] sm:$0xf]
      %v1353 = vld [vmem:[%s192 + $0x50] sm:$0xf]
      %v1354 = vld [vmem:[%s192 + $0x54] sm:$0xf]
      %v1355 = vld [vmem:[%s192 + $0x58] sm:$0xf]
      %v1356 = vld [vmem:[%s192 + $0x5c] sm:$0xf]
      %v1357 = vld [vmem:[%s192 + $0x60] sm:$0xf]
      %v1358 = vld [vmem:[%s192 + $0x64] sm:$0xf]
      %v1359 = vld [vmem:[%s192 + $0x68] sm:$0xf]
      %v1360 = vld [vmem:[%s192 + $0x6c] sm:$0xf]
      %v1361 = vld [vmem:[%s192 + $0x70] sm:$0xf]
      %v1362 = vld [vmem:[%s192 + $0x74] sm:$0xf]
      %v1363 = vld [vmem:[%s192 + $0x78] sm:$0xf]
      %v1364 = vld [vmem:[%s192 + $0x7c] sm:$0xf]
      %v1365 = vld [vmem:[%s192 + $0x80] sm:$0xf]
      %v1366 = vld [vmem:[%s192 + $0x84] sm:$0xf]
      %v1367 = vld [vmem:[%s192 + $0x88] sm:$0xf]
      %v1368 = vld [vmem:[%s192 + $0x8c] sm:$0xf]
      %v1369 = vld [vmem:[%s192 + $0x90] sm:$0xf]
      %v1370 = vld [vmem:[%s192 + $0x94] sm:$0xf]
      %v1371 = vld [vmem:[%s192 + $0x98] sm:$0x1]
      %s1372 = scalar_lea.vmem %s1, 192
      %v1373 = vld [vmem:[%s1372] sm:$0xf]
      %v1374 = vld [vmem:[%s1372 + $0x4] sm:$0xf]
      %v1375 = vld [vmem:[%s1372 + $0x8] sm:$0xf]
      %v1376 = vld [vmem:[%s1372 + $0xc] sm:$0xf]
      %v1377 = vld [vmem:[%s1372 + $0x10] sm:$0xf]
      %v1378 = vld [vmem:[%s1372 + $0x14] sm:$0xf]
      %v1379 = vld [vmem:[%s1372 + $0x18] sm:$0xf]
      %v1380 = vld [vmem:[%s1372 + $0x1c] sm:$0xf]
      %v1381 = vld [vmem:[%s1372 + $0x20] sm:$0xf]
      %v1382 = vld [vmem:[%s1372 + $0x24] sm:$0xf]
      %v1383 = vld [vmem:[%s1372 + $0x28] sm:$0xf]
      %v1384 = vld [vmem:[%s1372 + $0x2c] sm:$0xf]
      %v1385 = vld [vmem:[%s1372 + $0x30] sm:$0xf]
      %v1386 = vld [vmem:[%s1372 + $0x34] sm:$0xf]
      %v1387 = vld [vmem:[%s1372 + $0x38] sm:$0xf]
      %v1388 = vld [vmem:[%s1372 + $0x3c] sm:$0xf]
      %v1426 = vunpack.c.l.b16 %v1335
      %v1427 = vunpack.c.l.b16 %v1336
      %v1428 = vunpack.c.l.b16 %v1337
      %v1429 = vunpack.c.l.b16 %v1338
      %v1430 = vunpack.c.l.b16 %v1339
      %v1431 = vunpack.c.l.b16 %v1340
      %v1432 = vunpack.c.l.b16 %v1341
      %v1433 = vunpack.c.l.b16 %v1342
      %v1434 = vunpack.c.l.b16 %v1343
      %v1435 = vunpack.c.l.b16 %v1344
      %v1436 = vunpack.c.l.b16 %v1345
      %v1437 = vunpack.c.l.b16 %v1346
      %v1438 = vunpack.c.l.b16 %v1347
      %v1439 = vunpack.c.l.b16 %v1348
      %v1440 = vunpack.c.l.b16 %v1349
      %v1441 = vunpack.c.l.b16 %v1350
      %v1442 = vunpack.c.l.b16 %v1351
      %v1443 = vunpack.c.l.b16 %v1352
      %v1444 = vunpack.c.l.b16 %v1353
      %v1445 = vunpack.c.l.b16 %v1354
      %v1446 = vunpack.c.l.b16 %v1355
      %v1447 = vunpack.c.l.b16 %v1356
      %v1448 = vunpack.c.l.b16 %v1357
      %v1449 = vunpack.c.l.b16 %v1358
      %v1450 = vunpack.c.l.b16 %v1359
      %v1451 = vunpack.c.l.b16 %v1360
      %v1452 = vunpack.c.l.b16 %v1361
      %v1453 = vunpack.c.l.b16 %v1362
      %v1454 = vunpack.c.l.b16 %v1363
      %v1455 = vunpack.c.l.b16 %v1364
      %v1456 = vunpack.c.l.b16 %v1365
      %v1457 = vunpack.c.l.b16 %v1366
      %v1458 = vunpack.c.l.b16 %v1367
      %v1459 = vunpack.c.l.b16 %v1368
      %v1460 = vunpack.c.l.b16 %v1369
      %v1461 = vunpack.c.l.b16 %v1370
      %v1462 = vunpack.c.l.b16 %v1371
      %v1463 = vpack.c.b16 %v1427, %v1426
      %v1464 = vpack.c.b16 %v1429, %v1428
      %v1465 = vpack.c.b16 %v1431, %v1430
      %v1466 = vpack.c.b16 %v1433, %v1432
      %v1467 = vpack.c.b16 %v1435, %v1434
      %v1468 = vpack.c.b16 %v1437, %v1436
      %v1469 = vpack.c.b16 %v1439, %v1438
      %v1470 = vpack.c.b16 %v1441, %v1440
      %v1471 = vpack.c.b16 %v1443, %v1442
      %v1472 = vpack.c.b16 %v1445, %v1444
      %v1473 = vpack.c.b16 %v1447, %v1446
      %v1474 = vpack.c.b16 %v1449, %v1448
      %v1475 = vpack.c.b16 %v1451, %v1450
      %v1476 = vpack.c.b16 %v1453, %v1452
      %v1477 = vpack.c.b16 %v1455, %v1454
      %v1478 = vpack.c.b16 %v1457, %v1456
      %v1479 = vpack.c.b16 %v1459, %v1458
      %v1480 = vpack.c.b16 %v1461, %v1460
      %v1481 = vpack.c.b16 %v1462, %v1462
      %v1482 = vrot.slane %v1463, 1
      %v1483 = vrot.slane %v1464, 1
      %v1484 = vsel %vm1018, %v1482, %v1483
      %v1485 = vrot.slane %v1465, 1
      %v1486 = vsel %vm1018, %v1483, %v1485
      %v1487 = vrot.slane %v1466, 1
      %v1488 = vsel %vm1018, %v1485, %v1487
      %v1489 = vrot.slane %v1467, 1
      %v1490 = vsel %vm1018, %v1487, %v1489
      %v1491 = vrot.slane %v1468, 1
      %v1492 = vsel %vm1018, %v1489, %v1491
      %v1493 = vrot.slane %v1469, 1
      %v1494 = vsel %vm1018, %v1491, %v1493
      %v1495 = vrot.slane %v1470, 1
      %v1496 = vsel %vm1018, %v1493, %v1495
      %v1497 = vrot.slane %v1471, 1
      %v1498 = vsel %vm1018, %v1495, %v1497
      %v1499 = vrot.slane %v1472, 1
      %v1500 = vsel %vm1018, %v1497, %v1499
      %v1501 = vrot.slane %v1473, 1
      %v1502 = vsel %vm1018, %v1499, %v1501
      %v1503 = vrot.slane %v1474, 1
      %v1504 = vsel %vm1018, %v1501, %v1503
      %v1505 = vrot.slane %v1475, 1
      %v1506 = vsel %vm1018, %v1503, %v1505
      %v1507 = vrot.slane %v1476, 1
      %v1508 = vsel %vm1018, %v1505, %v1507
      %v1509 = vrot.slane %v1477, 1
      %v1510 = vsel %vm1018, %v1507, %v1509
      %v1511 = vrot.slane %v1478, 1
      %v1512 = vsel %vm1018, %v1509, %v1511
      %v1513 = vrot.slane %v1479, 1
      %v1514 = vsel %vm1018, %v1511, %v1513
      %v1515 = vrot.slane %v1480, 1
      %v1516 = vsel %vm1018, %v1513, %v1515
      %v1517 = vrot.slane %v1481, 1
      %v1518 = vsel %vm1018, %v1515, %v1517
      %v1553 = vunpack.c.l.b16 %v1373
      %v1554 = vunpack.c.l.b16 %v1374
      %v1555 = vunpack.c.l.b16 %v1375
      %v1556 = vunpack.c.l.b16 %v1376
      %v1557 = vunpack.c.l.b16 %v1377
      %v1558 = vunpack.c.l.b16 %v1378
      %v1559 = vunpack.c.l.b16 %v1379
      %v1560 = vunpack.c.l.b16 %v1380
      %v1561 = vunpack.c.l.b16 %v1381
      %v1562 = vunpack.c.l.b16 %v1382
      %v1563 = vunpack.c.l.b16 %v1383
      %v1564 = vunpack.c.l.b16 %v1384
      %v1565 = vunpack.c.l.b16 %v1385
      %v1566 = vunpack.c.l.b16 %v1386
      %v1567 = vunpack.c.l.b16 %v1387
      %v1568 = vunpack.c.l.b16 %v1388
      %v1569 = vpack.c.b16 %v1554, %v1553
      %v1570 = vpack.c.b16 %v1556, %v1555
      %v1571 = vpack.c.b16 %v1558, %v1557
      %v1572 = vpack.c.b16 %v1560, %v1559
      %v1573 = vpack.c.b16 %v1562, %v1561
      %v1574 = vpack.c.b16 %v1564, %v1563
      %v1575 = vpack.c.b16 %v1566, %v1565
      %v1576 = vpack.c.b16 %v1568, %v1567
      %1585 = vmatprep.subr.bf16.mxu0 0
      %1586 = vmatpush1.bf16.msra.mxu0 %v1569
      %1587 = vmatprep.subr.bf16.mxu0 0
      %1588 = vmatpush1.bf16.msra.mxu0 %v1570
      %1589 = vmatprep.subr.bf16.mxu0 0
      %1590 = vmatpush1.bf16.msra.mxu0 %v1571
      %1591 = vmatprep.subr.bf16.mxu0 0
      %1592 = vmatpush1.bf16.msra.mxu0 %v1572
      %1593 = vmatprep.subr.bf16.mxu0 0
      %1594 = vmatpush1.bf16.msra.mxu0 %v1573
      %1595 = vmatprep.subr.bf16.mxu0 0
      %1596 = vmatpush1.bf16.msra.mxu0 %v1574
      %1597 = vmatprep.subr.bf16.mxu0 0
      %1598 = vmatpush1.bf16.msra.mxu0 %v1575
      %1599 = vmatprep.subr.bf16.mxu0 0
      %1600 = vmatpush1.bf16.msra.mxu0 %v1576
      %1601 = vmatprep.subr.bf16.mxu0 0
      %1602 = vmatpush1.bf16.msra.mxu0 0
      %1603 = vmatprep.subr.bf16.mxu0 0
      %1604 = vmatpush1.bf16.msra.mxu0 0
      %1605 = vmatprep.subr.bf16.mxu0 0
      %1606 = vmatpush1.bf16.msra.mxu0 0
      %1607 = vmatprep.subr.bf16.mxu0 0
      %1608 = vmatpush1.bf16.msra.mxu0 0
      %1609 = vmatprep.subr.bf16.mxu0 0
      %1610 = vmatpush1.bf16.msra.mxu0 0
      %1611 = vmatprep.subr.bf16.mxu0 0
      %1612 = vmatpush1.bf16.msra.mxu0 0
      %1613 = vmatprep.subr.bf16.mxu0 0
      %1614 = vmatpush1.bf16.msra.mxu0 0
      %1615 = vmatprep.subr.bf16.mxu0 0
      %1616 = vmatpush1.bf16.msra.mxu0 0
      %1617 = vmatprep.mubr.bf16.mxu0 0
      %1618 = vmatmul.mubr.bf16.gmra.mrb[0].mxu0 %v1484
      %v1619 = vpop.f32.mrb[0].mxu0
      %v1620 = vadd.f32 0.0, %v1619
      %v1621 = vpop.f32.mrb[0].mxu0
      %v1622 = vpop.f32.mrb[0].mxu0
      %v1623 = vadd.f32 0.0, %v1622
      %v1624 = vpop.f32.mrb[0].mxu0
      %1625 = vmatprep.mubr.bf16.mxu0 0
      %1626 = vmatmul.mubr.bf16.gmra.mrb[0].mxu0 %v1486
      %v1627 = vpop.f32.mrb[0].mxu0
      %v1628 = vadd.f32 0.0, %v1627
      %v1629 = vpop.f32.mrb[0].mxu0
      %v1630 = vpop.f32.mrb[0].mxu0
      %v1631 = vadd.f32 0.0, %v1630
      %v1632 = vpop.f32.mrb[0].mxu0
      %1633 = vmatprep.mubr.bf16.mxu0 0
      %1634 = vmatmul.mubr.bf16.gmra.mrb[0].mxu0 %v1488
      %v1635 = vpop.f32.mrb[0].mxu0
      %v1636 = vadd.f32 0.0, %v1635
      %v1637 = vpop.f32.mrb[0].mxu0
      %v1638 = vpop.f32.mrb[0].mxu0
      %v1639 = vadd.f32 0.0, %v1638
      %v1640 = vpop.f32.mrb[0].mxu0
      %1641 = vmatprep.mubr.bf16.mxu0 0
      %1642 = vmatmul.mubr.bf16.gmra.mrb[0].mxu0 %v1490
      %v1643 = vpop.f32.mrb[0].mxu0
      %v1644 = vadd.f32 0.0, %v1643
      %v1645 = vpop.f32.mrb[0].mxu0
      %v1646 = vpop.f32.mrb[0].mxu0
      %v1647 = vadd.f32 0.0, %v1646
      %v1648 = vpop.f32.mrb[0].mxu0
      %1649 = vmatprep.mubr.bf16.mxu0 0
      %1650 = vmatmul.mubr.bf16.gmra.mrb[0].mxu0 %v1492
      %v1651 = vpop.f32.mrb[0].mxu0
      %v1652 = vadd.f32 0.0, %v1651
      %v1653 = vpop.f32.mrb[0].mxu0
      %v1654 = vpop.f32.mrb[0].mxu0
      %v1655 = vadd.f32 0.0, %v1654
      %v1656 = vpop.f32.mrb[0].mxu0
      %1657 = vmatprep.mubr.bf16.mxu0 0
      %1658 = vmatmul.mubr.bf16.gmra.mrb[0].mxu0 %v1494
      %v1659 = vpop.f32.mrb[0].mxu0
      %v1660 = vadd.f32 0.0, %v1659
      %v1661 = vpop.f32.mrb[0].mxu0
      %v1662 = vpop.f32.mrb[0].mxu0
      %v1663 = vadd.f32 0.0, %v1662
      %v1664 = vpop.f32.mrb[0].mxu0
      %1665 = vmatprep.mubr.bf16.mxu0 0
      %1666 = vmatmul.mubr.bf16.gmra.mrb[0].mxu0 %v1496
      %v1667 = vpop.f32.mrb[0].mxu0
      %v1668 = vadd.f32 0.0, %v1667
      %v1669 = vpop.f32.mrb[0].mxu0
      %v1670 = vpop.f32.mrb[0].mxu0
      %v1671 = vadd.f32 0.0, %v1670
      %v1672 = vpop.f32.mrb[0].mxu0
      %1673 = vmatprep.mubr.bf16.mxu0 0
      %1674 = vmatmul.mubr.bf16.gmra.mrb[0].mxu0 %v1498
      %v1675 = vpop.f32.mrb[0].mxu0
      %v1676 = vadd.f32 0.0, %v1675
      %v1677 = vpop.f32.mrb[0].mxu0
      %v1678 = vpop.f32.mrb[0].mxu0
      %v1679 = vadd.f32 0.0, %v1678
      %v1680 = vpop.f32.mrb[0].mxu0
      %1681 = vmatprep.mubr.bf16.mxu0 0
      %1682 = vmatmul.mubr.bf16.gmra.mrb[0].mxu0 %v1500
      %v1683 = vpop.f32.mrb[0].mxu0
      %v1684 = vadd.f32 0.0, %v1683
      %v1685 = vpop.f32.mrb[0].mxu0
      %v1686 = vpop.f32.mrb[0].mxu0
      %v1687 = vadd.f32 0.0, %v1686
      %v1688 = vpop.f32.mrb[0].mxu0
      %1689 = vmatprep.mubr.bf16.mxu0 0
      %1690 = vmatmul.mubr.bf16.gmra.mrb[0].mxu0 %v1502
      %v1691 = vpop.f32.mrb[0].mxu0
      %v1692 = vadd.f32 0.0, %v1691
      %v1693 = vpop.f32.mrb[0].mxu0
      %v1694 = vpop.f32.mrb[0].mxu0
      %v1695 = vadd.f32 0.0, %v1694
      %v1696 = vpop.f32.mrb[0].mxu0
      %1697 = vmatprep.mubr.bf16.mxu0 0
      %1698 = vmatmul.mubr.bf16.gmra.mrb[0].mxu0 %v1504
      %v1699 = vpop.f32.mrb[0].mxu0
      %v1700 = vadd.f32 0.0, %v1699
      %v1701 = vpop.f32.mrb[0].mxu0
      %v1702 = vpop.f32.mrb[0].mxu0
      %v1703 = vadd.f32 0.0, %v1702
      %v1704 = vpop.f32.mrb[0].mxu0
      %1705 = vmatprep.mubr.bf16.mxu0 0
      %1706 = vmatmul.mubr.bf16.gmra.mrb[0].mxu0 %v1506
      %v1707 = vpop.f32.mrb[0].mxu0
      %v1708 = vadd.f32 0.0, %v1707
      %v1709 = vpop.f32.mrb[0].mxu0
      %v1710 = vpop.f32.mrb[0].mxu0
      %v1711 = vadd.f32 0.0, %v1710
      %v1712 = vpop.f32.mrb[0].mxu0
      %1713 = vmatprep.mubr.bf16.mxu0 0
      %1714 = vmatmul.mubr.bf16.gmra.mrb[0].mxu0 %v1508
      %v1715 = vpop.f32.mrb[0].mxu0
      %v1716 = vadd.f32 0.0, %v1715
      %v1717 = vpop.f32.mrb[0].mxu0
      %v1718 = vpop.f32.mrb[0].mxu0
      %v1719 = vadd.f32 0.0, %v1718
      %v1720 = vpop.f32.mrb[0].mxu0
      %1721 = vmatprep.mubr.bf16.mxu0 0
      %1722 = vmatmul.mubr.bf16.gmra.mrb[0].mxu0 %v1510
      %v1723 = vpop.f32.mrb[0].mxu0
      %v1724 = vadd.f32 0.0, %v1723
      %v1725 = vpop.f32.mrb[0].mxu0
      %v1726 = vpop.f32.mrb[0].mxu0
      %v1727 = vadd.f32 0.0, %v1726
      %v1728 = vpop.f32.mrb[0].mxu0
      %1729 = vmatprep.mubr.bf16.mxu0 0
      %1730 = vmatmul.mubr.bf16.gmra.mrb[0].mxu0 %v1512
      %v1731 = vpop.f32.mrb[0].mxu0
      %v1732 = vadd.f32 0.0, %v1731
      %v1733 = vpop.f32.mrb[0].mxu0
      %v1734 = vpop.f32.mrb[0].mxu0
      %v1735 = vadd.f32 0.0, %v1734
      %v1736 = vpop.f32.mrb[0].mxu0
      %1737 = vmatprep.mubr.bf16.mxu0 0
      %1738 = vmatmul.mubr.bf16.gmra.mrb[0].mxu0 %v1514
      %v1739 = vpop.f32.mrb[0].mxu0
      %v1740 = vadd.f32 0.0, %v1739
      %v1741 = vpop.f32.mrb[0].mxu0
      %v1742 = vpop.f32.mrb[0].mxu0
      %v1743 = vadd.f32 0.0, %v1742
      %v1744 = vpop.f32.mrb[0].mxu0
      %1745 = vmatprep.mubr.bf16.mxu0 0
      %1746 = vmatmul.mubr.bf16.gmra.mrb[0].mxu0 %v1516
      %v1747 = vpop.f32.mrb[0].mxu0
      %v1748 = vadd.f32 0.0, %v1747
      %v1749 = vpop.f32.mrb[0].mxu0
      %v1750 = vpop.f32.mrb[0].mxu0
      %v1751 = vadd.f32 0.0, %v1750
      %v1752 = vpop.f32.mrb[0].mxu0
      %1753 = vmatprep.mubr.bf16.mxu0 0
      %1754 = vmatmul.mubr.bf16.gmra.mrb[0].mxu0 %v1518
      %v1755 = vpop.f32.mrb[0].mxu0
      %v1756 = vadd.f32 0.0, %v1755
      %v1757 = vpop.f32.mrb[0].mxu0
      %v1758 = vpop.f32.mrb[0].mxu0
      %v1759 = vadd.f32 0.0, %v1758
      %v1760 = vpop.f32.mrb[0].mxu0
      %1761 = vdwg.mxu0
      %v1762 = vadd.f32 %v1299, %v1620
      %v1763 = vadd.f32 %v1300, %v1623
      %v1764 = vadd.f32 %v1301, %v1628
      %v1765 = vadd.f32 %v1302, %v1631
      %v1766 = vadd.f32 %v1303, %v1636
      %v1767 = vadd.f32 %v1304, %v1639
      %v1768 = vadd.f32 %v1305, %v1644
      %v1769 = vadd.f32 %v1306, %v1647
      %v1770 = vadd.f32 %v1307, %v1652
      %v1771 = vadd.f32 %v1308, %v1655
      %v1772 = vadd.f32 %v1309, %v1660
      %v1773 = vadd.f32 %v1310, %v1663
      %v1774 = vadd.f32 %v1311, %v1668
      %v1775 = vadd.f32 %v1312, %v1671
      %v1776 = vadd.f32 %v1313, %v1676
      %v1777 = vadd.f32 %v1314, %v1679
      %v1778 = vadd.f32 %v1315, %v1684
      %v1779 = vadd.f32 %v1316, %v1687
      %v1780 = vadd.f32 %v1317, %v1692
      %v1781 = vadd.f32 %v1318, %v1695
      %v1782 = vadd.f32 %v1319, %v1700
      %v1783 = vadd.f32 %v1320, %v1703
      %v1784 = vadd.f32 %v1321, %v1708
      %v1785 = vadd.f32 %v1322, %v1711
      %v1786 = vadd.f32 %v1323, %v1716
      %v1787 = vadd.f32 %v1324, %v1719
      %v1788 = vadd.f32 %v1325, %v1724
      %v1789 = vadd.f32 %v1326, %v1727
      %v1790 = vadd.f32 %v1327, %v1732
      %v1791 = vadd.f32 %v1328, %v1735
      %v1792 = vadd.f32 %v1329, %v1740
      %v1793 = vadd.f32 %v1330, %v1743
      %v1794 = vadd.f32 %v1331, %v1748
      %v1795 = vadd.f32 %v1332, %v1751
      %v1796 = vadd.f32 %v1333, %v1756
      %v1797 = vadd.f32 %v1334, %v1759
      %v1798 = vld [vmem:[%s192 + $0x98] sm:$0x3]
      %s1799 = scalar_lea.vmem %s1, 256
      %v1800 = vld [vmem:[%s1799] sm:$0xf]
      %v1801 = vld [vmem:[%s1799 + $0x4] sm:$0xf]
      %v1802 = vld [vmem:[%s1799 + $0x8] sm:$0xf]
      %v1803 = vld [vmem:[%s1799 + $0xc] sm:$0xf]
      %v1804 = vld [vmem:[%s1799 + $0x10] sm:$0xf]
      %v1805 = vld [vmem:[%s1799 + $0x14] sm:$0xf]
      %v1806 = vld [vmem:[%s1799 + $0x18] sm:$0xf]
      %v1807 = vld [vmem:[%s1799 + $0x1c] sm:$0xf]
      %v1808 = vld [vmem:[%s1799 + $0x20] sm:$0xf]
      %v1809 = vld [vmem:[%s1799 + $0x24] sm:$0xf]
      %v1810 = vld [vmem:[%s1799 + $0x28] sm:$0xf]
      %v1811 = vld [vmem:[%s1799 + $0x2c] sm:$0xf]
      %v1812 = vld [vmem:[%s1799 + $0x30] sm:$0xf]
      %v1813 = vld [vmem:[%s1799 + $0x34] sm:$0xf]
      %v1814 = vld [vmem:[%s1799 + $0x38] sm:$0xf]
      %v1815 = vld [vmem:[%s1799 + $0x3c] sm:$0xf]
      %v1817 = vunpack.c.l.b16 %v1798
      %v1818 = vpack.c.b16 %v1817, %v1817
      %vm1819 = vsmask.f32 6400
      %v1821 = vshrl.u32 %v1463, 16
      %v1823 = vrot.slane %v1821, 1
      %v1824 = vshll.u32 %v1463, 16
      %v1826 = vrot.slane %v1824, 2
      %v1827 = vor.u32 %v1823, %v1826
      %v1829 = vshrl.u32 %v1464, 16
      %v1831 = vrot.slane %v1829, 1
      %v1832 = vshll.u32 %v1464, 16
      %v1834 = vrot.slane %v1832, 2
      %v1835 = vor.u32 %v1831, %v1834
      %v1836 = vsel %vm1819, %v1827, %v1835
      %v1838 = vshrl.u32 %v1465, 16
      %v1840 = vrot.slane %v1838, 1
      %v1841 = vshll.u32 %v1465, 16
      %v1843 = vrot.slane %v1841, 2
      %v1844 = vor.u32 %v1840, %v1843
      %v1845 = vsel %vm1819, %v1835, %v1844
      %v1847 = vshrl.u32 %v1466, 16
      %v1849 = vrot.slane %v1847, 1
      %v1850 = vshll.u32 %v1466, 16
      %v1852 = vrot.slane %v1850, 2
      %v1853 = vor.u32 %v1849, %v1852
      %v1854 = vsel %vm1819, %v1844, %v1853
      %v1856 = vshrl.u32 %v1467, 16
      %v1858 = vrot.slane %v1856, 1
      %v1859 = vshll.u32 %v1467, 16
      %v1861 = vrot.slane %v1859, 2
      %v1862 = vor.u32 %v1858, %v1861
      %v1863 = vsel %vm1819, %v1853, %v1862
      %v1865 = vshrl.u32 %v1468, 16
      %v1867 = vrot.slane %v1865, 1
      %v1868 = vshll.u32 %v1468, 16
      %v1870 = vrot.slane %v1868, 2
      %v1871 = vor.u32 %v1867, %v1870
      %v1872 = vsel %vm1819, %v1862, %v1871
      %v1874 = vshrl.u32 %v1469, 16
      %v1876 = vrot.slane %v1874, 1
      %v1877 = vshll.u32 %v1469, 16
      %v1879 = vrot.slane %v1877, 2
      %v1880 = vor.u32 %v1876, %v1879
      %v1881 = vsel %vm1819, %v1871, %v1880
      %v1883 = vshrl.u32 %v1470, 16
      %v1885 = vrot.slane %v1883, 1
      %v1886 = vshll.u32 %v1470, 16
      %v1888 = vrot.slane %v1886, 2
      %v1889 = vor.u32 %v1885, %v1888
      %v1890 = vsel %vm1819, %v1880, %v1889
      %v1892 = vshrl.u32 %v1471, 16
      %v1894 = vrot.slane %v1892, 1
      %v1895 = vshll.u32 %v1471, 16
      %v1897 = vrot.slane %v1895, 2
      %v1898 = vor.u32 %v1894, %v1897
      %v1899 = vsel %vm1819, %v1889, %v1898
      %v1901 = vshrl.u32 %v1472, 16
      %v1903 = vrot.slane %v1901, 1
      %v1904 = vshll.u32 %v1472, 16
      %v1906 = vrot.slane %v1904, 2
      %v1907 = vor.u32 %v1903, %v1906
      %v1908 = vsel %vm1819, %v1898, %v1907
      %v1910 = vshrl.u32 %v1473, 16
      %v1912 = vrot.slane %v1910, 1
      %v1913 = vshll.u32 %v1473, 16
      %v1915 = vrot.slane %v1913, 2
      %v1916 = vor.u32 %v1912, %v1915
      %v1917 = vsel %vm1819, %v1907, %v1916
      %v1919 = vshrl.u32 %v1474, 16
      %v1921 = vrot.slane %v1919, 1
      %v1922 = vshll.u32 %v1474, 16
      %v1924 = vrot.slane %v1922, 2
      %v1925 = vor.u32 %v1921, %v1924
      %v1926 = vsel %vm1819, %v1916, %v1925
      %v1928 = vshrl.u32 %v1475, 16
      %v1930 = vrot.slane %v1928, 1
      %v1931 = vshll.u32 %v1475, 16
      %v1933 = vrot.slane %v1931, 2
      %v1934 = vor.u32 %v1930, %v1933
      %v1935 = vsel %vm1819, %v1925, %v1934
      %v1937 = vshrl.u32 %v1476, 16
      %v1939 = vrot.slane %v1937, 1
      %v1940 = vshll.u32 %v1476, 16
      %v1942 = vrot.slane %v1940, 2
      %v1943 = vor.u32 %v1939, %v1942
      %v1944 = vsel %vm1819, %v1934, %v1943
      %v1946 = vshrl.u32 %v1477, 16
      %v1948 = vrot.slane %v1946, 1
      %v1949 = vshll.u32 %v1477, 16
      %v1951 = vrot.slane %v1949, 2
      %v1952 = vor.u32 %v1948, %v1951
      %v1953 = vsel %vm1819, %v1943, %v1952
      %v1955 = vshrl.u32 %v1478, 16
      %v1957 = vrot.slane %v1955, 1
      %v1958 = vshll.u32 %v1478, 16
      %v1960 = vrot.slane %v1958, 2
      %v1961 = vor.u32 %v1957, %v1960
      %v1962 = vsel %vm1819, %v1952, %v1961
      %v1964 = vshrl.u32 %v1479, 16
      %v1966 = vrot.slane %v1964, 1
      %v1967 = vshll.u32 %v1479, 16
      %v1969 = vrot.slane %v1967, 2
      %v1970 = vor.u32 %v1966, %v1969
      %v1971 = vsel %vm1819, %v1961, %v1970
      %v1973 = vshrl.u32 %v1480, 16
      %v1975 = vrot.slane %v1973, 1
      %v1976 = vshll.u32 %v1480, 16
      %v1978 = vrot.slane %v1976, 2
      %v1979 = vor.u32 %v1975, %v1978
      %v1980 = vsel %vm1819, %v1970, %v1979
      %v1982 = vshrl.u32 %v1818, 16
      %v1984 = vrot.slane %v1982, 1
      %v1985 = vshll.u32 %v1818, 16
      %v1987 = vrot.slane %v1985, 2
      %v1988 = vor.u32 %v1984, %v1987
      %v1989 = vsel %vm1819, %v1979, %v1988
      %v2024 = vunpack.c.l.b16 %v1800
      %v2025 = vunpack.c.l.b16 %v1801
      %v2026 = vunpack.c.l.b16 %v1802
      %v2027 = vunpack.c.l.b16 %v1803
      %v2028 = vunpack.c.l.b16 %v1804
      %v2029 = vunpack.c.l.b16 %v1805
      %v2030 = vunpack.c.l.b16 %v1806
      %v2031 = vunpack.c.l.b16 %v1807
      %v2032 = vunpack.c.l.b16 %v1808
      %v2033 = vunpack.c.l.b16 %v1809
      %v2034 = vunpack.c.l.b16 %v1810
      %v2035 = vunpack.c.l.b16 %v1811
      %v2036 = vunpack.c.l.b16 %v1812
      %v2037 = vunpack.c.l.b16 %v1813
      %v2038 = vunpack.c.l.b16 %v1814
      %v2039 = vunpack.c.l.b16 %v1815
      %v2040 = vpack.c.b16 %v2025, %v2024
      %v2041 = vpack.c.b16 %v2027, %v2026
      %v2042 = vpack.c.b16 %v2029, %v2028
      %v2043 = vpack.c.b16 %v2031, %v2030
      %v2044 = vpack.c.b16 %v2033, %v2032
      %v2045 = vpack.c.b16 %v2035, %v2034
      %v2046 = vpack.c.b16 %v2037, %v2036
      %v2047 = vpack.c.b16 %v2039, %v2038
      %2056 = vmatprep.subr.bf16.mxu0 0
      %2057 = vmatpush1.bf16.msra.mxu0 %v2040
      %2058 = vmatprep.subr.bf16.mxu0 0
      %2059 = vmatpush1.bf16.msra.mxu0 %v2041
      %2060 = vmatprep.subr.bf16.mxu0 0
      %2061 = vmatpush1.bf16.msra.mxu0 %v2042
      %2062 = vmatprep.subr.bf16.mxu0 0
      %2063 = vmatpush1.bf16.msra.mxu0 %v2043
      %2064 = vmatprep.subr.bf16.mxu0 0
      %2065 = vmatpush1.bf16.msra.mxu0 %v2044
      %2066 = vmatprep.subr.bf16.mxu0 0
      %2067 = vmatpush1.bf16.msra.mxu0 %v2045
      %2068 = vmatprep.subr.bf16.mxu0 0
      %2069 = vmatpush1.bf16.msra.mxu0 %v2046
      %2070 = vmatprep.subr.bf16.mxu0 0
      %2071 = vmatpush1.bf16.msra.mxu0 %v2047
      %2072 = vmatprep.subr.bf16.mxu0 0
      %2073 = vmatpush1.bf16.msra.mxu0 0
      %2074 = vmatprep.subr.bf16.mxu0 0
      %2075 = vmatpush1.bf16.msra.mxu0 0
      %2076 = vmatprep.subr.bf16.mxu0 0
      %2077 = vmatpush1.bf16.msra.mxu0 0
      %2078 = vmatprep.subr.bf16.mxu0 0
      %2079 = vmatpush1.bf16.msra.mxu0 0
      %2080 = vmatprep.subr.bf16.mxu0 0
      %2081 = vmatpush1.bf16.msra.mxu0 0
      %2082 = vmatprep.subr.bf16.mxu0 0
      %2083 = vmatpush1.bf16.msra.mxu0 0
      %2084 = vmatprep.subr.bf16.mxu0 0
      %2085 = vmatpush1.bf16.msra.mxu0 0
      %2086 = vmatprep.subr.bf16.mxu0 0
      %2087 = vmatpush1.bf16.msra.mxu0 0
      %2088 = vmatprep.mubr.bf16.mxu0 0
      %2089 = vmatmul.mubr.bf16.gmra.mrb[0].mxu0 %v1836
      %v2090 = vpop.f32.mrb[0].mxu0
      %v2091 = vadd.f32 0.0, %v2090
      %v2092 = vpop.f32.mrb[0].mxu0
      %v2093 = vpop.f32.mrb[0].mxu0
      %v2094 = vadd.f32 0.0, %v2093
      %v2095 = vpop.f32.mrb[0].mxu0
      %2096 = vmatprep.mubr.bf16.mxu0 0
      %2097 = vmatmul.mubr.bf16.gmra.mrb[0].mxu0 %v1845
      %v2098 = vpop.f32.mrb[0].mxu0
      %v2099 = vadd.f32 0.0, %v2098
      %v2100 = vpop.f32.mrb[0].mxu0
      %v2101 = vpop.f32.mrb[0].mxu0
      %v2102 = vadd.f32 0.0, %v2101
      %v2103 = vpop.f32.mrb[0].mxu0
      %2104 = vmatprep.mubr.bf16.mxu0 0
      %2105 = vmatmul.mubr.bf16.gmra.mrb[0].mxu0 %v1854
      %v2106 = vpop.f32.mrb[0].mxu0
      %v2107 = vadd.f32 0.0, %v2106
      %v2108 = vpop.f32.mrb[0].mxu0
      %v2109 = vpop.f32.mrb[0].mxu0
      %v2110 = vadd.f32 0.0, %v2109
      %v2111 = vpop.f32.mrb[0].mxu0
      %2112 = vmatprep.mubr.bf16.mxu0 0
      %2113 = vmatmul.mubr.bf16.gmra.mrb[0].mxu0 %v1863
      %v2114 = vpop.f32.mrb[0].mxu0
      %v2115 = vadd.f32 0.0, %v2114
      %v2116 = vpop.f32.mrb[0].mxu0
      %v2117 = vpop.f32.mrb[0].mxu0
      %v2118 = vadd.f32 0.0, %v2117
      %v2119 = vpop.f32.mrb[0].mxu0
      %2120 = vmatprep.mubr.bf16.mxu0 0
      %2121 = vmatmul.mubr.bf16.gmra.mrb[0].mxu0 %v1872
      %v2122 = vpop.f32.mrb[0].mxu0
      %v2123 = vadd.f32 0.0, %v2122
      %v2124 = vpop.f32.mrb[0].mxu0
      %v2125 = vpop.f32.mrb[0].mxu0
      %v2126 = vadd.f32 0.0, %v2125
      %v2127 = vpop.f32.mrb[0].mxu0
      %2128 = vmatprep.mubr.bf16.mxu0 0
      %2129 = vmatmul.mubr.bf16.gmra.mrb[0].mxu0 %v1881
      %v2130 = vpop.f32.mrb[0].mxu0
      %v2131 = vadd.f32 0.0, %v2130
      %v2132 = vpop.f32.mrb[0].mxu0
      %v2133 = vpop.f32.mrb[0].mxu0
      %v2134 = vadd.f32 0.0, %v2133
      %v2135 = vpop.f32.mrb[0].mxu0
      %2136 = vmatprep.mubr.bf16.mxu0 0
      %2137 = vmatmul.mubr.bf16.gmra.mrb[0].mxu0 %v1890
      %v2138 = vpop.f32.mrb[0].mxu0
      %v2139 = vadd.f32 0.0, %v2138
      %v2140 = vpop.f32.mrb[0].mxu0
      %v2141 = vpop.f32.mrb[0].mxu0
      %v2142 = vadd.f32 0.0, %v2141
      %v2143 = vpop.f32.mrb[0].mxu0
      %2144 = vmatprep.mubr.bf16.mxu0 0
      %2145 = vmatmul.mubr.bf16.gmra.mrb[0].mxu0 %v1899
      %v2146 = vpop.f32.mrb[0].mxu0
      %v2147 = vadd.f32 0.0, %v2146
      %v2148 = vpop.f32.mrb[0].mxu0
      %v2149 = vpop.f32.mrb[0].mxu0
      %v2150 = vadd.f32 0.0, %v2149
      %v2151 = vpop.f32.mrb[0].mxu0
      %2152 = vmatprep.mubr.bf16.mxu0 0
      %2153 = vmatmul.mubr.bf16.gmra.mrb[0].mxu0 %v1908
      %v2154 = vpop.f32.mrb[0].mxu0
      %v2155 = vadd.f32 0.0, %v2154
      %v2156 = vpop.f32.mrb[0].mxu0
      %v2157 = vpop.f32.mrb[0].mxu0
      %v2158 = vadd.f32 0.0, %v2157
      %v2159 = vpop.f32.mrb[0].mxu0
      %2160 = vmatprep.mubr.bf16.mxu0 0
      %2161 = vmatmul.mubr.bf16.gmra.mrb[0].mxu0 %v1917
      %v2162 = vpop.f32.mrb[0].mxu0
      %v2163 = vadd.f32 0.0, %v2162
      %v2164 = vpop.f32.mrb[0].mxu0
      %v2165 = vpop.f32.mrb[0].mxu0
      %v2166 = vadd.f32 0.0, %v2165
      %v2167 = vpop.f32.mrb[0].mxu0
      %2168 = vmatprep.mubr.bf16.mxu0 0
      %2169 = vmatmul.mubr.bf16.gmra.mrb[0].mxu0 %v1926
      %v2170 = vpop.f32.mrb[0].mxu0
      %v2171 = vadd.f32 0.0, %v2170
      %v2172 = vpop.f32.mrb[0].mxu0
      %v2173 = vpop.f32.mrb[0].mxu0
      %v2174 = vadd.f32 0.0, %v2173
      %v2175 = vpop.f32.mrb[0].mxu0
      %2176 = vmatprep.mubr.bf16.mxu0 0
      %2177 = vmatmul.mubr.bf16.gmra.mrb[0].mxu0 %v1935
      %v2178 = vpop.f32.mrb[0].mxu0
      %v2179 = vadd.f32 0.0, %v2178
      %v2180 = vpop.f32.mrb[0].mxu0
      %v2181 = vpop.f32.mrb[0].mxu0
      %v2182 = vadd.f32 0.0, %v2181
      %v2183 = vpop.f32.mrb[0].mxu0
      %2184 = vmatprep.mubr.bf16.mxu0 0
      %2185 = vmatmul.mubr.bf16.gmra.mrb[0].mxu0 %v1944
      %v2186 = vpop.f32.mrb[0].mxu0
      %v2187 = vadd.f32 0.0, %v2186
      %v2188 = vpop.f32.mrb[0].mxu0
      %v2189 = vpop.f32.mrb[0].mxu0
      %v2190 = vadd.f32 0.0, %v2189
      %v2191 = vpop.f32.mrb[0].mxu0
      %2192 = vmatprep.mubr.bf16.mxu0 0
      %2193 = vmatmul.mubr.bf16.gmra.mrb[0].mxu0 %v1953
      %v2194 = vpop.f32.mrb[0].mxu0
      %v2195 = vadd.f32 0.0, %v2194
      %v2196 = vpop.f32.mrb[0].mxu0
      %v2197 = vpop.f32.mrb[0].mxu0
      %v2198 = vadd.f32 0.0, %v2197
      %v2199 = vpop.f32.mrb[0].mxu0
      %2200 = vmatprep.mubr.bf16.mxu0 0
      %2201 = vmatmul.mubr.bf16.gmra.mrb[0].mxu0 %v1962
      %v2202 = vpop.f32.mrb[0].mxu0
      %v2203 = vadd.f32 0.0, %v2202
      %v2204 = vpop.f32.mrb[0].mxu0
      %v2205 = vpop.f32.mrb[0].mxu0
      %v2206 = vadd.f32 0.0, %v2205
      %v2207 = vpop.f32.mrb[0].mxu0
      %2208 = vmatprep.mubr.bf16.mxu0 0
      %2209 = vmatmul.mubr.bf16.gmra.mrb[0].mxu0 %v1971
      %v2210 = vpop.f32.mrb[0].mxu0
      %v2211 = vadd.f32 0.0, %v2210
      %v2212 = vpop.f32.mrb[0].mxu0
      %v2213 = vpop.f32.mrb[0].mxu0
      %v2214 = vadd.f32 0.0, %v2213
      %v2215 = vpop.f32.mrb[0].mxu0
      %2216 = vmatprep.mubr.bf16.mxu0 0
      %2217 = vmatmul.mubr.bf16.gmra.mrb[0].mxu0 %v1980
      %v2218 = vpop.f32.mrb[0].mxu0
      %v2219 = vadd.f32 0.0, %v2218
      %v2220 = vpop.f32.mrb[0].mxu0
      %v2221 = vpop.f32.mrb[0].mxu0
      %v2222 = vadd.f32 0.0, %v2221
      %v2223 = vpop.f32.mrb[0].mxu0
      %2224 = vmatprep.mubr.bf16.mxu0 0
      %2225 = vmatmul.mubr.bf16.gmra.mrb[0].mxu0 %v1989
      %v2226 = vpop.f32.mrb[0].mxu0
      %v2227 = vadd.f32 0.0, %v2226
      %v2228 = vpop.f32.mrb[0].mxu0
      %v2229 = vpop.f32.mrb[0].mxu0
      %v2230 = vadd.f32 0.0, %v2229
      %v2231 = vpop.f32.mrb[0].mxu0
      %2232 = vdwg.mxu0
      %v2233 = vadd.f32 %v1762, %v2091
      %v2234 = vadd.f32 %v1763, %v2094
      %v2235 = vadd.f32 %v1764, %v2099
      %v2236 = vadd.f32 %v1765, %v2102
      %v2237 = vadd.f32 %v1766, %v2107
      %v2238 = vadd.f32 %v1767, %v2110
      %v2239 = vadd.f32 %v1768, %v2115
      %v2240 = vadd.f32 %v1769, %v2118
      %v2241 = vadd.f32 %v1770, %v2123
      %v2242 = vadd.f32 %v1771, %v2126
      %v2243 = vadd.f32 %v1772, %v2131
      %v2244 = vadd.f32 %v1773, %v2134
      %v2245 = vadd.f32 %v1774, %v2139
      %v2246 = vadd.f32 %v1775, %v2142
      %v2247 = vadd.f32 %v1776, %v2147
      %v2248 = vadd.f32 %v1777, %v2150
      %v2249 = vadd.f32 %v1778, %v2155
      %v2250 = vadd.f32 %v1779, %v2158
      %v2251 = vadd.f32 %v1780, %v2163
      %v2252 = vadd.f32 %v1781, %v2166
      %v2253 = vadd.f32 %v1782, %v2171
      %v2254 = vadd.f32 %v1783, %v2174
      %v2255 = vadd.f32 %v1784, %v2179
      %v2256 = vadd.f32 %v1785, %v2182
      %v2257 = vadd.f32 %v1786, %v2187
      %v2258 = vadd.f32 %v1787, %v2190
      %v2259 = vadd.f32 %v1788, %v2195
      %v2260 = vadd.f32 %v1789, %v2198
      %v2261 = vadd.f32 %v1790, %v2203
      %v2262 = vadd.f32 %v1791, %v2206
      %v2263 = vadd.f32 %v1792, %v2211
      %v2264 = vadd.f32 %v1793, %v2214
      %v2265 = vadd.f32 %v1794, %v2219
      %v2266 = vadd.f32 %v1795, %v2222
      %v2267 = vadd.f32 %v1796, %v2227
      %v2268 = vadd.f32 %v1797, %v2230
      %v2269 = vld [vmem:[%s192 + $0x8] sm:$0xc]
      %s2270 = scalar_lea.vmem %s1, 320
      %v2271 = vld [vmem:[%s2270] sm:$0xf]
      %v2272 = vld [vmem:[%s2270 + $0x4] sm:$0xf]
      %v2273 = vld [vmem:[%s2270 + $0x8] sm:$0xf]
      %v2274 = vld [vmem:[%s2270 + $0xc] sm:$0xf]
      %v2275 = vld [vmem:[%s2270 + $0x10] sm:$0xf]
      %v2276 = vld [vmem:[%s2270 + $0x14] sm:$0xf]
      %v2277 = vld [vmem:[%s2270 + $0x18] sm:$0xf]
      %v2278 = vld [vmem:[%s2270 + $0x1c] sm:$0xf]
      %v2279 = vld [vmem:[%s2270 + $0x20] sm:$0xf]
      %v2280 = vld [vmem:[%s2270 + $0x24] sm:$0xf]
      %v2281 = vld [vmem:[%s2270 + $0x28] sm:$0xf]
      %v2282 = vld [vmem:[%s2270 + $0x2c] sm:$0xf]
      %v2283 = vld [vmem:[%s2270 + $0x30] sm:$0xf]
      %v2284 = vld [vmem:[%s2270 + $0x34] sm:$0xf]
      %v2285 = vld [vmem:[%s2270 + $0x38] sm:$0xf]
      %v2286 = vld [vmem:[%s2270 + $0x3c] sm:$0xf]
      %v2288 = vunpack.c.l.b16 %v2269
      %v2289 = vpack.c.b16 %v1427, %v2288
      %vm2290 = vcmask 1045504
      %v2291 = vrot.slane %v2289, 2
      %v2292 = vrot.slane %v1464, 2
      %v2293 = vsel %vm2290, %v2291, %v2292
      %v2294 = vrot.slane %v1465, 2
      %v2295 = vsel %vm2290, %v2292, %v2294
      %v2296 = vrot.slane %v1466, 2
      %v2297 = vsel %vm2290, %v2294, %v2296
      %v2298 = vrot.slane %v1467, 2
      %v2299 = vsel %vm2290, %v2296, %v2298
      %v2300 = vrot.slane %v1468, 2
      %v2301 = vsel %vm2290, %v2298, %v2300
      %v2302 = vrot.slane %v1469, 2
      %v2303 = vsel %vm2290, %v2300, %v2302
      %v2304 = vrot.slane %v1470, 2
      %v2305 = vsel %vm2290, %v2302, %v2304
      %v2306 = vrot.slane %v1471, 2
      %v2307 = vsel %vm2290, %v2304, %v2306
      %v2308 = vrot.slane %v1472, 2
      %v2309 = vsel %vm2290, %v2306, %v2308
      %v2310 = vrot.slane %v1473, 2
      %v2311 = vsel %vm2290, %v2308, %v2310
      %v2312 = vrot.slane %v1474, 2
      %v2313 = vsel %vm2290, %v2310, %v2312
      %v2314 = vrot.slane %v1475, 2
      %v2315 = vsel %vm2290, %v2312, %v2314
      %v2316 = vrot.slane %v1476, 2
      %v2317 = vsel %vm2290, %v2314, %v2316
      %v2318 = vrot.slane %v1477, 2
      %v2319 = vsel %vm2290, %v2316, %v2318
      %v2320 = vrot.slane %v1478, 2
      %v2321 = vsel %vm2290, %v2318, %v2320
      %v2322 = vrot.slane %v1479, 2
      %v2323 = vsel %vm2290, %v2320, %v2322
      %v2324 = vrot.slane %v1480, 2
      %v2325 = vsel %vm2290, %v2322, %v2324
      %v2326 = vrot.slane %v1818, 2
      %v2327 = vsel %vm2290, %v2324, %v2326
      %v2362 = vunpack.c.l.b16 %v2271
      %v2363 = vunpack.c.l.b16 %v2272
      %v2364 = vunpack.c.l.b16 %v2273
      %v2365 = vunpack.c.l.b16 %v2274
      %v2366 = vunpack.c.l.b16 %v2275
      %v2367 = vunpack.c.l.b16 %v2276
      %v2368 = vunpack.c.l.b16 %v2277
      %v2369 = vunpack.c.l.b16 %v2278
      %v2370 = vunpack.c.l.b16 %v2279
      %v2371 = vunpack.c.l.b16 %v2280
      %v2372 = vunpack.c.l.b16 %v2281
      %v2373 = vunpack.c.l.b16 %v2282
      %v2374 = vunpack.c.l.b16 %v2283
      %v2375 = vunpack.c.l.b16 %v2284
      %v2376 = vunpack.c.l.b16 %v2285
      %v2377 = vunpack.c.l.b16 %v2286
      %v2378 = vpack.c.b16 %v2363, %v2362
      %v2379 = vpack.c.b16 %v2365, %v2364
      %v2380 = vpack.c.b16 %v2367, %v2366
      %v2381 = vpack.c.b16 %v2369, %v2368
      %v2382 = vpack.c.b16 %v2371, %v2370
      %v2383 = vpack.c.b16 %v2373, %v2372
      %v2384 = vpack.c.b16 %v2375, %v2374
      %v2385 = vpack.c.b16 %v2377, %v2376
      %2394 = vmatprep.subr.bf16.mxu0 0
      %2395 = vmatpush1.bf16.msra.mxu0 %v2378
      %2396 = vmatprep.subr.bf16.mxu0 0
      %2397 = vmatpush1.bf16.msra.mxu0 %v2379
      %2398 = vmatprep.subr.bf16.mxu0 0
      %2399 = vmatpush1.bf16.msra.mxu0 %v2380
      %2400 = vmatprep.subr.bf16.mxu0 0
      %2401 = vmatpush1.bf16.msra.mxu0 %v2381
      %2402 = vmatprep.subr.bf16.mxu0 0
      %2403 = vmatpush1.bf16.msra.mxu0 %v2382
      %2404 = vmatprep.subr.bf16.mxu0 0
      %2405 = vmatpush1.bf16.msra.mxu0 %v2383
      %2406 = vmatprep.subr.bf16.mxu0 0
      %2407 = vmatpush1.bf16.msra.mxu0 %v2384
      %2408 = vmatprep.subr.bf16.mxu0 0
      %2409 = vmatpush1.bf16.msra.mxu0 %v2385
      %2410 = vmatprep.subr.bf16.mxu0 0
      %2411 = vmatpush1.bf16.msra.mxu0 0
      %2412 = vmatprep.subr.bf16.mxu0 0
      %2413 = vmatpush1.bf16.msra.mxu0 0
      %2414 = vmatprep.subr.bf16.mxu0 0
      %2415 = vmatpush1.bf16.msra.mxu0 0
      %2416 = vmatprep.subr.bf16.mxu0 0
      %2417 = vmatpush1.bf16.msra.mxu0 0
      %2418 = vmatprep.subr.bf16.mxu0 0
      %2419 = vmatpush1.bf16.msra.mxu0 0
      %2420 = vmatprep.subr.bf16.mxu0 0
      %2421 = vmatpush1.bf16.msra.mxu0 0
      %2422 = vmatprep.subr.bf16.mxu0 0
      %2423 = vmatpush1.bf16.msra.mxu0 0
      %2424 = vmatprep.subr.bf16.mxu0 0
      %2425 = vmatpush1.bf16.msra.mxu0 0
      %2426 = vmatprep.mubr.bf16.mxu0 0
      %2427 = vmatmul.mubr.bf16.gmra.mrb[0].mxu0 %v2293
      %v2428 = vpop.f32.mrb[0].mxu0
      %v2429 = vadd.f32 0.0, %v2428
      %v2430 = vpop.f32.mrb[0].mxu0
      %v2431 = vpop.f32.mrb[0].mxu0
      %v2432 = vadd.f32 0.0, %v2431
      %v2433 = vpop.f32.mrb[0].mxu0
      %2434 = vmatprep.mubr.bf16.mxu0 0
      %2435 = vmatmul.mubr.bf16.gmra.mrb[0].mxu0 %v2295
      %v2436 = vpop.f32.mrb[0].mxu0
      %v2437 = vadd.f32 0.0, %v2436
      %v2438 = vpop.f32.mrb[0].mxu0
      %v2439 = vpop.f32.mrb[0].mxu0
      %v2440 = vadd.f32 0.0, %v2439
      %v2441 = vpop.f32.mrb[0].mxu0
      %2442 = vmatprep.mubr.bf16.mxu0 0
      %2443 = vmatmul.mubr.bf16.gmra.mrb[0].mxu0 %v2297
      %v2444 = vpop.f32.mrb[0].mxu0
      %v2445 = vadd.f32 0.0, %v2444
      %v2446 = vpop.f32.mrb[0].mxu0
      %v2447 = vpop.f32.mrb[0].mxu0
      %v2448 = vadd.f32 0.0, %v2447
      %v2449 = vpop.f32.mrb[0].mxu0
      %2450 = vmatprep.mubr.bf16.mxu0 0
      %2451 = vmatmul.mubr.bf16.gmra.mrb[0].mxu0 %v2299
      %v2452 = vpop.f32.mrb[0].mxu0
      %v2453 = vadd.f32 0.0, %v2452
      %v2454 = vpop.f32.mrb[0].mxu0
      %v2455 = vpop.f32.mrb[0].mxu0
      %v2456 = vadd.f32 0.0, %v2455
      %v2457 = vpop.f32.mrb[0].mxu0
      %2458 = vmatprep.mubr.bf16.mxu0 0
      %2459 = vmatmul.mubr.bf16.gmra.mrb[0].mxu0 %v2301
      %v2460 = vpop.f32.mrb[0].mxu0
      %v2461 = vadd.f32 0.0, %v2460
      %v2462 = vpop.f32.mrb[0].mxu0
      %v2463 = vpop.f32.mrb[0].mxu0
      %v2464 = vadd.f32 0.0, %v2463
      %v2465 = vpop.f32.mrb[0].mxu0
      %2466 = vmatprep.mubr.bf16.mxu0 0
      %2467 = vmatmul.mubr.bf16.gmra.mrb[0].mxu0 %v2303
      %v2468 = vpop.f32.mrb[0].mxu0
      %v2469 = vadd.f32 0.0, %v2468
      %v2470 = vpop.f32.mrb[0].mxu0
      %v2471 = vpop.f32.mrb[0].mxu0
      %v2472 = vadd.f32 0.0, %v2471
      %v2473 = vpop.f32.mrb[0].mxu0
      %2474 = vmatprep.mubr.bf16.mxu0 0
      %2475 = vmatmul.mubr.bf16.gmra.mrb[0].mxu0 %v2305
      %v2476 = vpop.f32.mrb[0].mxu0
      %v2477 = vadd.f32 0.0, %v2476
      %v2478 = vpop.f32.mrb[0].mxu0
      %v2479 = vpop.f32.mrb[0].mxu0
      %v2480 = vadd.f32 0.0, %v2479
      %v2481 = vpop.f32.mrb[0].mxu0
      %2482 = vmatprep.mubr.bf16.mxu0 0
      %2483 = vmatmul.mubr.bf16.gmra.mrb[0].mxu0 %v2307
      %v2484 = vpop.f32.mrb[0].mxu0
      %v2485 = vadd.f32 0.0, %v2484
      %v2486 = vpop.f32.mrb[0].mxu0
      %v2487 = vpop.f32.mrb[0].mxu0
      %v2488 = vadd.f32 0.0, %v2487
      %v2489 = vpop.f32.mrb[0].mxu0
      %2490 = vmatprep.mubr.bf16.mxu0 0
      %2491 = vmatmul.mubr.bf16.gmra.mrb[0].mxu0 %v2309
      %v2492 = vpop.f32.mrb[0].mxu0
      %v2493 = vadd.f32 0.0, %v2492
      %v2494 = vpop.f32.mrb[0].mxu0
      %v2495 = vpop.f32.mrb[0].mxu0
      %v2496 = vadd.f32 0.0, %v2495
      %v2497 = vpop.f32.mrb[0].mxu0
      %2498 = vmatprep.mubr.bf16.mxu0 0
      %2499 = vmatmul.mubr.bf16.gmra.mrb[0].mxu0 %v2311
      %v2500 = vpop.f32.mrb[0].mxu0
      %v2501 = vadd.f32 0.0, %v2500
      %v2502 = vpop.f32.mrb[0].mxu0
      %v2503 = vpop.f32.mrb[0].mxu0
      %v2504 = vadd.f32 0.0, %v2503
      %v2505 = vpop.f32.mrb[0].mxu0
      %2506 = vmatprep.mubr.bf16.mxu0 0
      %2507 = vmatmul.mubr.bf16.gmra.mrb[0].mxu0 %v2313
      %v2508 = vpop.f32.mrb[0].mxu0
      %v2509 = vadd.f32 0.0, %v2508
      %v2510 = vpop.f32.mrb[0].mxu0
      %v2511 = vpop.f32.mrb[0].mxu0
      %v2512 = vadd.f32 0.0, %v2511
      %v2513 = vpop.f32.mrb[0].mxu0
      %2514 = vmatprep.mubr.bf16.mxu0 0
      %2515 = vmatmul.mubr.bf16.gmra.mrb[0].mxu0 %v2315
      %v2516 = vpop.f32.mrb[0].mxu0
      %v2517 = vadd.f32 0.0, %v2516
      %v2518 = vpop.f32.mrb[0].mxu0
      %v2519 = vpop.f32.mrb[0].mxu0
      %v2520 = vadd.f32 0.0, %v2519
      %v2521 = vpop.f32.mrb[0].mxu0
      %2522 = vmatprep.mubr.bf16.mxu0 0
      %2523 = vmatmul.mubr.bf16.gmra.mrb[0].mxu0 %v2317
      %v2524 = vpop.f32.mrb[0].mxu0
      %v2525 = vadd.f32 0.0, %v2524
      %v2526 = vpop.f32.mrb[0].mxu0
      %v2527 = vpop.f32.mrb[0].mxu0
      %v2528 = vadd.f32 0.0, %v2527
      %v2529 = vpop.f32.mrb[0].mxu0
      %2530 = vmatprep.mubr.bf16.mxu0 0
      %2531 = vmatmul.mubr.bf16.gmra.mrb[0].mxu0 %v2319
      %v2532 = vpop.f32.mrb[0].mxu0
      %v2533 = vadd.f32 0.0, %v2532
      %v2534 = vpop.f32.mrb[0].mxu0
      %v2535 = vpop.f32.mrb[0].mxu0
      %v2536 = vadd.f32 0.0, %v2535
      %v2537 = vpop.f32.mrb[0].mxu0
      %2538 = vmatprep.mubr.bf16.mxu0 0
      %2539 = vmatmul.mubr.bf16.gmra.mrb[0].mxu0 %v2321
      %v2540 = vpop.f32.mrb[0].mxu0
      %v2541 = vadd.f32 0.0, %v2540
      %v2542 = vpop.f32.mrb[0].mxu0
      %v2543 = vpop.f32.mrb[0].mxu0
      %v2544 = vadd.f32 0.0, %v2543
      %v2545 = vpop.f32.mrb[0].mxu0
      %2546 = vmatprep.mubr.bf16.mxu0 0
      %2547 = vmatmul.mubr.bf16.gmra.mrb[0].mxu0 %v2323
      %v2548 = vpop.f32.mrb[0].mxu0
      %v2549 = vadd.f32 0.0, %v2548
      %v2550 = vpop.f32.mrb[0].mxu0
      %v2551 = vpop.f32.mrb[0].mxu0
      %v2552 = vadd.f32 0.0, %v2551
      %v2553 = vpop.f32.mrb[0].mxu0
      %2554 = vmatprep.mubr.bf16.mxu0 0
      %2555 = vmatmul.mubr.bf16.gmra.mrb[0].mxu0 %v2325
      %v2556 = vpop.f32.mrb[0].mxu0
      %v2557 = vadd.f32 0.0, %v2556
      %v2558 = vpop.f32.mrb[0].mxu0
      %v2559 = vpop.f32.mrb[0].mxu0
      %v2560 = vadd.f32 0.0, %v2559
      %v2561 = vpop.f32.mrb[0].mxu0
      %2562 = vmatprep.mubr.bf16.mxu0 0
      %2563 = vmatmul.mubr.bf16.gmra.mrb[0].mxu0 %v2327
      %v2564 = vpop.f32.mrb[0].mxu0
      %v2565 = vadd.f32 0.0, %v2564
      %v2566 = vpop.f32.mrb[0].mxu0
      %v2567 = vpop.f32.mrb[0].mxu0
      %v2568 = vadd.f32 0.0, %v2567
      %v2569 = vpop.f32.mrb[0].mxu0
      %2570 = vdwg.mxu0
      %v2571 = vadd.f32 %v2233, %v2429
      %v2572 = vadd.f32 %v2234, %v2432
      %v2573 = vadd.f32 %v2235, %v2437
      %v2574 = vadd.f32 %v2236, %v2440
      %v2575 = vadd.f32 %v2237, %v2445
      %v2576 = vadd.f32 %v2238, %v2448
      %v2577 = vadd.f32 %v2239, %v2453
      %v2578 = vadd.f32 %v2240, %v2456
      %v2579 = vadd.f32 %v2241, %v2461
      %v2580 = vadd.f32 %v2242, %v2464
      %v2581 = vadd.f32 %v2243, %v2469
      %v2582 = vadd.f32 %v2244, %v2472
      %v2583 = vadd.f32 %v2245, %v2477
      %v2584 = vadd.f32 %v2246, %v2480
      %v2585 = vadd.f32 %v2247, %v2485
      %v2586 = vadd.f32 %v2248, %v2488
      %v2587 = vadd.f32 %v2249, %v2493
      %v2588 = vadd.f32 %v2250, %v2496
      %v2589 = vadd.f32 %v2251, %v2501
      %v2590 = vadd.f32 %v2252, %v2504
      %v2591 = vadd.f32 %v2253, %v2509
      %v2592 = vadd.f32 %v2254, %v2512
      %v2593 = vadd.f32 %v2255, %v2517
      %v2594 = vadd.f32 %v2256, %v2520
      %v2595 = vadd.f32 %v2257, %v2525
      %v2596 = vadd.f32 %v2258, %v2528
      %v2597 = vadd.f32 %v2259, %v2533
      %v2598 = vadd.f32 %v2260, %v2536
      %v2599 = vadd.f32 %v2261, %v2541
      %v2600 = vadd.f32 %v2262, %v2544
      %v2601 = vadd.f32 %v2263, %v2549
      %v2602 = vadd.f32 %v2264, %v2552
      %v2603 = vadd.f32 %v2265, %v2557
      %v2604 = vadd.f32 %v2266, %v2560
      %v2605 = vadd.f32 %v2267, %v2565
      %v2606 = vadd.f32 %v2268, %v2568
      %v2607 = vld [vmem:[%s192 + $0x10] sm:$0xc]
      %v2608 = vld [vmem:[%s192 + $0x14] sm:$0xf]
      %v2609 = vld [vmem:[%s192 + $0x18] sm:$0xf]
      %v2610 = vld [vmem:[%s192 + $0x1c] sm:$0xf]
      %v2611 = vld [vmem:[%s192 + $0x20] sm:$0xf]
      %v2612 = vld [vmem:[%s192 + $0x24] sm:$0xf]
      %v2613 = vld [vmem:[%s192 + $0x28] sm:$0xf]
      %v2614 = vld [vmem:[%s192 + $0x2c] sm:$0xf]
      %v2615 = vld [vmem:[%s192 + $0x30] sm:$0xf]
      %v2616 = vld [vmem:[%s192 + $0x34] sm:$0xf]
      %v2617 = vld [vmem:[%s192 + $0x38] sm:$0xf]
      %v2618 = vld [vmem:[%s192 + $0x3c] sm:$0xf]
      %v2619 = vld [vmem:[%s192 + $0x40] sm:$0xf]
      %v2620 = vld [vmem:[%s192 + $0x44] sm:$0xf]
      %v2621 = vld [vmem:[%s192 + $0x48] sm:$0xf]
      %v2622 = vld [vmem:[%s192 + $0x4c] sm:$0xf]
      %v2623 = vld [vmem:[%s192 + $0x50] sm:$0xf]
      %v2624 = vld [vmem:[%s192 + $0x54] sm:$0xf]
      %v2625 = vld [vmem:[%s192 + $0x58] sm:$0xf]
      %v2626 = vld [vmem:[%s192 + $0x5c] sm:$0xf]
      %v2627 = vld [vmem:[%s192 + $0x60] sm:$0xf]
      %v2628 = vld [vmem:[%s192 + $0x64] sm:$0xf]
      %v2629 = vld [vmem:[%s192 + $0x68] sm:$0xf]
      %v2630 = vld [vmem:[%s192 + $0x6c] sm:$0xf]
      %v2631 = vld [vmem:[%s192 + $0x70] sm:$0xf]
      %v2632 = vld [vmem:[%s192 + $0x74] sm:$0xf]
      %v2633 = vld [vmem:[%s192 + $0x78] sm:$0xf]
      %v2634 = vld [vmem:[%s192 + $0x7c] sm:$0xf]
      %v2635 = vld [vmem:[%s192 + $0x80] sm:$0xf]
      %v2636 = vld [vmem:[%s192 + $0x84] sm:$0xf]
      %v2637 = vld [vmem:[%s192 + $0x88] sm:$0xf]
      %v2638 = vld [vmem:[%s192 + $0x8c] sm:$0xf]
      %v2639 = vld [vmem:[%s192 + $0x90] sm:$0xf]
      %v2640 = vld [vmem:[%s192 + $0x94] sm:$0xf]
      %v2641 = vld [vmem:[%s192 + $0x98] sm:$0xf]
      %v2642 = vld [vmem:[%s192 + $0x9c] sm:$0xf]
      %v2643 = vld [vmem:[%s192 + $0xa0] sm:$0x3]
      %s2644 = scalar_lea.vmem %s1, 384
      %v2645 = vld [vmem:[%s2644] sm:$0xf]
      %v2646 = vld [vmem:[%s2644 + $0x4] sm:$0xf]
      %v2647 = vld [vmem:[%s2644 + $0x8] sm:$0xf]
      %v2648 = vld [vmem:[%s2644 + $0xc] sm:$0xf]
      %v2649 = vld [vmem:[%s2644 + $0x10] sm:$0xf]
      %v2650 = vld [vmem:[%s2644 + $0x14] sm:$0xf]
      %v2651 = vld [vmem:[%s2644 + $0x18] sm:$0xf]
      %v2652 = vld [vmem:[%s2644 + $0x1c] sm:$0xf]
      %v2653 = vld [vmem:[%s2644 + $0x20] sm:$0xf]
      %v2654 = vld [vmem:[%s2644 + $0x24] sm:$0xf]
      %v2655 = vld [vmem:[%s2644 + $0x28] sm:$0xf]
      %v2656 = vld [vmem:[%s2644 + $0x2c] sm:$0xf]
      %v2657 = vld [vmem:[%s2644 + $0x30] sm:$0xf]
      %v2658 = vld [vmem:[%s2644 + $0x34] sm:$0xf]
      %v2659 = vld [vmem:[%s2644 + $0x38] sm:$0xf]
      %v2660 = vld [vmem:[%s2644 + $0x3c] sm:$0xf]
      %v2698 = vunpack.c.l.b16 %v2607
      %v2699 = vunpack.c.l.b16 %v2608
      %v2700 = vunpack.c.l.b16 %v2609
      %v2701 = vunpack.c.l.b16 %v2610
      %v2702 = vunpack.c.l.b16 %v2611
      %v2703 = vunpack.c.l.b16 %v2612
      %v2704 = vunpack.c.l.b16 %v2613
      %v2705 = vunpack.c.l.b16 %v2614
      %v2706 = vunpack.c.l.b16 %v2615
      %v2707 = vunpack.c.l.b16 %v2616
      %v2708 = vunpack.c.l.b16 %v2617
      %v2709 = vunpack.c.l.b16 %v2618
      %v2710 = vunpack.c.l.b16 %v2619
      %v2711 = vunpack.c.l.b16 %v2620
      %v2712 = vunpack.c.l.b16 %v2621
      %v2713 = vunpack.c.l.b16 %v2622
      %v2714 = vunpack.c.l.b16 %v2623
      %v2715 = vunpack.c.l.b16 %v2624
      %v2716 = vunpack.c.l.b16 %v2625
      %v2717 = vunpack.c.l.b16 %v2626
      %v2718 = vunpack.c.l.b16 %v2627
      %v2719 = vunpack.c.l.b16 %v2628
      %v2720 = vunpack.c.l.b16 %v2629
      %v2721 = vunpack.c.l.b16 %v2630
      %v2722 = vunpack.c.l.b16 %v2631
      %v2723 = vunpack.c.l.b16 %v2632
      %v2724 = vunpack.c.l.b16 %v2633
      %v2725 = vunpack.c.l.b16 %v2634
      %v2726 = vunpack.c.l.b16 %v2635
      %v2727 = vunpack.c.l.b16 %v2636
      %v2728 = vunpack.c.l.b16 %v2637
      %v2729 = vunpack.c.l.b16 %v2638
      %v2730 = vunpack.c.l.b16 %v2639
      %v2731 = vunpack.c.l.b16 %v2640
      %v2732 = vunpack.c.l.b16 %v2641
      %v2733 = vunpack.c.l.b16 %v2642
      %v2734 = vunpack.c.l.b16 %v2643
      %v2735 = vpack.c.b16 %v2699, %v2698
      %v2736 = vpack.c.b16 %v2701, %v2700
      %v2737 = vpack.c.b16 %v2703, %v2702
      %v2738 = vpack.c.b16 %v2705, %v2704
      %v2739 = vpack.c.b16 %v2707, %v2706
      %v2740 = vpack.c.b16 %v2709, %v2708
      %v2741 = vpack.c.b16 %v2711, %v2710
      %v2742 = vpack.c.b16 %v2713, %v2712
      %v2743 = vpack.c.b16 %v2715, %v2714
      %v2744 = vpack.c.b16 %v2717, %v2716
      %v2745 = vpack.c.b16 %v2719, %v2718
      %v2746 = vpack.c.b16 %v2721, %v2720
      %v2747 = vpack.c.b16 %v2723, %v2722
      %v2748 = vpack.c.b16 %v2725, %v2724
      %v2749 = vpack.c.b16 %v2727, %v2726
      %v2750 = vpack.c.b16 %v2729, %v2728
      %v2751 = vpack.c.b16 %v2731, %v2730
      %v2752 = vpack.c.b16 %v2733, %v2732
      %v2753 = vpack.c.b16 %v2734, %v2734
      %v2754 = vrot.slane %v2735, 2
      %v2755 = vrot.slane %v2736, 2
      %v2756 = vsel %vm2290, %v2754, %v2755
      %v2757 = vrot.slane %v2737, 2
      %v2758 = vsel %vm2290, %v2755, %v2757
      %v2759 = vrot.slane %v2738, 2
      %v2760 = vsel %vm2290, %v2757, %v2759
      %v2761 = vrot.slane %v2739, 2
      %v2762 = vsel %vm2290, %v2759, %v2761
      %v2763 = vrot.slane %v2740, 2
      %v2764 = vsel %vm2290, %v2761, %v2763
      %v2765 = vrot.slane %v2741, 2
      %v2766 = vsel %vm2290, %v2763, %v2765
      %v2767 = vrot.slane %v2742, 2
      %v2768 = vsel %vm2290, %v2765, %v2767
      %v2769 = vrot.slane %v2743, 2
      %v2770 = vsel %vm2290, %v2767, %v2769
      %v2771 = vrot.slane %v2744, 2
      %v2772 = vsel %vm2290, %v2769, %v2771
      %v2773 = vrot.slane %v2745, 2
      %v2774 = vsel %vm2290, %v2771, %v2773
      %v2775 = vrot.slane %v2746, 2
      %v2776 = vsel %vm2290, %v2773, %v2775
      %v2777 = vrot.slane %v2747, 2
      %v2778 = vsel %vm2290, %v2775, %v2777
      %v2779 = vrot.slane %v2748, 2
      %v2780 = vsel %vm2290, %v2777, %v2779
      %v2781 = vrot.slane %v2749, 2
      %v2782 = vsel %vm2290, %v2779, %v2781
      %v2783 = vrot.slane %v2750, 2
      %v2784 = vsel %vm2290, %v2781, %v2783
      %v2785 = vrot.slane %v2751, 2
      %v2786 = vsel %vm2290, %v2783, %v2785
      %v2787 = vrot.slane %v2752, 2
      %v2788 = vsel %vm2290, %v2785, %v2787
      %v2789 = vrot.slane %v2753, 2
      %v2790 = vsel %vm2290, %v2787, %v2789
      %v2825 = vunpack.c.l.b16 %v2645
      %v2826 = vunpack.c.l.b16 %v2646
      %v2827 = vunpack.c.l.b16 %v2647
      %v2828 = vunpack.c.l.b16 %v2648
      %v2829 = vunpack.c.l.b16 %v2649
      %v2830 = vunpack.c.l.b16 %v2650
      %v2831 = vunpack.c.l.b16 %v2651
      %v2832 = vunpack.c.l.b16 %v2652
      %v2833 = vunpack.c.l.b16 %v2653
      %v2834 = vunpack.c.l.b16 %v2654
      %v2835 = vunpack.c.l.b16 %v2655
      %v2836 = vunpack.c.l.b16 %v2656
      %v2837 = vunpack.c.l.b16 %v2657
      %v2838 = vunpack.c.l.b16 %v2658
      %v2839 = vunpack.c.l.b16 %v2659
      %v2840 = vunpack.c.l.b16 %v2660
      %v2841 = vpack.c.b16 %v2826, %v2825
      %v2842 = vpack.c.b16 %v2828, %v2827
      %v2843 = vpack.c.b16 %v2830, %v2829
      %v2844 = vpack.c.b16 %v2832, %v2831
      %v2845 = vpack.c.b16 %v2834, %v2833
      %v2846 = vpack.c.b16 %v2836, %v2835
      %v2847 = vpack.c.b16 %v2838, %v2837
      %v2848 = vpack.c.b16 %v2840, %v2839
      %2857 = vmatprep.subr.bf16.mxu0 0
      %2858 = vmatpush1.bf16.msra.mxu0 %v2841
      %2859 = vmatprep.subr.bf16.mxu0 0
      %2860 = vmatpush1.bf16.msra.mxu0 %v2842
      %2861 = vmatprep.subr.bf16.mxu0 0
      %2862 = vmatpush1.bf16.msra.mxu0 %v2843
      %2863 = vmatprep.subr.bf16.mxu0 0
      %2864 = vmatpush1.bf16.msra.mxu0 %v2844
      %2865 = vmatprep.subr.bf16.mxu0 0
      %2866 = vmatpush1.bf16.msra.mxu0 %v2845
      %2867 = vmatprep.subr.bf16.mxu0 0
      %2868 = vmatpush1.bf16.msra.mxu0 %v2846
      %2869 = vmatprep.subr.bf16.mxu0 0
      %2870 = vmatpush1.bf16.msra.mxu0 %v2847
      %2871 = vmatprep.subr.bf16.mxu0 0
      %2872 = vmatpush1.bf16.msra.mxu0 %v2848
      %2873 = vmatprep.subr.bf16.mxu0 0
      %2874 = vmatpush1.bf16.msra.mxu0 0
      %2875 = vmatprep.subr.bf16.mxu0 0
      %2876 = vmatpush1.bf16.msra.mxu0 0
      %2877 = vmatprep.subr.bf16.mxu0 0
      %2878 = vmatpush1.bf16.msra.mxu0 0
      %2879 = vmatprep.subr.bf16.mxu0 0
      %2880 = vmatpush1.bf16.msra.mxu0 0
      %2881 = vmatprep.subr.bf16.mxu0 0
      %2882 = vmatpush1.bf16.msra.mxu0 0
      %2883 = vmatprep.subr.bf16.mxu0 0
      %2884 = vmatpush1.bf16.msra.mxu0 0
      %2885 = vmatprep.subr.bf16.mxu0 0
      %2886 = vmatpush1.bf16.msra.mxu0 0
      %2887 = vmatprep.subr.bf16.mxu0 0
      %2888 = vmatpush1.bf16.msra.mxu0 0
      %2889 = vmatprep.mubr.bf16.mxu0 0
      %2890 = vmatmul.mubr.bf16.gmra.mrb[0].mxu0 %v2756
      %v2891 = vpop.f32.mrb[0].mxu0
      %v2892 = vadd.f32 0.0, %v2891
      %v2893 = vpop.f32.mrb[0].mxu0
      %v2894 = vpop.f32.mrb[0].mxu0
      %v2895 = vadd.f32 0.0, %v2894
      %v2896 = vpop.f32.mrb[0].mxu0
      %2897 = vmatprep.mubr.bf16.mxu0 0
      %2898 = vmatmul.mubr.bf16.gmra.mrb[0].mxu0 %v2758
      %v2899 = vpop.f32.mrb[0].mxu0
      %v2900 = vadd.f32 0.0, %v2899
      %v2901 = vpop.f32.mrb[0].mxu0
      %v2902 = vpop.f32.mrb[0].mxu0
      %v2903 = vadd.f32 0.0, %v2902
      %v2904 = vpop.f32.mrb[0].mxu0
      %2905 = vmatprep.mubr.bf16.mxu0 0
      %2906 = vmatmul.mubr.bf16.gmra.mrb[0].mxu0 %v2760
      %v2907 = vpop.f32.mrb[0].mxu0
      %v2908 = vadd.f32 0.0, %v2907
      %v2909 = vpop.f32.mrb[0].mxu0
      %v2910 = vpop.f32.mrb[0].mxu0
      %v2911 = vadd.f32 0.0, %v2910
      %v2912 = vpop.f32.mrb[0].mxu0
      %2913 = vmatprep.mubr.bf16.mxu0 0
      %2914 = vmatmul.mubr.bf16.gmra.mrb[0].mxu0 %v2762
      %v2915 = vpop.f32.mrb[0].mxu0
      %v2916 = vadd.f32 0.0, %v2915
      %v2917 = vpop.f32.mrb[0].mxu0
      %v2918 = vpop.f32.mrb[0].mxu0
      %v2919 = vadd.f32 0.0, %v2918
      %v2920 = vpop.f32.mrb[0].mxu0
      %2921 = vmatprep.mubr.bf16.mxu0 0
      %2922 = vmatmul.mubr.bf16.gmra.mrb[0].mxu0 %v2764
      %v2923 = vpop.f32.mrb[0].mxu0
      %v2924 = vadd.f32 0.0, %v2923
      %v2925 = vpop.f32.mrb[0].mxu0
      %v2926 = vpop.f32.mrb[0].mxu0
      %v2927 = vadd.f32 0.0, %v2926
      %v2928 = vpop.f32.mrb[0].mxu0
      %2929 = vmatprep.mubr.bf16.mxu0 0
      %2930 = vmatmul.mubr.bf16.gmra.mrb[0].mxu0 %v2766
      %v2931 = vpop.f32.mrb[0].mxu0
      %v2932 = vadd.f32 0.0, %v2931
      %v2933 = vpop.f32.mrb[0].mxu0
      %v2934 = vpop.f32.mrb[0].mxu0
      %v2935 = vadd.f32 0.0, %v2934
      %v2936 = vpop.f32.mrb[0].mxu0
      %2937 = vmatprep.mubr.bf16.mxu0 0
      %2938 = vmatmul.mubr.bf16.gmra.mrb[0].mxu0 %v2768
      %v2939 = vpop.f32.mrb[0].mxu0
      %v2940 = vadd.f32 0.0, %v2939
      %v2941 = vpop.f32.mrb[0].mxu0
      %v2942 = vpop.f32.mrb[0].mxu0
      %v2943 = vadd.f32 0.0, %v2942
      %v2944 = vpop.f32.mrb[0].mxu0
      %2945 = vmatprep.mubr.bf16.mxu0 0
      %2946 = vmatmul.mubr.bf16.gmra.mrb[0].mxu0 %v2770
      %v2947 = vpop.f32.mrb[0].mxu0
      %v2948 = vadd.f32 0.0, %v2947
      %v2949 = vpop.f32.mrb[0].mxu0
      %v2950 = vpop.f32.mrb[0].mxu0
      %v2951 = vadd.f32 0.0, %v2950
      %v2952 = vpop.f32.mrb[0].mxu0
      %2953 = vmatprep.mubr.bf16.mxu0 0
      %2954 = vmatmul.mubr.bf16.gmra.mrb[0].mxu0 %v2772
      %v2955 = vpop.f32.mrb[0].mxu0
      %v2956 = vadd.f32 0.0, %v2955
      %v2957 = vpop.f32.mrb[0].mxu0
      %v2958 = vpop.f32.mrb[0].mxu0
      %v2959 = vadd.f32 0.0, %v2958
      %v2960 = vpop.f32.mrb[0].mxu0
      %2961 = vmatprep.mubr.bf16.mxu0 0
      %2962 = vmatmul.mubr.bf16.gmra.mrb[0].mxu0 %v2774
      %v2963 = vpop.f32.mrb[0].mxu0
      %v2964 = vadd.f32 0.0, %v2963
      %v2965 = vpop.f32.mrb[0].mxu0
      %v2966 = vpop.f32.mrb[0].mxu0
      %v2967 = vadd.f32 0.0, %v2966
      %v2968 = vpop.f32.mrb[0].mxu0
      %2969 = vmatprep.mubr.bf16.mxu0 0
      %2970 = vmatmul.mubr.bf16.gmra.mrb[0].mxu0 %v2776
      %v2971 = vpop.f32.mrb[0].mxu0
      %v2972 = vadd.f32 0.0, %v2971
      %v2973 = vpop.f32.mrb[0].mxu0
      %v2974 = vpop.f32.mrb[0].mxu0
      %v2975 = vadd.f32 0.0, %v2974
      %v2976 = vpop.f32.mrb[0].mxu0
      %2977 = vmatprep.mubr.bf16.mxu0 0
      %2978 = vmatmul.mubr.bf16.gmra.mrb[0].mxu0 %v2778
      %v2979 = vpop.f32.mrb[0].mxu0
      %v2980 = vadd.f32 0.0, %v2979
      %v2981 = vpop.f32.mrb[0].mxu0
      %v2982 = vpop.f32.mrb[0].mxu0
      %v2983 = vadd.f32 0.0, %v2982
      %v2984 = vpop.f32.mrb[0].mxu0
      %2985 = vmatprep.mubr.bf16.mxu0 0
      %2986 = vmatmul.mubr.bf16.gmra.mrb[0].mxu0 %v2780
      %v2987 = vpop.f32.mrb[0].mxu0
      %v2988 = vadd.f32 0.0, %v2987
      %v2989 = vpop.f32.mrb[0].mxu0
      %v2990 = vpop.f32.mrb[0].mxu0
      %v2991 = vadd.f32 0.0, %v2990
      %v2992 = vpop.f32.mrb[0].mxu0
      %2993 = vmatprep.mubr.bf16.mxu0 0
      %2994 = vmatmul.mubr.bf16.gmra.mrb[0].mxu0 %v2782
      %v2995 = vpop.f32.mrb[0].mxu0
      %v2996 = vadd.f32 0.0, %v2995
      %v2997 = vpop.f32.mrb[0].mxu0
      %v2998 = vpop.f32.mrb[0].mxu0
      %v2999 = vadd.f32 0.0, %v2998
      %v3000 = vpop.f32.mrb[0].mxu0
      %3001 = vmatprep.mubr.bf16.mxu0 0
      %3002 = vmatmul.mubr.bf16.gmra.mrb[0].mxu0 %v2784
      %v3003 = vpop.f32.mrb[0].mxu0
      %v3004 = vadd.f32 0.0, %v3003
      %v3005 = vpop.f32.mrb[0].mxu0
      %v3006 = vpop.f32.mrb[0].mxu0
      %v3007 = vadd.f32 0.0, %v3006
      %v3008 = vpop.f32.mrb[0].mxu0
      %3009 = vmatprep.mubr.bf16.mxu0 0
      %3010 = vmatmul.mubr.bf16.gmra.mrb[0].mxu0 %v2786
      %v3011 = vpop.f32.mrb[0].mxu0
      %v3012 = vadd.f32 0.0, %v3011
      %v3013 = vpop.f32.mrb[0].mxu0
      %v3014 = vpop.f32.mrb[0].mxu0
      %v3015 = vadd.f32 0.0, %v3014
      %v3016 = vpop.f32.mrb[0].mxu0
      %3017 = vmatprep.mubr.bf16.mxu0 0
      %3018 = vmatmul.mubr.bf16.gmra.mrb[0].mxu0 %v2788
      %v3019 = vpop.f32.mrb[0].mxu0
      %v3020 = vadd.f32 0.0, %v3019
      %v3021 = vpop.f32.mrb[0].mxu0
      %v3022 = vpop.f32.mrb[0].mxu0
      %v3023 = vadd.f32 0.0, %v3022
      %v3024 = vpop.f32.mrb[0].mxu0
      %3025 = vmatprep.mubr.bf16.mxu0 0
      %3026 = vmatmul.mubr.bf16.gmra.mrb[0].mxu0 %v2790
      %v3027 = vpop.f32.mrb[0].mxu0
      %v3028 = vadd.f32 0.0, %v3027
      %v3029 = vpop.f32.mrb[0].mxu0
      %v3030 = vpop.f32.mrb[0].mxu0
      %v3031 = vadd.f32 0.0, %v3030
      %v3032 = vpop.f32.mrb[0].mxu0
      %3033 = vdwg.mxu0
      %v3034 = vadd.f32 %v2571, %v2892
      %v3035 = vadd.f32 %v2572, %v2895
      %v3036 = vadd.f32 %v2573, %v2900
      %v3037 = vadd.f32 %v2574, %v2903
      %v3038 = vadd.f32 %v2575, %v2908
      %v3039 = vadd.f32 %v2576, %v2911
      %v3040 = vadd.f32 %v2577, %v2916
      %v3041 = vadd.f32 %v2578, %v2919
      %v3042 = vadd.f32 %v2579, %v2924
      %v3043 = vadd.f32 %v2580, %v2927
      %v3044 = vadd.f32 %v2581, %v2932
      %v3045 = vadd.f32 %v2582, %v2935
      %v3046 = vadd.f32 %v2583, %v2940
      %v3047 = vadd.f32 %v2584, %v2943
      %v3048 = vadd.f32 %v2585, %v2948
      %v3049 = vadd.f32 %v2586, %v2951
      %v3050 = vadd.f32 %v2587, %v2956
      %v3051 = vadd.f32 %v2588, %v2959
      %v3052 = vadd.f32 %v2589, %v2964
      %v3053 = vadd.f32 %v2590, %v2967
      %v3054 = vadd.f32 %v2591, %v2972
      %v3055 = vadd.f32 %v2592, %v2975
      %v3056 = vadd.f32 %v2593, %v2980
      %v3057 = vadd.f32 %v2594, %v2983
      %v3058 = vadd.f32 %v2595, %v2988
      %v3059 = vadd.f32 %v2596, %v2991
      %v3060 = vadd.f32 %v2597, %v2996
      %v3061 = vadd.f32 %v2598, %v2999
      %v3062 = vadd.f32 %v2599, %v3004
      %v3063 = vadd.f32 %v2600, %v3007
      %v3064 = vadd.f32 %v2601, %v3012
      %v3065 = vadd.f32 %v2602, %v3015
      %v3066 = vadd.f32 %v2603, %v3020
      %v3067 = vadd.f32 %v2604, %v3023
      %v3068 = vadd.f32 %v2605, %v3028
      %v3069 = vadd.f32 %v2606, %v3031
      %v3070 = vld [vmem:[%s192 + $0xa0] sm:$0x7]
      %s3071 = scalar_lea.vmem %s1, 448
      %v3072 = vld [vmem:[%s3071] sm:$0xf]
      %v3073 = vld [vmem:[%s3071 + $0x4] sm:$0xf]
      %v3074 = vld [vmem:[%s3071 + $0x8] sm:$0xf]
      %v3075 = vld [vmem:[%s3071 + $0xc] sm:$0xf]
      %v3076 = vld [vmem:[%s3071 + $0x10] sm:$0xf]
      %v3077 = vld [vmem:[%s3071 + $0x14] sm:$0xf]
      %v3078 = vld [vmem:[%s3071 + $0x18] sm:$0xf]
      %v3079 = vld [vmem:[%s3071 + $0x1c] sm:$0xf]
      %v3080 = vld [vmem:[%s3071 + $0x20] sm:$0xf]
      %v3081 = vld [vmem:[%s3071 + $0x24] sm:$0xf]
      %v3082 = vld [vmem:[%s3071 + $0x28] sm:$0xf]
      %v3083 = vld [vmem:[%s3071 + $0x2c] sm:$0xf]
      %v3084 = vld [vmem:[%s3071 + $0x30] sm:$0xf]
      %v3085 = vld [vmem:[%s3071 + $0x34] sm:$0xf]
      %v3086 = vld [vmem:[%s3071 + $0x38] sm:$0xf]
      %v3087 = vld [vmem:[%s3071 + $0x3c] sm:$0xf]
      %v3089 = vunpack.c.l.b16 %v3070
      %v3090 = vpack.c.b16 %v3089, %v3089
      %vm3091 = vsmask.f32 5376
      %v3093 = vshrl.u32 %v2735, 16
      %v3095 = vrot.slane %v3093, 2
      %v3096 = vshll.u32 %v2735, 16
      %v3098 = vrot.slane %v3096, 3
      %v3099 = vor.u32 %v3095, %v3098
      %v3101 = vshrl.u32 %v2736, 16
      %v3103 = vrot.slane %v3101, 2
      %v3104 = vshll.u32 %v2736, 16
      %v3106 = vrot.slane %v3104, 3
      %v3107 = vor.u32 %v3103, %v3106
      %v3108 = vsel %vm3091, %v3099, %v3107
      %v3110 = vshrl.u32 %v2737, 16
      %v3112 = vrot.slane %v3110, 2
      %v3113 = vshll.u32 %v2737, 16
      %v3115 = vrot.slane %v3113, 3
      %v3116 = vor.u32 %v3112, %v3115
      %v3117 = vsel %vm3091, %v3107, %v3116
      %v3119 = vshrl.u32 %v2738, 16
      %v3121 = vrot.slane %v3119, 2
      %v3122 = vshll.u32 %v2738, 16
      %v3124 = vrot.slane %v3122, 3
      %v3125 = vor.u32 %v3121, %v3124
      %v3126 = vsel %vm3091, %v3116, %v3125
      %v3128 = vshrl.u32 %v2739, 16
      %v3130 = vrot.slane %v3128, 2
      %v3131 = vshll.u32 %v2739, 16
      %v3133 = vrot.slane %v3131, 3
      %v3134 = vor.u32 %v3130, %v3133
      %v3135 = vsel %vm3091, %v3125, %v3134
      %v3137 = vshrl.u32 %v2740, 16
      %v3139 = vrot.slane %v3137, 2
      %v3140 = vshll.u32 %v2740, 16
      %v3142 = vrot.slane %v3140, 3
      %v3143 = vor.u32 %v3139, %v3142
      %v3144 = vsel %vm3091, %v3134, %v3143
      %v3146 = vshrl.u32 %v2741, 16
      %v3148 = vrot.slane %v3146, 2
      %v3149 = vshll.u32 %v2741, 16
      %v3151 = vrot.slane %v3149, 3
      %v3152 = vor.u32 %v3148, %v3151
      %v3153 = vsel %vm3091, %v3143, %v3152
      %v3155 = vshrl.u32 %v2742, 16
      %v3157 = vrot.slane %v3155, 2
      %v3158 = vshll.u32 %v2742, 16
      %v3160 = vrot.slane %v3158, 3
      %v3161 = vor.u32 %v3157, %v3160
      %v3162 = vsel %vm3091, %v3152, %v3161
      %v3164 = vshrl.u32 %v2743, 16
      %v3166 = vrot.slane %v3164, 2
      %v3167 = vshll.u32 %v2743, 16
      %v3169 = vrot.slane %v3167, 3
      %v3170 = vor.u32 %v3166, %v3169
      %v3171 = vsel %vm3091, %v3161, %v3170
      %v3173 = vshrl.u32 %v2744, 16
      %v3175 = vrot.slane %v3173, 2
      %v3176 = vshll.u32 %v2744, 16
      %v3178 = vrot.slane %v3176, 3
      %v3179 = vor.u32 %v3175, %v3178
      %v3180 = vsel %vm3091, %v3170, %v3179
      %v3182 = vshrl.u32 %v2745, 16
      %v3184 = vrot.slane %v3182, 2
      %v3185 = vshll.u32 %v2745, 16
      %v3187 = vrot.slane %v3185, 3
      %v3188 = vor.u32 %v3184, %v3187
      %v3189 = vsel %vm3091, %v3179, %v3188
      %v3191 = vshrl.u32 %v2746, 16
      %v3193 = vrot.slane %v3191, 2
      %v3194 = vshll.u32 %v2746, 16
      %v3196 = vrot.slane %v3194, 3
      %v3197 = vor.u32 %v3193, %v3196
      %v3198 = vsel %vm3091, %v3188, %v3197
      %v3200 = vshrl.u32 %v2747, 16
      %v3202 = vrot.slane %v3200, 2
      %v3203 = vshll.u32 %v2747, 16
      %v3205 = vrot.slane %v3203, 3
      %v3206 = vor.u32 %v3202, %v3205
      %v3207 = vsel %vm3091, %v3197, %v3206
      %v3209 = vshrl.u32 %v2748, 16
      %v3211 = vrot.slane %v3209, 2
      %v3212 = vshll.u32 %v2748, 16
      %v3214 = vrot.slane %v3212, 3
      %v3215 = vor.u32 %v3211, %v3214
      %v3216 = vsel %vm3091, %v3206, %v3215
      %v3218 = vshrl.u32 %v2749, 16
      %v3220 = vrot.slane %v3218, 2
      %v3221 = vshll.u32 %v2749, 16
      %v3223 = vrot.slane %v3221, 3
      %v3224 = vor.u32 %v3220, %v3223
      %v3225 = vsel %vm3091, %v3215, %v3224
      %v3227 = vshrl.u32 %v2750, 16
      %v3229 = vrot.slane %v3227, 2
      %v3230 = vshll.u32 %v2750, 16
      %v3232 = vrot.slane %v3230, 3
      %v3233 = vor.u32 %v3229, %v3232
      %v3234 = vsel %vm3091, %v3224, %v3233
      %v3236 = vshrl.u32 %v2751, 16
      %v3238 = vrot.slane %v3236, 2
      %v3239 = vshll.u32 %v2751, 16
      %v3241 = vrot.slane %v3239, 3
      %v3242 = vor.u32 %v3238, %v3241
      %v3243 = vsel %vm3091, %v3233, %v3242
      %v3245 = vshrl.u32 %v2752, 16
      %v3247 = vrot.slane %v3245, 2
      %v3248 = vshll.u32 %v2752, 16
      %v3250 = vrot.slane %v3248, 3
      %v3251 = vor.u32 %v3247, %v3250
      %v3252 = vsel %vm3091, %v3242, %v3251
      %v3254 = vshrl.u32 %v3090, 16
      %v3256 = vrot.slane %v3254, 2
      %v3257 = vshll.u32 %v3090, 16
      %v3259 = vrot.slane %v3257, 3
      %v3260 = vor.u32 %v3256, %v3259
      %v3261 = vsel %vm3091, %v3251, %v3260
      %v3296 = vunpack.c.l.b16 %v3072
      %v3297 = vunpack.c.l.b16 %v3073
      %v3298 = vunpack.c.l.b16 %v3074
      %v3299 = vunpack.c.l.b16 %v3075
      %v3300 = vunpack.c.l.b16 %v3076
      %v3301 = vunpack.c.l.b16 %v3077
      %v3302 = vunpack.c.l.b16 %v3078
      %v3303 = vunpack.c.l.b16 %v3079
      %v3304 = vunpack.c.l.b16 %v3080
      %v3305 = vunpack.c.l.b16 %v3081
      %v3306 = vunpack.c.l.b16 %v3082
      %v3307 = vunpack.c.l.b16 %v3083
      %v3308 = vunpack.c.l.b16 %v3084
      %v3309 = vunpack.c.l.b16 %v3085
      %v3310 = vunpack.c.l.b16 %v3086
      %v3311 = vunpack.c.l.b16 %v3087
      %v3312 = vpack.c.b16 %v3297, %v3296
      %v3313 = vpack.c.b16 %v3299, %v3298
      %v3314 = vpack.c.b16 %v3301, %v3300
      %v3315 = vpack.c.b16 %v3303, %v3302
      %v3316 = vpack.c.b16 %v3305, %v3304
      %v3317 = vpack.c.b16 %v3307, %v3306
      %v3318 = vpack.c.b16 %v3309, %v3308
      %v3319 = vpack.c.b16 %v3311, %v3310
      %3328 = vmatprep.subr.bf16.mxu0 0
      %3329 = vmatpush1.bf16.msra.mxu0 %v3312
      %3330 = vmatprep.subr.bf16.mxu0 0
      %3331 = vmatpush1.bf16.msra.mxu0 %v3313
      %3332 = vmatprep.subr.bf16.mxu0 0
      %3333 = vmatpush1.bf16.msra.mxu0 %v3314
      %3334 = vmatprep.subr.bf16.mxu0 0
      %3335 = vmatpush1.bf16.msra.mxu0 %v3315
      %3336 = vmatprep.subr.bf16.mxu0 0
      %3337 = vmatpush1.bf16.msra.mxu0 %v3316
      %3338 = vmatprep.subr.bf16.mxu0 0
      %3339 = vmatpush1.bf16.msra.mxu0 %v3317
      %3340 = vmatprep.subr.bf16.mxu0 0
      %3341 = vmatpush1.bf16.msra.mxu0 %v3318
      %3342 = vmatprep.subr.bf16.mxu0 0
      %3343 = vmatpush1.bf16.msra.mxu0 %v3319
      %3344 = vmatprep.subr.bf16.mxu0 0
      %3345 = vmatpush1.bf16.msra.mxu0 0
      %3346 = vmatprep.subr.bf16.mxu0 0
      %3347 = vmatpush1.bf16.msra.mxu0 0
      %3348 = vmatprep.subr.bf16.mxu0 0
      %3349 = vmatpush1.bf16.msra.mxu0 0
      %3350 = vmatprep.subr.bf16.mxu0 0
      %3351 = vmatpush1.bf16.msra.mxu0 0
      %3352 = vmatprep.subr.bf16.mxu0 0
      %3353 = vmatpush1.bf16.msra.mxu0 0
      %3354 = vmatprep.subr.bf16.mxu0 0
      %3355 = vmatpush1.bf16.msra.mxu0 0
      %3356 = vmatprep.subr.bf16.mxu0 0
      %3357 = vmatpush1.bf16.msra.mxu0 0
      %3358 = vmatprep.subr.bf16.mxu0 0
      %3359 = vmatpush1.bf16.msra.mxu0 0
      %3360 = vmatprep.mubr.bf16.mxu0 0
      %3361 = vmatmul.mubr.bf16.gmra.mrb[0].mxu0 %v3108
      %v3362 = vpop.f32.mrb[0].mxu0
      %v3363 = vadd.f32 0.0, %v3362
      %v3364 = vpop.f32.mrb[0].mxu0
      %v3365 = vpop.f32.mrb[0].mxu0
      %v3366 = vadd.f32 0.0, %v3365
      %v3367 = vpop.f32.mrb[0].mxu0
      %3368 = vmatprep.mubr.bf16.mxu0 0
      %3369 = vmatmul.mubr.bf16.gmra.mrb[0].mxu0 %v3117
      %v3370 = vpop.f32.mrb[0].mxu0
      %v3371 = vadd.f32 0.0, %v3370
      %v3372 = vpop.f32.mrb[0].mxu0
      %v3373 = vpop.f32.mrb[0].mxu0
      %v3374 = vadd.f32 0.0, %v3373
      %v3375 = vpop.f32.mrb[0].mxu0
      %3376 = vmatprep.mubr.bf16.mxu0 0
      %3377 = vmatmul.mubr.bf16.gmra.mrb[0].mxu0 %v3126
      %v3378 = vpop.f32.mrb[0].mxu0
      %v3379 = vadd.f32 0.0, %v3378
      %v3380 = vpop.f32.mrb[0].mxu0
      %v3381 = vpop.f32.mrb[0].mxu0
      %v3382 = vadd.f32 0.0, %v3381
      %v3383 = vpop.f32.mrb[0].mxu0
      %3384 = vmatprep.mubr.bf16.mxu0 0
      %3385 = vmatmul.mubr.bf16.gmra.mrb[0].mxu0 %v3135
      %v3386 = vpop.f32.mrb[0].mxu0
      %v3387 = vadd.f32 0.0, %v3386
      %v3388 = vpop.f32.mrb[0].mxu0
      %v3389 = vpop.f32.mrb[0].mxu0
      %v3390 = vadd.f32 0.0, %v3389
      %v3391 = vpop.f32.mrb[0].mxu0
      %3392 = vmatprep.mubr.bf16.mxu0 0
      %3393 = vmatmul.mubr.bf16.gmra.mrb[0].mxu0 %v3144
      %v3394 = vpop.f32.mrb[0].mxu0
      %v3395 = vadd.f32 0.0, %v3394
      %v3396 = vpop.f32.mrb[0].mxu0
      %v3397 = vpop.f32.mrb[0].mxu0
      %v3398 = vadd.f32 0.0, %v3397
      %v3399 = vpop.f32.mrb[0].mxu0
      %3400 = vmatprep.mubr.bf16.mxu0 0
      %3401 = vmatmul.mubr.bf16.gmra.mrb[0].mxu0 %v3153
      %v3402 = vpop.f32.mrb[0].mxu0
      %v3403 = vadd.f32 0.0, %v3402
      %v3404 = vpop.f32.mrb[0].mxu0
      %v3405 = vpop.f32.mrb[0].mxu0
      %v3406 = vadd.f32 0.0, %v3405
      %v3407 = vpop.f32.mrb[0].mxu0
      %3408 = vmatprep.mubr.bf16.mxu0 0
      %3409 = vmatmul.mubr.bf16.gmra.mrb[0].mxu0 %v3162
      %v3410 = vpop.f32.mrb[0].mxu0
      %v3411 = vadd.f32 0.0, %v3410
      %v3412 = vpop.f32.mrb[0].mxu0
      %v3413 = vpop.f32.mrb[0].mxu0
      %v3414 = vadd.f32 0.0, %v3413
      %v3415 = vpop.f32.mrb[0].mxu0
      %3416 = vmatprep.mubr.bf16.mxu0 0
      %3417 = vmatmul.mubr.bf16.gmra.mrb[0].mxu0 %v3171
      %v3418 = vpop.f32.mrb[0].mxu0
      %v3419 = vadd.f32 0.0, %v3418
      %v3420 = vpop.f32.mrb[0].mxu0
      %v3421 = vpop.f32.mrb[0].mxu0
      %v3422 = vadd.f32 0.0, %v3421
      %v3423 = vpop.f32.mrb[0].mxu0
      %3424 = vmatprep.mubr.bf16.mxu0 0
      %3425 = vmatmul.mubr.bf16.gmra.mrb[0].mxu0 %v3180
      %v3426 = vpop.f32.mrb[0].mxu0
      %v3427 = vadd.f32 0.0, %v3426
      %v3428 = vpop.f32.mrb[0].mxu0
      %v3429 = vpop.f32.mrb[0].mxu0
      %v3430 = vadd.f32 0.0, %v3429
      %v3431 = vpop.f32.mrb[0].mxu0
      %3432 = vmatprep.mubr.bf16.mxu0 0
      %3433 = vmatmul.mubr.bf16.gmra.mrb[0].mxu0 %v3189
      %v3434 = vpop.f32.mrb[0].mxu0
      %v3435 = vadd.f32 0.0, %v3434
      %v3436 = vpop.f32.mrb[0].mxu0
      %v3437 = vpop.f32.mrb[0].mxu0
      %v3438 = vadd.f32 0.0, %v3437
      %v3439 = vpop.f32.mrb[0].mxu0
      %3440 = vmatprep.mubr.bf16.mxu0 0
      %3441 = vmatmul.mubr.bf16.gmra.mrb[0].mxu0 %v3198
      %v3442 = vpop.f32.mrb[0].mxu0
      %v3443 = vadd.f32 0.0, %v3442
      %v3444 = vpop.f32.mrb[0].mxu0
      %v3445 = vpop.f32.mrb[0].mxu0
      %v3446 = vadd.f32 0.0, %v3445
      %v3447 = vpop.f32.mrb[0].mxu0
      %3448 = vmatprep.mubr.bf16.mxu0 0
      %3449 = vmatmul.mubr.bf16.gmra.mrb[0].mxu0 %v3207
      %v3450 = vpop.f32.mrb[0].mxu0
      %v3451 = vadd.f32 0.0, %v3450
      %v3452 = vpop.f32.mrb[0].mxu0
      %v3453 = vpop.f32.mrb[0].mxu0
      %v3454 = vadd.f32 0.0, %v3453
      %v3455 = vpop.f32.mrb[0].mxu0
      %3456 = vmatprep.mubr.bf16.mxu0 0
      %3457 = vmatmul.mubr.bf16.gmra.mrb[0].mxu0 %v3216
      %v3458 = vpop.f32.mrb[0].mxu0
      %v3459 = vadd.f32 0.0, %v3458
      %v3460 = vpop.f32.mrb[0].mxu0
      %v3461 = vpop.f32.mrb[0].mxu0
      %v3462 = vadd.f32 0.0, %v3461
      %v3463 = vpop.f32.mrb[0].mxu0
      %3464 = vmatprep.mubr.bf16.mxu0 0
      %3465 = vmatmul.mubr.bf16.gmra.mrb[0].mxu0 %v3225
      %v3466 = vpop.f32.mrb[0].mxu0
      %v3467 = vadd.f32 0.0, %v3466
      %v3468 = vpop.f32.mrb[0].mxu0
      %v3469 = vpop.f32.mrb[0].mxu0
      %v3470 = vadd.f32 0.0, %v3469
      %v3471 = vpop.f32.mrb[0].mxu0
      %3472 = vmatprep.mubr.bf16.mxu0 0
      %3473 = vmatmul.mubr.bf16.gmra.mrb[0].mxu0 %v3234
      %v3474 = vpop.f32.mrb[0].mxu0
      %v3475 = vadd.f32 0.0, %v3474
      %v3476 = vpop.f32.mrb[0].mxu0
      %v3477 = vpop.f32.mrb[0].mxu0
      %v3478 = vadd.f32 0.0, %v3477
      %v3479 = vpop.f32.mrb[0].mxu0
      %3480 = vmatprep.mubr.bf16.mxu0 0
      %3481 = vmatmul.mubr.bf16.gmra.mrb[0].mxu0 %v3243
      %v3482 = vpop.f32.mrb[0].mxu0
      %v3483 = vadd.f32 0.0, %v3482
      %v3484 = vpop.f32.mrb[0].mxu0
      %v3485 = vpop.f32.mrb[0].mxu0
      %v3486 = vadd.f32 0.0, %v3485
      %v3487 = vpop.f32.mrb[0].mxu0
      %3488 = vmatprep.mubr.bf16.mxu0 0
      %3489 = vmatmul.mubr.bf16.gmra.mrb[0].mxu0 %v3252
      %v3490 = vpop.f32.mrb[0].mxu0
      %v3491 = vadd.f32 0.0, %v3490
      %v3492 = vpop.f32.mrb[0].mxu0
      %v3493 = vpop.f32.mrb[0].mxu0
      %v3494 = vadd.f32 0.0, %v3493
      %v3495 = vpop.f32.mrb[0].mxu0
      %3496 = vmatprep.mubr.bf16.mxu0 0
      %3497 = vmatmul.mubr.bf16.gmra.mrb[0].mxu0 %v3261
      %v3498 = vpop.f32.mrb[0].mxu0
      %v3499 = vadd.f32 0.0, %v3498
      %v3500 = vpop.f32.mrb[0].mxu0
      %v3501 = vpop.f32.mrb[0].mxu0
      %v3502 = vadd.f32 0.0, %v3501
      %v3503 = vpop.f32.mrb[0].mxu0
      %3504 = vdwg.mxu0
      %v3505 = vadd.f32 %v3034, %v3363
      %v3506 = vadd.f32 %v3035, %v3366
      %v3507 = vadd.f32 %v3036, %v3371
      %v3508 = vadd.f32 %v3037, %v3374
      %v3509 = vadd.f32 %v3038, %v3379
      %v3510 = vadd.f32 %v3039, %v3382
      %v3511 = vadd.f32 %v3040, %v3387
      %v3512 = vadd.f32 %v3041, %v3390
      %v3513 = vadd.f32 %v3042, %v3395
      %v3514 = vadd.f32 %v3043, %v3398
      %v3515 = vadd.f32 %v3044, %v3403
      %v3516 = vadd.f32 %v3045, %v3406
      %v3517 = vadd.f32 %v3046, %v3411
      %v3518 = vadd.f32 %v3047, %v3414
      %v3519 = vadd.f32 %v3048, %v3419
      %v3520 = vadd.f32 %v3049, %v3422
      %v3521 = vadd.f32 %v3050, %v3427
      %v3522 = vadd.f32 %v3051, %v3430
      %v3523 = vadd.f32 %v3052, %v3435
      %v3524 = vadd.f32 %v3053, %v3438
      %v3525 = vadd.f32 %v3054, %v3443
      %v3526 = vadd.f32 %v3055, %v3446
      %v3527 = vadd.f32 %v3056, %v3451
      %v3528 = vadd.f32 %v3057, %v3454
      %v3529 = vadd.f32 %v3058, %v3459
      %v3530 = vadd.f32 %v3059, %v3462
      %v3531 = vadd.f32 %v3060, %v3467
      %v3532 = vadd.f32 %v3061, %v3470
      %v3533 = vadd.f32 %v3062, %v3475
      %v3534 = vadd.f32 %v3063, %v3478
      %v3535 = vadd.f32 %v3064, %v3483
      %v3536 = vadd.f32 %v3065, %v3486
      %v3537 = vadd.f32 %v3066, %v3491
      %v3538 = vadd.f32 %v3067, %v3494
      %v3539 = vadd.f32 %v3068, %v3499
      %v3540 = vadd.f32 %v3069, %v3502
      %v3541 = vld [vmem:[%s192 + $0x10] sm:$0x8]
      %s3542 = scalar_lea.vmem %s1, 512
      %v3543 = vld [vmem:[%s3542] sm:$0xf]
      %v3544 = vld [vmem:[%s3542 + $0x4] sm:$0xf]
      %v3545 = vld [vmem:[%s3542 + $0x8] sm:$0xf]
      %v3546 = vld [vmem:[%s3542 + $0xc] sm:$0xf]
      %v3547 = vld [vmem:[%s3542 + $0x10] sm:$0xf]
      %v3548 = vld [vmem:[%s3542 + $0x14] sm:$0xf]
      %v3549 = vld [vmem:[%s3542 + $0x18] sm:$0xf]
      %v3550 = vld [vmem:[%s3542 + $0x1c] sm:$0xf]
      %v3551 = vld [vmem:[%s3542 + $0x20] sm:$0xf]
      %v3552 = vld [vmem:[%s3542 + $0x24] sm:$0xf]
      %v3553 = vld [vmem:[%s3542 + $0x28] sm:$0xf]
      %v3554 = vld [vmem:[%s3542 + $0x2c] sm:$0xf]
      %v3555 = vld [vmem:[%s3542 + $0x30] sm:$0xf]
      %v3556 = vld [vmem:[%s3542 + $0x34] sm:$0xf]
      %v3557 = vld [vmem:[%s3542 + $0x38] sm:$0xf]
      %v3558 = vld [vmem:[%s3542 + $0x3c] sm:$0xf]
      %v3560 = vunpack.c.l.b16 %v3541
      %v3561 = vpack.c.b16 %v2699, %v3560
      %vm3562 = vcmask 1044480
      %v3563 = vrot.slane %v3561, 3
      %v3564 = vrot.slane %v2736, 3
      %v3565 = vsel %vm3562, %v3563, %v3564
      %v3566 = vrot.slane %v2737, 3
      %v3567 = vsel %vm3562, %v3564, %v3566
      %v3568 = vrot.slane %v2738, 3
      %v3569 = vsel %vm3562, %v3566, %v3568
      %v3570 = vrot.slane %v2739, 3
      %v3571 = vsel %vm3562, %v3568, %v3570
      %v3572 = vrot.slane %v2740, 3
      %v3573 = vsel %vm3562, %v3570, %v3572
      %v3574 = vrot.slane %v2741, 3
      %v3575 = vsel %vm3562, %v3572, %v3574
      %v3576 = vrot.slane %v2742, 3
      %v3577 = vsel %vm3562, %v3574, %v3576
      %v3578 = vrot.slane %v2743, 3
      %v3579 = vsel %vm3562, %v3576, %v3578
      %v3580 = vrot.slane %v2744, 3
      %v3581 = vsel %vm3562, %v3578, %v3580
      %v3582 = vrot.slane %v2745, 3
      %v3583 = vsel %vm3562, %v3580, %v3582
      %v3584 = vrot.slane %v2746, 3
      %v3585 = vsel %vm3562, %v3582, %v3584
      %v3586 = vrot.slane %v2747, 3
      %v3587 = vsel %vm3562, %v3584, %v3586
      %v3588 = vrot.slane %v2748, 3
      %v3589 = vsel %vm3562, %v3586, %v3588
      %v3590 = vrot.slane %v2749, 3
      %v3591 = vsel %vm3562, %v3588, %v3590
      %v3592 = vrot.slane %v2750, 3
      %v3593 = vsel %vm3562, %v3590, %v3592
      %v3594 = vrot.slane %v2751, 3
      %v3595 = vsel %vm3562, %v3592, %v3594
      %v3596 = vrot.slane %v2752, 3
      %v3597 = vsel %vm3562, %v3594, %v3596
      %v3598 = vrot.slane %v3090, 3
      %v3599 = vsel %vm3562, %v3596, %v3598
      %v3634 = vunpack.c.l.b16 %v3543
      %v3635 = vunpack.c.l.b16 %v3544
      %v3636 = vunpack.c.l.b16 %v3545
      %v3637 = vunpack.c.l.b16 %v3546
      %v3638 = vunpack.c.l.b16 %v3547
      %v3639 = vunpack.c.l.b16 %v3548
      %v3640 = vunpack.c.l.b16 %v3549
      %v3641 = vunpack.c.l.b16 %v3550
      %v3642 = vunpack.c.l.b16 %v3551
      %v3643 = vunpack.c.l.b16 %v3552
      %v3644 = vunpack.c.l.b16 %v3553
      %v3645 = vunpack.c.l.b16 %v3554
      %v3646 = vunpack.c.l.b16 %v3555
      %v3647 = vunpack.c.l.b16 %v3556
      %v3648 = vunpack.c.l.b16 %v3557
      %v3649 = vunpack.c.l.b16 %v3558
      %v3650 = vpack.c.b16 %v3635, %v3634
      %v3651 = vpack.c.b16 %v3637, %v3636
      %v3652 = vpack.c.b16 %v3639, %v3638
      %v3653 = vpack.c.b16 %v3641, %v3640
      %v3654 = vpack.c.b16 %v3643, %v3642
      %v3655 = vpack.c.b16 %v3645, %v3644
      %v3656 = vpack.c.b16 %v3647, %v3646
      %v3657 = vpack.c.b16 %v3649, %v3648
      %3666 = vmatprep.subr.bf16.mxu0 0
      %3667 = vmatpush1.bf16.msra.mxu0 %v3650
      %3668 = vmatprep.subr.bf16.mxu0 0
      %3669 = vmatpush1.bf16.msra.mxu0 %v3651
      %3670 = vmatprep.subr.bf16.mxu0 0
      %3671 = vmatpush1.bf16.msra.mxu0 %v3652
      %3672 = vmatprep.subr.bf16.mxu0 0
      %3673 = vmatpush1.bf16.msra.mxu0 %v3653
      %3674 = vmatprep.subr.bf16.mxu0 0
      %3675 = vmatpush1.bf16.msra.mxu0 %v3654
      %3676 = vmatprep.subr.bf16.mxu0 0
      %3677 = vmatpush1.bf16.msra.mxu0 %v3655
      %3678 = vmatprep.subr.bf16.mxu0 0
      %3679 = vmatpush1.bf16.msra.mxu0 %v3656
      %3680 = vmatprep.subr.bf16.mxu0 0
      %3681 = vmatpush1.bf16.msra.mxu0 %v3657
      %3682 = vmatprep.subr.bf16.mxu0 0
      %3683 = vmatpush1.bf16.msra.mxu0 0
      %3684 = vmatprep.subr.bf16.mxu0 0
      %3685 = vmatpush1.bf16.msra.mxu0 0
      %3686 = vmatprep.subr.bf16.mxu0 0
      %3687 = vmatpush1.bf16.msra.mxu0 0
      %3688 = vmatprep.subr.bf16.mxu0 0
      %3689 = vmatpush1.bf16.msra.mxu0 0
      %3690 = vmatprep.subr.bf16.mxu0 0
      %3691 = vmatpush1.bf16.msra.mxu0 0
      %3692 = vmatprep.subr.bf16.mxu0 0
      %3693 = vmatpush1.bf16.msra.mxu0 0
      %3694 = vmatprep.subr.bf16.mxu0 0
      %3695 = vmatpush1.bf16.msra.mxu0 0
      %3696 = vmatprep.subr.bf16.mxu0 0
      %3697 = vmatpush1.bf16.msra.mxu0 0
      %3698 = vmatprep.mubr.bf16.mxu0 0
      %3699 = vmatmul.mubr.bf16.gmra.mrb[0].mxu0 %v3565
      %v3700 = vpop.f32.mrb[0].mxu0
      %v3701 = vadd.f32 0.0, %v3700
      %v3702 = vpop.f32.mrb[0].mxu0
      %v3703 = vpop.f32.mrb[0].mxu0
      %v3704 = vadd.f32 0.0, %v3703
      %v3705 = vpop.f32.mrb[0].mxu0
      %3706 = vmatprep.mubr.bf16.mxu0 0
      %3707 = vmatmul.mubr.bf16.gmra.mrb[0].mxu0 %v3567
      %v3708 = vpop.f32.mrb[0].mxu0
      %v3709 = vadd.f32 0.0, %v3708
      %v3710 = vpop.f32.mrb[0].mxu0
      %v3711 = vpop.f32.mrb[0].mxu0
      %v3712 = vadd.f32 0.0, %v3711
      %v3713 = vpop.f32.mrb[0].mxu0
      %3714 = vmatprep.mubr.bf16.mxu0 0
      %3715 = vmatmul.mubr.bf16.gmra.mrb[0].mxu0 %v3569
      %v3716 = vpop.f32.mrb[0].mxu0
      %v3717 = vadd.f32 0.0, %v3716
      %v3718 = vpop.f32.mrb[0].mxu0
      %v3719 = vpop.f32.mrb[0].mxu0
      %v3720 = vadd.f32 0.0, %v3719
      %v3721 = vpop.f32.mrb[0].mxu0
      %3722 = vmatprep.mubr.bf16.mxu0 0
      %3723 = vmatmul.mubr.bf16.gmra.mrb[0].mxu0 %v3571
      %v3724 = vpop.f32.mrb[0].mxu0
      %v3725 = vadd.f32 0.0, %v3724
      %v3726 = vpop.f32.mrb[0].mxu0
      %v3727 = vpop.f32.mrb[0].mxu0
      %v3728 = vadd.f32 0.0, %v3727
      %v3729 = vpop.f32.mrb[0].mxu0
      %3730 = vmatprep.mubr.bf16.mxu0 0
      %3731 = vmatmul.mubr.bf16.gmra.mrb[0].mxu0 %v3573
      %v3732 = vpop.f32.mrb[0].mxu0
      %v3733 = vadd.f32 0.0, %v3732
      %v3734 = vpop.f32.mrb[0].mxu0
      %v3735 = vpop.f32.mrb[0].mxu0
      %v3736 = vadd.f32 0.0, %v3735
      %v3737 = vpop.f32.mrb[0].mxu0
      %3738 = vmatprep.mubr.bf16.mxu0 0
      %3739 = vmatmul.mubr.bf16.gmra.mrb[0].mxu0 %v3575
      %v3740 = vpop.f32.mrb[0].mxu0
      %v3741 = vadd.f32 0.0, %v3740
      %v3742 = vpop.f32.mrb[0].mxu0
      %v3743 = vpop.f32.mrb[0].mxu0
      %v3744 = vadd.f32 0.0, %v3743
      %v3745 = vpop.f32.mrb[0].mxu0
      %3746 = vmatprep.mubr.bf16.mxu0 0
      %3747 = vmatmul.mubr.bf16.gmra.mrb[0].mxu0 %v3577
      %v3748 = vpop.f32.mrb[0].mxu0
      %v3749 = vadd.f32 0.0, %v3748
      %v3750 = vpop.f32.mrb[0].mxu0
      %v3751 = vpop.f32.mrb[0].mxu0
      %v3752 = vadd.f32 0.0, %v3751
      %v3753 = vpop.f32.mrb[0].mxu0
      %3754 = vmatprep.mubr.bf16.mxu0 0
      %3755 = vmatmul.mubr.bf16.gmra.mrb[0].mxu0 %v3579
      %v3756 = vpop.f32.mrb[0].mxu0
      %v3757 = vadd.f32 0.0, %v3756
      %v3758 = vpop.f32.mrb[0].mxu0
      %v3759 = vpop.f32.mrb[0].mxu0
      %v3760 = vadd.f32 0.0, %v3759
      %v3761 = vpop.f32.mrb[0].mxu0
      %3762 = vmatprep.mubr.bf16.mxu0 0
      %3763 = vmatmul.mubr.bf16.gmra.mrb[0].mxu0 %v3581
      %v3764 = vpop.f32.mrb[0].mxu0
      %v3765 = vadd.f32 0.0, %v3764
      %v3766 = vpop.f32.mrb[0].mxu0
      %v3767 = vpop.f32.mrb[0].mxu0
      %v3768 = vadd.f32 0.0, %v3767
      %v3769 = vpop.f32.mrb[0].mxu0
      %3770 = vmatprep.mubr.bf16.mxu0 0
      %3771 = vmatmul.mubr.bf16.gmra.mrb[0].mxu0 %v3583
      %v3772 = vpop.f32.mrb[0].mxu0
      %v3773 = vadd.f32 0.0, %v3772
      %v3774 = vpop.f32.mrb[0].mxu0
      %v3775 = vpop.f32.mrb[0].mxu0
      %v3776 = vadd.f32 0.0, %v3775
      %v3777 = vpop.f32.mrb[0].mxu0
      %3778 = vmatprep.mubr.bf16.mxu0 0
      %3779 = vmatmul.mubr.bf16.gmra.mrb[0].mxu0 %v3585
      %v3780 = vpop.f32.mrb[0].mxu0
      %v3781 = vadd.f32 0.0, %v3780
      %v3782 = vpop.f32.mrb[0].mxu0
      %v3783 = vpop.f32.mrb[0].mxu0
      %v3784 = vadd.f32 0.0, %v3783
      %v3785 = vpop.f32.mrb[0].mxu0
      %3786 = vmatprep.mubr.bf16.mxu0 0
      %3787 = vmatmul.mubr.bf16.gmra.mrb[0].mxu0 %v3587
      %v3788 = vpop.f32.mrb[0].mxu0
      %v3789 = vadd.f32 0.0, %v3788
      %v3790 = vpop.f32.mrb[0].mxu0
      %v3791 = vpop.f32.mrb[0].mxu0
      %v3792 = vadd.f32 0.0, %v3791
      %v3793 = vpop.f32.mrb[0].mxu0
      %3794 = vmatprep.mubr.bf16.mxu0 0
      %3795 = vmatmul.mubr.bf16.gmra.mrb[0].mxu0 %v3589
      %v3796 = vpop.f32.mrb[0].mxu0
      %v3797 = vadd.f32 0.0, %v3796
      %v3798 = vpop.f32.mrb[0].mxu0
      %v3799 = vpop.f32.mrb[0].mxu0
      %v3800 = vadd.f32 0.0, %v3799
      %v3801 = vpop.f32.mrb[0].mxu0
      %3802 = vmatprep.mubr.bf16.mxu0 0
      %3803 = vmatmul.mubr.bf16.gmra.mrb[0].mxu0 %v3591
      %v3804 = vpop.f32.mrb[0].mxu0
      %v3805 = vadd.f32 0.0, %v3804
      %v3806 = vpop.f32.mrb[0].mxu0
      %v3807 = vpop.f32.mrb[0].mxu0
      %v3808 = vadd.f32 0.0, %v3807
      %v3809 = vpop.f32.mrb[0].mxu0
      %3810 = vmatprep.mubr.bf16.mxu0 0
      %3811 = vmatmul.mubr.bf16.gmra.mrb[0].mxu0 %v3593
      %v3812 = vpop.f32.mrb[0].mxu0
      %v3813 = vadd.f32 0.0, %v3812
      %v3814 = vpop.f32.mrb[0].mxu0
      %v3815 = vpop.f32.mrb[0].mxu0
      %v3816 = vadd.f32 0.0, %v3815
      %v3817 = vpop.f32.mrb[0].mxu0
      %3818 = vmatprep.mubr.bf16.mxu0 0
      %3819 = vmatmul.mubr.bf16.gmra.mrb[0].mxu0 %v3595
      %v3820 = vpop.f32.mrb[0].mxu0
      %v3821 = vadd.f32 0.0, %v3820
      %v3822 = vpop.f32.mrb[0].mxu0
      %v3823 = vpop.f32.mrb[0].mxu0
      %v3824 = vadd.f32 0.0, %v3823
      %v3825 = vpop.f32.mrb[0].mxu0
      %3826 = vmatprep.mubr.bf16.mxu0 0
      %3827 = vmatmul.mubr.bf16.gmra.mrb[0].mxu0 %v3597
      %v3828 = vpop.f32.mrb[0].mxu0
      %v3829 = vadd.f32 0.0, %v3828
      %v3830 = vpop.f32.mrb[0].mxu0
      %v3831 = vpop.f32.mrb[0].mxu0
      %v3832 = vadd.f32 0.0, %v3831
      %v3833 = vpop.f32.mrb[0].mxu0
      %3834 = vmatprep.mubr.bf16.mxu0 0
      %3835 = vmatmul.mubr.bf16.gmra.mrb[0].mxu0 %v3599
      %v3836 = vpop.f32.mrb[0].mxu0
      %v3837 = vadd.f32 0.0, %v3836
      %v3838 = vpop.f32.mrb[0].mxu0
      %v3839 = vpop.f32.mrb[0].mxu0
      %v3840 = vadd.f32 0.0, %v3839
      %v3841 = vpop.f32.mrb[0].mxu0
      %3842 = vdwg.mxu0
      %v3843 = vadd.f32 %v3505, %v3701
      %v3844 = vadd.f32 %v3506, %v3704
      %v3845 = vadd.f32 %v3507, %v3709
      %v3846 = vadd.f32 %v3508, %v3712
      %v3847 = vadd.f32 %v3509, %v3717
      %v3848 = vadd.f32 %v3510, %v3720
      %v3849 = vadd.f32 %v3511, %v3725
      %v3850 = vadd.f32 %v3512, %v3728
      %v3851 = vadd.f32 %v3513, %v3733
      %v3852 = vadd.f32 %v3514, %v3736
      %v3853 = vadd.f32 %v3515, %v3741
      %v3854 = vadd.f32 %v3516, %v3744
      %v3855 = vadd.f32 %v3517, %v3749
      %v3856 = vadd.f32 %v3518, %v3752
      %v3857 = vadd.f32 %v3519, %v3757
      %v3858 = vadd.f32 %v3520, %v3760
      %v3859 = vadd.f32 %v3521, %v3765
      %v3860 = vadd.f32 %v3522, %v3768
      %v3861 = vadd.f32 %v3523, %v3773
      %v3862 = vadd.f32 %v3524, %v3776
      %v3863 = vadd.f32 %v3525, %v3781
      %v3864 = vadd.f32 %v3526, %v3784
      %v3865 = vadd.f32 %v3527, %v3789
      %v3866 = vadd.f32 %v3528, %v3792
      %v3867 = vadd.f32 %v3529, %v3797
      %v3868 = vadd.f32 %v3530, %v3800
      %v3869 = vadd.f32 %v3531, %v3805
      %v3870 = vadd.f32 %v3532, %v3808
      %v3871 = vadd.f32 %v3533, %v3813
      %v3872 = vadd.f32 %v3534, %v3816
      %v3873 = vadd.f32 %v3535, %v3821
      %v3874 = vadd.f32 %v3536, %v3824
      %v3875 = vadd.f32 %v3537, %v3829
      %v3876 = vadd.f32 %v3538, %v3832
      %v3877 = vadd.f32 %v3539, %v3837
      %v3878 = vadd.f32 %v3540, %v3840
      %v3879 = vld [vmem:[%s2] sm:$0x1]
      %v3881 = vlaneseq
      %v3882 = vshrl.u32 %v3881, 7
      %v3883 = vsub.s32 0, %v3882
      %v3884 = vrot.slane %v3879, %v3883
      %v3886 = vmul.f32 %v3843, %v3884
      %v3887 = vmul.f32 %v3844, %v3884
      %v3888 = vmul.f32 %v3845, %v3884
      %v3889 = vmul.f32 %v3846, %v3884
      %v3890 = vmul.f32 %v3847, %v3884
      %v3891 = vmul.f32 %v3848, %v3884
      %v3892 = vmul.f32 %v3849, %v3884
      %v3893 = vmul.f32 %v3850, %v3884
      %v3894 = vmul.f32 %v3851, %v3884
      %v3895 = vmul.f32 %v3852, %v3884
      %v3896 = vmul.f32 %v3853, %v3884
      %v3897 = vmul.f32 %v3854, %v3884
      %v3898 = vmul.f32 %v3855, %v3884
      %v3899 = vmul.f32 %v3856, %v3884
      %v3900 = vmul.f32 %v3857, %v3884
      %v3901 = vmul.f32 %v3858, %v3884
      %v3902 = vmul.f32 %v3859, %v3884
      %v3903 = vmul.f32 %v3860, %v3884
      %v3904 = vmul.f32 %v3861, %v3884
      %v3905 = vmul.f32 %v3862, %v3884
      %v3906 = vmul.f32 %v3863, %v3884
      %v3907 = vmul.f32 %v3864, %v3884
      %v3908 = vmul.f32 %v3865, %v3884
      %v3909 = vmul.f32 %v3866, %v3884
      %v3910 = vmul.f32 %v3867, %v3884
      %v3911 = vmul.f32 %v3868, %v3884
      %v3912 = vmul.f32 %v3869, %v3884
      %v3913 = vmul.f32 %v3870, %v3884
      %v3914 = vmul.f32 %v3871, %v3884
      %v3915 = vmul.f32 %v3872, %v3884
      %v3916 = vmul.f32 %v3873, %v3884
      %v3917 = vmul.f32 %v3874, %v3884
      %v3918 = vmul.f32 %v3875, %v3884
      %v3919 = vmul.f32 %v3876, %v3884
      %v3920 = vmul.f32 %v3877, %v3884
      %v3921 = vmul.f32 %v3878, %v3884
      %v3922 = vld [vmem:[%s3] sm:$0x1]
      %v3924 = vlaneseq
      %v3925 = vshrl.u32 %v3924, 7
      %v3926 = vsub.s32 0, %v3925
      %v3927 = vrot.slane %v3922, %v3926
      %v3929 = vadd.f32 %v3886, %v3927
      %v3930 = vadd.f32 %v3887, %v3927
      %v3931 = vadd.f32 %v3888, %v3927
      %v3932 = vadd.f32 %v3889, %v3927
      %v3933 = vadd.f32 %v3890, %v3927
      %v3934 = vadd.f32 %v3891, %v3927
      %v3935 = vadd.f32 %v3892, %v3927
      %v3936 = vadd.f32 %v3893, %v3927
      %v3937 = vadd.f32 %v3894, %v3927
      %v3938 = vadd.f32 %v3895, %v3927
      %v3939 = vadd.f32 %v3896, %v3927
      %v3940 = vadd.f32 %v3897, %v3927
      %v3941 = vadd.f32 %v3898, %v3927
      %v3942 = vadd.f32 %v3899, %v3927
      %v3943 = vadd.f32 %v3900, %v3927
      %v3944 = vadd.f32 %v3901, %v3927
      %v3945 = vadd.f32 %v3902, %v3927
      %v3946 = vadd.f32 %v3903, %v3927
      %v3947 = vadd.f32 %v3904, %v3927
      %v3948 = vadd.f32 %v3905, %v3927
      %v3949 = vadd.f32 %v3906, %v3927
      %v3950 = vadd.f32 %v3907, %v3927
      %v3951 = vadd.f32 %v3908, %v3927
      %v3952 = vadd.f32 %v3909, %v3927
      %v3953 = vadd.f32 %v3910, %v3927
      %v3954 = vadd.f32 %v3911, %v3927
      %v3955 = vadd.f32 %v3912, %v3927
      %v3956 = vadd.f32 %v3913, %v3927
      %v3957 = vadd.f32 %v3914, %v3927
      %v3958 = vadd.f32 %v3915, %v3927
      %v3959 = vadd.f32 %v3916, %v3927
      %v3960 = vadd.f32 %v3917, %v3927
      %v3961 = vadd.f32 %v3918, %v3927
      %v3962 = vadd.f32 %v3919, %v3927
      %v3963 = vadd.f32 %v3920, %v3927
      %v3964 = vadd.f32 %v3921, %v3927
      %v3965 = vmax.f32 %v3929, 0.0
      %v3966 = vmax.f32 %v3930, 0.0
      %v3967 = vmax.f32 %v3931, 0.0
      %v3968 = vmax.f32 %v3932, 0.0
      %v3969 = vmax.f32 %v3933, 0.0
      %v3970 = vmax.f32 %v3934, 0.0
      %v3971 = vmax.f32 %v3935, 0.0
      %v3972 = vmax.f32 %v3936, 0.0
      %v3973 = vmax.f32 %v3937, 0.0
      %v3974 = vmax.f32 %v3938, 0.0
      %v3975 = vmax.f32 %v3939, 0.0
      %v3976 = vmax.f32 %v3940, 0.0
      %v3977 = vmax.f32 %v3941, 0.0
      %v3978 = vmax.f32 %v3942, 0.0
      %v3979 = vmax.f32 %v3943, 0.0
      %v3980 = vmax.f32 %v3944, 0.0
      %v3981 = vmax.f32 %v3945, 0.0
      %v3982 = vmax.f32 %v3946, 0.0
      %v3983 = vmax.f32 %v3947, 0.0
      %v3984 = vmax.f32 %v3948, 0.0
      %v3985 = vmax.f32 %v3949, 0.0
      %v3986 = vmax.f32 %v3950, 0.0
      %v3987 = vmax.f32 %v3951, 0.0
      %v3988 = vmax.f32 %v3952, 0.0
      %v3989 = vmax.f32 %v3953, 0.0
      %v3990 = vmax.f32 %v3954, 0.0
      %v3991 = vmax.f32 %v3955, 0.0
      %v3992 = vmax.f32 %v3956, 0.0
      %v3993 = vmax.f32 %v3957, 0.0
      %v3994 = vmax.f32 %v3958, 0.0
      %v3995 = vmax.f32 %v3959, 0.0
      %v3996 = vmax.f32 %v3960, 0.0
      %v3997 = vmax.f32 %v3961, 0.0
      %v3998 = vmax.f32 %v3962, 0.0
      %v3999 = vmax.f32 %v3963, 0.0
      %v4000 = vmax.f32 %v3964, 0.0
      %v4001 = vpack.c.bf16 %v3966, %v3965
      %v4002 = vpack.c.bf16 %v3968, %v3967
      %v4003 = vpack.c.bf16 %v3970, %v3969
      %v4004 = vpack.c.bf16 %v3972, %v3971
      %v4005 = vpack.c.bf16 %v3974, %v3973
      %v4006 = vpack.c.bf16 %v3976, %v3975
      %v4007 = vpack.c.bf16 %v3978, %v3977
      %v4008 = vpack.c.bf16 %v3980, %v3979
      %v4009 = vpack.c.bf16 %v3982, %v3981
      %v4010 = vpack.c.bf16 %v3984, %v3983
      %v4011 = vpack.c.bf16 %v3986, %v3985
      %v4012 = vpack.c.bf16 %v3988, %v3987
      %v4013 = vpack.c.bf16 %v3990, %v3989
      %v4014 = vpack.c.bf16 %v3992, %v3991
      %v4015 = vpack.c.bf16 %v3994, %v3993
      %v4016 = vpack.c.bf16 %v3996, %v3995
      %v4017 = vpack.c.bf16 %v3998, %v3997
      %v4018 = vpack.c.bf16 %v4000, %v3999
      %v4037 = vunpack.c.l.b16 %v4001
      %v4038 = vunpack.c.h.b16 %v4001
      %v4039 = vunpack.c.l.b16 %v4002
      %v4040 = vunpack.c.h.b16 %v4002
      %v4041 = vunpack.c.l.b16 %v4003
      %v4042 = vunpack.c.h.b16 %v4003
      %v4043 = vunpack.c.l.b16 %v4004
      %v4044 = vunpack.c.h.b16 %v4004
      %v4045 = vunpack.c.l.b16 %v4005
      %v4046 = vunpack.c.h.b16 %v4005
      %v4047 = vunpack.c.l.b16 %v4006
      %v4048 = vunpack.c.h.b16 %v4006
      %v4049 = vunpack.c.l.b16 %v4007
      %v4050 = vunpack.c.h.b16 %v4007
      %v4051 = vunpack.c.l.b16 %v4008
      %v4052 = vunpack.c.h.b16 %v4008
      %v4053 = vunpack.c.l.b16 %v4009
      %v4054 = vunpack.c.h.b16 %v4009
      %v4055 = vunpack.c.l.b16 %v4010
      %v4056 = vunpack.c.h.b16 %v4010
      %v4057 = vunpack.c.l.b16 %v4011
      %v4058 = vunpack.c.h.b16 %v4011
      %v4059 = vunpack.c.l.b16 %v4012
      %v4060 = vunpack.c.h.b16 %v4012
      %v4061 = vunpack.c.l.b16 %v4013
      %v4062 = vunpack.c.h.b16 %v4013
      %v4063 = vunpack.c.l.b16 %v4014
      %v4064 = vunpack.c.h.b16 %v4014
      %v4065 = vunpack.c.l.b16 %v4015
      %v4066 = vunpack.c.h.b16 %v4015
      %v4067 = vunpack.c.l.b16 %v4016
      %v4068 = vunpack.c.h.b16 %v4016
      %v4069 = vunpack.c.l.b16 %v4017
      %v4070 = vunpack.c.h.b16 %v4017
      %v4071 = vunpack.c.l.b16 %v4018
      %v4072 = vunpack.c.h.b16 %v4018
      %v4073 = vpack.c.b16 %v4037, %v4037
      %v4074 = vpack.c.b16 %v4038, %v4038
      %v4075 = vpack.c.b16 %v4039, %v4039
      %v4076 = vpack.c.b16 %v4040, %v4040
      %v4077 = vpack.c.b16 %v4041, %v4041
      %v4078 = vpack.c.b16 %v4042, %v4042
      %v4079 = vpack.c.b16 %v4043, %v4043
      %v4080 = vpack.c.b16 %v4044, %v4044
      %v4081 = vpack.c.b16 %v4045, %v4045
      %v4082 = vpack.c.b16 %v4046, %v4046
      %v4083 = vpack.c.b16 %v4047, %v4047
      %v4084 = vpack.c.b16 %v4048, %v4048
      %v4085 = vpack.c.b16 %v4049, %v4049
      %v4086 = vpack.c.b16 %v4050, %v4050
      %v4087 = vpack.c.b16 %v4051, %v4051
      %v4088 = vpack.c.b16 %v4052, %v4052
      %v4089 = vpack.c.b16 %v4053, %v4053
      %v4090 = vpack.c.b16 %v4054, %v4054
      %v4091 = vpack.c.b16 %v4055, %v4055
      %v4092 = vpack.c.b16 %v4056, %v4056
      %v4093 = vpack.c.b16 %v4057, %v4057
      %v4094 = vpack.c.b16 %v4058, %v4058
      %v4095 = vpack.c.b16 %v4059, %v4059
      %v4096 = vpack.c.b16 %v4060, %v4060
      %v4097 = vpack.c.b16 %v4061, %v4061
      %v4098 = vpack.c.b16 %v4062, %v4062
      %v4099 = vpack.c.b16 %v4063, %v4063
      %v4100 = vpack.c.b16 %v4064, %v4064
      %v4101 = vpack.c.b16 %v4065, %v4065
      %v4102 = vpack.c.b16 %v4066, %v4066
      %v4103 = vpack.c.b16 %v4067, %v4067
      %v4104 = vpack.c.b16 %v4068, %v4068
      %v4105 = vpack.c.b16 %v4069, %v4069
      %v4106 = vpack.c.b16 %v4070, %v4070
      %v4107 = vpack.c.b16 %v4071, %v4071
      %v4108 = vpack.c.b16 %v4072, %v4072
      %4145 = vst [vmem:[%s197] sm:$0xf] %v4073
      %4146 = vst [vmem:[%s197 + $0x4] sm:$0xf] %v4074
      %4147 = vst [vmem:[%s197 + $0x8] sm:$0xf] %v4075
      %4148 = vst [vmem:[%s197 + $0xc] sm:$0xf] %v4076
      %4149 = vst [vmem:[%s197 + $0x10] sm:$0xf] %v4077
      %4150 = vst [vmem:[%s197 + $0x14] sm:$0xf] %v4078
      %4151 = vst [vmem:[%s197 + $0x18] sm:$0xf] %v4079
      %4152 = vst [vmem:[%s197 + $0x1c] sm:$0xf] %v4080
      %4153 = vst [vmem:[%s197 + $0x20] sm:$0xf] %v4081
      %4154 = vst [vmem:[%s197 + $0x24] sm:$0xf] %v4082
      %4155 = vst [vmem:[%s197 + $0x28] sm:$0xf] %v4083
      %4156 = vst [vmem:[%s197 + $0x2c] sm:$0xf] %v4084
      %4157 = vst [vmem:[%s197 + $0x30] sm:$0xf] %v4085
      %4158 = vst [vmem:[%s197 + $0x34] sm:$0xf] %v4086
      %4159 = vst [vmem:[%s197 + $0x38] sm:$0xf] %v4087
      %4160 = vst [vmem:[%s197 + $0x3c] sm:$0xf] %v4088
      %4161 = vst [vmem:[%s197 + $0x40] sm:$0xf] %v4089
      %4162 = vst [vmem:[%s197 + $0x44] sm:$0xf] %v4090
      %4163 = vst [vmem:[%s197 + $0x48] sm:$0xf] %v4091
      %4164 = vst [vmem:[%s197 + $0x4c] sm:$0xf] %v4092
      %4165 = vst [vmem:[%s197 + $0x50] sm:$0xf] %v4093
      %4166 = vst [vmem:[%s197 + $0x54] sm:$0xf] %v4094
      %4167 = vst [vmem:[%s197 + $0x58] sm:$0xf] %v4095
      %4168 = vst [vmem:[%s197 + $0x5c] sm:$0xf] %v4096
      %4169 = vst [vmem:[%s197 + $0x60] sm:$0xf] %v4097
      %4170 = vst [vmem:[%s197 + $0x64] sm:$0xf] %v4098
      %4171 = vst [vmem:[%s197 + $0x68] sm:$0xf] %v4099
      %4172 = vst [vmem:[%s197 + $0x6c] sm:$0xf] %v4100
      %4173 = vst [vmem:[%s197 + $0x70] sm:$0xf] %v4101
      %4174 = vst [vmem:[%s197 + $0x74] sm:$0xf] %v4102
      %4175 = vst [vmem:[%s197 + $0x78] sm:$0xf] %v4103
      %4176 = vst [vmem:[%s197 + $0x7c] sm:$0xf] %v4104
      %4177 = vst [vmem:[%s197 + $0x80] sm:$0xf] %v4105
      %4178 = vst [vmem:[%s197 + $0x84] sm:$0xf] %v4106
      %4179 = vst [vmem:[%s197 + $0x88] sm:$0xf] %v4107
      %4180 = vst [vmem:[%s197 + $0x8c] sm:$0xf] %v4108
      %p4181 = scmp.lt.s32.totalorder %s15, 1
      %s4182 = scalar_select %p4181, %s15, 1
      %s4183 = smul.addr %s4182, 36
      %s4184 = smul.addr %s4183, 4
      %s4185 = scalar_lea.vmem %s4, %s4184
      // Predicated region
      $region37: #{residual_block_forward.2} parent=35 // pred_check
        %p4186 = pneg %p122
      $region38: #{residual_block_forward.2} parent=35 // pred_check_branch
        %4188 = sbr.rel (%p4186) target = $region40
      $region39: #{residual_block_forward.2} parent=35 // pred_region
        _
      $region40: #{residual_block_forward.2} parent=35 // pred_fallthru
        _
    $region36: #{residual_block_forward.2} parent=5 // pred_fallthru
      _
    %p4189 = scmp.le.s32.totalorder 2, %s10
    // Predicated region
    $region41: #{residual_block_forward.2} parent=5 // pred_check
      %p4190 = pneg %p4189
    $region42: #{residual_block_forward.2} parent=5 // pred_check_branch
      %4192 = sbr.rel (%p4190) target = $region44
    $region43: #{residual_block_forward.2} parent=5 // pred_region
      %s4193 = ssub.s32 %s10, 2
      // Predicated region
      $region45: #{residual_block_forward.2} parent=43 // pred_check
        %p4194 = pneg %p128
      $region46: #{residual_block_forward.2} parent=43 // pred_check_branch
        %4196 = sbr.rel (%p4194) target = $region48
      $region47: #{residual_block_forward.2} parent=43 // pred_region
        %p4197 = scmp.lt.s32.totalorder %s16, 1
        %s4198 = scalar_select %p4197, %s16, 1
        %s4199 = smul.addr %s4198, 36
        %s4200 = smul.addr %s4199, 4
        %s4201 = scalar_lea.vmem %s4, %s4200
      $region48: #{residual_block_forward.2} parent=43 // pred_fallthru
        _
    $region44: #{residual_block_forward.2} parent=5 // pred_fallthru
      _
  $region6: #{residual_block_forward.2} parent=0 // loop_footer
    %s14 = sadd.s32 1, %s10
  $region7: #{residual_block_forward.2} parent=0 // loop_footer_branch
    %9 = sbr.rel target = $region3
  $region8: #{residual_block_forward.2} parent=0 // loop_exit
    _

</llo_original>
